<compile_context>
chip_gen: v7x
topology: tpu7x:2x2x1
jax: 0.10.0
libtpu: 0.0.40
codegen_flags: <defaults>
</compile_context>

<pallas_src>
import functools
import math

import jax
import jax.numpy as jnp
from jax.experimental import pallas as pl
from jax.experimental.pallas import tpu as pltpu


# ------------------------------------------------------------------
# Small math helpers (used both in-kernel and in the pure-JAX reference)
# ------------------------------------------------------------------
def _layernorm(x, g, b, eps):
    mu = jnp.mean(x, axis=-1, keepdims=True)
    d = x - mu
    var = jnp.mean(d * d, axis=-1, keepdims=True)
    return d * jax.lax.rsqrt(var + eps) * g + b


def _gelu_tanh(x):
    c = 0.7978845608028654  # sqrt(2/pi)
    return 0.5 * x * (1.0 + jnp.tanh(c * (x + 0.044715 * x * x * x)))


# ------------------------------------------------------------------
# Fused encoder kernel: grid = (num_layers,), hidden state resident in VMEM.
# ------------------------------------------------------------------
def _encoder_kernel(word_ref, other_ref, maskb_ref, embg_ref, embb_ref,
                    wqkv_ref, bqkv_ref, wo_ref, bo_ref, ln1g_ref, ln1b_ref,
                    wi_ref, bi_ref, wout_ref, bout_ref, ln2g_ref, ln2b_ref,
                    out_ref,
                    h_scr, qkv_scr, ctx_scr,
                    *, batch, seq, num_heads, head_dim, head_pad, eps):
    l = pl.program_id(0)
    f32 = jnp.float32
    hp = num_heads * head_pad  # padded "hidden" width of one of Q/K/V

    # ---- embedding sum + LayerNorm (only on the first grid step) ----
    @pl.when(l == 0)
    def _embed():
        x = word_ref[...].astype(f32)                         # (M, H)
        oth = other_ref[...]                                  # (S, H) f32
        x = x + jnp.concatenate([oth] * batch, axis=0)        # broadcast over batch
        h_scr[...] = _layernorm(x, embg_ref[...], embb_ref[...], eps)

    h = h_scr[...]                                            # (M, H) f32
    hb = h.astype(jnp.bfloat16)

    # ---- fused QKV projection (padded head layout), result kept in VMEM ----
    qkv = jnp.dot(hb, wqkv_ref[...], preferred_element_type=f32) + bqkv_ref[...]
    qkv_scr[...] = qkv.astype(jnp.bfloat16)                   # (M, 3*nh*dp)

    # ---- multi-head attention: all heads/batches inside this kernel ----
    scale = 1.0 / math.sqrt(head_dim)
    for b in range(batch):
        bias = maskb_ref[pl.ds(b, 1), :]                      # (1, S) additive mask
        r0 = b * seq
        for hh in range(num_heads):
            q = qkv_scr[pl.ds(r0, seq), pl.ds(hh * head_pad, head_pad)]
            k = qkv_scr[pl.ds(r0, seq), pl.ds(hp + hh * head_pad, head_pad)]
            v = qkv_scr[pl.ds(r0, seq), pl.ds(2 * hp + hh * head_pad, head_pad)]
            # Q @ K^T without an explicit transpose ("NT" dot_general)
            s = jax.lax.dot_general(q, k, (((1,), (1,)), ((), ())),
                                    preferred_element_type=f32)   # (S, S)
            s = s * scale + bias
            m = jnp.max(s, axis=-1, keepdims=True)
            p = jnp.exp(s - m)
            denom = jnp.sum(p, axis=-1, keepdims=True)
            p = p / jnp.maximum(denom, 1e-20)                 # guarded softmax
            ctx = jnp.dot(p.astype(jnp.bfloat16), v,
                          preferred_element_type=f32)         # (S, dp)
            ctx_scr[pl.ds(r0, seq), pl.ds(hh * head_pad, head_pad)] = (
                ctx.astype(jnp.bfloat16))

    # ---- attention output projection + residual + LayerNorm ----
    attn = jnp.dot(ctx_scr[...], wo_ref[...],
                   preferred_element_type=f32) + bo_ref[...]
    h1 = _layernorm(attn + h, ln1g_ref[...], ln1b_ref[...], eps)

    # ---- FFN: GELU fused after the first matmul, residual+LN after the second
    ff = jnp.dot(h1.astype(jnp.bfloat16), wi_ref[...],
                 preferred_element_type=f32) + bi_ref[...]
    ff = _gelu_tanh(ff)
    out2 = jnp.dot(ff.astype(jnp.bfloat16), wout_ref[...],
                   preferred_element_type=f32) + bout_ref[...]
    h2 = _layernorm(out2 + h1, ln2g_ref[...], ln2b_ref[...], eps)

    h_scr[...] = h2
    out_ref[...] = h2.astype(out_ref.dtype)


# ------------------------------------------------------------------
# BlockSpec helpers
# ------------------------------------------------------------------
def _rep_spec(shape):
    """Same block for every layer step (stays resident, no re-DMA)."""
    n = len(shape)
    return pl.BlockSpec(shape, lambda l, _n=n: (0,) * _n)


def _layer_spec(shape):
    """Leading (squeezed) layer axis indexed by the grid step."""
    n = len(shape)
    return pl.BlockSpec((None,) + shape, lambda l, _n=n: (l,) + (0,) * _n)


# ------------------------------------------------------------------
# TextEncoder forward: BERT encoder -> last_hidden_state[:, 0, :] -> dropout
# ------------------------------------------------------------------
def text_encoder_forward(packed, input_ids, attention_mask, *, num_heads):
    B, S = input_ids.shape
    H = packed["emb_ln_g"].shape[-1]
    dh = H // num_heads
    dp = ((dh + 127) // 128) * 128          # per-head width padded to 128 lanes
    L = packed["wqkv"].shape[0]
    I = packed["wi"].shape[-1]
    M = B * S
    Nqkv = 3 * num_heads * dp
    Hp = num_heads * dp
    assert S % 16 == 0 and H % 128 == 0 and I % 128 == 0

    # tiny XLA prologue: embedding gather + position/type sum + mask bias
    word = jnp.take(packed["word_emb"], input_ids.reshape(-1), axis=0)     # (M,H) bf16
    other = (packed["pos_emb"][:S].astype(jnp.float32)
             + packed["type_emb"][0].astype(jnp.float32))                   # (S,H) f32
    maskb = (1.0 - attention_mask.astype(jnp.float32)) * -1e9               # (B,S) f32

    kern = functools.partial(_encoder_kernel, batch=B, seq=S,
                             num_heads=num_heads, head_dim=dh, head_pad=dp,
                             eps=1e-12)

    in_specs = [
        _rep_spec((M, H)),            # word embeddings
        _rep_spec((S, H)),            # pos + type embeddings
        _rep_spec((B, S)),            # attention-mask bias
        _rep_spec((1, H)),            # emb LN gamma
        _rep_spec((1, H)),            # emb LN beta
        _layer_spec((H, Nqkv)),       # wqkv (padded head layout)
        _layer_spec((1, Nqkv)),       # bqkv
        _layer_spec((Hp, H)),         # wo (padded rows)
        _layer_spec((1, H)),          # bo
        _layer_spec((1, H)),          # ln1 gamma
        _layer_spec((1, H)),          # ln1 beta
        _layer_spec((H, I)),          # wi
        _layer_spec((1, I)),          # bi
        _layer_spec((I, H)),          # wout
        _layer_spec((1, H)),          # bout
        _layer_spec((1, H)),          # ln2 gamma
        _layer_spec((1, H)),          # ln2 beta
    ]

    h_out = pl.pallas_call(
        kern,
        out_shape=jax.ShapeDtypeStruct((M, H), jnp.float32),
        grid=(L,),
        in_specs=in_specs,
        out_specs=pl.BlockSpec((M, H), lambda l: (0, 0)),
        scratch_shapes=[
            pltpu.VMEM((M, H), jnp.float32),        # resident hidden state
            pltpu.VMEM((M, Nqkv), jnp.bfloat16),    # qkv activations
            pltpu.VMEM((M, Hp), jnp.bfloat16),      # per-head context
        ],
        compiler_params=pltpu.CompilerParams(
            dimension_semantics=("arbitrary",)),    # layers are sequential
    )(word, other, maskb,
      packed["emb_ln_g"], packed["emb_ln_b"],
      packed["wqkv"], packed["bqkv"], packed["wo"], packed["bo"],
      packed["ln1_g"], packed["ln1_b"],
      packed["wi"], packed["bi"], packed["wout"], packed["bout"],
      packed["ln2_g"], packed["ln2_b"])

    cls = h_out.reshape(B, S, H)[:, 0, :]            # (B, H) f32
    # Dropout(p=0.3): identity in eval mode.
    return cls


# ------------------------------------------------------------------
# Synthetic BERT-style parameters (standard layout) + one-time repacking
# ------------------------------------------------------------------
def make_params(key, *, vocab=128, max_pos=64, type_vocab=2, hidden=256,
                num_layers=2, intermediate=1024):
    def nrm(k, shape, std=0.02, dtype=jnp.bfloat16):
        return (std * jax.random.normal(k, shape, jnp.float32)).astype(dtype)

    keys = iter(jax.random.split(key, 8 + 8 * num_layers))
    params = {
        "word_emb": nrm(next(keys), (vocab, hidden)),
        "pos_emb": nrm(next(keys), (max_pos, hidden)),
        "type_emb": nrm(next(keys), (type_vocab, hidden)),
        "emb_ln_g": jnp.ones((hidden,), jnp.float32),
        "emb_ln_b": jnp.zeros((hidden,), jnp.float32),
        "layers": [],
    }
    for _ in range(num_layers):
        params["layers"].append({
            "wqkv": nrm(next(keys), (hidden, 3 * hidden)),
            "bqkv": jnp.zeros((3 * hidden,), jnp.float32),
            "wo": nrm(next(keys), (hidden, hidden)),
            "bo": jnp.zeros((hidden,), jnp.float32),
            "ln1_g": jnp.ones((hidden,), jnp.float32),
            "ln1_b": jnp.zeros((hidden,), jnp.float32),
            "wi": nrm(next(keys), (hidden, intermediate)),
            "bi": jnp.zeros((intermediate,), jnp.float32),
            "wout": nrm(next(keys), (intermediate, hidden)),
            "bout": jnp.zeros((hidden,), jnp.float32),
            "ln2_g": jnp.ones((hidden,), jnp.float32),
            "ln2_b": jnp.zeros((hidden,), jnp.float32),
        })
    return params


def pack_params(params, *, num_heads):
    """One-time weight repack: stack layers + pad each head's Q/K/V/ctx slot
    to 128 lanes so every in-kernel slice is lane-aligned (zero padding is a
    mathematical no-op)."""
    H = params["emb_ln_g"].shape[0]
    dh = H // num_heads
    dp = ((dh + 127) // 128) * 128
    f32, bf16 = jnp.float32, jnp.bfloat16

    def pad_qkv_w(w):  # (H, 3H) -> (H, 3*nh*dp)
        parts = []
        for s in range(3):
            blk = w[:, s * H:(s + 1) * H].reshape(H, num_heads, dh)
            blk = jnp.pad(blk, ((0, 0), (0, 0), (0, dp - dh)))
            parts.append(blk.reshape(H, num_heads * dp))
        return jnp.concatenate(parts, axis=1)

    def pad_qkv_b(b):  # (3H,) -> (1, 3*nh*dp)
        parts = []
        for s in range(3):
            blk = b[s * H:(s + 1) * H].reshape(num_heads, dh)
            blk = jnp.pad(blk, ((0, 0), (0, dp - dh)))
            parts.append(blk.reshape(num_heads * dp))
        return jnp.concatenate(parts).reshape(1, -1)

    def pad_wo(w):     # (H, H) -> (nh*dp, H), zero rows in padded slots
        w = w.reshape(num_heads, dh, H)
        w = jnp.pad(w, ((0, 0), (0, dp - dh), (0, 0)))
        return w.reshape(num_heads * dp, H)

    lyrs = params["layers"]
    packed = {
        "word_emb": params["word_emb"].astype(bf16),
        "pos_emb": params["pos_emb"],
        "type_emb": params["type_emb"],
        "emb_ln_g": params["emb_ln_g"].reshape(1, H).astype(f32),
        "emb_ln_b": params["emb_ln_b"].reshape(1, H).astype(f32),
        "wqkv": jnp.stack([pad_qkv_w(l["wqkv"].astype(bf16)) for l in lyrs]),
        "bqkv": jnp.stack([pad_qkv_b(l["bqkv"].astype(f32)) for l in lyrs]),
        "wo": jnp.stack([pad_wo(l["wo"].astype(bf16)) for l in lyrs]),
        "bo": jnp.stack([l["bo"].astype(f32).reshape(1, H) for l in lyrs]),
        "ln1_g": jnp.stack([l["ln1_g"].astype(f32).reshape(1, H) for l in lyrs]),
        "ln1_b": jnp.stack([l["ln1_b"].astype(f32).reshape(1, H) for l in lyrs]),
        "wi": jnp.stack([l["wi"].astype(bf16) for l in lyrs]),
        "bi": jnp.stack([l["bi"].astype(f32).reshape(1, -1) for l in lyrs]),
        "wout": jnp.stack([l["wout"].astype(bf16) for l in lyrs]),
        "bout": jnp.stack([l["bout"].astype(f32).reshape(1, H) for l in lyrs]),
        "ln2_g": jnp.stack([l["ln2_g"].astype(f32).reshape(1, H) for l in lyrs]),
        "ln2_b": jnp.stack([l["ln2_b"].astype(f32).reshape(1, H) for l in lyrs]),
    }
    return packed


# ------------------------------------------------------------------
# Pure-JAX reference (f32) for correctness check
# ------------------------------------------------------------------
def reference_forward(params, input_ids, attention_mask, *, num_heads):
    f32 = jnp.float32
    B, S = input_ids.shape
    H = params["emb_ln_g"].shape[0]
    dh = H // num_heads
    eps = 1e-12

    word = params["word_emb"].astype(f32)[input_ids]                 # (B,S,H)
    pos = params["pos_emb"].astype(f32)[:S][None]
    typ = params["type_emb"].astype(f32)[0][None, None]
    h = _layernorm(word + pos + typ, params["emb_ln_g"], params["emb_ln_b"], eps)
    bias = ((1.0 - attention_mask.astype(f32)) * -1e9)[:, None, None, :]

    for lyr in params["layers"]:
        qkv = h @ lyr["wqkv"].astype(f32) + lyr["bqkv"]
        q, k, v = jnp.split(qkv, 3, axis=-1)
        def heads(x):
            return x.reshape(B, S, num_heads, dh).transpose(0, 2, 1, 3)
        q, k, v = heads(q), heads(k), heads(v)
        s = jnp.einsum("bhqd,bhkd->bhqk", q, k) / math.sqrt(dh) + bias
        p = jax.nn.softmax(s, axis=-1)
        ctx = jnp.einsum("bhqk,bhkd->bhqd", p, v)
        ctx = ctx.transpose(0, 2, 1, 3).reshape(B, S, H)
        h = _layernorm(ctx @ lyr["wo"].astype(f32) + lyr["bo"] + h,
                       lyr["ln1_g"], lyr["ln1_b"], eps)
        ff = _gelu_tanh(h @ lyr["wi"].astype(f32) + lyr["bi"])
        h = _layernorm(ff @ lyr["wout"].astype(f32) + lyr["bout"] + h,
                       lyr["ln2_g"], lyr["ln2_b"], eps)
    return h[:, 0, :]


if __name__ == "__main__":
    key = jax.random.PRNGKey(0)
    pkey, ikey = jax.random.split(key)
    cfg = dict(vocab=128, max_pos=64, type_vocab=2, hidden=256,
               num_layers=2, intermediate=1024)
    num_heads = 4
    params = make_params(pkey, **cfg)
    packed = pack_params(params, num_heads=num_heads)

    B, S = 2, 16
    input_ids = jax.random.randint(ikey, (B, S), 0, cfg["vocab"], dtype=jnp.int32)
    attention_mask = jnp.ones((B, S), jnp.int32).at[1, 12:].set(0)

    fwd = jax.jit(functools.partial(text_encoder_forward, num_heads=num_heads))
    out = jax.block_until_ready(fwd(packed, input_ids, attention_mask))
    assert out.shape == (B, cfg["hidden"]), out.shape
    assert bool(jnp.isfinite(out).all())

    ref = reference_forward(params, input_ids, attention_mask, num_heads=num_heads)
    assert float(jnp.max(jnp.abs(out - ref))) < 0.2
    print("KERNEL_OK")
</pallas_src>

<mosaic_0001>
module attributes {stable_mosaic.version = 11 : i64} {
  func.func @_encoder_kernel(%arg0: i32, %arg1: memref<32x256xbf16, #tpu.memory_space<vmem>>, %arg2: memref<16x256xf32, #tpu.memory_space<vmem>>, %arg3: memref<2x16xf32, #tpu.memory_space<vmem>>, %arg4: memref<1x256xf32, #tpu.memory_space<vmem>>, %arg5: memref<1x256xf32, #tpu.memory_space<vmem>>, %arg6: memref<1x256x1536xbf16, #tpu.memory_space<vmem>>, %arg7: memref<1x1x1536xf32, #tpu.memory_space<vmem>>, %arg8: memref<1x512x256xbf16, #tpu.memory_space<vmem>>, %arg9: memref<1x1x256xf32, #tpu.memory_space<vmem>>, %arg10: memref<1x1x256xf32, #tpu.memory_space<vmem>>, %arg11: memref<1x1x256xf32, #tpu.memory_space<vmem>>, %arg12: memref<1x256x1024xbf16, #tpu.memory_space<vmem>>, %arg13: memref<1x1x1024xf32, #tpu.memory_space<vmem>>, %arg14: memref<1x1024x256xbf16, #tpu.memory_space<vmem>>, %arg15: memref<1x1x256xf32, #tpu.memory_space<vmem>>, %arg16: memref<1x1x256xf32, #tpu.memory_space<vmem>>, %arg17: memref<1x1x256xf32, #tpu.memory_space<vmem>>, %arg18: memref<32x256xf32, #tpu.memory_space<vmem>>, %arg19: memref<32x256xf32, #tpu.memory_space<vmem>>, %arg20: memref<32x1536xbf16, #tpu.memory_space<vmem>>, %arg21: memref<32x512xbf16, #tpu.memory_space<vmem>>) attributes {dimension_semantics = [#tpu.dimension_semantics<arbitrary>], iteration_bounds = array<i64: 2>, scalar_prefetch = 0 : i64, scratch_operands = 3 : i64, tpu.core_type = #tpu.core_type<tc>, window_params = [{pipeline_mode = #tpu.pipeline_mode<synchronous>, transform_indices = @transform_0, window_bounds = array<i64: 32, 256>}, {pipeline_mode = #tpu.pipeline_mode<synchronous>, transform_indices = @transform_1, window_bounds = array<i64: 16, 256>}, {pipeline_mode = #tpu.pipeline_mode<synchronous>, transform_indices = @transform_2, window_bounds = array<i64: 2, 16>}, {pipeline_mode = #tpu.pipeline_mode<synchronous>, transform_indices = @transform_3, window_bounds = array<i64: 1, 256>}, {pipeline_mode = #tpu.pipeline_mode<synchronous>, transform_indices = @transform_4, window_bounds = array<i64: 1, 256>}, {transform_indices = @transform_5, window_bounds = array<i64: 1, 256, 1536>}, {transform_indices = @transform_6, window_bounds = array<i64: 1, 1, 1536>}, {transform_indices = @transform_7, window_bounds = array<i64: 1, 512, 256>}, {transform_indices = @transform_8, window_bounds = array<i64: 1, 1, 256>}, {transform_indices = @transform_9, window_bounds = array<i64: 1, 1, 256>}, {transform_indices = @transform_10, window_bounds = array<i64: 1, 1, 256>}, {transform_indices = @transform_11, window_bounds = array<i64: 1, 256, 1024>}, {transform_indices = @transform_12, window_bounds = array<i64: 1, 1, 1024>}, {transform_indices = @transform_13, window_bounds = array<i64: 1, 1024, 256>}, {transform_indices = @transform_14, window_bounds = array<i64: 1, 1, 256>}, {transform_indices = @transform_15, window_bounds = array<i64: 1, 1, 256>}, {transform_indices = @transform_16, window_bounds = array<i64: 1, 1, 256>}, {pipeline_mode = #tpu.pipeline_mode<synchronous>, transform_indices = @transform_17, window_bounds = array<i64: 32, 256>}]} {
    %c0_i32 = arith.constant 0 : i32
    %0 = arith.cmpi eq, %arg0, %c0_i32 : i32
    %1 = arith.extui %0 : i1 to i32
    %c0_i32_0 = arith.constant 0 : i32
    %2 = arith.cmpi ne, %1, %c0_i32_0 : i32
    scf.if %2 {
      %c0_166 = arith.constant 0 : index
      %c0_167 = arith.constant 0 : index
      %289 = vector.load %arg1[%c0_166, %c0_167] : memref<32x256xbf16, #tpu.memory_space<vmem>>, vector<32x256xbf16>
      %290 = arith.extf %289 : vector<32x256xbf16> to vector<32x256xf32>
      %c0_168 = arith.constant 0 : index
      %c0_169 = arith.constant 0 : index
      %291 = vector.load %arg2[%c0_168, %c0_169] : memref<16x256xf32, #tpu.memory_space<vmem>>, vector<16x256xf32>
      %292 = tpu.concatenate %291, %291 in 0 : vector<16x256xf32>, vector<16x256xf32> -> vector<32x256xf32>
      %293 = arith.addf %290, %292 : vector<32x256xf32>
      %c0_170 = arith.constant 0 : index
      %c0_171 = arith.constant 0 : index
      %294 = vector.load %arg4[%c0_170, %c0_171] : memref<1x256xf32, #tpu.memory_space<vmem>>, vector<1x256xf32>
      %c0_172 = arith.constant 0 : index
      %c0_173 = arith.constant 0 : index
      %295 = vector.load %arg5[%c0_172, %c0_173] : memref<1x256xf32, #tpu.memory_space<vmem>>, vector<1x256xf32>
      %cst_174 = arith.constant dense<0.000000e+00> : vector<32xf32>
      %296 = vector.multi_reduction <add>, %293, %cst_174 [1] : vector<32x256xf32> to vector<32xf32>
      %297 = vector.shape_cast %296 : vector<32xf32> to vector<32x1xf32>
      %cst_175 = arith.constant 2.560000e+02 : f32
      %298 = vector.broadcast %cst_175 : f32 to vector<32x1xf32>
      %299 = arith.divf %297, %298 : vector<32x1xf32>
      %300 = vector.broadcast %299 : vector<32x1xf32> to vector<32x256xf32>
      %301 = arith.subf %293, %300 : vector<32x256xf32>
      %302 = arith.mulf %301, %301 : vector<32x256xf32>
      %cst_176 = arith.constant dense<0.000000e+00> : vector<32xf32>
      %303 = vector.multi_reduction <add>, %302, %cst_176 [1] : vector<32x256xf32> to vector<32xf32>
      %304 = vector.shape_cast %303 : vector<32xf32> to vector<32x1xf32>
      %cst_177 = arith.constant 2.560000e+02 : f32
      %305 = vector.broadcast %cst_177 : f32 to vector<32x1xf32>
      %306 = arith.divf %304, %305 : vector<32x1xf32>
      %cst_178 = arith.constant 9.99999996E-13 : f32
      %307 = vector.broadcast %cst_178 : f32 to vector<32x1xf32>
      %308 = arith.addf %306, %307 : vector<32x1xf32>
      %309 = math.rsqrt %308 : vector<32x1xf32>
      %310 = vector.broadcast %309 : vector<32x1xf32> to vector<32x256xf32>
      %311 = arith.mulf %301, %310 : vector<32x256xf32>
      %312 = vector.broadcast %294 : vector<1x256xf32> to vector<32x256xf32>
      %313 = arith.mulf %311, %312 : vector<32x256xf32>
      %314 = vector.broadcast %295 : vector<1x256xf32> to vector<32x256xf32>
      %315 = arith.addf %313, %314 : vector<32x256xf32>
      %c0_179 = arith.constant 0 : index
      %c0_180 = arith.constant 0 : index
      %316 = vector.load %arg19[%c0_179, %c0_180] : memref<32x256xf32, #tpu.memory_space<vmem>>, vector<32x256xf32>
      tpu.vector_store %arg19[%c0_179, %c0_180], %315 {strides = array<i32>} : memref<32x256xf32, #tpu.memory_space<vmem>>, vector<32x256xf32>,
    } else {
    }
    %c0 = arith.constant 0 : index
    %c0_1 = arith.constant 0 : index
    %3 = vector.load %arg19[%c0, %c0_1] : memref<32x256xf32, #tpu.memory_space<vmem>>, vector<32x256xf32>
    %4 = arith.truncf %3 : vector<32x256xf32> to vector<32x256xbf16>
    %c0_2 = arith.constant 0 : index
    %c0_3 = arith.constant 0 : index
    %c0_4 = arith.constant 0 : index
    %5 = vector.load %arg6[%c0_2, %c0_3, %c0_4] : memref<1x256x1536xbf16, #tpu.memory_space<vmem>>, vector<1x256x1536xbf16>
    %6 = vector.shape_cast %5 : vector<1x256x1536xbf16> to vector<256x1536xbf16>
    %cst = arith.constant dense<0.000000e+00> : vector<32x1536xf32>
    %7 = tpu.matmul %4, %6, %cst {dimension_numbers = #tpu.dot_dimension_numbers<[1], [0], [0], [1], [0, 0, 1, 1], [], []>} : vector<32x256xbf16>, vector<256x1536xbf16>, vector<32x1536xf32> -> vector<32x1536xf32>
    %c0_5 = arith.constant 0 : index
    %c0_6 = arith.constant 0 : index
    %c0_7 = arith.constant 0 : index
    %8 = vector.load %arg7[%c0_5, %c0_6, %c0_7] : memref<1x1x1536xf32, #tpu.memory_space<vmem>>, vector<1x1x1536xf32>
    %9 = vector.shape_cast %8 : vector<1x1x1536xf32> to vector<1x1536xf32>
    %10 = vector.broadcast %9 : vector<1x1536xf32> to vector<32x1536xf32>
    %11 = arith.addf %7, %10 : vector<32x1536xf32>
    %12 = arith.truncf %11 : vector<32x1536xf32> to vector<32x1536xbf16>
    %c0_8 = arith.constant 0 : index
    %c0_9 = arith.constant 0 : index
    %13 = vector.load %arg20[%c0_8, %c0_9] : memref<32x1536xbf16, #tpu.memory_space<vmem>>, vector<32x1536xbf16>
    tpu.vector_store %arg20[%c0_8, %c0_9], %12 {strides = array<i32>} : memref<32x1536xbf16, #tpu.memory_space<vmem>>, vector<32x1536xbf16>,
    %c0_10 = arith.constant 0 : index
    %c0_11 = arith.constant 0 : index
    %14 = vector.load %arg3[%c0_10, %c0_11] : memref<2x16xf32, #tpu.memory_space<vmem>>, vector<1x16xf32>
    %c0_12 = arith.constant 0 : index
    %c0_13 = arith.constant 0 : index
    %15 = vector.load %arg20[%c0_12, %c0_13] : memref<32x1536xbf16, #tpu.memory_space<vmem>>, vector<16x128xbf16>
    %c0_14 = arith.constant 0 : index
    %c512 = arith.constant 512 : index
    %16 = vector.load %arg20[%c0_14, %c512] : memref<32x1536xbf16, #tpu.memory_space<vmem>>, vector<16x128xbf16>
    %c0_15 = arith.constant 0 : index
    %c1024 = arith.constant 1024 : index
    %17 = vector.load %arg20[%c0_15, %c1024] : memref<32x1536xbf16, #tpu.memory_space<vmem>>, vector<16x128xbf16>
    %cst_16 = arith.constant dense<0.000000e+00> : vector<16x16xf32>
    %18 = tpu.matmul %15, %16, %cst_16 {dimension_numbers = #tpu.dot_dimension_numbers<[1], [1], [0], [0], [0, 0, 1, 0], [], []>} : vector<16x128xbf16>, vector<16x128xbf16>, vector<16x16xf32> -> vector<16x16xf32>
    %cst_17 = arith.constant 1.250000e-01 : f32
    %19 = vector.broadcast %cst_17 : f32 to vector<16x16xf32>
    %20 = arith.mulf %18, %19 : vector<16x16xf32>
    %21 = vector.broadcast %14 : vector<1x16xf32> to vector<16x16xf32>
    %22 = arith.addf %20, %21 : vector<16x16xf32>
    %cst_18 = arith.constant dense<0xFF800000> : vector<16xf32>
    %23 = vector.multi_reduction <maximumf>, %22, %cst_18 [1] : vector<16x16xf32> to vector<16xf32>
    %24 = vector.shape_cast %23 : vector<16xf32> to vector<16x1xf32>
    %25 = vector.broadcast %24 : vector<16x1xf32> to vector<16x16xf32>
    %26 = arith.subf %22, %25 : vector<16x16xf32>
    %27 = math.exp %26 : vector<16x16xf32>
    %cst_19 = arith.constant dense<0.000000e+00> : vector<16xf32>
    %28 = vector.multi_reduction <add>, %27, %cst_19 [1] : vector<16x16xf32> to vector<16xf32>
    %29 = vector.shape_cast %28 : vector<16xf32> to vector<16x1xf32>
    %cst_20 = arith.constant 9.99999968E-21 : f32
    %30 = vector.broadcast %cst_20 : f32 to vector<16x1xf32>
    %31 = arith.maximumf %29, %30 : vector<16x1xf32>
    %32 = vector.broadcast %31 : vector<16x1xf32> to vector<16x16xf32>
    %33 = arith.divf %27, %32 : vector<16x16xf32>
    %34 = arith.truncf %33 : vector<16x16xf32> to vector<16x16xbf16>
    %cst_21 = arith.constant dense<0.000000e+00> : vector<16x128xf32>
    %35 = tpu.matmul %34, %17, %cst_21 {dimension_numbers = #tpu.dot_dimension_numbers<[1], [0], [0], [1], [0, 0, 1, 1], [], []>} : vector<16x16xbf16>, vector<16x128xbf16>, vector<16x128xf32> -> vector<16x128xf32>
    %36 = arith.truncf %35 : vector<16x128xf32> to vector<16x128xbf16>
    %c0_22 = arith.constant 0 : index
    %c0_23 = arith.constant 0 : index
    %37 = vector.load %arg21[%c0_22, %c0_23] : memref<32x512xbf16, #tpu.memory_space<vmem>>, vector<16x128xbf16>
    tpu.vector_store %arg21[%c0_22, %c0_23], %36 {strides = array<i32>} : memref<32x512xbf16, #tpu.memory_space<vmem>>, vector<16x128xbf16>,
    %c0_24 = arith.constant 0 : index
    %c128 = arith.constant 128 : index
    %38 = vector.load %arg20[%c0_24, %c128] : memref<32x1536xbf16, #tpu.memory_space<vmem>>, vector<16x128xbf16>
    %c0_25 = arith.constant 0 : index
    %c640 = arith.constant 640 : index
    %39 = vector.load %arg20[%c0_25, %c640] : memref<32x1536xbf16, #tpu.memory_space<vmem>>, vector<16x128xbf16>
    %c0_26 = arith.constant 0 : index
    %c1152 = arith.constant 1152 : index
    %40 = vector.load %arg20[%c0_26, %c1152] : memref<32x1536xbf16, #tpu.memory_space<vmem>>, vector<16x128xbf16>
    %cst_27 = arith.constant dense<0.000000e+00> : vector<16x16xf32>
    %41 = tpu.matmul %38, %39, %cst_27 {dimension_numbers = #tpu.dot_dimension_numbers<[1], [1], [0], [0], [0, 0, 1, 0], [], []>} : vector<16x128xbf16>, vector<16x128xbf16>, vector<16x16xf32> -> vector<16x16xf32>
    %cst_28 = arith.constant 1.250000e-01 : f32
    %42 = vector.broadcast %cst_28 : f32 to vector<16x16xf32>
    %43 = arith.mulf %41, %42 : vector<16x16xf32>
    %44 = vector.broadcast %14 : vector<1x16xf32> to vector<16x16xf32>
    %45 = arith.addf %43, %44 : vector<16x16xf32>
    %cst_29 = arith.constant dense<0xFF800000> : vector<16xf32>
    %46 = vector.multi_reduction <maximumf>, %45, %cst_29 [1] : vector<16x16xf32> to vector<16xf32>
    %47 = vector.shape_cast %46 : vector<16xf32> to vector<16x1xf32>
    %48 = vector.broadcast %47 : vector<16x1xf32> to vector<16x16xf32>
    %49 = arith.subf %45, %48 : vector<16x16xf32>
    %50 = math.exp %49 : vector<16x16xf32>
    %cst_30 = arith.constant dense<0.000000e+00> : vector<16xf32>
    %51 = vector.multi_reduction <add>, %50, %cst_30 [1] : vector<16x16xf32> to vector<16xf32>
    %52 = vector.shape_cast %51 : vector<16xf32> to vector<16x1xf32>
    %cst_31 = arith.constant 9.99999968E-21 : f32
    %53 = vector.broadcast %cst_31 : f32 to vector<16x1xf32>
    %54 = arith.maximumf %52, %53 : vector<16x1xf32>
    %55 = vector.broadcast %54 : vector<16x1xf32> to vector<16x16xf32>
    %56 = arith.divf %50, %55 : vector<16x16xf32>
    %57 = arith.truncf %56 : vector<16x16xf32> to vector<16x16xbf16>
    %cst_32 = arith.constant dense<0.000000e+00> : vector<16x128xf32>
    %58 = tpu.matmul %57, %40, %cst_32 {dimension_numbers = #tpu.dot_dimension_numbers<[1], [0], [0], [1], [0, 0, 1, 1], [], []>} : vector<16x16xbf16>, vector<16x128xbf16>, vector<16x128xf32> -> vector<16x128xf32>
    %59 = arith.truncf %58 : vector<16x128xf32> to vector<16x128xbf16>
    %c0_33 = arith.constant 0 : index
    %c128_34 = arith.constant 128 : index
    %60 = vector.load %arg21[%c0_33, %c128_34] : memref<32x512xbf16, #tpu.memory_space<vmem>>, vector<16x128xbf16>
    tpu.vector_store %arg21[%c0_33, %c128_34], %59 {strides = array<i32>} : memref<32x512xbf16, #tpu.memory_space<vmem>>, vector<16x128xbf16>,
    %c0_35 = arith.constant 0 : index
    %c256 = arith.constant 256 : index
    %61 = vector.load %arg20[%c0_35, %c256] : memref<32x1536xbf16, #tpu.memory_space<vmem>>, vector<16x128xbf16>
    %c0_36 = arith.constant 0 : index
    %c768 = arith.constant 768 : index
    %62 = vector.load %arg20[%c0_36, %c768] : memref<32x1536xbf16, #tpu.memory_space<vmem>>, vector<16x128xbf16>
    %c0_37 = arith.constant 0 : index
    %c1280 = arith.constant 1280 : index
    %63 = vector.load %arg20[%c0_37, %c1280] : memref<32x1536xbf16, #tpu.memory_space<vmem>>, vector<16x128xbf16>
    %cst_38 = arith.constant dense<0.000000e+00> : vector<16x16xf32>
    %64 = tpu.matmul %61, %62, %cst_38 {dimension_numbers = #tpu.dot_dimension_numbers<[1], [1], [0], [0], [0, 0, 1, 0], [], []>} : vector<16x128xbf16>, vector<16x128xbf16>, vector<16x16xf32> -> vector<16x16xf32>
    %cst_39 = arith.constant 1.250000e-01 : f32
    %65 = vector.broadcast %cst_39 : f32 to vector<16x16xf32>
    %66 = arith.mulf %64, %65 : vector<16x16xf32>
    %67 = vector.broadcast %14 : vector<1x16xf32> to vector<16x16xf32>
    %68 = arith.addf %66, %67 : vector<16x16xf32>
    %cst_40 = arith.constant dense<0xFF800000> : vector<16xf32>
    %69 = vector.multi_reduction <maximumf>, %68, %cst_40 [1] : vector<16x16xf32> to vector<16xf32>
    %70 = vector.shape_cast %69 : vector<16xf32> to vector<16x1xf32>
    %71 = vector.broadcast %70 : vector<16x1xf32> to vector<16x16xf32>
    %72 = arith.subf %68, %71 : vector<16x16xf32>
    %73 = math.exp %72 : vector<16x16xf32>
    %cst_41 = arith.constant dense<0.000000e+00> : vector<16xf32>
    %74 = vector.multi_reduction <add>, %73, %cst_41 [1] : vector<16x16xf32> to vector<16xf32>
    %75 = vector.shape_cast %74 : vector<16xf32> to vector<16x1xf32>
    %cst_42 = arith.constant 9.99999968E-21 : f32
    %76 = vector.broadcast %cst_42 : f32 to vector<16x1xf32>
    %77 = arith.maximumf %75, %76 : vector<16x1xf32>
    %78 = vector.broadcast %77 : vector<16x1xf32> to vector<16x16xf32>
    %79 = arith.divf %73, %78 : vector<16x16xf32>
    %80 = arith.truncf %79 : vector<16x16xf32> to vector<16x16xbf16>
    %cst_43 = arith.constant dense<0.000000e+00> : vector<16x128xf32>
    %81 = tpu.matmul %80, %63, %cst_43 {dimension_numbers = #tpu.dot_dimension_numbers<[1], [0], [0], [1], [0, 0, 1, 1], [], []>} : vector<16x16xbf16>, vector<16x128xbf16>, vector<16x128xf32> -> vector<16x128xf32>
    %82 = arith.truncf %81 : vector<16x128xf32> to vector<16x128xbf16>
    %c0_44 = arith.constant 0 : index
    %c256_45 = arith.constant 256 : index
    %83 = vector.load %arg21[%c0_44, %c256_45] : memref<32x512xbf16, #tpu.memory_space<vmem>>, vector<16x128xbf16>
    tpu.vector_store %arg21[%c0_44, %c256_45], %82 {strides = array<i32>} : memref<32x512xbf16, #tpu.memory_space<vmem>>, vector<16x128xbf16>,
    %c0_46 = arith.constant 0 : index
    %c384 = arith.constant 384 : index
    %84 = vector.load %arg20[%c0_46, %c384] : memref<32x1536xbf16, #tpu.memory_space<vmem>>, vector<16x128xbf16>
    %c0_47 = arith.constant 0 : index
    %c896 = arith.constant 896 : index
    %85 = vector.load %arg20[%c0_47, %c896] : memref<32x1536xbf16, #tpu.memory_space<vmem>>, vector<16x128xbf16>
    %c0_48 = arith.constant 0 : index
    %c1408 = arith.constant 1408 : index
    %86 = vector.load %arg20[%c0_48, %c1408] : memref<32x1536xbf16, #tpu.memory_space<vmem>>, vector<16x128xbf16>
    %cst_49 = arith.constant dense<0.000000e+00> : vector<16x16xf32>
    %87 = tpu.matmul %84, %85, %cst_49 {dimension_numbers = #tpu.dot_dimension_numbers<[1], [1], [0], [0], [0, 0, 1, 0], [], []>} : vector<16x128xbf16>, vector<16x128xbf16>, vector<16x16xf32> -> vector<16x16xf32>
    %cst_50 = arith.constant 1.250000e-01 : f32
    %88 = vector.broadcast %cst_50 : f32 to vector<16x16xf32>
    %89 = arith.mulf %87, %88 : vector<16x16xf32>
    %90 = vector.broadcast %14 : vector<1x16xf32> to vector<16x16xf32>
    %91 = arith.addf %89, %90 : vector<16x16xf32>
    %cst_51 = arith.constant dense<0xFF800000> : vector<16xf32>
    %92 = vector.multi_reduction <maximumf>, %91, %cst_51 [1] : vector<16x16xf32> to vector<16xf32>
    %93 = vector.shape_cast %92 : vector<16xf32> to vector<16x1xf32>
    %94 = vector.broadcast %93 : vector<16x1xf32> to vector<16x16xf32>
    %95 = arith.subf %91, %94 : vector<16x16xf32>
    %96 = math.exp %95 : vector<16x16xf32>
    %cst_52 = arith.constant dense<0.000000e+00> : vector<16xf32>
    %97 = vector.multi_reduction <add>, %96, %cst_52 [1] : vector<16x16xf32> to vector<16xf32>
    %98 = vector.shape_cast %97 : vector<16xf32> to vector<16x1xf32>
    %cst_53 = arith.constant 9.99999968E-21 : f32
    %99 = vector.broadcast %cst_53 : f32 to vector<16x1xf32>
    %100 = arith.maximumf %98, %99 : vector<16x1xf32>
    %101 = vector.broadcast %100 : vector<16x1xf32> to vector<16x16xf32>
    %102 = arith.divf %96, %101 : vector<16x16xf32>
    %103 = arith.truncf %102 : vector<16x16xf32> to vector<16x16xbf16>
    %cst_54 = arith.constant dense<0.000000e+00> : vector<16x128xf32>
    %104 = tpu.matmul %103, %86, %cst_54 {dimension_numbers = #tpu.dot_dimension_numbers<[1], [0], [0], [1], [0, 0, 1, 1], [], []>} : vector<16x16xbf16>, vector<16x128xbf16>, vector<16x128xf32> -> vector<16x128xf32>
    %105 = arith.truncf %104 : vector<16x128xf32> to vector<16x128xbf16>
    %c0_55 = arith.constant 0 : index
    %c384_56 = arith.constant 384 : index
    %106 = vector.load %arg21[%c0_55, %c384_56] : memref<32x512xbf16, #tpu.memory_space<vmem>>, vector<16x128xbf16>
    tpu.vector_store %arg21[%c0_55, %c384_56], %105 {strides = array<i32>} : memref<32x512xbf16, #tpu.memory_space<vmem>>, vector<16x128xbf16>,
    %c1 = arith.constant 1 : index
    %c0_57 = arith.constant 0 : index
    %107 = vector.load %arg3[%c1, %c0_57] : memref<2x16xf32, #tpu.memory_space<vmem>>, vector<1x16xf32>
    %c16 = arith.constant 16 : index
    %c0_58 = arith.constant 0 : index
    %108 = vector.load %arg20[%c16, %c0_58] : memref<32x1536xbf16, #tpu.memory_space<vmem>>, vector<16x128xbf16>
    %c16_59 = arith.constant 16 : index
    %c512_60 = arith.constant 512 : index
    %109 = vector.load %arg20[%c16_59, %c512_60] : memref<32x1536xbf16, #tpu.memory_space<vmem>>, vector<16x128xbf16>
    %c16_61 = arith.constant 16 : index
    %c1024_62 = arith.constant 1024 : index
    %110 = vector.load %arg20[%c16_61, %c1024_62] : memref<32x1536xbf16, #tpu.memory_space<vmem>>, vector<16x128xbf16>
    %cst_63 = arith.constant dense<0.000000e+00> : vector<16x16xf32>
    %111 = tpu.matmul %108, %109, %cst_63 {dimension_numbers = #tpu.dot_dimension_numbers<[1], [1], [0], [0], [0, 0, 1, 0], [], []>} : vector<16x128xbf16>, vector<16x128xbf16>, vector<16x16xf32> -> vector<16x16xf32>
    %cst_64 = arith.constant 1.250000e-01 : f32
    %112 = vector.broadcast %cst_64 : f32 to vector<16x16xf32>
    %113 = arith.mulf %111, %112 : vector<16x16xf32>
    %114 = vector.broadcast %107 : vector<1x16xf32> to vector<16x16xf32>
    %115 = arith.addf %113, %114 : vector<16x16xf32>
    %cst_65 = arith.constant dense<0xFF800000> : vector<16xf32>
    %116 = vector.multi_reduction <maximumf>, %115, %cst_65 [1] : vector<16x16xf32> to vector<16xf32>
    %117 = vector.shape_cast %116 : vector<16xf32> to vector<16x1xf32>
    %118 = vector.broadcast %117 : vector<16x1xf32> to vector<16x16xf32>
    %119 = arith.subf %115, %118 : vector<16x16xf32>
    %120 = math.exp %119 : vector<16x16xf32>
    %cst_66 = arith.constant dense<0.000000e+00> : vector<16xf32>
    %121 = vector.multi_reduction <add>, %120, %cst_66 [1] : vector<16x16xf32> to vector<16xf32>
    %122 = vector.shape_cast %121 : vector<16xf32> to vector<16x1xf32>
    %cst_67 = arith.constant 9.99999968E-21 : f32
    %123 = vector.broadcast %cst_67 : f32 to vector<16x1xf32>
    %124 = arith.maximumf %122, %123 : vector<16x1xf32>
    %125 = vector.broadcast %124 : vector<16x1xf32> to vector<16x16xf32>
    %126 = arith.divf %120, %125 : vector<16x16xf32>
    %127 = arith.truncf %126 : vector<16x16xf32> to vector<16x16xbf16>
    %cst_68 = arith.constant dense<0.000000e+00> : vector<16x128xf32>
    %128 = tpu.matmul %127, %110, %cst_68 {dimension_numbers = #tpu.dot_dimension_numbers<[1], [0], [0], [1], [0, 0, 1, 1], [], []>} : vector<16x16xbf16>, vector<16x128xbf16>, vector<16x128xf32> -> vector<16x128xf32>
    %129 = arith.truncf %128 : vector<16x128xf32> to vector<16x128xbf16>
    %c16_69 = arith.constant 16 : index
    %c0_70 = arith.constant 0 : index
    %130 = vector.load %arg21[%c16_69, %c0_70] : memref<32x512xbf16, #tpu.memory_space<vmem>>, vector<16x128xbf16>
    tpu.vector_store %arg21[%c16_69, %c0_70], %129 {strides = array<i32>} : memref<32x512xbf16, #tpu.memory_space<vmem>>, vector<16x128xbf16>,
    %c16_71 = arith.constant 16 : index
    %c128_72 = arith.constant 128 : index
    %131 = vector.load %arg20[%c16_71, %c128_72] : memref<32x1536xbf16, #tpu.memory_space<vmem>>, vector<16x128xbf16>
    %c16_73 = arith.constant 16 : index
    %c640_74 = arith.constant 640 : index
    %132 = vector.load %arg20[%c16_73, %c640_74] : memref<32x1536xbf16, #tpu.memory_space<vmem>>, vector<16x128xbf16>
    %c16_75 = arith.constant 16 : index
    %c1152_76 = arith.constant 1152 : index
    %133 = vector.load %arg20[%c16_75, %c1152_76] : memref<32x1536xbf16, #tpu.memory_space<vmem>>, vector<16x128xbf16>
    %cst_77 = arith.constant dense<0.000000e+00> : vector<16x16xf32>
    %134 = tpu.matmul %131, %132, %cst_77 {dimension_numbers = #tpu.dot_dimension_numbers<[1], [1], [0], [0], [0, 0, 1, 0], [], []>} : vector<16x128xbf16>, vector<16x128xbf16>, vector<16x16xf32> -> vector<16x16xf32>
    %cst_78 = arith.constant 1.250000e-01 : f32
    %135 = vector.broadcast %cst_78 : f32 to vector<16x16xf32>
    %136 = arith.mulf %134, %135 : vector<16x16xf32>
    %137 = vector.broadcast %107 : vector<1x16xf32> to vector<16x16xf32>
    %138 = arith.addf %136, %137 : vector<16x16xf32>
    %cst_79 = arith.constant dense<0xFF800000> : vector<16xf32>
    %139 = vector.multi_reduction <maximumf>, %138, %cst_79 [1] : vector<16x16xf32> to vector<16xf32>
    %140 = vector.shape_cast %139 : vector<16xf32> to vector<16x1xf32>
    %141 = vector.broadcast %140 : vector<16x1xf32> to vector<16x16xf32>
    %142 = arith.subf %138, %141 : vector<16x16xf32>
    %143 = math.exp %142 : vector<16x16xf32>
    %cst_80 = arith.constant dense<0.000000e+00> : vector<16xf32>
    %144 = vector.multi_reduction <add>, %143, %cst_80 [1] : vector<16x16xf32> to vector<16xf32>
    %145 = vector.shape_cast %144 : vector<16xf32> to vector<16x1xf32>
    %cst_81 = arith.constant 9.99999968E-21 : f32
    %146 = vector.broadcast %cst_81 : f32 to vector<16x1xf32>
    %147 = arith.maximumf %145, %146 : vector<16x1xf32>
    %148 = vector.broadcast %147 : vector<16x1xf32> to vector<16x16xf32>
    %149 = arith.divf %143, %148 : vector<16x16xf32>
    %150 = arith.truncf %149 : vector<16x16xf32> to vector<16x16xbf16>
    %cst_82 = arith.constant dense<0.000000e+00> : vector<16x128xf32>
    %151 = tpu.matmul %150, %133, %cst_82 {dimension_numbers = #tpu.dot_dimension_numbers<[1], [0], [0], [1], [0, 0, 1, 1], [], []>} : vector<16x16xbf16>, vector<16x128xbf16>, vector<16x128xf32> -> vector<16x128xf32>
    %152 = arith.truncf %151 : vector<16x128xf32> to vector<16x128xbf16>
    %c16_83 = arith.constant 16 : index
    %c128_84 = arith.constant 128 : index
    %153 = vector.load %arg21[%c16_83, %c128_84] : memref<32x512xbf16, #tpu.memory_space<vmem>>, vector<16x128xbf16>
    tpu.vector_store %arg21[%c16_83, %c128_84], %152 {strides = array<i32>} : memref<32x512xbf16, #tpu.memory_space<vmem>>, vector<16x128xbf16>,
    %c16_85 = arith.constant 16 : index
    %c256_86 = arith.constant 256 : index
    %154 = vector.load %arg20[%c16_85, %c256_86] : memref<32x1536xbf16, #tpu.memory_space<vmem>>, vector<16x128xbf16>
    %c16_87 = arith.constant 16 : index
    %c768_88 = arith.constant 768 : index
    %155 = vector.load %arg20[%c16_87, %c768_88] : memref<32x1536xbf16, #tpu.memory_space<vmem>>, vector<16x128xbf16>
    %c16_89 = arith.constant 16 : index
    %c1280_90 = arith.constant 1280 : index
    %156 = vector.load %arg20[%c16_89, %c1280_90] : memref<32x1536xbf16, #tpu.memory_space<vmem>>, vector<16x128xbf16>
    %cst_91 = arith.constant dense<0.000000e+00> : vector<16x16xf32>
    %157 = tpu.matmul %154, %155, %cst_91 {dimension_numbers = #tpu.dot_dimension_numbers<[1], [1], [0], [0], [0, 0, 1, 0], [], []>} : vector<16x128xbf16>, vector<16x128xbf16>, vector<16x16xf32> -> vector<16x16xf32>
    %cst_92 = arith.constant 1.250000e-01 : f32
    %158 = vector.broadcast %cst_92 : f32 to vector<16x16xf32>
    %159 = arith.mulf %157, %158 : vector<16x16xf32>
    %160 = vector.broadcast %107 : vector<1x16xf32> to vector<16x16xf32>
    %161 = arith.addf %159, %160 : vector<16x16xf32>
    %cst_93 = arith.constant dense<0xFF800000> : vector<16xf32>
    %162 = vector.multi_reduction <maximumf>, %161, %cst_93 [1] : vector<16x16xf32> to vector<16xf32>
    %163 = vector.shape_cast %162 : vector<16xf32> to vector<16x1xf32>
    %164 = vector.broadcast %163 : vector<16x1xf32> to vector<16x16xf32>
    %165 = arith.subf %161, %164 : vector<16x16xf32>
    %166 = math.exp %165 : vector<16x16xf32>
    %cst_94 = arith.constant dense<0.000000e+00> : vector<16xf32>
    %167 = vector.multi_reduction <add>, %166, %cst_94 [1] : vector<16x16xf32> to vector<16xf32>
    %168 = vector.shape_cast %167 : vector<16xf32> to vector<16x1xf32>
    %cst_95 = arith.constant 9.99999968E-21 : f32
    %169 = vector.broadcast %cst_95 : f32 to vector<16x1xf32>
    %170 = arith.maximumf %168, %169 : vector<16x1xf32>
    %171 = vector.broadcast %170 : vector<16x1xf32> to vector<16x16xf32>
    %172 = arith.divf %166, %171 : vector<16x16xf32>
    %173 = arith.truncf %172 : vector<16x16xf32> to vector<16x16xbf16>
    %cst_96 = arith.constant dense<0.000000e+00> : vector<16x128xf32>
    %174 = tpu.matmul %173, %156, %cst_96 {dimension_numbers = #tpu.dot_dimension_numbers<[1], [0], [0], [1], [0, 0, 1, 1], [], []>} : vector<16x16xbf16>, vector<16x128xbf16>, vector<16x128xf32> -> vector<16x128xf32>
    %175 = arith.truncf %174 : vector<16x128xf32> to vector<16x128xbf16>
    %c16_97 = arith.constant 16 : index
    %c256_98 = arith.constant 256 : index
    %176 = vector.load %arg21[%c16_97, %c256_98] : memref<32x512xbf16, #tpu.memory_space<vmem>>, vector<16x128xbf16>
    tpu.vector_store %arg21[%c16_97, %c256_98], %175 {strides = array<i32>} : memref<32x512xbf16, #tpu.memory_space<vmem>>, vector<16x128xbf16>,
    %c16_99 = arith.constant 16 : index
    %c384_100 = arith.constant 384 : index
    %177 = vector.load %arg20[%c16_99, %c384_100] : memref<32x1536xbf16, #tpu.memory_space<vmem>>, vector<16x128xbf16>
    %c16_101 = arith.constant 16 : index
    %c896_102 = arith.constant 896 : index
    %178 = vector.load %arg20[%c16_101, %c896_102] : memref<32x1536xbf16, #tpu.memory_space<vmem>>, vector<16x128xbf16>
    %c16_103 = arith.constant 16 : index
    %c1408_104 = arith.constant 1408 : index
    %179 = vector.load %arg20[%c16_103, %c1408_104] : memref<32x1536xbf16, #tpu.memory_space<vmem>>, vector<16x128xbf16>
    %cst_105 = arith.constant dense<0.000000e+00> : vector<16x16xf32>
    %180 = tpu.matmul %177, %178, %cst_105 {dimension_numbers = #tpu.dot_dimension_numbers<[1], [1], [0], [0], [0, 0, 1, 0], [], []>} : vector<16x128xbf16>, vector<16x128xbf16>, vector<16x16xf32> -> vector<16x16xf32>
    %cst_106 = arith.constant 1.250000e-01 : f32
    %181 = vector.broadcast %cst_106 : f32 to vector<16x16xf32>
    %182 = arith.mulf %180, %181 : vector<16x16xf32>
    %183 = vector.broadcast %107 : vector<1x16xf32> to vector<16x16xf32>
    %184 = arith.addf %182, %183 : vector<16x16xf32>
    %cst_107 = arith.constant dense<0xFF800000> : vector<16xf32>
    %185 = vector.multi_reduction <maximumf>, %184, %cst_107 [1] : vector<16x16xf32> to vector<16xf32>
    %186 = vector.shape_cast %185 : vector<16xf32> to vector<16x1xf32>
    %187 = vector.broadcast %186 : vector<16x1xf32> to vector<16x16xf32>
    %188 = arith.subf %184, %187 : vector<16x16xf32>
    %189 = math.exp %188 : vector<16x16xf32>
    %cst_108 = arith.constant dense<0.000000e+00> : vector<16xf32>
    %190 = vector.multi_reduction <add>, %189, %cst_108 [1] : vector<16x16xf32> to vector<16xf32>
    %191 = vector.shape_cast %190 : vector<16xf32> to vector<16x1xf32>
    %cst_109 = arith.constant 9.99999968E-21 : f32
    %192 = vector.broadcast %cst_109 : f32 to vector<16x1xf32>
    %193 = arith.maximumf %191, %192 : vector<16x1xf32>
    %194 = vector.broadcast %193 : vector<16x1xf32> to vector<16x16xf32>
    %195 = arith.divf %189, %194 : vector<16x16xf32>
    %196 = arith.truncf %195 : vector<16x16xf32> to vector<16x16xbf16>
    %cst_110 = arith.constant dense<0.000000e+00> : vector<16x128xf32>
    %197 = tpu.matmul %196, %179, %cst_110 {dimension_numbers = #tpu.dot_dimension_numbers<[1], [0], [0], [1], [0, 0, 1, 1], [], []>} : vector<16x16xbf16>, vector<16x128xbf16>, vector<16x128xf32> -> vector<16x128xf32>
    %198 = arith.truncf %197 : vector<16x128xf32> to vector<16x128xbf16>
    %c16_111 = arith.constant 16 : index
    %c384_112 = arith.constant 384 : index
    %199 = vector.load %arg21[%c16_111, %c384_112] : memref<32x512xbf16, #tpu.memory_space<vmem>>, vector<16x128xbf16>
    tpu.vector_store %arg21[%c16_111, %c384_112], %198 {strides = array<i32>} : memref<32x512xbf16, #tpu.memory_space<vmem>>, vector<16x128xbf16>,
    %c0_113 = arith.constant 0 : index
    %c0_114 = arith.constant 0 : index
    %200 = vector.load %arg21[%c0_113, %c0_114] : memref<32x512xbf16, #tpu.memory_space<vmem>>, vector<32x512xbf16>
    %c0_115 = arith.constant 0 : index
    %c0_116 = arith.constant 0 : index
    %c0_117 = arith.constant 0 : index
    %201 = vector.load %arg8[%c0_115, %c0_116, %c0_117] : memref<1x512x256xbf16, #tpu.memory_space<vmem>>, vector<1x512x256xbf16>
    %202 = vector.shape_cast %201 : vector<1x512x256xbf16> to vector<512x256xbf16>
    %cst_118 = arith.constant dense<0.000000e+00> : vector<32x256xf32>
    %203 = tpu.matmul %200, %202, %cst_118 {dimension_numbers = #tpu.dot_dimension_numbers<[1], [0], [0], [1], [0, 0, 1, 1], [], []>} : vector<32x512xbf16>, vector<512x256xbf16>, vector<32x256xf32> -> vector<32x256xf32>
    %c0_119 = arith.constant 0 : index
    %c0_120 = arith.constant 0 : index
    %c0_121 = arith.constant 0 : index
    %204 = vector.load %arg9[%c0_119, %c0_120, %c0_121] : memref<1x1x256xf32, #tpu.memory_space<vmem>>, vector<1x1x256xf32>
    %205 = vector.shape_cast %204 : vector<1x1x256xf32> to vector<1x256xf32>
    %206 = vector.broadcast %205 : vector<1x256xf32> to vector<32x256xf32>
    %207 = arith.addf %203, %206 : vector<32x256xf32>
    %208 = arith.addf %207, %3 : vector<32x256xf32>
    %c0_122 = arith.constant 0 : index
    %c0_123 = arith.constant 0 : index
    %c0_124 = arith.constant 0 : index
    %209 = vector.load %arg10[%c0_122, %c0_123, %c0_124] : memref<1x1x256xf32, #tpu.memory_space<vmem>>, vector<1x1x256xf32>
    %210 = vector.shape_cast %209 : vector<1x1x256xf32> to vector<1x256xf32>
    %c0_125 = arith.constant 0 : index
    %c0_126 = arith.constant 0 : index
    %c0_127 = arith.constant 0 : index
    %211 = vector.load %arg11[%c0_125, %c0_126, %c0_127] : memref<1x1x256xf32, #tpu.memory_space<vmem>>, vector<1x1x256xf32>
    %212 = vector.shape_cast %211 : vector<1x1x256xf32> to vector<1x256xf32>
    %cst_128 = arith.constant dense<0.000000e+00> : vector<32xf32>
    %213 = vector.multi_reduction <add>, %208, %cst_128 [1] : vector<32x256xf32> to vector<32xf32>
    %214 = vector.shape_cast %213 : vector<32xf32> to vector<32x1xf32>
    %cst_129 = arith.constant 2.560000e+02 : f32
    %215 = vector.broadcast %cst_129 : f32 to vector<32x1xf32>
    %216 = arith.divf %214, %215 : vector<32x1xf32>
    %217 = vector.broadcast %216 : vector<32x1xf32> to vector<32x256xf32>
    %218 = arith.subf %208, %217 : vector<32x256xf32>
    %219 = arith.mulf %218, %218 : vector<32x256xf32>
    %cst_130 = arith.constant dense<0.000000e+00> : vector<32xf32>
    %220 = vector.multi_reduction <add>, %219, %cst_130 [1] : vector<32x256xf32> to vector<32xf32>
    %221 = vector.shape_cast %220 : vector<32xf32> to vector<32x1xf32>
    %cst_131 = arith.constant 2.560000e+02 : f32
    %222 = vector.broadcast %cst_131 : f32 to vector<32x1xf32>
    %223 = arith.divf %221, %222 : vector<32x1xf32>
    %cst_132 = arith.constant 9.99999996E-13 : f32
    %224 = vector.broadcast %cst_132 : f32 to vector<32x1xf32>
    %225 = arith.addf %223, %224 : vector<32x1xf32>
    %226 = math.rsqrt %225 : vector<32x1xf32>
    %227 = vector.broadcast %226 : vector<32x1xf32> to vector<32x256xf32>
    %228 = arith.mulf %218, %227 : vector<32x256xf32>
    %229 = vector.broadcast %210 : vector<1x256xf32> to vector<32x256xf32>
    %230 = arith.mulf %228, %229 : vector<32x256xf32>
    %231 = vector.broadcast %212 : vector<1x256xf32> to vector<32x256xf32>
    %232 = arith.addf %230, %231 : vector<32x256xf32>
    %233 = arith.truncf %232 : vector<32x256xf32> to vector<32x256xbf16>
    %c0_133 = arith.constant 0 : index
    %c0_134 = arith.constant 0 : index
    %c0_135 = arith.constant 0 : index
    %234 = vector.load %arg12[%c0_133, %c0_134, %c0_135] : memref<1x256x1024xbf16, #tpu.memory_space<vmem>>, vector<1x256x1024xbf16>
    %235 = vector.shape_cast %234 : vector<1x256x1024xbf16> to vector<256x1024xbf16>
    %cst_136 = arith.constant dense<0.000000e+00> : vector<32x1024xf32>
    %236 = tpu.matmul %233, %235, %cst_136 {dimension_numbers = #tpu.dot_dimension_numbers<[1], [0], [0], [1], [0, 0, 1, 1], [], []>} : vector<32x256xbf16>, vector<256x1024xbf16>, vector<32x1024xf32> -> vector<32x1024xf32>
    %c0_137 = arith.constant 0 : index
    %c0_138 = arith.constant 0 : index
    %c0_139 = arith.constant 0 : index
    %237 = vector.load %arg13[%c0_137, %c0_138, %c0_139] : memref<1x1x1024xf32, #tpu.memory_space<vmem>>, vector<1x1x1024xf32>
    %238 = vector.shape_cast %237 : vector<1x1x1024xf32> to vector<1x1024xf32>
    %239 = vector.broadcast %238 : vector<1x1024xf32> to vector<32x1024xf32>
    %240 = arith.addf %236, %239 : vector<32x1024xf32>
    %cst_140 = arith.constant 5.000000e-01 : f32
    %241 = vector.broadcast %cst_140 : f32 to vector<32x1024xf32>
    %242 = arith.mulf %241, %240 : vector<32x1024xf32>
    %cst_141 = arith.constant 4.471500e-02 : f32
    %243 = vector.broadcast %cst_141 : f32 to vector<32x1024xf32>
    %244 = arith.mulf %243, %240 : vector<32x1024xf32>
    %245 = arith.mulf %244, %240 : vector<32x1024xf32>
    %246 = arith.mulf %245, %240 : vector<32x1024xf32>
    %247 = arith.addf %240, %246 : vector<32x1024xf32>
    %cst_142 = arith.constant 0.797884583 : f32
    %248 = vector.broadcast %cst_142 : f32 to vector<32x1024xf32>
    %249 = arith.mulf %248, %247 : vector<32x1024xf32>
    %250 = math.tanh %249 : vector<32x1024xf32>
    %cst_143 = arith.constant 1.000000e+00 : f32
    %251 = vector.broadcast %cst_143 : f32 to vector<32x1024xf32>
    %252 = arith.addf %251, %250 : vector<32x1024xf32>
    %253 = arith.mulf %242, %252 : vector<32x1024xf32>
    %254 = arith.truncf %253 : vector<32x1024xf32> to vector<32x1024xbf16>
    %c0_144 = arith.constant 0 : index
    %c0_145 = arith.constant 0 : index
    %c0_146 = arith.constant 0 : index
    %255 = vector.load %arg14[%c0_144, %c0_145, %c0_146] : memref<1x1024x256xbf16, #tpu.memory_space<vmem>>, vector<1x1024x256xbf16>
    %256 = vector.shape_cast %255 : vector<1x1024x256xbf16> to vector<1024x256xbf16>
    %cst_147 = arith.constant dense<0.000000e+00> : vector<32x256xf32>
    %257 = tpu.matmul %254, %256, %cst_147 {dimension_numbers = #tpu.dot_dimension_numbers<[1], [0], [0], [1], [0, 0, 1, 1], [], []>} : vector<32x1024xbf16>, vector<1024x256xbf16>, vector<32x256xf32> -> vector<32x256xf32>
    %c0_148 = arith.constant 0 : index
    %c0_149 = arith.constant 0 : index
    %c0_150 = arith.constant 0 : index
    %258 = vector.load %arg15[%c0_148, %c0_149, %c0_150] : memref<1x1x256xf32, #tpu.memory_space<vmem>>, vector<1x1x256xf32>
    %259 = vector.shape_cast %258 : vector<1x1x256xf32> to vector<1x256xf32>
    %260 = vector.broadcast %259 : vector<1x256xf32> to vector<32x256xf32>
    %261 = arith.addf %257, %260 : vector<32x256xf32>
    %262 = arith.addf %261, %232 : vector<32x256xf32>
    %c0_151 = arith.constant 0 : index
    %c0_152 = arith.constant 0 : index
    %c0_153 = arith.constant 0 : index
    %263 = vector.load %arg16[%c0_151, %c0_152, %c0_153] : memref<1x1x256xf32, #tpu.memory_space<vmem>>, vector<1x1x256xf32>
    %264 = vector.shape_cast %263 : vector<1x1x256xf32> to vector<1x256xf32>
    %c0_154 = arith.constant 0 : index
    %c0_155 = arith.constant 0 : index
    %c0_156 = arith.constant 0 : index
    %265 = vector.load %arg17[%c0_154, %c0_155, %c0_156] : memref<1x1x256xf32, #tpu.memory_space<vmem>>, vector<1x1x256xf32>
    %266 = vector.shape_cast %265 : vector<1x1x256xf32> to vector<1x256xf32>
    %cst_157 = arith.constant dense<0.000000e+00> : vector<32xf32>
    %267 = vector.multi_reduction <add>, %262, %cst_157 [1] : vector<32x256xf32> to vector<32xf32>
    %268 = vector.shape_cast %267 : vector<32xf32> to vector<32x1xf32>
    %cst_158 = arith.constant 2.560000e+02 : f32
    %269 = vector.broadcast %cst_158 : f32 to vector<32x1xf32>
    %270 = arith.divf %268, %269 : vector<32x1xf32>
    %271 = vector.broadcast %270 : vector<32x1xf32> to vector<32x256xf32>
    %272 = arith.subf %262, %271 : vector<32x256xf32>
    %273 = arith.mulf %272, %272 : vector<32x256xf32>
    %cst_159 = arith.constant dense<0.000000e+00> : vector<32xf32>
    %274 = vector.multi_reduction <add>, %273, %cst_159 [1] : vector<32x256xf32> to vector<32xf32>
    %275 = vector.shape_cast %274 : vector<32xf32> to vector<32x1xf32>
    %cst_160 = arith.constant 2.560000e+02 : f32
    %276 = vector.broadcast %cst_160 : f32 to vector<32x1xf32>
    %277 = arith.divf %275, %276 : vector<32x1xf32>
    %cst_161 = arith.constant 9.99999996E-13 : f32
    %278 = vector.broadcast %cst_161 : f32 to vector<32x1xf32>
    %279 = arith.addf %277, %278 : vector<32x1xf32>
    %280 = math.rsqrt %279 : vector<32x1xf32>
    %281 = vector.broadcast %280 : vector<32x1xf32> to vector<32x256xf32>
    %282 = arith.mulf %272, %281 : vector<32x256xf32>
    %283 = vector.broadcast %264 : vector<1x256xf32> to vector<32x256xf32>
    %284 = arith.mulf %282, %283 : vector<32x256xf32>
    %285 = vector.broadcast %266 : vector<1x256xf32> to vector<32x256xf32>
    %286 = arith.addf %284, %285 : vector<32x256xf32>
    %c0_162 = arith.constant 0 : index
    %c0_163 = arith.constant 0 : index
    %287 = vector.load %arg19[%c0_162, %c0_163] : memref<32x256xf32, #tpu.memory_space<vmem>>, vector<32x256xf32>
    tpu.vector_store %arg19[%c0_162, %c0_163], %286 {strides = array<i32>} : memref<32x256xf32, #tpu.memory_space<vmem>>, vector<32x256xf32>,
    %c0_164 = arith.constant 0 : index
    %c0_165 = arith.constant 0 : index
    %288 = vector.load %arg18[%c0_164, %c0_165] : memref<32x256xf32, #tpu.memory_space<vmem>>, vector<32x256xf32>
    tpu.vector_store %arg18[%c0_164, %c0_165], %286 {strides = array<i32>} : memref<32x256xf32, #tpu.memory_space<vmem>>, vector<32x256xf32>,
    return
  }
  func.func @transform_0(%arg0: i32) -> (i32, i32) {
    %c0_i32 = arith.constant 0 : i32
    %c0_i32_0 = arith.constant 0 : i32
    %c0_i32_1 = arith.constant 0 : i32
    return %c0_i32, %c0_i32_0 : i32, i32
  }
  func.func @transform_1(%arg0: i32) -> (i32, i32) {
    %c0_i32 = arith.constant 0 : i32
    %c0_i32_0 = arith.constant 0 : i32
    %c0_i32_1 = arith.constant 0 : i32
    return %c0_i32, %c0_i32_0 : i32, i32
  }
  func.func @transform_2(%arg0: i32) -> (i32, i32) {
    %c0_i32 = arith.constant 0 : i32
    %c0_i32_0 = arith.constant 0 : i32
    %c0_i32_1 = arith.constant 0 : i32
    return %c0_i32, %c0_i32_0 : i32, i32
  }
  func.func @transform_3(%arg0: i32) -> (i32, i32) {
    %c0_i32 = arith.constant 0 : i32
    %c0_i32_0 = arith.constant 0 : i32
    %c0_i32_1 = arith.constant 0 : i32
    return %c0_i32, %c0_i32_0 : i32, i32
  }
  func.func @transform_4(%arg0: i32) -> (i32, i32) {
    %c0_i32 = arith.constant 0 : i32
    %c0_i32_0 = arith.constant 0 : i32
    %c0_i32_1 = arith.constant 0 : i32
    return %c0_i32, %c0_i32_0 : i32, i32
  }
  func.func @transform_5(%arg0: i32) -> (i32, i32, i32) {
    %c0_i32 = arith.constant 0 : i32
    %c0_i32_0 = arith.constant 0 : i32
    %c0_i32_1 = arith.constant 0 : i32
    return %arg0, %c0_i32, %c0_i32_0 : i32, i32, i32
  }
  func.func @transform_6(%arg0: i32) -> (i32, i32, i32) {
    %c0_i32 = arith.constant 0 : i32
    %c0_i32_0 = arith.constant 0 : i32
    %c0_i32_1 = arith.constant 0 : i32
    return %arg0, %c0_i32, %c0_i32_0 : i32, i32, i32
  }
  func.func @transform_7(%arg0: i32) -> (i32, i32, i32) {
    %c0_i32 = arith.constant 0 : i32
    %c0_i32_0 = arith.constant 0 : i32
    %c0_i32_1 = arith.constant 0 : i32
    return %arg0, %c0_i32, %c0_i32_0 : i32, i32, i32
  }
  func.func @transform_8(%arg0: i32) -> (i32, i32, i32) {
    %c0_i32 = arith.constant 0 : i32
    %c0_i32_0 = arith.constant 0 : i32
    %c0_i32_1 = arith.constant 0 : i32
    return %arg0, %c0_i32, %c0_i32_0 : i32, i32, i32
  }
  func.func @transform_9(%arg0: i32) -> (i32, i32, i32) {
    %c0_i32 = arith.constant 0 : i32
    %c0_i32_0 = arith.constant 0 : i32
    %c0_i32_1 = arith.constant 0 : i32
    return %arg0, %c0_i32, %c0_i32_0 : i32, i32, i32
  }
  func.func @transform_10(%arg0: i32) -> (i32, i32, i32) {
    %c0_i32 = arith.constant 0 : i32
    %c0_i32_0 = arith.constant 0 : i32
    %c0_i32_1 = arith.constant 0 : i32
    return %arg0, %c0_i32, %c0_i32_0 : i32, i32, i32
  }
  func.func @transform_11(%arg0: i32) -> (i32, i32, i32) {
    %c0_i32 = arith.constant 0 : i32
    %c0_i32_0 = arith.constant 0 : i32
    %c0_i32_1 = arith.constant 0 : i32
    return %arg0, %c0_i32, %c0_i32_0 : i32, i32, i32
  }
  func.func @transform_12(%arg0: i32) -> (i32, i32, i32) {
    %c0_i32 = arith.constant 0 : i32
    %c0_i32_0 = arith.constant 0 : i32
    %c0_i32_1 = arith.constant 0 : i32
    return %arg0, %c0_i32, %c0_i32_0 : i32, i32, i32
  }
  func.func @transform_13(%arg0: i32) -> (i32, i32, i32) {
    %c0_i32 = arith.constant 0 : i32
    %c0_i32_0 = arith.constant 0 : i32
    %c0_i32_1 = arith.constant 0 : i32
    return %arg0, %c0_i32, %c0_i32_0 : i32, i32, i32
  }
  func.func @transform_14(%arg0: i32) -> (i32, i32, i32) {
    %c0_i32 = arith.constant 0 : i32
    %c0_i32_0 = arith.constant 0 : i32
    %c0_i32_1 = arith.constant 0 : i32
    return %arg0, %c0_i32, %c0_i32_0 : i32, i32, i32
  }
  func.func @transform_15(%arg0: i32) -> (i32, i32, i32) {
    %c0_i32 = arith.constant 0 : i32
    %c0_i32_0 = arith.constant 0 : i32
    %c0_i32_1 = arith.constant 0 : i32
    return %arg0, %c0_i32, %c0_i32_0 : i32, i32, i32
  }
  func.func @transform_16(%arg0: i32) -> (i32, i32, i32) {
    %c0_i32 = arith.constant 0 : i32
    %c0_i32_0 = arith.constant 0 : i32
    %c0_i32_1 = arith.constant 0 : i32
    return %arg0, %c0_i32, %c0_i32_0 : i32, i32, i32
  }
  func.func @transform_17(%arg0: i32) -> (i32, i32) {
    %c0_i32 = arith.constant 0 : i32
    %c0_i32_0 = arith.constant 0 : i32
    %c0_i32_1 = arith.constant 0 : i32
    return %c0_i32, %c0_i32_0 : i32, i32
  }
}

</mosaic_0001>

<llo_original>
// kernel: text_encoder_forward.1
$region0: #{text_encoder_forward.1}
  #allocation0 [shape = 'u32[]', space=smem, size = 0x4, offset = 0x4, fixed_abs, tag = 'smem constant byte address 0x4 - core index']
  #allocation1 [shape = 'u32[144,128]{1,0:T(1,128)}', space=vmem, size = 0x12000, scoped, tag = 'internal scratch']
  #allocation2 [shape = 'f32[32,256]{1,0:T(8,128)}', space=vmem, size = 0x8000, scoped, tag = 'scratch operand']
  #allocation3 [shape = 'bf16[32,1536]{1,0:T(16,128)(2,1)}', space=vmem, size = 0x18000, scoped, tag = 'scratch operand']
  #allocation4 [shape = 'bf16[32,512]{1,0:T(16,128)(2,1)}', space=vmem, size = 0x8000, scoped, tag = 'scratch operand']
  %s0 = inlined_call_operand.vmem [shape: bf16[32,256], index: 0, kind: input, shape index: {}]
  %s1 = inlined_call_operand.vmem [shape: f32[16,256], index: 1, kind: input, shape index: {}]
  %s2 = inlined_call_operand.vmem [shape: f32[2,16], index: 2, kind: input, shape index: {}]
  %s3 = inlined_call_operand.hbm [shape: f32[1,256], index: 3, kind: input, shape index: {}]
  %s4 = inlined_call_operand.hbm [shape: f32[1,256], index: 4, kind: input, shape index: {}]
  %s5 = inlined_call_operand.hbm [shape: bf16[2,256,1536], index: 5, kind: input, shape index: {}]
  %s6 = inlined_call_operand.hbm [shape: f32[2,1,1536], index: 6, kind: input, shape index: {}]
  %s7 = inlined_call_operand.hbm [shape: bf16[2,512,256], index: 7, kind: input, shape index: {}]
  %s8 = inlined_call_operand.hbm [shape: f32[2,1,256], index: 8, kind: input, shape index: {}]
  %s9 = inlined_call_operand.hbm [shape: f32[2,1,256], index: 9, kind: input, shape index: {}]
  %s10 = inlined_call_operand.hbm [shape: f32[2,1,256], index: 10, kind: input, shape index: {}]
  %s11 = inlined_call_operand.hbm [shape: bf16[2,256,1024], index: 11, kind: input, shape index: {}]
  %s12 = inlined_call_operand.hbm [shape: f32[2,1,1024], index: 12, kind: input, shape index: {}]
  %s13 = inlined_call_operand.hbm [shape: bf16[2,1024,256], index: 13, kind: input, shape index: {}]
  %s14 = inlined_call_operand.hbm [shape: f32[2,1,256], index: 14, kind: input, shape index: {}]
  %s15 = inlined_call_operand.hbm [shape: f32[2,1,256], index: 15, kind: input, shape index: {}]
  %s16 = inlined_call_operand.hbm [shape: f32[2,1,256], index: 16, kind: input, shape index: {}]
  %s17 = inlined_call_operand.vmem [shape: f32[32,256], index: 17, kind: output, shape index: {}]
  %s18 = sld [smem:[#allocation0]]
  $region161: #{text_encoder_forward.1} parent=0
    _
  %s20 = ssub.s32 1, %s18
  %s21 = scalar_select 0, %s20, %s18
  $region1: #{text_encoder_forward.1} parent=0
    #allocation5 [shape = 'u8[1024]{0}', space=vmem, size = 0x400, scoped, tag = 'input window, operand 3, single buffered']
    #allocation6 [shape = 's32[2]{0}', space=sflag, size = 0x8, scoped, tag = 'scoped memory for text_encoder_forward.1']
    #allocation7 [shape = 'u8[1024]{0}', space=vmem, size = 0x400, scoped, tag = 'input window, operand 4, single buffered']
    #allocation8 [shape = 's32[1]{0}', space=sflag, size = 0x4, scoped, tag = 'scoped memory for text_encoder_forward.1']
    #allocation9 [shape = 'u8[1572864]{0}', space=vmem, size = 0x180000, scoped, tag = 'input window, operand 5']
    #allocation10 [shape = 'u8[12288]{0}', space=vmem, size = 0x3000, scoped, tag = 'input window, operand 6']
    #allocation11 [shape = 'u8[524288]{0}', space=vmem, size = 0x80000, scoped, tag = 'input window, operand 7']
    #allocation12 [shape = 'u8[2048]{0}', space=vmem, size = 0x800, scoped, tag = 'input window, operand 8']
    #allocation13 [shape = 'u8[2048]{0}', space=vmem, size = 0x800, scoped, tag = 'input window, operand 9']
    #allocation14 [shape = 'u8[2048]{0}', space=vmem, size = 0x800, scoped, tag = 'input window, operand 10']
    #allocation15 [shape = 'u8[1048576]{0}', space=vmem, size = 0x100000, scoped, tag = 'input window, operand 11']
    #allocation16 [shape = 'u8[8192]{0}', space=vmem, size = 0x2000, scoped, tag = 'input window, operand 12']
    #allocation17 [shape = 'u8[1048576]{0}', space=vmem, size = 0x100000, scoped, tag = 'input window, operand 13']
    #allocation18 [shape = 'u8[2048]{0}', space=vmem, size = 0x800, scoped, tag = 'input window, operand 14']
    #allocation19 [shape = 'u8[2048]{0}', space=vmem, size = 0x800, scoped, tag = 'input window, operand 15']
    #allocation20 [shape = 'u8[2048]{0}', space=vmem, size = 0x800, scoped, tag = 'input window, operand 16']
    %22 = vsyncpa [#allocation6], 0
    %23 = vsyncpa [#allocation8], 0
    loop: start=0, step=1, limit=4
    $region2: #{text_encoder_forward.1} parent=1 // loop_pre_header
      _
    $region3: #{text_encoder_forward.1} parent=1 // loop_header
      %s25 = sphi 0, %s29
      %p26 = scmp.ge.s32.totalorder %s25, 4
      %s33 = sphi 0, %s33
      %s35 = sphi 0, %s33
      %s36 = sphi 0, %s35
      %s50 = sphi 0, %s36
      %s54 = sphi 0, %s54
      %s56 = sphi 0, %s54
      %s57 = sphi 0, %s56
      %s71 = sphi 0, %s57
      %s75 = sphi 0, %s75
      %s77 = sphi 0, %s75
      %s78 = sphi 0, %s77
      %s92 = sphi 0, %s78
      %s96 = sphi 0, %s96
      %s98 = sphi 0, %s96
      %s99 = sphi 0, %s98
      %s113 = sphi 0, %s99
      %s117 = sphi 0, %s117
      %s119 = sphi 0, %s117
      %s120 = sphi 0, %s119
      %s134 = sphi 0, %s120
      %s140 = sphi 0, %s142
      %s143 = sphi 0, %s140
      %s144 = sphi 0, %s143
      %s160 = sphi 0, %s144
      %s166 = sphi 0, %s168
      %s169 = sphi 0, %s166
      %s170 = sphi 0, %s169
      %s186 = sphi 0, %s170
      %s192 = sphi 0, %s194
      %s195 = sphi 0, %s192
      %s196 = sphi 0, %s195
      %s212 = sphi 0, %s196
      %s218 = sphi 0, %s220
      %s221 = sphi 0, %s218
      %s222 = sphi 0, %s221
      %s238 = sphi 0, %s222
      %s244 = sphi 0, %s246
      %s247 = sphi 0, %s244
      %s248 = sphi 0, %s247
      %s264 = sphi 0, %s248
      %s270 = sphi 0, %s272
      %s273 = sphi 0, %s270
      %s274 = sphi 0, %s273
      %s290 = sphi 0, %s274
      %s296 = sphi 0, %s298
      %s299 = sphi 0, %s296
      %s300 = sphi 0, %s299
      %s316 = sphi 0, %s300
      %s322 = sphi 0, %s324
      %s325 = sphi 0, %s322
      %s326 = sphi 0, %s325
      %s342 = sphi 0, %s326
      %s348 = sphi 0, %s350
      %s351 = sphi 0, %s348
      %s352 = sphi 0, %s351
      %s368 = sphi 0, %s352
      %s374 = sphi 0, %s376
      %s377 = sphi 0, %s374
      %s378 = sphi 0, %s377
      %s394 = sphi 0, %s378
      %s400 = sphi 0, %s402
      %s403 = sphi 0, %s400
      %s404 = sphi 0, %s403
      %s420 = sphi 0, %s404
      %s426 = sphi 0, %s428
      %s429 = sphi 0, %s426
      %s430 = sphi 0, %s429
      %s446 = sphi 0, %s430
      %s450 = sphi 0, %s450
      %s452 = sphi 0, %s450
      %s453 = sphi 0, %s452
      %s467 = sphi 0, %s453
    $region4: #{text_encoder_forward.1} parent=1 // loop_header_branch
      %28 = sbr.rel (%p26) target = $region8
    $region5: #{text_encoder_forward.1} parent=1 // loop_body
      %s30 = ssub.s32 %s25, 1
      %s31 = ssub.s32 %s25, 2
      %s32 = sadd.s32 %s25, 1
      %s34 = sadd.s32 %s33, 1
      %p37 = scmp.eq.s32.totalorder %s25, 1
      %p38 = scmp.ne.s32.totalorder %s33, %s35
      %p39 = scmp.eq.s32.totalorder %s25, 0
      %p40 = por %p38, %p39
      %p41 = scmp.ne.s32.totalorder %s33, %s35
      %p42 = scmp.eq.s32.totalorder %s30, 1
      %p43 = por %p41, %p42
      %p44 = scmp.ne.s32.totalorder %s35, %s36
      %p45 = scmp.eq.s32.totalorder %s30, 0
      %p46 = por %p44, %p45
      %p47 = scmp.ne.s32.totalorder %s35, %s36
      %p48 = scmp.eq.s32.totalorder %s31, 1
      %p49 = por %p47, %p48
      %p51 = scmp.ne.s32.totalorder %s36, %s50
      %p52 = scmp.eq.s32.totalorder %s31, 0
      %p53 = por %p51, %p52
      %s55 = sadd.s32 %s54, 1
      %p58 = scmp.eq.s32.totalorder %s25, 1
      %p59 = scmp.ne.s32.totalorder %s54, %s56
      %p60 = scmp.eq.s32.totalorder %s25, 0
      %p61 = por %p59, %p60
      %p62 = scmp.ne.s32.totalorder %s54, %s56
      %p63 = scmp.eq.s32.totalorder %s30, 1
      %p64 = por %p62, %p63
      %p65 = scmp.ne.s32.totalorder %s56, %s57
      %p66 = scmp.eq.s32.totalorder %s30, 0
      %p67 = por %p65, %p66
      %p68 = scmp.ne.s32.totalorder %s56, %s57
      %p69 = scmp.eq.s32.totalorder %s31, 1
      %p70 = por %p68, %p69
      %p72 = scmp.ne.s32.totalorder %s57, %s71
      %p73 = scmp.eq.s32.totalorder %s31, 0
      %p74 = por %p72, %p73
      %s76 = sadd.s32 %s75, 1
      %p79 = scmp.eq.s32.totalorder %s25, 1
      %p80 = scmp.ne.s32.totalorder %s75, %s77
      %p81 = scmp.eq.s32.totalorder %s25, 0
      %p82 = por %p80, %p81
      %p83 = scmp.ne.s32.totalorder %s75, %s77
      %p84 = scmp.eq.s32.totalorder %s30, 1
      %p85 = por %p83, %p84
      %p86 = scmp.ne.s32.totalorder %s77, %s78
      %p87 = scmp.eq.s32.totalorder %s30, 0
      %p88 = por %p86, %p87
      %p89 = scmp.ne.s32.totalorder %s77, %s78
      %p90 = scmp.eq.s32.totalorder %s31, 1
      %p91 = por %p89, %p90
      %p93 = scmp.ne.s32.totalorder %s78, %s92
      %p94 = scmp.eq.s32.totalorder %s31, 0
      %p95 = por %p93, %p94
      %s97 = sadd.s32 %s96, 1
      %p100 = scmp.eq.s32.totalorder %s25, 1
      %p101 = scmp.ne.s32.totalorder %s96, %s98
      %p102 = scmp.eq.s32.totalorder %s25, 0
      %p103 = por %p101, %p102
      %p104 = scmp.ne.s32.totalorder %s96, %s98
      %p105 = scmp.eq.s32.totalorder %s30, 1
      %p106 = por %p104, %p105
      %p107 = scmp.ne.s32.totalorder %s98, %s99
      %p108 = scmp.eq.s32.totalorder %s30, 0
      %p109 = por %p107, %p108
      %p110 = scmp.ne.s32.totalorder %s98, %s99
      %p111 = scmp.eq.s32.totalorder %s31, 1
      %p112 = por %p110, %p111
      %p114 = scmp.ne.s32.totalorder %s99, %s113
      %p115 = scmp.eq.s32.totalorder %s31, 0
      %p116 = por %p114, %p115
      %s118 = sadd.s32 %s117, 1
      %p121 = scmp.eq.s32.totalorder %s25, 1
      %p122 = scmp.ne.s32.totalorder %s117, %s119
      %p123 = scmp.eq.s32.totalorder %s25, 0
      %p124 = por %p122, %p123
      %p125 = scmp.ne.s32.totalorder %s117, %s119
      %p126 = scmp.eq.s32.totalorder %s30, 1
      %p127 = por %p125, %p126
      %p128 = scmp.ne.s32.totalorder %s119, %s120
      %p129 = scmp.eq.s32.totalorder %s30, 0
      %p130 = por %p128, %p129
      %p131 = scmp.ne.s32.totalorder %s119, %s120
      %p132 = scmp.eq.s32.totalorder %s31, 1
      %p133 = por %p131, %p132
      %p135 = scmp.ne.s32.totalorder %s120, %s134
      %p136 = scmp.eq.s32.totalorder %s31, 0
      %p137 = por %p135, %p136
      %s138 = ssub.s32 %s25, %s32
      %p139 = scmp.eq.s32.totalorder %s138, 0
      %s141 = sadd.s32 %s140, 1
      %s142 = scalar_select %p139, %s140, %s141
      %p145 = pneg %p139
      %p146 = scmp.eq.s32.totalorder %s25, 1
      %p147 = por %p145, %p146
      %p148 = scmp.ne.s32.totalorder %s140, %s143
      %p149 = scmp.eq.s32.totalorder %s25, 0
      %p150 = por %p148, %p149
      %p151 = scmp.ne.s32.totalorder %s140, %s143
      %p152 = scmp.eq.s32.totalorder %s30, 1
      %p153 = por %p151, %p152
      %p154 = scmp.ne.s32.totalorder %s143, %s144
      %p155 = scmp.eq.s32.totalorder %s30, 0
      %p156 = por %p154, %p155
      %p157 = scmp.ne.s32.totalorder %s143, %s144
      %p158 = scmp.eq.s32.totalorder %s31, 1
      %p159 = por %p157, %p158
      %p161 = scmp.ne.s32.totalorder %s144, %s160
      %p162 = scmp.eq.s32.totalorder %s31, 0
      %p163 = por %p161, %p162
      %s164 = ssub.s32 %s25, %s32
      %p165 = scmp.eq.s32.totalorder %s164, 0
      %s167 = sadd.s32 %s166, 1
      %s168 = scalar_select %p165, %s166, %s167
      %p171 = pneg %p165
      %p172 = scmp.eq.s32.totalorder %s25, 1
      %p173 = por %p171, %p172
      %p174 = scmp.ne.s32.totalorder %s166, %s169
      %p175 = scmp.eq.s32.totalorder %s25, 0
      %p176 = por %p174, %p175
      %p177 = scmp.ne.s32.totalorder %s166, %s169
      %p178 = scmp.eq.s32.totalorder %s30, 1
      %p179 = por %p177, %p178
      %p180 = scmp.ne.s32.totalorder %s169, %s170
      %p181 = scmp.eq.s32.totalorder %s30, 0
      %p182 = por %p180, %p181
      %p183 = scmp.ne.s32.totalorder %s169, %s170
      %p184 = scmp.eq.s32.totalorder %s31, 1
      %p185 = por %p183, %p184
      %p187 = scmp.ne.s32.totalorder %s170, %s186
      %p188 = scmp.eq.s32.totalorder %s31, 0
      %p189 = por %p187, %p188
      %s190 = ssub.s32 %s25, %s32
      %p191 = scmp.eq.s32.totalorder %s190, 0
      %s193 = sadd.s32 %s192, 1
      %s194 = scalar_select %p191, %s192, %s193
      %p197 = pneg %p191
      %p198 = scmp.eq.s32.totalorder %s25, 1
      %p199 = por %p197, %p198
      %p200 = scmp.ne.s32.totalorder %s192, %s195
      %p201 = scmp.eq.s32.totalorder %s25, 0
      %p202 = por %p200, %p201
      %p203 = scmp.ne.s32.totalorder %s192, %s195
      %p204 = scmp.eq.s32.totalorder %s30, 1
      %p205 = por %p203, %p204
      %p206 = scmp.ne.s32.totalorder %s195, %s196
      %p207 = scmp.eq.s32.totalorder %s30, 0
      %p208 = por %p206, %p207
      %p209 = scmp.ne.s32.totalorder %s195, %s196
      %p210 = scmp.eq.s32.totalorder %s31, 1
      %p211 = por %p209, %p210
      %p213 = scmp.ne.s32.totalorder %s196, %s212
      %p214 = scmp.eq.s32.totalorder %s31, 0
      %p215 = por %p213, %p214
      %s216 = ssub.s32 %s25, %s32
      %p217 = scmp.eq.s32.totalorder %s216, 0
      %s219 = sadd.s32 %s218, 1
      %s220 = scalar_select %p217, %s218, %s219
      %p223 = pneg %p217
      %p224 = scmp.eq.s32.totalorder %s25, 1
      %p225 = por %p223, %p224
      %p226 = scmp.ne.s32.totalorder %s218, %s221
      %p227 = scmp.eq.s32.totalorder %s25, 0
      %p228 = por %p226, %p227
      %p229 = scmp.ne.s32.totalorder %s218, %s221
      %p230 = scmp.eq.s32.totalorder %s30, 1
      %p231 = por %p229, %p230
      %p232 = scmp.ne.s32.totalorder %s221, %s222
      %p233 = scmp.eq.s32.totalorder %s30, 0
      %p234 = por %p232, %p233
      %p235 = scmp.ne.s32.totalorder %s221, %s222
      %p236 = scmp.eq.s32.totalorder %s31, 1
      %p237 = por %p235, %p236
      %p239 = scmp.ne.s32.totalorder %s222, %s238
      %p240 = scmp.eq.s32.totalorder %s31, 0
      %p241 = por %p239, %p240
      %s242 = ssub.s32 %s25, %s32
      %p243 = scmp.eq.s32.totalorder %s242, 0
      %s245 = sadd.s32 %s244, 1
      %s246 = scalar_select %p243, %s244, %s245
      %p249 = pneg %p243
      %p250 = scmp.eq.s32.totalorder %s25, 1
      %p251 = por %p249, %p250
      %p252 = scmp.ne.s32.totalorder %s244, %s247
      %p253 = scmp.eq.s32.totalorder %s25, 0
      %p254 = por %p252, %p253
      %p255 = scmp.ne.s32.totalorder %s244, %s247
      %p256 = scmp.eq.s32.totalorder %s30, 1
      %p257 = por %p255, %p256
      %p258 = scmp.ne.s32.totalorder %s247, %s248
      %p259 = scmp.eq.s32.totalorder %s30, 0
      %p260 = por %p258, %p259
      %p261 = scmp.ne.s32.totalorder %s247, %s248
      %p262 = scmp.eq.s32.totalorder %s31, 1
      %p263 = por %p261, %p262
      %p265 = scmp.ne.s32.totalorder %s248, %s264
      %p266 = scmp.eq.s32.totalorder %s31, 0
      %p267 = por %p265, %p266
      %s268 = ssub.s32 %s25, %s32
      %p269 = scmp.eq.s32.totalorder %s268, 0
      %s271 = sadd.s32 %s270, 1
      %s272 = scalar_select %p269, %s270, %s271
      %p275 = pneg %p269
      %p276 = scmp.eq.s32.totalorder %s25, 1
      %p277 = por %p275, %p276
      %p278 = scmp.ne.s32.totalorder %s270, %s273
      %p279 = scmp.eq.s32.totalorder %s25, 0
      %p280 = por %p278, %p279
      %p281 = scmp.ne.s32.totalorder %s270, %s273
      %p282 = scmp.eq.s32.totalorder %s30, 1
      %p283 = por %p281, %p282
      %p284 = scmp.ne.s32.totalorder %s273, %s274
      %p285 = scmp.eq.s32.totalorder %s30, 0
      %p286 = por %p284, %p285
      %p287 = scmp.ne.s32.totalorder %s273, %s274
      %p288 = scmp.eq.s32.totalorder %s31, 1
      %p289 = por %p287, %p288
      %p291 = scmp.ne.s32.totalorder %s274, %s290
      %p292 = scmp.eq.s32.totalorder %s31, 0
      %p293 = por %p291, %p292
      %s294 = ssub.s32 %s25, %s32
      %p295 = scmp.eq.s32.totalorder %s294, 0
      %s297 = sadd.s32 %s296, 1
      %s298 = scalar_select %p295, %s296, %s297
      %p301 = pneg %p295
      %p302 = scmp.eq.s32.totalorder %s25, 1
      %p303 = por %p301, %p302
      %p304 = scmp.ne.s32.totalorder %s296, %s299
      %p305 = scmp.eq.s32.totalorder %s25, 0
      %p306 = por %p304, %p305
      %p307 = scmp.ne.s32.totalorder %s296, %s299
      %p308 = scmp.eq.s32.totalorder %s30, 1
      %p309 = por %p307, %p308
      %p310 = scmp.ne.s32.totalorder %s299, %s300
      %p311 = scmp.eq.s32.totalorder %s30, 0
      %p312 = por %p310, %p311
      %p313 = scmp.ne.s32.totalorder %s299, %s300
      %p314 = scmp.eq.s32.totalorder %s31, 1
      %p315 = por %p313, %p314
      %p317 = scmp.ne.s32.totalorder %s300, %s316
      %p318 = scmp.eq.s32.totalorder %s31, 0
      %p319 = por %p317, %p318
      %s320 = ssub.s32 %s25, %s32
      %p321 = scmp.eq.s32.totalorder %s320, 0
      %s323 = sadd.s32 %s322, 1
      %s324 = scalar_select %p321, %s322, %s323
      %p327 = pneg %p321
      %p328 = scmp.eq.s32.totalorder %s25, 1
      %p329 = por %p327, %p328
      %p330 = scmp.ne.s32.totalorder %s322, %s325
      %p331 = scmp.eq.s32.totalorder %s25, 0
      %p332 = por %p330, %p331
      %p333 = scmp.ne.s32.totalorder %s322, %s325
      %p334 = scmp.eq.s32.totalorder %s30, 1
      %p335 = por %p333, %p334
      %p336 = scmp.ne.s32.totalorder %s325, %s326
      %p337 = scmp.eq.s32.totalorder %s30, 0
      %p338 = por %p336, %p337
      %p339 = scmp.ne.s32.totalorder %s325, %s326
      %p340 = scmp.eq.s32.totalorder %s31, 1
      %p341 = por %p339, %p340
      %p343 = scmp.ne.s32.totalorder %s326, %s342
      %p344 = scmp.eq.s32.totalorder %s31, 0
      %p345 = por %p343, %p344
      %s346 = ssub.s32 %s25, %s32
      %p347 = scmp.eq.s32.totalorder %s346, 0
      %s349 = sadd.s32 %s348, 1
      %s350 = scalar_select %p347, %s348, %s349
      %p353 = pneg %p347
      %p354 = scmp.eq.s32.totalorder %s25, 1
      %p355 = por %p353, %p354
      %p356 = scmp.ne.s32.totalorder %s348, %s351
      %p357 = scmp.eq.s32.totalorder %s25, 0
      %p358 = por %p356, %p357
      %p359 = scmp.ne.s32.totalorder %s348, %s351
      %p360 = scmp.eq.s32.totalorder %s30, 1
      %p361 = por %p359, %p360
      %p362 = scmp.ne.s32.totalorder %s351, %s352
      %p363 = scmp.eq.s32.totalorder %s30, 0
      %p364 = por %p362, %p363
      %p365 = scmp.ne.s32.totalorder %s351, %s352
      %p366 = scmp.eq.s32.totalorder %s31, 1
      %p367 = por %p365, %p366
      %p369 = scmp.ne.s32.totalorder %s352, %s368
      %p370 = scmp.eq.s32.totalorder %s31, 0
      %p371 = por %p369, %p370
      %s372 = ssub.s32 %s25, %s32
      %p373 = scmp.eq.s32.totalorder %s372, 0
      %s375 = sadd.s32 %s374, 1
      %s376 = scalar_select %p373, %s374, %s375
      %p379 = pneg %p373
      %p380 = scmp.eq.s32.totalorder %s25, 1
      %p381 = por %p379, %p380
      %p382 = scmp.ne.s32.totalorder %s374, %s377
      %p383 = scmp.eq.s32.totalorder %s25, 0
      %p384 = por %p382, %p383
      %p385 = scmp.ne.s32.totalorder %s374, %s377
      %p386 = scmp.eq.s32.totalorder %s30, 1
      %p387 = por %p385, %p386
      %p388 = scmp.ne.s32.totalorder %s377, %s378
      %p389 = scmp.eq.s32.totalorder %s30, 0
      %p390 = por %p388, %p389
      %p391 = scmp.ne.s32.totalorder %s377, %s378
      %p392 = scmp.eq.s32.totalorder %s31, 1
      %p393 = por %p391, %p392
      %p395 = scmp.ne.s32.totalorder %s378, %s394
      %p396 = scmp.eq.s32.totalorder %s31, 0
      %p397 = por %p395, %p396
      %s398 = ssub.s32 %s25, %s32
      %p399 = scmp.eq.s32.totalorder %s398, 0
      %s401 = sadd.s32 %s400, 1
      %s402 = scalar_select %p399, %s400, %s401
      %p405 = pneg %p399
      %p406 = scmp.eq.s32.totalorder %s25, 1
      %p407 = por %p405, %p406
      %p408 = scmp.ne.s32.totalorder %s400, %s403
      %p409 = scmp.eq.s32.totalorder %s25, 0
      %p410 = por %p408, %p409
      %p411 = scmp.ne.s32.totalorder %s400, %s403
      %p412 = scmp.eq.s32.totalorder %s30, 1
      %p413 = por %p411, %p412
      %p414 = scmp.ne.s32.totalorder %s403, %s404
      %p415 = scmp.eq.s32.totalorder %s30, 0
      %p416 = por %p414, %p415
      %p417 = scmp.ne.s32.totalorder %s403, %s404
      %p418 = scmp.eq.s32.totalorder %s31, 1
      %p419 = por %p417, %p418
      %p421 = scmp.ne.s32.totalorder %s404, %s420
      %p422 = scmp.eq.s32.totalorder %s31, 0
      %p423 = por %p421, %p422
      %s424 = ssub.s32 %s25, %s32
      %p425 = scmp.eq.s32.totalorder %s424, 0
      %s427 = sadd.s32 %s426, 1
      %s428 = scalar_select %p425, %s426, %s427
      %p431 = pneg %p425
      %p432 = scmp.eq.s32.totalorder %s25, 1
      %p433 = por %p431, %p432
      %p434 = scmp.ne.s32.totalorder %s426, %s429
      %p435 = scmp.eq.s32.totalorder %s25, 0
      %p436 = por %p434, %p435
      %p437 = scmp.ne.s32.totalorder %s426, %s429
      %p438 = scmp.eq.s32.totalorder %s30, 1
      %p439 = por %p437, %p438
      %p440 = scmp.ne.s32.totalorder %s429, %s430
      %p441 = scmp.eq.s32.totalorder %s30, 0
      %p442 = por %p440, %p441
      %p443 = scmp.ne.s32.totalorder %s429, %s430
      %p444 = scmp.eq.s32.totalorder %s31, 1
      %p445 = por %p443, %p444
      %p447 = scmp.ne.s32.totalorder %s430, %s446
      %p448 = scmp.eq.s32.totalorder %s31, 0
      %p449 = por %p447, %p448
      %s451 = sadd.s32 %s450, 1
      %p454 = scmp.eq.s32.totalorder %s25, 1
      %p455 = scmp.ne.s32.totalorder %s450, %s452
      %p456 = scmp.eq.s32.totalorder %s25, 0
      %p457 = por %p455, %p456
      %p458 = scmp.ne.s32.totalorder %s450, %s452
      %p459 = scmp.eq.s32.totalorder %s30, 1
      %p460 = por %p458, %p459
      %p461 = scmp.ne.s32.totalorder %s452, %s453
      %p462 = scmp.eq.s32.totalorder %s30, 0
      %p463 = por %p461, %p462
      %p464 = scmp.ne.s32.totalorder %s452, %s453
      %p465 = scmp.eq.s32.totalorder %s31, 1
      %p466 = por %p464, %p465
      %p468 = scmp.ne.s32.totalorder %s453, %s467
      %p469 = scmp.eq.s32.totalorder %s31, 0
      %p470 = por %p468, %p469
      %p471 = scmp.le.s32.totalorder 1, %s25
      %p472 = scmp.lt.s32.totalorder %s25, 3
      %p473 = pnand %p471, %p472
      %p474 = pneg %p473
      // Predicated region
      $region9: #{text_encoder_forward.1} parent=5 // pred_check
        _
      $region10: #{text_encoder_forward.1} parent=5 // pred_check_branch
        %476 = sbr.rel (%p473) target = $region12
      $region11: #{text_encoder_forward.1} parent=5 // pred_region
        %s477 = ssub.s32 %s25, 1
        // Predicated region
        $region13: #{text_encoder_forward.1} parent=11 // pred_check
          %p478 = pneg %p46
        $region14: #{text_encoder_forward.1} parent=11 // pred_check_branch
          %480 = sbr.rel (%p478) target = $region16
        $region15: #{text_encoder_forward.1} parent=11 // pred_region
          _
        $region16: #{text_encoder_forward.1} parent=11 // pred_fallthru
          _
        // Predicated region
        $region17: #{text_encoder_forward.1} parent=11 // pred_check
          %p481 = pneg %p67
        $region18: #{text_encoder_forward.1} parent=11 // pred_check_branch
          %483 = sbr.rel (%p481) target = $region20
        $region19: #{text_encoder_forward.1} parent=11 // pred_region
          _
        $region20: #{text_encoder_forward.1} parent=11 // pred_fallthru
          _
        // Predicated region
        $region21: #{text_encoder_forward.1} parent=11 // pred_check
          %p484 = pneg %p88
        $region22: #{text_encoder_forward.1} parent=11 // pred_check_branch
          %486 = sbr.rel (%p484) target = $region24
        $region23: #{text_encoder_forward.1} parent=11 // pred_region
          _
        $region24: #{text_encoder_forward.1} parent=11 // pred_fallthru
          _
        // Predicated region
        $region25: #{text_encoder_forward.1} parent=11 // pred_check
          %p487 = pneg %p109
        $region26: #{text_encoder_forward.1} parent=11 // pred_check_branch
          %489 = sbr.rel (%p487) target = $region28
        $region27: #{text_encoder_forward.1} parent=11 // pred_region
          %s491 = ssub.s32 32, 32
          %492 = vsyncadd [#allocation6], %s491
          %s494 = sshll.u32 [#allocation5], 4
          %s495 = int_to_ptr.vmem [resolvable:$true] %s494
          %497 = dma.hbm_to_vmem [thread:$0]  %s3, 32, %s495, [#allocation6]
        $region28: #{text_encoder_forward.1} parent=11 // pred_fallthru
          _
        // Predicated region
        $region29: #{text_encoder_forward.1} parent=11 // pred_check
          %p498 = pneg %p130
        $region30: #{text_encoder_forward.1} parent=11 // pred_check_branch
          %500 = sbr.rel (%p498) target = $region32
        $region31: #{text_encoder_forward.1} parent=11 // pred_region
          %s502 = ssub.s32 32, 32
          %503 = vsyncadd [#allocation8], %s502
          %s505 = sshll.u32 [#allocation7], 4
          %s506 = int_to_ptr.vmem [resolvable:$true] %s505
          %508 = dma.hbm_to_vmem [thread:$0]  %s4, 32, %s506, [#allocation8]
        $region32: #{text_encoder_forward.1} parent=11 // pred_fallthru
          _
      $region12: #{text_encoder_forward.1} parent=5 // pred_fallthru
        _
      %p509 = scmp.lt.s32.totalorder %s25, 2
      // Predicated region
      $region33: #{text_encoder_forward.1} parent=5 // pred_check
        %p510 = pneg %p509
      $region34: #{text_encoder_forward.1} parent=5 // pred_check_branch
        %512 = sbr.rel (%p510) target = $region36
      $region35: #{text_encoder_forward.1} parent=5 // pred_region
        // Predicated region
        $region37: #{text_encoder_forward.1} parent=35 // pred_check
          %p513 = pneg %p150
        $region38: #{text_encoder_forward.1} parent=35 // pred_check_branch
          %515 = sbr.rel (%p513) target = $region40
        $region39: #{text_encoder_forward.1} parent=35 // pred_region
          %s516 = sand.u32 %s25, 1
          %s517 = scalar_lea.sflag [#allocation6], %s516
          %s518 = sand.u32 %s140, 1
          %s519 = smul.addr %s518, 1536
          %s520 = scalar_lea.vmem [#allocation9], %s519
          %s522 = ssub.s32 24576, 24576
          %523 = vsyncadd %s517, %s522
          %s524 = smul.addr %s25, 384
          %s525 = smul.addr %s524, 64
          %s526 = scalar_lea.hbm %s5, %s525
          %s527 = sshll.u32 %s520, 4
          %s528 = int_to_ptr.vmem [resolvable:$true] %s527
          %533 = dma.hbm_to_vmem [thread:$0]  %s526, 24576, %s528, %s517, 768, 768, 48
        $region40: #{text_encoder_forward.1} parent=35 // pred_fallthru
          _
        // Predicated region
        $region41: #{text_encoder_forward.1} parent=35 // pred_check
          %p534 = pneg %p176
        $region42: #{text_encoder_forward.1} parent=35 // pred_check_branch
          %536 = sbr.rel (%p534) target = $region44
        $region43: #{text_encoder_forward.1} parent=35 // pred_region
          %s537 = sand.u32 %s25, 1
          %s538 = scalar_lea.sflag [#allocation6], %s537
          %s539 = sand.u32 %s166, 1
          %s540 = smul.addr %s539, 12
          %s541 = scalar_lea.vmem [#allocation10], %s540
          %s543 = ssub.s32 192, 192
          %544 = vsyncadd %s538, %s543
          %s545 = smul.addr %s25, 12
          %s546 = smul.addr %s545, 16
          %s547 = scalar_lea.hbm %s6, %s546
          %s549 = sshll.u32 %s541, 4
          %s550 = int_to_ptr.vmem [resolvable:$true] %s549
          %552 = dma.hbm_to_vmem [thread:$0]  %s547, 192, %s550, %s538
        $region44: #{text_encoder_forward.1} parent=35 // pred_fallthru
          _
        // Predicated region
        $region45: #{text_encoder_forward.1} parent=35 // pred_check
          %p553 = pneg %p202
        $region46: #{text_encoder_forward.1} parent=35 // pred_check_branch
          %555 = sbr.rel (%p553) target = $region48
        $region47: #{text_encoder_forward.1} parent=35 // pred_region
          %s556 = sand.u32 %s25, 1
          %s557 = scalar_lea.sflag [#allocation6], %s556
          %s558 = sand.u32 %s192, 1
          %s559 = smul.addr %s558, 512
          %s560 = scalar_lea.vmem [#allocation11], %s559
          %s562 = ssub.s32 8192, 8192
          %563 = vsyncadd %s557, %s562
          %s564 = smul.addr %s25, 128
          %s565 = smul.addr %s564, 64
          %s566 = scalar_lea.hbm %s7, %s565
          %s567 = sshll.u32 %s560, 4
          %s568 = int_to_ptr.vmem [resolvable:$true] %s567
          %573 = dma.hbm_to_vmem [thread:$0]  %s566, 8192, %s568, %s557, 128, 128, 8
        $region48: #{text_encoder_forward.1} parent=35 // pred_fallthru
          _
        // Predicated region
        $region49: #{text_encoder_forward.1} parent=35 // pred_check
          %p574 = pneg %p228
        $region50: #{text_encoder_forward.1} parent=35 // pred_check_branch
          %576 = sbr.rel (%p574) target = $region52
        $region51: #{text_encoder_forward.1} parent=35 // pred_region
          %s577 = sand.u32 %s25, 1
          %s578 = scalar_lea.sflag [#allocation6], %s577
          %s579 = sand.u32 %s218, 1
          %s580 = smul.addr %s579, 2
          %s581 = scalar_lea.vmem [#allocation12], %s580
          %s583 = ssub.s32 32, 32
          %584 = vsyncadd %s578, %s583
          %s585 = smul.addr %s25, 2
          %s586 = smul.addr %s585, 16
          %s587 = scalar_lea.hbm %s8, %s586
          %s589 = sshll.u32 %s581, 4
          %s590 = int_to_ptr.vmem [resolvable:$true] %s589
          %592 = dma.hbm_to_vmem [thread:$0]  %s587, 32, %s590, %s578
        $region52: #{text_encoder_forward.1} parent=35 // pred_fallthru
          _
        // Predicated region
        $region53: #{text_encoder_forward.1} parent=35 // pred_check
          %p593 = pneg %p254
        $region54: #{text_encoder_forward.1} parent=35 // pred_check_branch
          %595 = sbr.rel (%p593) target = $region56
        $region55: #{text_encoder_forward.1} parent=35 // pred_region
          %s596 = sand.u32 %s25, 1
          %s597 = scalar_lea.sflag [#allocation6], %s596
          %s598 = sand.u32 %s244, 1
          %s599 = smul.addr %s598, 2
          %s600 = scalar_lea.vmem [#allocation13], %s599
          %s602 = ssub.s32 32, 32
          %603 = vsyncadd %s597, %s602
          %s604 = smul.addr %s25, 2
          %s605 = smul.addr %s604, 16
          %s606 = scalar_lea.hbm %s9, %s605
          %s608 = sshll.u32 %s600, 4
          %s609 = int_to_ptr.vmem [resolvable:$true] %s608
          %611 = dma.hbm_to_vmem [thread:$0]  %s606, 32, %s609, %s597
        $region56: #{text_encoder_forward.1} parent=35 // pred_fallthru
          _
        // Predicated region
        $region57: #{text_encoder_forward.1} parent=35 // pred_check
          %p612 = pneg %p280
        $region58: #{text_encoder_forward.1} parent=35 // pred_check_branch
          %614 = sbr.rel (%p612) target = $region60
        $region59: #{text_encoder_forward.1} parent=35 // pred_region
          %s615 = sand.u32 %s25, 1
          %s616 = scalar_lea.sflag [#allocation6], %s615
          %s617 = sand.u32 %s270, 1
          %s618 = smul.addr %s617, 2
          %s619 = scalar_lea.vmem [#allocation14], %s618
          %s621 = ssub.s32 32, 32
          %622 = vsyncadd %s616, %s621
          %s623 = smul.addr %s25, 2
          %s624 = smul.addr %s623, 16
          %s625 = scalar_lea.hbm %s10, %s624
          %s627 = sshll.u32 %s619, 4
          %s628 = int_to_ptr.vmem [resolvable:$true] %s627
          %630 = dma.hbm_to_vmem [thread:$0]  %s625, 32, %s628, %s616
        $region60: #{text_encoder_forward.1} parent=35 // pred_fallthru
          _
        // Predicated region
        $region61: #{text_encoder_forward.1} parent=35 // pred_check
          %p631 = pneg %p306
        $region62: #{text_encoder_forward.1} parent=35 // pred_check_branch
          %633 = sbr.rel (%p631) target = $region64
        $region63: #{text_encoder_forward.1} parent=35 // pred_region
          %s634 = sand.u32 %s25, 1
          %s635 = scalar_lea.sflag [#allocation6], %s634
          %s636 = sand.u32 %s296, 1
          %s637 = smul.addr %s636, 1024
          %s638 = scalar_lea.vmem [#allocation15], %s637
          %s640 = ssub.s32 16384, 16384
          %641 = vsyncadd %s635, %s640
          %s642 = smul.addr %s25, 256
          %s643 = smul.addr %s642, 64
          %s644 = scalar_lea.hbm %s11, %s643
          %s645 = sshll.u32 %s638, 4
          %s646 = int_to_ptr.vmem [resolvable:$true] %s645
          %651 = dma.hbm_to_vmem [thread:$0]  %s644, 16384, %s646, %s635, 512, 512, 32
        $region64: #{text_encoder_forward.1} parent=35 // pred_fallthru
          _
        // Predicated region
        $region65: #{text_encoder_forward.1} parent=35 // pred_check
          %p652 = pneg %p332
        $region66: #{text_encoder_forward.1} parent=35 // pred_check_branch
          %654 = sbr.rel (%p652) target = $region68
        $region67: #{text_encoder_forward.1} parent=35 // pred_region
          %s655 = sand.u32 %s25, 1
          %s656 = scalar_lea.sflag [#allocation6], %s655
          %s657 = sand.u32 %s322, 1
          %s658 = smul.addr %s657, 8
          %s659 = scalar_lea.vmem [#allocation16], %s658
          %s661 = ssub.s32 128, 128
          %662 = vsyncadd %s656, %s661
          %s663 = smul.addr %s25, 8
          %s664 = smul.addr %s663, 16
          %s665 = scalar_lea.hbm %s12, %s664
          %s667 = sshll.u32 %s659, 4
          %s668 = int_to_ptr.vmem [resolvable:$true] %s667
          %670 = dma.hbm_to_vmem [thread:$0]  %s665, 128, %s668, %s656
        $region68: #{text_encoder_forward.1} parent=35 // pred_fallthru
          _
        // Predicated region
        $region69: #{text_encoder_forward.1} parent=35 // pred_check
          %p671 = pneg %p358
        $region70: #{text_encoder_forward.1} parent=35 // pred_check_branch
          %673 = sbr.rel (%p671) target = $region72
        $region71: #{text_encoder_forward.1} parent=35 // pred_region
          %s674 = sand.u32 %s25, 1
          %s675 = scalar_lea.sflag [#allocation6], %s674
          %s676 = sand.u32 %s348, 1
          %s677 = smul.addr %s676, 1024
          %s678 = scalar_lea.vmem [#allocation17], %s677
          %s680 = ssub.s32 16384, 16384
          %681 = vsyncadd %s675, %s680
          %s682 = smul.addr %s25, 256
          %s683 = smul.addr %s682, 64
          %s684 = scalar_lea.hbm %s13, %s683
          %s685 = sshll.u32 %s678, 4
          %s686 = int_to_ptr.vmem [resolvable:$true] %s685
          %691 = dma.hbm_to_vmem [thread:$0]  %s684, 16384, %s686, %s675, 128, 128, 8
        $region72: #{text_encoder_forward.1} parent=35 // pred_fallthru
          _
        // Predicated region
        $region73: #{text_encoder_forward.1} parent=35 // pred_check
          %p692 = pneg %p384
        $region74: #{text_encoder_forward.1} parent=35 // pred_check_branch
          %694 = sbr.rel (%p692) target = $region76
        $region75: #{text_encoder_forward.1} parent=35 // pred_region
          %s695 = sand.u32 %s25, 1
          %s696 = scalar_lea.sflag [#allocation6], %s695
          %s697 = sand.u32 %s374, 1
          %s698 = smul.addr %s697, 2
          %s699 = scalar_lea.vmem [#allocation18], %s698
          %s701 = ssub.s32 32, 32
          %702 = vsyncadd %s696, %s701
          %s703 = smul.addr %s25, 2
          %s704 = smul.addr %s703, 16
          %s705 = scalar_lea.hbm %s14, %s704
          %s707 = sshll.u32 %s699, 4
          %s708 = int_to_ptr.vmem [resolvable:$true] %s707
          %710 = dma.hbm_to_vmem [thread:$0]  %s705, 32, %s708, %s696
        $region76: #{text_encoder_forward.1} parent=35 // pred_fallthru
          _
        // Predicated region
        $region77: #{text_encoder_forward.1} parent=35 // pred_check
          %p711 = pneg %p410
        $region78: #{text_encoder_forward.1} parent=35 // pred_check_branch
          %713 = sbr.rel (%p711) target = $region80
        $region79: #{text_encoder_forward.1} parent=35 // pred_region
          %s714 = sand.u32 %s25, 1
          %s715 = scalar_lea.sflag [#allocation6], %s714
          %s716 = sand.u32 %s400, 1
          %s717 = smul.addr %s716, 2
          %s718 = scalar_lea.vmem [#allocation19], %s717
          %s720 = ssub.s32 32, 32
          %721 = vsyncadd %s715, %s720
          %s722 = smul.addr %s25, 2
          %s723 = smul.addr %s722, 16
          %s724 = scalar_lea.hbm %s15, %s723
          %s726 = sshll.u32 %s718, 4
          %s727 = int_to_ptr.vmem [resolvable:$true] %s726
          %729 = dma.hbm_to_vmem [thread:$0]  %s724, 32, %s727, %s715
        $region80: #{text_encoder_forward.1} parent=35 // pred_fallthru
          _
        // Predicated region
        $region81: #{text_encoder_forward.1} parent=35 // pred_check
          %p730 = pneg %p436
        $region82: #{text_encoder_forward.1} parent=35 // pred_check_branch
          %732 = sbr.rel (%p730) target = $region84
        $region83: #{text_encoder_forward.1} parent=35 // pred_region
          %s733 = sand.u32 %s25, 1
          %s734 = scalar_lea.sflag [#allocation6], %s733
          %s735 = sand.u32 %s426, 1
          %s736 = smul.addr %s735, 2
          %s737 = scalar_lea.vmem [#allocation20], %s736
          %s739 = ssub.s32 32, 32
          %740 = vsyncadd %s734, %s739
          %s741 = smul.addr %s25, 2
          %s742 = smul.addr %s741, 16
          %s743 = scalar_lea.hbm %s16, %s742
          %s745 = sshll.u32 %s737, 4
          %s746 = int_to_ptr.vmem [resolvable:$true] %s745
          %748 = dma.hbm_to_vmem [thread:$0]  %s743, 32, %s746, %s734
        $region84: #{text_encoder_forward.1} parent=35 // pred_fallthru
          _
      $region36: #{text_encoder_forward.1} parent=5 // pred_fallthru
        _
      %p749 = scmp.le.s32.totalorder 1, %s25
      %p750 = scmp.lt.s32.totalorder %s25, 3
      %p751 = pnand %p749, %p750
      %p752 = pneg %p751
      // Predicated region
      $region85: #{text_encoder_forward.1} parent=5 // pred_check
        _
      $region86: #{text_encoder_forward.1} parent=5 // pred_check_branch
        %754 = sbr.rel (%p751) target = $region88
      $region87: #{text_encoder_forward.1} parent=5 // pred_region
        %s755 = ssub.s32 %s25, 1
        // Predicated region
        $region89: #{text_encoder_forward.1} parent=87 // pred_check
          %p756 = pneg %p109
        $region90: #{text_encoder_forward.1} parent=87 // pred_check_branch
          %758 = sbr.rel (%p756) target = $region92
        $region91: #{text_encoder_forward.1} parent=87 // pred_region
          %759 = dma.done [#allocation6], 32
        $region92: #{text_encoder_forward.1} parent=87 // pred_fallthru
          _
        // Predicated region
        $region93: #{text_encoder_forward.1} parent=87 // pred_check
          %p760 = pneg %p130
        $region94: #{text_encoder_forward.1} parent=87 // pred_check_branch
          %762 = sbr.rel (%p760) target = $region96
        $region95: #{text_encoder_forward.1} parent=87 // pred_region
          %763 = dma.done [#allocation8], 32
        $region96: #{text_encoder_forward.1} parent=87 // pred_fallthru
          _
        %s764 = sand.u32 %s30, 1
        %s765 = scalar_lea.sflag [#allocation6], %s764
        %s766 = sand.u32 %s143, 1
        %s767 = smul.addr %s766, 1536
        %s768 = scalar_lea.vmem [#allocation9], %s767
        // Predicated region
        $region97: #{text_encoder_forward.1} parent=87 // pred_check
          %p769 = pneg %p156
        $region98: #{text_encoder_forward.1} parent=87 // pred_check_branch
          %771 = sbr.rel (%p769) target = $region100
        $region99: #{text_encoder_forward.1} parent=87 // pred_region
          %772 = dma.done %s765, 24576
        $region100: #{text_encoder_forward.1} parent=87 // pred_fallthru
          _
        %s773 = sand.u32 %s30, 1
        %s774 = scalar_lea.sflag [#allocation6], %s773
        %s775 = sand.u32 %s169, 1
        %s776 = smul.addr %s775, 12
        %s777 = scalar_lea.vmem [#allocation10], %s776
        // Predicated region
        $region101: #{text_encoder_forward.1} parent=87 // pred_check
          %p778 = pneg %p182
        $region102: #{text_encoder_forward.1} parent=87 // pred_check_branch
          %780 = sbr.rel (%p778) target = $region104
        $region103: #{text_encoder_forward.1} parent=87 // pred_region
          %781 = dma.done %s774, 192
        $region104: #{text_encoder_forward.1} parent=87 // pred_fallthru
          _
        %s782 = sand.u32 %s30, 1
        %s783 = scalar_lea.sflag [#allocation6], %s782
        %s784 = sand.u32 %s195, 1
        %s785 = smul.addr %s784, 512
        %s786 = scalar_lea.vmem [#allocation11], %s785
        // Predicated region
        $region105: #{text_encoder_forward.1} parent=87 // pred_check
          %p787 = pneg %p208
        $region106: #{text_encoder_forward.1} parent=87 // pred_check_branch
          %789 = sbr.rel (%p787) target = $region108
        $region107: #{text_encoder_forward.1} parent=87 // pred_region
          %790 = dma.done %s783, 8192
        $region108: #{text_encoder_forward.1} parent=87 // pred_fallthru
          _
        %s791 = sand.u32 %s30, 1
        %s792 = scalar_lea.sflag [#allocation6], %s791
        %s793 = sand.u32 %s221, 1
        %s794 = smul.addr %s793, 2
        %s795 = scalar_lea.vmem [#allocation12], %s794
        // Predicated region
        $region109: #{text_encoder_forward.1} parent=87 // pred_check
          %p796 = pneg %p234
        $region110: #{text_encoder_forward.1} parent=87 // pred_check_branch
          %798 = sbr.rel (%p796) target = $region112
        $region111: #{text_encoder_forward.1} parent=87 // pred_region
          %799 = dma.done %s792, 32
        $region112: #{text_encoder_forward.1} parent=87 // pred_fallthru
          _
        %s800 = sand.u32 %s30, 1
        %s801 = scalar_lea.sflag [#allocation6], %s800
        %s802 = sand.u32 %s247, 1
        %s803 = smul.addr %s802, 2
        %s804 = scalar_lea.vmem [#allocation13], %s803
        // Predicated region
        $region113: #{text_encoder_forward.1} parent=87 // pred_check
          %p805 = pneg %p260
        $region114: #{text_encoder_forward.1} parent=87 // pred_check_branch
          %807 = sbr.rel (%p805) target = $region116
        $region115: #{text_encoder_forward.1} parent=87 // pred_region
          %808 = dma.done %s801, 32
        $region116: #{text_encoder_forward.1} parent=87 // pred_fallthru
          _
        %s809 = sand.u32 %s30, 1
        %s810 = scalar_lea.sflag [#allocation6], %s809
        %s811 = sand.u32 %s273, 1
        %s812 = smul.addr %s811, 2
        %s813 = scalar_lea.vmem [#allocation14], %s812
        // Predicated region
        $region117: #{text_encoder_forward.1} parent=87 // pred_check
          %p814 = pneg %p286
        $region118: #{text_encoder_forward.1} parent=87 // pred_check_branch
          %816 = sbr.rel (%p814) target = $region120
        $region119: #{text_encoder_forward.1} parent=87 // pred_region
          %817 = dma.done %s810, 32
        $region120: #{text_encoder_forward.1} parent=87 // pred_fallthru
          _
        %s818 = sand.u32 %s30, 1
        %s819 = scalar_lea.sflag [#allocation6], %s818
        %s820 = sand.u32 %s299, 1
        %s821 = smul.addr %s820, 1024
        %s822 = scalar_lea.vmem [#allocation15], %s821
        // Predicated region
        $region121: #{text_encoder_forward.1} parent=87 // pred_check
          %p823 = pneg %p312
        $region122: #{text_encoder_forward.1} parent=87 // pred_check_branch
          %825 = sbr.rel (%p823) target = $region124
        $region123: #{text_encoder_forward.1} parent=87 // pred_region
          %826 = dma.done %s819, 16384
        $region124: #{text_encoder_forward.1} parent=87 // pred_fallthru
          _
        %s827 = sand.u32 %s30, 1
        %s828 = scalar_lea.sflag [#allocation6], %s827
        %s829 = sand.u32 %s325, 1
        %s830 = smul.addr %s829, 8
        %s831 = scalar_lea.vmem [#allocation16], %s830
        // Predicated region
        $region125: #{text_encoder_forward.1} parent=87 // pred_check
          %p832 = pneg %p338
        $region126: #{text_encoder_forward.1} parent=87 // pred_check_branch
          %834 = sbr.rel (%p832) target = $region128
        $region127: #{text_encoder_forward.1} parent=87 // pred_region
          %835 = dma.done %s828, 128
        $region128: #{text_encoder_forward.1} parent=87 // pred_fallthru
          _
        %s836 = sand.u32 %s30, 1
        %s837 = scalar_lea.sflag [#allocation6], %s836
        %s838 = sand.u32 %s351, 1
        %s839 = smul.addr %s838, 1024
        %s840 = scalar_lea.vmem [#allocation17], %s839
        // Predicated region
        $region129: #{text_encoder_forward.1} parent=87 // pred_check
          %p841 = pneg %p364
        $region130: #{text_encoder_forward.1} parent=87 // pred_check_branch
          %843 = sbr.rel (%p841) target = $region132
        $region131: #{text_encoder_forward.1} parent=87 // pred_region
          %844 = dma.done %s837, 16384
        $region132: #{text_encoder_forward.1} parent=87 // pred_fallthru
          _
        %s845 = sand.u32 %s30, 1
        %s846 = scalar_lea.sflag [#allocation6], %s845
        %s847 = sand.u32 %s377, 1
        %s848 = smul.addr %s847, 2
        %s849 = scalar_lea.vmem [#allocation18], %s848
        // Predicated region
        $region133: #{text_encoder_forward.1} parent=87 // pred_check
          %p850 = pneg %p390
        $region134: #{text_encoder_forward.1} parent=87 // pred_check_branch
          %852 = sbr.rel (%p850) target = $region136
        $region135: #{text_encoder_forward.1} parent=87 // pred_region
          %853 = dma.done %s846, 32
        $region136: #{text_encoder_forward.1} parent=87 // pred_fallthru
          _
        %s854 = sand.u32 %s30, 1
        %s855 = scalar_lea.sflag [#allocation6], %s854
        %s856 = sand.u32 %s403, 1
        %s857 = smul.addr %s856, 2
        %s858 = scalar_lea.vmem [#allocation19], %s857
        // Predicated region
        $region137: #{text_encoder_forward.1} parent=87 // pred_check
          %p859 = pneg %p416
        $region138: #{text_encoder_forward.1} parent=87 // pred_check_branch
          %861 = sbr.rel (%p859) target = $region140
        $region139: #{text_encoder_forward.1} parent=87 // pred_region
          %862 = dma.done %s855, 32
        $region140: #{text_encoder_forward.1} parent=87 // pred_fallthru
          _
        %s863 = sand.u32 %s30, 1
        %s864 = scalar_lea.sflag [#allocation6], %s863
        %s865 = sand.u32 %s429, 1
        %s866 = smul.addr %s865, 2
        %s867 = scalar_lea.vmem [#allocation20], %s866
        // Predicated region
        $region141: #{text_encoder_forward.1} parent=87 // pred_check
          %p868 = pneg %p442
        $region142: #{text_encoder_forward.1} parent=87 // pred_check_branch
          %870 = sbr.rel (%p868) target = $region144
        $region143: #{text_encoder_forward.1} parent=87 // pred_region
          %871 = dma.done %s864, 32
        $region144: #{text_encoder_forward.1} parent=87 // pred_fallthru
          _
        %p872 = pneg %p46
        %p873 = pneg %p43
        %p874 = pneg %p67
        %p875 = pneg %p64
        %p876 = pneg %p88
        %p877 = pneg %p85
        %p878 = pneg %p109
        %p879 = pneg %p106
        %p880 = pneg %p130
        %p881 = pneg %p127
        %s882 = sand.u32 %s30, 1
        %s883 = scalar_lea.sflag [#allocation6], %s882
        %s884 = sand.u32 %s143, 1
        %s885 = smul.addr %s884, 1536
        %s886 = scalar_lea.vmem [#allocation9], %s885
        %p887 = pneg %p156
        %p888 = pneg %p153
        %s889 = sand.u32 %s30, 1
        %s890 = scalar_lea.sflag [#allocation6], %s889
        %s891 = sand.u32 %s169, 1
        %s892 = smul.addr %s891, 12
        %s893 = scalar_lea.vmem [#allocation10], %s892
        %p894 = pneg %p182
        %p895 = pneg %p179
        %s896 = sand.u32 %s30, 1
        %s897 = scalar_lea.sflag [#allocation6], %s896
        %s898 = sand.u32 %s195, 1
        %s899 = smul.addr %s898, 512
        %s900 = scalar_lea.vmem [#allocation11], %s899
        %p901 = pneg %p208
        %p902 = pneg %p205
        %s903 = sand.u32 %s30, 1
        %s904 = scalar_lea.sflag [#allocation6], %s903
        %s905 = sand.u32 %s221, 1
        %s906 = smul.addr %s905, 2
        %s907 = scalar_lea.vmem [#allocation12], %s906
        %p908 = pneg %p234
        %p909 = pneg %p231
        %s910 = sand.u32 %s30, 1
        %s911 = scalar_lea.sflag [#allocation6], %s910
        %s912 = sand.u32 %s247, 1
        %s913 = smul.addr %s912, 2
        %s914 = scalar_lea.vmem [#allocation13], %s913
        %p915 = pneg %p260
        %p916 = pneg %p257
        %s917 = sand.u32 %s30, 1
        %s918 = scalar_lea.sflag [#allocation6], %s917
        %s919 = sand.u32 %s273, 1
        %s920 = smul.addr %s919, 2
        %s921 = scalar_lea.vmem [#allocation14], %s920
        %p922 = pneg %p286
        %p923 = pneg %p283
        %s924 = sand.u32 %s30, 1
        %s925 = scalar_lea.sflag [#allocation6], %s924
        %s926 = sand.u32 %s299, 1
        %s927 = smul.addr %s926, 1024
        %s928 = scalar_lea.vmem [#allocation15], %s927
        %p929 = pneg %p312
        %p930 = pneg %p309
        %s931 = sand.u32 %s30, 1
        %s932 = scalar_lea.sflag [#allocation6], %s931
        %s933 = sand.u32 %s325, 1
        %s934 = smul.addr %s933, 8
        %s935 = scalar_lea.vmem [#allocation16], %s934
        %p936 = pneg %p338
        %p937 = pneg %p335
        %s938 = sand.u32 %s30, 1
        %s939 = scalar_lea.sflag [#allocation6], %s938
        %s940 = sand.u32 %s351, 1
        %s941 = smul.addr %s940, 1024
        %s942 = scalar_lea.vmem [#allocation17], %s941
        %p943 = pneg %p364
        %p944 = pneg %p361
        %s945 = sand.u32 %s30, 1
        %s946 = scalar_lea.sflag [#allocation6], %s945
        %s947 = sand.u32 %s377, 1
        %s948 = smul.addr %s947, 2
        %s949 = scalar_lea.vmem [#allocation18], %s948
        %p950 = pneg %p390
        %p951 = pneg %p387
        %s952 = sand.u32 %s30, 1
        %s953 = scalar_lea.sflag [#allocation6], %s952
        %s954 = sand.u32 %s403, 1
        %s955 = smul.addr %s954, 2
        %s956 = scalar_lea.vmem [#allocation19], %s955
        %p957 = pneg %p416
        %p958 = pneg %p413
        %s959 = sand.u32 %s30, 1
        %s960 = scalar_lea.sflag [#allocation6], %s959
        %s961 = sand.u32 %s429, 1
        %s962 = smul.addr %s961, 2
        %s963 = scalar_lea.vmem [#allocation20], %s962
        %p964 = pneg %p442
        %p965 = pneg %p439
        %p966 = pneg %p463
        %p967 = pneg %p460
        %p969 = scmp.eq.s32.totalorder %s30, 0
        // Predicated region
        $region145: #{text_encoder_forward.1} parent=87 // pred_check
          %p970 = pneg %p969
        $region146: #{text_encoder_forward.1} parent=87 // pred_check_branch
          %972 = sbr.rel (%p970) target = $region148
        $region147: #{text_encoder_forward.1} parent=87 // pred_region
          %v973 = vld [vmem:[%s0] sm:$0xff]
          %v974 = vld [vmem:[%s0 + $0x8] sm:$0xff]
          %v975 = vld [vmem:[%s0 + $0x10] sm:$0xff]
          %v976 = vld [vmem:[%s0 + $0x18] sm:$0xff]
          %v977 = vunpack.c.l.bf16 %v973
          %v978 = vunpack.c.h.bf16 %v973
          %v979 = vunpack.c.l.bf16 %v974
          %v980 = vunpack.c.h.bf16 %v974
          %v981 = vunpack.c.l.bf16 %v975
          %v982 = vunpack.c.h.bf16 %v975
          %v983 = vunpack.c.l.bf16 %v976
          %v984 = vunpack.c.h.bf16 %v976
          %v985 = vld [vmem:[%s1] sm:$0xff]
          %v986 = vld [vmem:[%s1 + $0x8] sm:$0xff]
          %v987 = vld [vmem:[%s1 + $0x10] sm:$0xff]
          %v988 = vld [vmem:[%s1 + $0x18] sm:$0xff]
          %v989 = vadd.f32 %v977, %v985
          %v990 = vadd.f32 %v978, %v986
          %v991 = vadd.f32 %v979, %v987
          %v992 = vadd.f32 %v980, %v988
          %v993 = vadd.f32 %v981, %v985
          %v994 = vadd.f32 %v982, %v986
          %v995 = vadd.f32 %v983, %v987
          %v996 = vadd.f32 %v984, %v988
          %v997 = vld [vmem:[#allocation5] sm:$0x3]
          %v998 = vld [vmem:[#allocation7] sm:$0x3]
          %v999 = vadd.f32 %v989, %v990
          %1000 = vadd.xlane.f32.xlu0 %v999
          %v1001 = vpop.xlane.xlu0 %1000
          %v1002 = vadd.f32 %v991, %v992
          %1003 = vadd.xlane.f32.xlu0 %v1002
          %v1004 = vpop.xlane.xlu0 %1003
          %v1005 = vadd.f32 %v993, %v994
          %1006 = vadd.xlane.f32.xlu0 %v1005
          %v1007 = vpop.xlane.xlu0 %1006
          %v1008 = vadd.f32 %v995, %v996
          %1009 = vadd.xlane.f32.xlu0 %v1008
          %v1010 = vpop.xlane.xlu0 %1009
          %v1011 = vrcp.pop 256.0
          %v1012 = vmul.f32 %v1001, %v1011
          %v1013 = vmul.f32 %v1004, %v1011
          %v1014 = vmul.f32 %v1007, %v1011
          %v1015 = vmul.f32 %v1010, %v1011
          %v1016 = vsub.f32 %v989, %v1012
          %v1017 = vsub.f32 %v990, %v1012
          %v1018 = vsub.f32 %v991, %v1013
          %v1019 = vsub.f32 %v992, %v1013
          %v1020 = vsub.f32 %v993, %v1014
          %v1021 = vsub.f32 %v994, %v1014
          %v1022 = vsub.f32 %v995, %v1015
          %v1023 = vsub.f32 %v996, %v1015
          %v1024 = vmul.f32 %v1016, %v1016
          %v1025 = vmul.f32 %v1017, %v1017
          %v1026 = vmul.f32 %v1018, %v1018
          %v1027 = vmul.f32 %v1019, %v1019
          %v1028 = vmul.f32 %v1020, %v1020
          %v1029 = vmul.f32 %v1021, %v1021
          %v1030 = vmul.f32 %v1022, %v1022
          %v1031 = vmul.f32 %v1023, %v1023
          %v1032 = vadd.f32 %v1024, %v1025
          %1033 = vadd.xlane.f32.xlu0 %v1032
          %v1034 = vpop.xlane.xlu0 %1033
          %v1035 = vadd.f32 %v1026, %v1027
          %1036 = vadd.xlane.f32.xlu0 %v1035
          %v1037 = vpop.xlane.xlu0 %1036
          %v1038 = vadd.f32 %v1028, %v1029
          %1039 = vadd.xlane.f32.xlu0 %v1038
          %v1040 = vpop.xlane.xlu0 %1039
          %v1041 = vadd.f32 %v1030, %v1031
          %1042 = vadd.xlane.f32.xlu0 %v1041
          %v1043 = vpop.xlane.xlu0 %1042
          %v1044 = vmul.f32 %v1034, %v1011
          %v1045 = vmul.f32 %v1037, %v1011
          %v1046 = vmul.f32 %v1040, %v1011
          %v1047 = vmul.f32 %v1043, %v1011
          %v1048 = vadd.f32 %v1044, 1e-12
          %v1049 = vadd.f32 %v1045, 1e-12
          %v1050 = vadd.f32 %v1046, 1e-12
          %v1051 = vadd.f32 %v1047, 1e-12
          %v1052 = vrsqrt.pop %v1048
          %v1053 = vrsqrt.pop %v1049
          %v1054 = vrsqrt.pop %v1050
          %v1055 = vrsqrt.pop %v1051
          %v1056 = vmul.f32 %v1016, %v1052
          %v1057 = vmul.f32 %v1017, %v1052
          %v1058 = vmul.f32 %v1018, %v1053
          %v1059 = vmul.f32 %v1019, %v1053
          %v1060 = vmul.f32 %v1020, %v1054
          %v1061 = vmul.f32 %v1021, %v1054
          %v1062 = vmul.f32 %v1022, %v1055
          %v1063 = vmul.f32 %v1023, %v1055
          %v1065 = vlaneseq
          %v1066 = vshrl.u32 %v1065, 7
          %v1067 = vsub.s32 0, %v1066
          %v1068 = vrot.slane %v997, %v1067
          %v1069 = vlaneseq
          %v1070 = vshrl.u32 %v1069, 7
          %v1071 = vsub.s32 1, %v1070
          %v1072 = vrot.slane %v997, %v1071
          %v1075 = vmul.f32 %v1056, %v1068
          %v1076 = vmul.f32 %v1057, %v1072
          %v1077 = vmul.f32 %v1058, %v1068
          %v1078 = vmul.f32 %v1059, %v1072
          %v1079 = vmul.f32 %v1060, %v1068
          %v1080 = vmul.f32 %v1061, %v1072
          %v1081 = vmul.f32 %v1062, %v1068
          %v1082 = vmul.f32 %v1063, %v1072
          %v1084 = vlaneseq
          %v1085 = vshrl.u32 %v1084, 7
          %v1086 = vsub.s32 0, %v1085
          %v1087 = vrot.slane %v998, %v1086
          %v1088 = vlaneseq
          %v1089 = vshrl.u32 %v1088, 7
          %v1090 = vsub.s32 1, %v1089
          %v1091 = vrot.slane %v998, %v1090
          %v1094 = vadd.f32 %v1075, %v1087
          %v1095 = vadd.f32 %v1076, %v1091
          %v1096 = vadd.f32 %v1077, %v1087
          %v1097 = vadd.f32 %v1078, %v1091
          %v1098 = vadd.f32 %v1079, %v1087
          %v1099 = vadd.f32 %v1080, %v1091
          %v1100 = vadd.f32 %v1081, %v1087
          %v1101 = vadd.f32 %v1082, %v1091
          %1102 = vst [vmem:[#allocation2] sm:$0xff] %v1094
          %1103 = vst [vmem:[#allocation2 + $0x8] sm:$0xff] %v1095
          %1104 = vst [vmem:[#allocation2 + $0x10] sm:$0xff] %v1096
          %1105 = vst [vmem:[#allocation2 + $0x18] sm:$0xff] %v1097
          %1106 = vst [vmem:[#allocation2 + $0x20] sm:$0xff] %v1098
          %1107 = vst [vmem:[#allocation2 + $0x28] sm:$0xff] %v1099
          %1108 = vst [vmem:[#allocation2 + $0x30] sm:$0xff] %v1100
          %1109 = vst [vmem:[#allocation2 + $0x38] sm:$0xff] %v1101
        $region148: #{text_encoder_forward.1} parent=87 // pred_fallthru
          _
        %v1110 = vld [vmem:[#allocation2] sm:$0xff]
        %v1111 = vld [vmem:[#allocation2 + $0x8] sm:$0xff]
        %v1112 = vld [vmem:[#allocation2 + $0x10] sm:$0xff]
        %v1113 = vld [vmem:[#allocation2 + $0x18] sm:$0xff]
        %v1114 = vld [vmem:[#allocation2 + $0x20] sm:$0xff]
        %v1115 = vld [vmem:[#allocation2 + $0x28] sm:$0xff]
        %v1116 = vld [vmem:[#allocation2 + $0x30] sm:$0xff]
        %v1117 = vld [vmem:[#allocation2 + $0x38] sm:$0xff]
        %v1118 = vpack.c.bf16 %v1112, %v1110
        %v1119 = vpack.c.bf16 %v1113, %v1111
        %v1120 = vpack.c.bf16 %v1116, %v1114
        %v1121 = vpack.c.bf16 %v1117, %v1115
        %v1122 = vld [vmem:[%s768] sm:$0xff]
        %v1123 = vld [vmem:[%s768 + $0x8] sm:$0xff]
        %v1124 = vld [vmem:[%s768 + $0x10] sm:$0xff]
        %v1125 = vld [vmem:[%s768 + $0x18] sm:$0xff]
        %v1126 = vld [vmem:[%s768 + $0x20] sm:$0xff]
        %v1127 = vld [vmem:[%s768 + $0x28] sm:$0xff]
        %v1128 = vld [vmem:[%s768 + $0x30] sm:$0xff]
        %v1129 = vld [vmem:[%s768 + $0x38] sm:$0xff]
        %v1130 = vld [vmem:[%s768 + $0x40] sm:$0xff]
        %v1131 = vld [vmem:[%s768 + $0x48] sm:$0xff]
        %v1132 = vld [vmem:[%s768 + $0x50] sm:$0xff]
        %v1133 = vld [vmem:[%s768 + $0x58] sm:$0xff]
        %v1134 = vld [vmem:[%s768 + $0x60] sm:$0xff]
        %v1135 = vld [vmem:[%s768 + $0x68] sm:$0xff]
        %v1136 = vld [vmem:[%s768 + $0x70] sm:$0xff]
        %v1137 = vld [vmem:[%s768 + $0x78] sm:$0xff]
        %v1138 = vld [vmem:[%s768 + $0x80] sm:$0xff]
        %v1139 = vld [vmem:[%s768 + $0x88] sm:$0xff]
        %v1140 = vld [vmem:[%s768 + $0x90] sm:$0xff]
        %v1141 = vld [vmem:[%s768 + $0x98] sm:$0xff]
        %v1142 = vld [vmem:[%s768 + $0xa0] sm:$0xff]
        %v1143 = vld [vmem:[%s768 + $0xa8] sm:$0xff]
        %v1144 = vld [vmem:[%s768 + $0xb0] sm:$0xff]
        %v1145 = vld [vmem:[%s768 + $0xb8] sm:$0xff]
        %v1146 = vld [vmem:[%s768 + $0xc0] sm:$0xff]
        %v1147 = vld [vmem:[%s768 + $0xc8] sm:$0xff]
        %v1148 = vld [vmem:[%s768 + $0xd0] sm:$0xff]
        %v1149 = vld [vmem:[%s768 + $0xd8] sm:$0xff]
        %v1150 = vld [vmem:[%s768 + $0xe0] sm:$0xff]
        %v1151 = vld [vmem:[%s768 + $0xe8] sm:$0xff]
        %v1152 = vld [vmem:[%s768 + $0xf0] sm:$0xff]
        %v1153 = vld [vmem:[%s768 + $0xf8] sm:$0xff]
        %v1154 = vld [vmem:[%s768 + $0x100] sm:$0xff]
        %v1155 = vld [vmem:[%s768 + $0x108] sm:$0xff]
        %v1156 = vld [vmem:[%s768 + $0x110] sm:$0xff]
        %v1157 = vld [vmem:[%s768 + $0x118] sm:$0xff]
        %v1158 = vld [vmem:[%s768 + $0x120] sm:$0xff]
        %v1159 = vld [vmem:[%s768 + $0x128] sm:$0xff]
        %v1160 = vld [vmem:[%s768 + $0x130] sm:$0xff]
        %v1161 = vld [vmem:[%s768 + $0x138] sm:$0xff]
        %v1162 = vld [vmem:[%s768 + $0x140] sm:$0xff]
        %v1163 = vld [vmem:[%s768 + $0x148] sm:$0xff]
        %v1164 = vld [vmem:[%s768 + $0x150] sm:$0xff]
        %v1165 = vld [vmem:[%s768 + $0x158] sm:$0xff]
        %v1166 = vld [vmem:[%s768 + $0x160] sm:$0xff]
        %v1167 = vld [vmem:[%s768 + $0x168] sm:$0xff]
        %v1168 = vld [vmem:[%s768 + $0x170] sm:$0xff]
        %v1169 = vld [vmem:[%s768 + $0x178] sm:$0xff]
        %v1170 = vld [vmem:[%s768 + $0x180] sm:$0xff]
        %v1171 = vld [vmem:[%s768 + $0x188] sm:$0xff]
        %v1172 = vld [vmem:[%s768 + $0x190] sm:$0xff]
        %v1173 = vld [vmem:[%s768 + $0x198] sm:$0xff]
        %v1174 = vld [vmem:[%s768 + $0x1a0] sm:$0xff]
        %v1175 = vld [vmem:[%s768 + $0x1a8] sm:$0xff]
        %v1176 = vld [vmem:[%s768 + $0x1b0] sm:$0xff]
        %v1177 = vld [vmem:[%s768 + $0x1b8] sm:$0xff]
        %v1178 = vld [vmem:[%s768 + $0x1c0] sm:$0xff]
        %v1179 = vld [vmem:[%s768 + $0x1c8] sm:$0xff]
        %v1180 = vld [vmem:[%s768 + $0x1d0] sm:$0xff]
        %v1181 = vld [vmem:[%s768 + $0x1d8] sm:$0xff]
        %v1182 = vld [vmem:[%s768 + $0x1e0] sm:$0xff]
        %v1183 = vld [vmem:[%s768 + $0x1e8] sm:$0xff]
        %v1184 = vld [vmem:[%s768 + $0x1f0] sm:$0xff]
        %v1185 = vld [vmem:[%s768 + $0x1f8] sm:$0xff]
        %v1186 = vld [vmem:[%s768 + $0x200] sm:$0xff]
        %v1187 = vld [vmem:[%s768 + $0x208] sm:$0xff]
        %v1188 = vld [vmem:[%s768 + $0x210] sm:$0xff]
        %v1189 = vld [vmem:[%s768 + $0x218] sm:$0xff]
        %v1190 = vld [vmem:[%s768 + $0x220] sm:$0xff]
        %v1191 = vld [vmem:[%s768 + $0x228] sm:$0xff]
        %v1192 = vld [vmem:[%s768 + $0x230] sm:$0xff]
        %v1193 = vld [vmem:[%s768 + $0x238] sm:$0xff]
        %v1194 = vld [vmem:[%s768 + $0x240] sm:$0xff]
        %v1195 = vld [vmem:[%s768 + $0x248] sm:$0xff]
        %v1196 = vld [vmem:[%s768 + $0x250] sm:$0xff]
        %v1197 = vld [vmem:[%s768 + $0x258] sm:$0xff]
        %v1198 = vld [vmem:[%s768 + $0x260] sm:$0xff]
        %v1199 = vld [vmem:[%s768 + $0x268] sm:$0xff]
        %v1200 = vld [vmem:[%s768 + $0x270] sm:$0xff]
        %v1201 = vld [vmem:[%s768 + $0x278] sm:$0xff]
        %v1202 = vld [vmem:[%s768 + $0x280] sm:$0xff]
        %v1203 = vld [vmem:[%s768 + $0x288] sm:$0xff]
        %v1204 = vld [vmem:[%s768 + $0x290] sm:$0xff]
        %v1205 = vld [vmem:[%s768 + $0x298] sm:$0xff]
        %v1206 = vld [vmem:[%s768 + $0x2a0] sm:$0xff]
        %v1207 = vld [vmem:[%s768 + $0x2a8] sm:$0xff]
        %v1208 = vld [vmem:[%s768 + $0x2b0] sm:$0xff]
        %v1209 = vld [vmem:[%s768 + $0x2b8] sm:$0xff]
        %v1210 = vld [vmem:[%s768 + $0x2c0] sm:$0xff]
        %v1211 = vld [vmem:[%s768 + $0x2c8] sm:$0xff]
        %v1212 = vld [vmem:[%s768 + $0x2d0] sm:$0xff]
        %v1213 = vld [vmem:[%s768 + $0x2d8] sm:$0xff]
        %v1214 = vld [vmem:[%s768 + $0x2e0] sm:$0xff]
        %v1215 = vld [vmem:[%s768 + $0x2e8] sm:$0xff]
        %v1216 = vld [vmem:[%s768 + $0x2f0] sm:$0xff]
        %v1217 = vld [vmem:[%s768 + $0x2f8] sm:$0xff]
        %v1218 = vld [vmem:[%s768 + $0x300] sm:$0xff]
        %v1219 = vld [vmem:[%s768 + $0x308] sm:$0xff]
        %v1220 = vld [vmem:[%s768 + $0x310] sm:$0xff]
        %v1221 = vld [vmem:[%s768 + $0x318] sm:$0xff]
        %v1222 = vld [vmem:[%s768 + $0x320] sm:$0xff]
        %v1223 = vld [vmem:[%s768 + $0x328] sm:$0xff]
        %v1224 = vld [vmem:[%s768 + $0x330] sm:$0xff]
        %v1225 = vld [vmem:[%s768 + $0x338] sm:$0xff]
        %v1226 = vld [vmem:[%s768 + $0x340] sm:$0xff]
        %v1227 = vld [vmem:[%s768 + $0x348] sm:$0xff]
        %v1228 = vld [vmem:[%s768 + $0x350] sm:$0xff]
        %v1229 = vld [vmem:[%s768 + $0x358] sm:$0xff]
        %v1230 = vld [vmem:[%s768 + $0x360] sm:$0xff]
        %v1231 = vld [vmem:[%s768 + $0x368] sm:$0xff]
        %v1232 = vld [vmem:[%s768 + $0x370] sm:$0xff]
        %v1233 = vld [vmem:[%s768 + $0x378] sm:$0xff]
        %v1234 = vld [vmem:[%s768 + $0x380] sm:$0xff]
        %v1235 = vld [vmem:[%s768 + $0x388] sm:$0xff]
        %v1236 = vld [vmem:[%s768 + $0x390] sm:$0xff]
        %v1237 = vld [vmem:[%s768 + $0x398] sm:$0xff]
        %v1238 = vld [vmem:[%s768 + $0x3a0] sm:$0xff]
        %v1239 = vld [vmem:[%s768 + $0x3a8] sm:$0xff]
        %v1240 = vld [vmem:[%s768 + $0x3b0] sm:$0xff]
        %v1241 = vld [vmem:[%s768 + $0x3b8] sm:$0xff]
        %v1242 = vld [vmem:[%s768 + $0x3c0] sm:$0xff]
        %v1243 = vld [vmem:[%s768 + $0x3c8] sm:$0xff]
        %v1244 = vld [vmem:[%s768 + $0x3d0] sm:$0xff]
        %v1245 = vld [vmem:[%s768 + $0x3d8] sm:$0xff]
        %v1246 = vld [vmem:[%s768 + $0x3e0] sm:$0xff]
        %v1247 = vld [vmem:[%s768 + $0x3e8] sm:$0xff]
        %v1248 = vld [vmem:[%s768 + $0x3f0] sm:$0xff]
        %v1249 = vld [vmem:[%s768 + $0x3f8] sm:$0xff]
        %v1250 = vld [vmem:[%s768 + $0x400] sm:$0xff]
        %v1251 = vld [vmem:[%s768 + $0x408] sm:$0xff]
        %v1252 = vld [vmem:[%s768 + $0x410] sm:$0xff]
        %v1253 = vld [vmem:[%s768 + $0x418] sm:$0xff]
        %v1254 = vld [vmem:[%s768 + $0x420] sm:$0xff]
        %v1255 = vld [vmem:[%s768 + $0x428] sm:$0xff]
        %v1256 = vld [vmem:[%s768 + $0x430] sm:$0xff]
        %v1257 = vld [vmem:[%s768 + $0x438] sm:$0xff]
        %v1258 = vld [vmem:[%s768 + $0x440] sm:$0xff]
        %v1259 = vld [vmem:[%s768 + $0x448] sm:$0xff]
        %v1260 = vld [vmem:[%s768 + $0x450] sm:$0xff]
        %v1261 = vld [vmem:[%s768 + $0x458] sm:$0xff]
        %v1262 = vld [vmem:[%s768 + $0x460] sm:$0xff]
        %v1263 = vld [vmem:[%s768 + $0x468] sm:$0xff]
        %v1264 = vld [vmem:[%s768 + $0x470] sm:$0xff]
        %v1265 = vld [vmem:[%s768 + $0x478] sm:$0xff]
        %v1266 = vld [vmem:[%s768 + $0x480] sm:$0xff]
        %v1267 = vld [vmem:[%s768 + $0x488] sm:$0xff]
        %v1268 = vld [vmem:[%s768 + $0x490] sm:$0xff]
        %v1269 = vld [vmem:[%s768 + $0x498] sm:$0xff]
        %v1270 = vld [vmem:[%s768 + $0x4a0] sm:$0xff]
        %v1271 = vld [vmem:[%s768 + $0x4a8] sm:$0xff]
        %v1272 = vld [vmem:[%s768 + $0x4b0] sm:$0xff]
        %v1273 = vld [vmem:[%s768 + $0x4b8] sm:$0xff]
        %v1274 = vld [vmem:[%s768 + $0x4c0] sm:$0xff]
        %v1275 = vld [vmem:[%s768 + $0x4c8] sm:$0xff]
        %v1276 = vld [vmem:[%s768 + $0x4d0] sm:$0xff]
        %v1277 = vld [vmem:[%s768 + $0x4d8] sm:$0xff]
        %v1278 = vld [vmem:[%s768 + $0x4e0] sm:$0xff]
        %v1279 = vld [vmem:[%s768 + $0x4e8] sm:$0xff]
        %v1280 = vld [vmem:[%s768 + $0x4f0] sm:$0xff]
        %v1281 = vld [vmem:[%s768 + $0x4f8] sm:$0xff]
        %v1282 = vld [vmem:[%s768 + $0x500] sm:$0xff]
        %v1283 = vld [vmem:[%s768 + $0x508] sm:$0xff]
        %v1284 = vld [vmem:[%s768 + $0x510] sm:$0xff]
        %v1285 = vld [vmem:[%s768 + $0x518] sm:$0xff]
        %v1286 = vld [vmem:[%s768 + $0x520] sm:$0xff]
        %v1287 = vld [vmem:[%s768 + $0x528] sm:$0xff]
        %v1288 = vld [vmem:[%s768 + $0x530] sm:$0xff]
        %v1289 = vld [vmem:[%s768 + $0x538] sm:$0xff]
        %v1290 = vld [vmem:[%s768 + $0x540] sm:$0xff]
        %v1291 = vld [vmem:[%s768 + $0x548] sm:$0xff]
        %v1292 = vld [vmem:[%s768 + $0x550] sm:$0xff]
        %v1293 = vld [vmem:[%s768 + $0x558] sm:$0xff]
        %v1294 = vld [vmem:[%s768 + $0x560] sm:$0xff]
        %v1295 = vld [vmem:[%s768 + $0x568] sm:$0xff]
        %v1296 = vld [vmem:[%s768 + $0x570] sm:$0xff]
        %v1297 = vld [vmem:[%s768 + $0x578] sm:$0xff]
        %v1298 = vld [vmem:[%s768 + $0x580] sm:$0xff]
        %v1299 = vld [vmem:[%s768 + $0x588] sm:$0xff]
        %v1300 = vld [vmem:[%s768 + $0x590] sm:$0xff]
        %v1301 = vld [vmem:[%s768 + $0x598] sm:$0xff]
        %v1302 = vld [vmem:[%s768 + $0x5a0] sm:$0xff]
        %v1303 = vld [vmem:[%s768 + $0x5a8] sm:$0xff]
        %v1304 = vld [vmem:[%s768 + $0x5b0] sm:$0xff]
        %v1305 = vld [vmem:[%s768 + $0x5b8] sm:$0xff]
        %v1306 = vld [vmem:[%s768 + $0x5c0] sm:$0xff]
        %v1307 = vld [vmem:[%s768 + $0x5c8] sm:$0xff]
        %v1308 = vld [vmem:[%s768 + $0x5d0] sm:$0xff]
        %v1309 = vld [vmem:[%s768 + $0x5d8] sm:$0xff]
        %v1310 = vld [vmem:[%s768 + $0x5e0] sm:$0xff]
        %v1311 = vld [vmem:[%s768 + $0x5e8] sm:$0xff]
        %v1312 = vld [vmem:[%s768 + $0x5f0] sm:$0xff]
        %v1313 = vld [vmem:[%s768 + $0x5f8] sm:$0xff]
        %v1314 = vld [vmem:[%s777] sm:$0xff]
        %v1315 = vld [vmem:[%s777 + $0x8] sm:$0xf]
        %v1318 = vlaneseq
        %v1319 = vshrl.u32 %v1318, 7
        %v1320 = vsub.s32 0, %v1319
        %v1321 = vrot.slane %v1314, %v1320
        %v1322 = vlaneseq
        %v1323 = vshrl.u32 %v1322, 7
        %v1324 = vsub.s32 1, %v1323
        %v1325 = vrot.slane %v1314, %v1324
        %v1326 = vlaneseq
        %v1327 = vshrl.u32 %v1326, 7
        %v1328 = vsub.s32 2, %v1327
        %v1329 = vrot.slane %v1314, %v1328
        %v1330 = vlaneseq
        %v1331 = vshrl.u32 %v1330, 7
        %v1332 = vsub.s32 3, %v1331
        %v1333 = vrot.slane %v1314, %v1332
        %v1334 = vlaneseq
        %v1335 = vshrl.u32 %v1334, 7
        %v1336 = vsub.s32 4, %v1335
        %v1337 = vrot.slane %v1314, %v1336
        %v1338 = vlaneseq
        %v1339 = vshrl.u32 %v1338, 7
        %v1340 = vsub.s32 5, %v1339
        %v1341 = vrot.slane %v1314, %v1340
        %v1342 = vlaneseq
        %v1343 = vshrl.u32 %v1342, 7
        %v1344 = vsub.s32 6, %v1343
        %v1345 = vrot.slane %v1314, %v1344
        %v1346 = vlaneseq
        %v1347 = vshrl.u32 %v1346, 7
        %v1348 = vsub.s32 7, %v1347
        %v1349 = vrot.slane %v1314, %v1348
        %v1350 = vlaneseq
        %v1351 = vshrl.u32 %v1350, 7
        %v1352 = vsub.s32 0, %v1351
        %v1353 = vrot.slane %v1315, %v1352
        %v1354 = vlaneseq
        %v1355 = vshrl.u32 %v1354, 7
        %v1356 = vsub.s32 1, %v1355
        %v1357 = vrot.slane %v1315, %v1356
        %v1358 = vlaneseq
        %v1359 = vshrl.u32 %v1358, 7
        %v1360 = vsub.s32 2, %v1359
        %v1361 = vrot.slane %v1315, %v1360
        %v1362 = vlaneseq
        %v1363 = vshrl.u32 %v1362, 7
        %v1364 = vsub.s32 3, %v1363
        %v1365 = vrot.slane %v1315, %v1364
        %v1570 = vunpack.c.l.b16 %v1122
        %v1571 = vunpack.c.h.b16 %v1122
        %v1572 = vunpack.c.l.b16 %v1123
        %v1573 = vunpack.c.h.b16 %v1123
        %v1574 = vunpack.c.l.b16 %v1124
        %v1575 = vunpack.c.h.b16 %v1124
        %v1576 = vunpack.c.l.b16 %v1125
        %v1577 = vunpack.c.h.b16 %v1125
        %v1578 = vunpack.c.l.b16 %v1126
        %v1579 = vunpack.c.h.b16 %v1126
        %v1580 = vunpack.c.l.b16 %v1127
        %v1581 = vunpack.c.h.b16 %v1127
        %v1582 = vunpack.c.l.b16 %v1128
        %v1583 = vunpack.c.h.b16 %v1128
        %v1584 = vunpack.c.l.b16 %v1129
        %v1585 = vunpack.c.h.b16 %v1129
        %v1586 = vunpack.c.l.b16 %v1130
        %v1587 = vunpack.c.h.b16 %v1130
        %v1588 = vunpack.c.l.b16 %v1131
        %v1589 = vunpack.c.h.b16 %v1131
        %v1590 = vunpack.c.l.b16 %v1132
        %v1591 = vunpack.c.h.b16 %v1132
        %v1592 = vunpack.c.l.b16 %v1133
        %v1593 = vunpack.c.h.b16 %v1133
        %v1594 = vunpack.c.l.b16 %v1134
        %v1595 = vunpack.c.h.b16 %v1134
        %v1596 = vunpack.c.l.b16 %v1135
        %v1597 = vunpack.c.h.b16 %v1135
        %v1598 = vunpack.c.l.b16 %v1136
        %v1599 = vunpack.c.h.b16 %v1136
        %v1600 = vunpack.c.l.b16 %v1137
        %v1601 = vunpack.c.h.b16 %v1137
        %v1602 = vunpack.c.l.b16 %v1138
        %v1603 = vunpack.c.h.b16 %v1138
        %v1604 = vunpack.c.l.b16 %v1139
        %v1605 = vunpack.c.h.b16 %v1139
        %v1606 = vunpack.c.l.b16 %v1140
        %v1607 = vunpack.c.h.b16 %v1140
        %v1608 = vunpack.c.l.b16 %v1141
        %v1609 = vunpack.c.h.b16 %v1141
        %v1610 = vunpack.c.l.b16 %v1142
        %v1611 = vunpack.c.h.b16 %v1142
        %v1612 = vunpack.c.l.b16 %v1143
        %v1613 = vunpack.c.h.b16 %v1143
        %v1614 = vunpack.c.l.b16 %v1144
        %v1615 = vunpack.c.h.b16 %v1144
        %v1616 = vunpack.c.l.b16 %v1145
        %v1617 = vunpack.c.h.b16 %v1145
        %v1618 = vunpack.c.l.b16 %v1146
        %v1619 = vunpack.c.h.b16 %v1146
        %v1620 = vunpack.c.l.b16 %v1147
        %v1621 = vunpack.c.h.b16 %v1147
        %v1622 = vunpack.c.l.b16 %v1148
        %v1623 = vunpack.c.h.b16 %v1148
        %v1624 = vunpack.c.l.b16 %v1149
        %v1625 = vunpack.c.h.b16 %v1149
        %v1626 = vunpack.c.l.b16 %v1150
        %v1627 = vunpack.c.h.b16 %v1150
        %v1628 = vunpack.c.l.b16 %v1151
        %v1629 = vunpack.c.h.b16 %v1151
        %v1630 = vunpack.c.l.b16 %v1152
        %v1631 = vunpack.c.h.b16 %v1152
        %v1632 = vunpack.c.l.b16 %v1153
        %v1633 = vunpack.c.h.b16 %v1153
        %v1634 = vunpack.c.l.b16 %v1154
        %v1635 = vunpack.c.h.b16 %v1154
        %v1636 = vunpack.c.l.b16 %v1155
        %v1637 = vunpack.c.h.b16 %v1155
        %v1638 = vunpack.c.l.b16 %v1156
        %v1639 = vunpack.c.h.b16 %v1156
        %v1640 = vunpack.c.l.b16 %v1157
        %v1641 = vunpack.c.h.b16 %v1157
        %v1642 = vunpack.c.l.b16 %v1158
        %v1643 = vunpack.c.h.b16 %v1158
        %v1644 = vunpack.c.l.b16 %v1159
        %v1645 = vunpack.c.h.b16 %v1159
        %v1646 = vunpack.c.l.b16 %v1160
        %v1647 = vunpack.c.h.b16 %v1160
        %v1648 = vunpack.c.l.b16 %v1161
        %v1649 = vunpack.c.h.b16 %v1161
        %v1650 = vunpack.c.l.b16 %v1162
        %v1651 = vunpack.c.h.b16 %v1162
        %v1652 = vunpack.c.l.b16 %v1163
        %v1653 = vunpack.c.h.b16 %v1163
        %v1654 = vunpack.c.l.b16 %v1164
        %v1655 = vunpack.c.h.b16 %v1164
        %v1656 = vunpack.c.l.b16 %v1165
        %v1657 = vunpack.c.h.b16 %v1165
        %v1658 = vunpack.c.l.b16 %v1166
        %v1659 = vunpack.c.h.b16 %v1166
        %v1660 = vunpack.c.l.b16 %v1167
        %v1661 = vunpack.c.h.b16 %v1167
        %v1662 = vunpack.c.l.b16 %v1168
        %v1663 = vunpack.c.h.b16 %v1168
        %v1664 = vunpack.c.l.b16 %v1169
        %v1665 = vunpack.c.h.b16 %v1169
        %v1666 = vunpack.c.l.b16 %v1170
        %v1667 = vunpack.c.h.b16 %v1170
        %v1668 = vunpack.c.l.b16 %v1171
        %v1669 = vunpack.c.h.b16 %v1171
        %v1670 = vunpack.c.l.b16 %v1172
        %v1671 = vunpack.c.h.b16 %v1172
        %v1672 = vunpack.c.l.b16 %v1173
        %v1673 = vunpack.c.h.b16 %v1173
        %v1674 = vunpack.c.l.b16 %v1174
        %v1675 = vunpack.c.h.b16 %v1174
        %v1676 = vunpack.c.l.b16 %v1175
        %v1677 = vunpack.c.h.b16 %v1175
        %v1678 = vunpack.c.l.b16 %v1176
        %v1679 = vunpack.c.h.b16 %v1176
        %v1680 = vunpack.c.l.b16 %v1177
        %v1681 = vunpack.c.h.b16 %v1177
        %v1682 = vunpack.c.l.b16 %v1178
        %v1683 = vunpack.c.h.b16 %v1178
        %v1684 = vunpack.c.l.b16 %v1179
        %v1685 = vunpack.c.h.b16 %v1179
        %v1686 = vunpack.c.l.b16 %v1180
        %v1687 = vunpack.c.h.b16 %v1180
        %v1688 = vunpack.c.l.b16 %v1181
        %v1689 = vunpack.c.h.b16 %v1181
        %v1690 = vunpack.c.l.b16 %v1182
        %v1691 = vunpack.c.h.b16 %v1182
        %v1692 = vunpack.c.l.b16 %v1183
        %v1693 = vunpack.c.h.b16 %v1183
        %v1694 = vunpack.c.l.b16 %v1184
        %v1695 = vunpack.c.h.b16 %v1184
        %v1696 = vunpack.c.l.b16 %v1185
        %v1697 = vunpack.c.h.b16 %v1185
        %v1698 = vunpack.c.l.b16 %v1186
        %v1699 = vunpack.c.h.b16 %v1186
        %v1700 = vunpack.c.l.b16 %v1187
        %v1701 = vunpack.c.h.b16 %v1187
        %v1702 = vunpack.c.l.b16 %v1188
        %v1703 = vunpack.c.h.b16 %v1188
        %v1704 = vunpack.c.l.b16 %v1189
        %v1705 = vunpack.c.h.b16 %v1189
        %v1706 = vunpack.c.l.b16 %v1190
        %v1707 = vunpack.c.h.b16 %v1190
        %v1708 = vunpack.c.l.b16 %v1191
        %v1709 = vunpack.c.h.b16 %v1191
        %v1710 = vunpack.c.l.b16 %v1192
        %v1711 = vunpack.c.h.b16 %v1192
        %v1712 = vunpack.c.l.b16 %v1193
        %v1713 = vunpack.c.h.b16 %v1193
        %v1714 = vunpack.c.l.b16 %v1194
        %v1715 = vunpack.c.h.b16 %v1194
        %v1716 = vunpack.c.l.b16 %v1195
        %v1717 = vunpack.c.h.b16 %v1195
        %v1718 = vunpack.c.l.b16 %v1196
        %v1719 = vunpack.c.h.b16 %v1196
        %v1720 = vunpack.c.l.b16 %v1197
        %v1721 = vunpack.c.h.b16 %v1197
        %v1722 = vunpack.c.l.b16 %v1198
        %v1723 = vunpack.c.h.b16 %v1198
        %v1724 = vunpack.c.l.b16 %v1199
        %v1725 = vunpack.c.h.b16 %v1199
        %v1726 = vunpack.c.l.b16 %v1200
        %v1727 = vunpack.c.h.b16 %v1200
        %v1728 = vunpack.c.l.b16 %v1201
        %v1729 = vunpack.c.h.b16 %v1201
        %v1730 = vunpack.c.l.b16 %v1202
        %v1731 = vunpack.c.h.b16 %v1202
        %v1732 = vunpack.c.l.b16 %v1203
        %v1733 = vunpack.c.h.b16 %v1203
        %v1734 = vunpack.c.l.b16 %v1204
        %v1735 = vunpack.c.h.b16 %v1204
        %v1736 = vunpack.c.l.b16 %v1205
        %v1737 = vunpack.c.h.b16 %v1205
        %v1738 = vunpack.c.l.b16 %v1206
        %v1739 = vunpack.c.h.b16 %v1206
        %v1740 = vunpack.c.l.b16 %v1207
        %v1741 = vunpack.c.h.b16 %v1207
        %v1742 = vunpack.c.l.b16 %v1208
        %v1743 = vunpack.c.h.b16 %v1208
        %v1744 = vunpack.c.l.b16 %v1209
        %v1745 = vunpack.c.h.b16 %v1209
        %v1746 = vunpack.c.l.b16 %v1210
        %v1747 = vunpack.c.h.b16 %v1210
        %v1748 = vunpack.c.l.b16 %v1211
        %v1749 = vunpack.c.h.b16 %v1211
        %v1750 = vunpack.c.l.b16 %v1212
        %v1751 = vunpack.c.h.b16 %v1212
        %v1752 = vunpack.c.l.b16 %v1213
        %v1753 = vunpack.c.h.b16 %v1213
        %v1754 = vunpack.c.l.b16 %v1214
        %v1755 = vunpack.c.h.b16 %v1214
        %v1756 = vunpack.c.l.b16 %v1215
        %v1757 = vunpack.c.h.b16 %v1215
        %v1758 = vunpack.c.l.b16 %v1216
        %v1759 = vunpack.c.h.b16 %v1216
        %v1760 = vunpack.c.l.b16 %v1217
        %v1761 = vunpack.c.h.b16 %v1217
        %v1762 = vunpack.c.l.b16 %v1218
        %v1763 = vunpack.c.h.b16 %v1218
        %v1764 = vunpack.c.l.b16 %v1219
        %v1765 = vunpack.c.h.b16 %v1219
        %v1766 = vunpack.c.l.b16 %v1220
        %v1767 = vunpack.c.h.b16 %v1220
        %v1768 = vunpack.c.l.b16 %v1221
        %v1769 = vunpack.c.h.b16 %v1221
        %v1770 = vunpack.c.l.b16 %v1222
        %v1771 = vunpack.c.h.b16 %v1222
        %v1772 = vunpack.c.l.b16 %v1223
        %v1773 = vunpack.c.h.b16 %v1223
        %v1774 = vunpack.c.l.b16 %v1224
        %v1775 = vunpack.c.h.b16 %v1224
        %v1776 = vunpack.c.l.b16 %v1225
        %v1777 = vunpack.c.h.b16 %v1225
        %v1778 = vunpack.c.l.b16 %v1226
        %v1779 = vunpack.c.h.b16 %v1226
        %v1780 = vunpack.c.l.b16 %v1227
        %v1781 = vunpack.c.h.b16 %v1227
        %v1782 = vunpack.c.l.b16 %v1228
        %v1783 = vunpack.c.h.b16 %v1228
        %v1784 = vunpack.c.l.b16 %v1229
        %v1785 = vunpack.c.h.b16 %v1229
        %v1786 = vunpack.c.l.b16 %v1230
        %v1787 = vunpack.c.h.b16 %v1230
        %v1788 = vunpack.c.l.b16 %v1231
        %v1789 = vunpack.c.h.b16 %v1231
        %v1790 = vunpack.c.l.b16 %v1232
        %v1791 = vunpack.c.h.b16 %v1232
        %v1792 = vunpack.c.l.b16 %v1233
        %v1793 = vunpack.c.h.b16 %v1233
        %v1794 = vunpack.c.l.b16 %v1234
        %v1795 = vunpack.c.h.b16 %v1234
        %v1796 = vunpack.c.l.b16 %v1235
        %v1797 = vunpack.c.h.b16 %v1235
        %v1798 = vunpack.c.l.b16 %v1236
        %v1799 = vunpack.c.h.b16 %v1236
        %v1800 = vunpack.c.l.b16 %v1237
        %v1801 = vunpack.c.h.b16 %v1237
        %v1802 = vunpack.c.l.b16 %v1238
        %v1803 = vunpack.c.h.b16 %v1238
        %v1804 = vunpack.c.l.b16 %v1239
        %v1805 = vunpack.c.h.b16 %v1239
        %v1806 = vunpack.c.l.b16 %v1240
        %v1807 = vunpack.c.h.b16 %v1240
        %v1808 = vunpack.c.l.b16 %v1241
        %v1809 = vunpack.c.h.b16 %v1241
        %v1810 = vunpack.c.l.b16 %v1242
        %v1811 = vunpack.c.h.b16 %v1242
        %v1812 = vunpack.c.l.b16 %v1243
        %v1813 = vunpack.c.h.b16 %v1243
        %v1814 = vunpack.c.l.b16 %v1244
        %v1815 = vunpack.c.h.b16 %v1244
        %v1816 = vunpack.c.l.b16 %v1245
        %v1817 = vunpack.c.h.b16 %v1245
        %v1818 = vunpack.c.l.b16 %v1246
        %v1819 = vunpack.c.h.b16 %v1246
        %v1820 = vunpack.c.l.b16 %v1247
        %v1821 = vunpack.c.h.b16 %v1247
        %v1822 = vunpack.c.l.b16 %v1248
        %v1823 = vunpack.c.h.b16 %v1248
        %v1824 = vunpack.c.l.b16 %v1249
        %v1825 = vunpack.c.h.b16 %v1249
        %v1826 = vunpack.c.l.b16 %v1250
        %v1827 = vunpack.c.h.b16 %v1250
        %v1828 = vunpack.c.l.b16 %v1251
        %v1829 = vunpack.c.h.b16 %v1251
        %v1830 = vunpack.c.l.b16 %v1252
        %v1831 = vunpack.c.h.b16 %v1252
        %v1832 = vunpack.c.l.b16 %v1253
        %v1833 = vunpack.c.h.b16 %v1253
        %v1834 = vunpack.c.l.b16 %v1254
        %v1835 = vunpack.c.h.b16 %v1254
        %v1836 = vunpack.c.l.b16 %v1255
        %v1837 = vunpack.c.h.b16 %v1255
        %v1838 = vunpack.c.l.b16 %v1256
        %v1839 = vunpack.c.h.b16 %v1256
        %v1840 = vunpack.c.l.b16 %v1257
        %v1841 = vunpack.c.h.b16 %v1257
        %v1842 = vunpack.c.l.b16 %v1258
        %v1843 = vunpack.c.h.b16 %v1258
        %v1844 = vunpack.c.l.b16 %v1259
        %v1845 = vunpack.c.h.b16 %v1259
        %v1846 = vunpack.c.l.b16 %v1260
        %v1847 = vunpack.c.h.b16 %v1260
        %v1848 = vunpack.c.l.b16 %v1261
        %v1849 = vunpack.c.h.b16 %v1261
        %v1850 = vunpack.c.l.b16 %v1262
        %v1851 = vunpack.c.h.b16 %v1262
        %v1852 = vunpack.c.l.b16 %v1263
        %v1853 = vunpack.c.h.b16 %v1263
        %v1854 = vunpack.c.l.b16 %v1264
        %v1855 = vunpack.c.h.b16 %v1264
        %v1856 = vunpack.c.l.b16 %v1265
        %v1857 = vunpack.c.h.b16 %v1265
        %v1858 = vunpack.c.l.b16 %v1266
        %v1859 = vunpack.c.h.b16 %v1266
        %v1860 = vunpack.c.l.b16 %v1267
        %v1861 = vunpack.c.h.b16 %v1267
        %v1862 = vunpack.c.l.b16 %v1268
        %v1863 = vunpack.c.h.b16 %v1268
        %v1864 = vunpack.c.l.b16 %v1269
        %v1865 = vunpack.c.h.b16 %v1269
        %v1866 = vunpack.c.l.b16 %v1270
        %v1867 = vunpack.c.h.b16 %v1270
        %v1868 = vunpack.c.l.b16 %v1271
        %v1869 = vunpack.c.h.b16 %v1271
        %v1870 = vunpack.c.l.b16 %v1272
        %v1871 = vunpack.c.h.b16 %v1272
        %v1872 = vunpack.c.l.b16 %v1273
        %v1873 = vunpack.c.h.b16 %v1273
        %v1874 = vunpack.c.l.b16 %v1274
        %v1875 = vunpack.c.h.b16 %v1274
        %v1876 = vunpack.c.l.b16 %v1275
        %v1877 = vunpack.c.h.b16 %v1275
        %v1878 = vunpack.c.l.b16 %v1276
        %v1879 = vunpack.c.h.b16 %v1276
        %v1880 = vunpack.c.l.b16 %v1277
        %v1881 = vunpack.c.h.b16 %v1277
        %v1882 = vunpack.c.l.b16 %v1278
        %v1883 = vunpack.c.h.b16 %v1278
        %v1884 = vunpack.c.l.b16 %v1279
        %v1885 = vunpack.c.h.b16 %v1279
        %v1886 = vunpack.c.l.b16 %v1280
        %v1887 = vunpack.c.h.b16 %v1280
        %v1888 = vunpack.c.l.b16 %v1281
        %v1889 = vunpack.c.h.b16 %v1281
        %v1890 = vunpack.c.l.b16 %v1282
        %v1891 = vunpack.c.h.b16 %v1282
        %v1892 = vunpack.c.l.b16 %v1283
        %v1893 = vunpack.c.h.b16 %v1283
        %v1894 = vunpack.c.l.b16 %v1284
        %v1895 = vunpack.c.h.b16 %v1284
        %v1896 = vunpack.c.l.b16 %v1285
        %v1897 = vunpack.c.h.b16 %v1285
        %v1898 = vunpack.c.l.b16 %v1286
        %v1899 = vunpack.c.h.b16 %v1286
        %v1900 = vunpack.c.l.b16 %v1287
        %v1901 = vunpack.c.h.b16 %v1287
        %v1902 = vunpack.c.l.b16 %v1288
        %v1903 = vunpack.c.h.b16 %v1288
        %v1904 = vunpack.c.l.b16 %v1289
        %v1905 = vunpack.c.h.b16 %v1289
        %v1906 = vunpack.c.l.b16 %v1290
        %v1907 = vunpack.c.h.b16 %v1290
        %v1908 = vunpack.c.l.b16 %v1291
        %v1909 = vunpack.c.h.b16 %v1291
        %v1910 = vunpack.c.l.b16 %v1292
        %v1911 = vunpack.c.h.b16 %v1292
        %v1912 = vunpack.c.l.b16 %v1293
        %v1913 = vunpack.c.h.b16 %v1293
        %v1914 = vunpack.c.l.b16 %v1294
        %v1915 = vunpack.c.h.b16 %v1294
        %v1916 = vunpack.c.l.b16 %v1295
        %v1917 = vunpack.c.h.b16 %v1295
        %v1918 = vunpack.c.l.b16 %v1296
        %v1919 = vunpack.c.h.b16 %v1296
        %v1920 = vunpack.c.l.b16 %v1297
        %v1921 = vunpack.c.h.b16 %v1297
        %v1922 = vunpack.c.l.b16 %v1298
        %v1923 = vunpack.c.h.b16 %v1298
        %v1924 = vunpack.c.l.b16 %v1299
        %v1925 = vunpack.c.h.b16 %v1299
        %v1926 = vunpack.c.l.b16 %v1300
        %v1927 = vunpack.c.h.b16 %v1300
        %v1928 = vunpack.c.l.b16 %v1301
        %v1929 = vunpack.c.h.b16 %v1301
        %v1930 = vunpack.c.l.b16 %v1302
        %v1931 = vunpack.c.h.b16 %v1302
        %v1932 = vunpack.c.l.b16 %v1303
        %v1933 = vunpack.c.h.b16 %v1303
        %v1934 = vunpack.c.l.b16 %v1304
        %v1935 = vunpack.c.h.b16 %v1304
        %v1936 = vunpack.c.l.b16 %v1305
        %v1937 = vunpack.c.h.b16 %v1305
        %v1938 = vunpack.c.l.b16 %v1306
        %v1939 = vunpack.c.h.b16 %v1306
        %v1940 = vunpack.c.l.b16 %v1307
        %v1941 = vunpack.c.h.b16 %v1307
        %v1942 = vunpack.c.l.b16 %v1308
        %v1943 = vunpack.c.h.b16 %v1308
        %v1944 = vunpack.c.l.b16 %v1309
        %v1945 = vunpack.c.h.b16 %v1309
        %v1946 = vunpack.c.l.b16 %v1310
        %v1947 = vunpack.c.h.b16 %v1310
        %v1948 = vunpack.c.l.b16 %v1311
        %v1949 = vunpack.c.h.b16 %v1311
        %v1950 = vunpack.c.l.b16 %v1312
        %v1951 = vunpack.c.h.b16 %v1312
        %v1952 = vunpack.c.l.b16 %v1313
        %v1953 = vunpack.c.h.b16 %v1313
        %v1954 = vpack.c.b16 %v1582, %v1570
        %v1955 = vpack.c.b16 %v1583, %v1571
        %v1956 = vpack.c.b16 %v1584, %v1572
        %v1957 = vpack.c.b16 %v1585, %v1573
        %v1958 = vpack.c.b16 %v1586, %v1574
        %v1959 = vpack.c.b16 %v1587, %v1575
        %v1960 = vpack.c.b16 %v1588, %v1576
        %v1961 = vpack.c.b16 %v1589, %v1577
        %v1962 = vpack.c.b16 %v1590, %v1578
        %v1963 = vpack.c.b16 %v1591, %v1579
        %v1964 = vpack.c.b16 %v1592, %v1580
        %v1965 = vpack.c.b16 %v1593, %v1581
        %v1966 = vpack.c.b16 %v1606, %v1594
        %v1967 = vpack.c.b16 %v1607, %v1595
        %v1968 = vpack.c.b16 %v1608, %v1596
        %v1969 = vpack.c.b16 %v1609, %v1597
        %v1970 = vpack.c.b16 %v1610, %v1598
        %v1971 = vpack.c.b16 %v1611, %v1599
        %v1972 = vpack.c.b16 %v1612, %v1600
        %v1973 = vpack.c.b16 %v1613, %v1601
        %v1974 = vpack.c.b16 %v1614, %v1602
        %v1975 = vpack.c.b16 %v1615, %v1603
        %v1976 = vpack.c.b16 %v1616, %v1604
        %v1977 = vpack.c.b16 %v1617, %v1605
        %v1978 = vpack.c.b16 %v1630, %v1618
        %v1979 = vpack.c.b16 %v1631, %v1619
        %v1980 = vpack.c.b16 %v1632, %v1620
        %v1981 = vpack.c.b16 %v1633, %v1621
        %v1982 = vpack.c.b16 %v1634, %v1622
        %v1983 = vpack.c.b16 %v1635, %v1623
        %v1984 = vpack.c.b16 %v1636, %v1624
        %v1985 = vpack.c.b16 %v1637, %v1625
        %v1986 = vpack.c.b16 %v1638, %v1626
        %v1987 = vpack.c.b16 %v1639, %v1627
        %v1988 = vpack.c.b16 %v1640, %v1628
        %v1989 = vpack.c.b16 %v1641, %v1629
        %v1990 = vpack.c.b16 %v1654, %v1642
        %v1991 = vpack.c.b16 %v1655, %v1643
        %v1992 = vpack.c.b16 %v1656, %v1644
        %v1993 = vpack.c.b16 %v1657, %v1645
        %v1994 = vpack.c.b16 %v1658, %v1646
        %v1995 = vpack.c.b16 %v1659, %v1647
        %v1996 = vpack.c.b16 %v1660, %v1648
        %v1997 = vpack.c.b16 %v1661, %v1649
        %v1998 = vpack.c.b16 %v1662, %v1650
        %v1999 = vpack.c.b16 %v1663, %v1651
        %v2000 = vpack.c.b16 %v1664, %v1652
        %v2001 = vpack.c.b16 %v1665, %v1653
        %v2002 = vpack.c.b16 %v1678, %v1666
        %v2003 = vpack.c.b16 %v1679, %v1667
        %v2004 = vpack.c.b16 %v1680, %v1668
        %v2005 = vpack.c.b16 %v1681, %v1669
        %v2006 = vpack.c.b16 %v1682, %v1670
        %v2007 = vpack.c.b16 %v1683, %v1671
        %v2008 = vpack.c.b16 %v1684, %v1672
        %v2009 = vpack.c.b16 %v1685, %v1673
        %v2010 = vpack.c.b16 %v1686, %v1674
        %v2011 = vpack.c.b16 %v1687, %v1675
        %v2012 = vpack.c.b16 %v1688, %v1676
        %v2013 = vpack.c.b16 %v1689, %v1677
        %v2014 = vpack.c.b16 %v1702, %v1690
        %v2015 = vpack.c.b16 %v1703, %v1691
        %v2016 = vpack.c.b16 %v1704, %v1692
        %v2017 = vpack.c.b16 %v1705, %v1693
        %v2018 = vpack.c.b16 %v1706, %v1694
        %v2019 = vpack.c.b16 %v1707, %v1695
        %v2020 = vpack.c.b16 %v1708, %v1696
        %v2021 = vpack.c.b16 %v1709, %v1697
        %v2022 = vpack.c.b16 %v1710, %v1698
        %v2023 = vpack.c.b16 %v1711, %v1699
        %v2024 = vpack.c.b16 %v1712, %v1700
        %v2025 = vpack.c.b16 %v1713, %v1701
        %v2026 = vpack.c.b16 %v1726, %v1714
        %v2027 = vpack.c.b16 %v1727, %v1715
        %v2028 = vpack.c.b16 %v1728, %v1716
        %v2029 = vpack.c.b16 %v1729, %v1717
        %v2030 = vpack.c.b16 %v1730, %v1718
        %v2031 = vpack.c.b16 %v1731, %v1719
        %v2032 = vpack.c.b16 %v1732, %v1720
        %v2033 = vpack.c.b16 %v1733, %v1721
        %v2034 = vpack.c.b16 %v1734, %v1722
        %v2035 = vpack.c.b16 %v1735, %v1723
        %v2036 = vpack.c.b16 %v1736, %v1724
        %v2037 = vpack.c.b16 %v1737, %v1725
        %v2038 = vpack.c.b16 %v1750, %v1738
        %v2039 = vpack.c.b16 %v1751, %v1739
        %v2040 = vpack.c.b16 %v1752, %v1740
        %v2041 = vpack.c.b16 %v1753, %v1741
        %v2042 = vpack.c.b16 %v1754, %v1742
        %v2043 = vpack.c.b16 %v1755, %v1743
        %v2044 = vpack.c.b16 %v1756, %v1744
        %v2045 = vpack.c.b16 %v1757, %v1745
        %v2046 = vpack.c.b16 %v1758, %v1746
        %v2047 = vpack.c.b16 %v1759, %v1747
        %v2048 = vpack.c.b16 %v1760, %v1748
        %v2049 = vpack.c.b16 %v1761, %v1749
        %v2050 = vpack.c.b16 %v1774, %v1762
        %v2051 = vpack.c.b16 %v1775, %v1763
        %v2052 = vpack.c.b16 %v1776, %v1764
        %v2053 = vpack.c.b16 %v1777, %v1765
        %v2054 = vpack.c.b16 %v1778, %v1766
        %v2055 = vpack.c.b16 %v1779, %v1767
        %v2056 = vpack.c.b16 %v1780, %v1768
        %v2057 = vpack.c.b16 %v1781, %v1769
        %v2058 = vpack.c.b16 %v1782, %v1770
        %v2059 = vpack.c.b16 %v1783, %v1771
        %v2060 = vpack.c.b16 %v1784, %v1772
        %v2061 = vpack.c.b16 %v1785, %v1773
        %v2062 = vpack.c.b16 %v1798, %v1786
        %v2063 = vpack.c.b16 %v1799, %v1787
        %v2064 = vpack.c.b16 %v1800, %v1788
        %v2065 = vpack.c.b16 %v1801, %v1789
        %v2066 = vpack.c.b16 %v1802, %v1790
        %v2067 = vpack.c.b16 %v1803, %v1791
        %v2068 = vpack.c.b16 %v1804, %v1792
        %v2069 = vpack.c.b16 %v1805, %v1793
        %v2070 = vpack.c.b16 %v1806, %v1794
        %v2071 = vpack.c.b16 %v1807, %v1795
        %v2072 = vpack.c.b16 %v1808, %v1796
        %v2073 = vpack.c.b16 %v1809, %v1797
        %v2074 = vpack.c.b16 %v1822, %v1810
        %v2075 = vpack.c.b16 %v1823, %v1811
        %v2076 = vpack.c.b16 %v1824, %v1812
        %v2077 = vpack.c.b16 %v1825, %v1813
        %v2078 = vpack.c.b16 %v1826, %v1814
        %v2079 = vpack.c.b16 %v1827, %v1815
        %v2080 = vpack.c.b16 %v1828, %v1816
        %v2081 = vpack.c.b16 %v1829, %v1817
        %v2082 = vpack.c.b16 %v1830, %v1818
        %v2083 = vpack.c.b16 %v1831, %v1819
        %v2084 = vpack.c.b16 %v1832, %v1820
        %v2085 = vpack.c.b16 %v1833, %v1821
        %v2086 = vpack.c.b16 %v1846, %v1834
        %v2087 = vpack.c.b16 %v1847, %v1835
        %v2088 = vpack.c.b16 %v1848, %v1836
        %v2089 = vpack.c.b16 %v1849, %v1837
        %v2090 = vpack.c.b16 %v1850, %v1838
        %v2091 = vpack.c.b16 %v1851, %v1839
        %v2092 = vpack.c.b16 %v1852, %v1840
        %v2093 = vpack.c.b16 %v1853, %v1841
        %v2094 = vpack.c.b16 %v1854, %v1842
        %v2095 = vpack.c.b16 %v1855, %v1843
        %v2096 = vpack.c.b16 %v1856, %v1844
        %v2097 = vpack.c.b16 %v1857, %v1845
        %v2098 = vpack.c.b16 %v1870, %v1858
        %v2099 = vpack.c.b16 %v1871, %v1859
        %v2100 = vpack.c.b16 %v1872, %v1860
        %v2101 = vpack.c.b16 %v1873, %v1861
        %v2102 = vpack.c.b16 %v1874, %v1862
        %v2103 = vpack.c.b16 %v1875, %v1863
        %v2104 = vpack.c.b16 %v1876, %v1864
        %v2105 = vpack.c.b16 %v1877, %v1865
        %v2106 = vpack.c.b16 %v1878, %v1866
        %v2107 = vpack.c.b16 %v1879, %v1867
        %v2108 = vpack.c.b16 %v1880, %v1868
        %v2109 = vpack.c.b16 %v1881, %v1869
        %v2110 = vpack.c.b16 %v1894, %v1882
        %v2111 = vpack.c.b16 %v1895, %v1883
        %v2112 = vpack.c.b16 %v1896, %v1884
        %v2113 = vpack.c.b16 %v1897, %v1885
        %v2114 = vpack.c.b16 %v1898, %v1886
        %v2115 = vpack.c.b16 %v1899, %v1887
        %v2116 = vpack.c.b16 %v1900, %v1888
        %v2117 = vpack.c.b16 %v1901, %v1889
        %v2118 = vpack.c.b16 %v1902, %v1890
        %v2119 = vpack.c.b16 %v1903, %v1891
        %v2120 = vpack.c.b16 %v1904, %v1892
        %v2121 = vpack.c.b16 %v1905, %v1893
        %v2122 = vpack.c.b16 %v1918, %v1906
        %v2123 = vpack.c.b16 %v1919, %v1907
        %v2124 = vpack.c.b16 %v1920, %v1908
        %v2125 = vpack.c.b16 %v1921, %v1909
        %v2126 = vpack.c.b16 %v1922, %v1910
        %v2127 = vpack.c.b16 %v1923, %v1911
        %v2128 = vpack.c.b16 %v1924, %v1912
        %v2129 = vpack.c.b16 %v1925, %v1913
        %v2130 = vpack.c.b16 %v1926, %v1914
        %v2131 = vpack.c.b16 %v1927, %v1915
        %v2132 = vpack.c.b16 %v1928, %v1916
        %v2133 = vpack.c.b16 %v1929, %v1917
        %v2134 = vpack.c.b16 %v1942, %v1930
        %v2135 = vpack.c.b16 %v1943, %v1931
        %v2136 = vpack.c.b16 %v1944, %v1932
        %v2137 = vpack.c.b16 %v1945, %v1933
        %v2138 = vpack.c.b16 %v1946, %v1934
        %v2139 = vpack.c.b16 %v1947, %v1935
        %v2140 = vpack.c.b16 %v1948, %v1936
        %v2141 = vpack.c.b16 %v1949, %v1937
        %v2142 = vpack.c.b16 %v1950, %v1938
        %v2143 = vpack.c.b16 %v1951, %v1939
        %v2144 = vpack.c.b16 %v1952, %v1940
        %v2145 = vpack.c.b16 %v1953, %v1941
        %2338 = vmatprep.subr.bf16.mxu0 %v1955
        %2339 = vmatpush1.bf16.msra.mxu0 %v1954
        %2340 = vmatprep.subr.bf16.mxu0 %v1967
        %2341 = vmatpush1.bf16.msra.mxu0 %v1966
        %2342 = vmatprep.subr.bf16.mxu0 %v1979
        %2343 = vmatpush1.bf16.msra.mxu0 %v1978
        %2344 = vmatprep.subr.bf16.mxu0 %v1991
        %2345 = vmatpush1.bf16.msra.mxu0 %v1990
        %2346 = vmatprep.subr.bf16.mxu0 %v2003
        %2347 = vmatpush1.bf16.msra.mxu0 %v2002
        %2348 = vmatprep.subr.bf16.mxu0 %v2015
        %2349 = vmatpush1.bf16.msra.mxu0 %v2014
        %2350 = vmatprep.subr.bf16.mxu0 %v2027
        %2351 = vmatpush1.bf16.msra.mxu0 %v2026
        %2352 = vmatprep.subr.bf16.mxu0 %v2039
        %2353 = vmatpush1.bf16.msra.mxu0 %v2038
        %2354 = vmatprep.subr.bf16.mxu0 %v2051
        %2355 = vmatpush1.bf16.msra.mxu0 %v2050
        %2356 = vmatprep.subr.bf16.mxu0 %v2063
        %2357 = vmatpush1.bf16.msra.mxu0 %v2062
        %2358 = vmatprep.subr.bf16.mxu0 %v2075
        %2359 = vmatpush1.bf16.msra.mxu0 %v2074
        %2360 = vmatprep.subr.bf16.mxu0 %v2087
        %2361 = vmatpush1.bf16.msra.mxu0 %v2086
        %2362 = vmatprep.subr.bf16.mxu0 %v2099
        %2363 = vmatpush1.bf16.msra.mxu0 %v2098
        %2364 = vmatprep.subr.bf16.mxu0 %v2111
        %2365 = vmatpush1.bf16.msra.mxu0 %v2110
        %2366 = vmatprep.subr.bf16.mxu0 %v2123
        %2367 = vmatpush1.bf16.msra.mxu0 %v2122
        %2368 = vmatprep.subr.bf16.mxu0 %v2135
        %2369 = vmatpush1.bf16.msra.mxu0 %v2134
        %2370 = vmatprep.mubr.bf16.mxu0 %v1119
        %2371 = vmatmul.mubr.bf16.gmra.mrb[0].mxu0 %v1118
        %v2372 = vpop.f32.mrb[0].mxu0
        %v2373 = vadd.f32 %v1321, %v2372
        %v2374 = vpop.f32.mrb[0].mxu0
        %v2375 = vadd.f32 %v1325, %v2374
        %v2376 = vpop.f32.mrb[0].mxu0
        %v2377 = vadd.f32 %v1321, %v2376
        %v2378 = vpop.f32.mrb[0].mxu0
        %v2379 = vadd.f32 %v1325, %v2378
        %2380 = vmatprep.mubr.bf16.mxu0 %v1121
        %2381 = vmatmul.mubr.bf16.gmra.mrb[0].mxu0 %v1120
        %v2382 = vpop.f32.mrb[0].mxu0
        %v2383 = vadd.f32 %v1321, %v2382
        %v2384 = vpop.f32.mrb[0].mxu0
        %v2385 = vadd.f32 %v1325, %v2384
        %v2386 = vpop.f32.mrb[0].mxu0
        %v2387 = vadd.f32 %v1321, %v2386
        %v2388 = vpop.f32.mrb[0].mxu0
        %v2389 = vadd.f32 %v1325, %v2388
        %2390 = vdwg.mxu0
        %2391 = vmatprep.subr.bf16.mxu0 %v1957
        %2392 = vmatpush1.bf16.msra.mxu0 %v1956
        %2393 = vmatprep.subr.bf16.mxu0 %v1969
        %2394 = vmatpush1.bf16.msra.mxu0 %v1968
        %2395 = vmatprep.subr.bf16.mxu0 %v1981
        %2396 = vmatpush1.bf16.msra.mxu0 %v1980
        %2397 = vmatprep.subr.bf16.mxu0 %v1993
        %2398 = vmatpush1.bf16.msra.mxu0 %v1992
        %2399 = vmatprep.subr.bf16.mxu0 %v2005
        %2400 = vmatpush1.bf16.msra.mxu0 %v2004
        %2401 = vmatprep.subr.bf16.mxu0 %v2017
        %2402 = vmatpush1.bf16.msra.mxu0 %v2016
        %2403 = vmatprep.subr.bf16.mxu0 %v2029
        %2404 = vmatpush1.bf16.msra.mxu0 %v2028
        %2405 = vmatprep.subr.bf16.mxu0 %v2041
        %2406 = vmatpush1.bf16.msra.mxu0 %v2040
        %2407 = vmatprep.subr.bf16.mxu0 %v2053
        %2408 = vmatpush1.bf16.msra.mxu0 %v2052
        %2409 = vmatprep.subr.bf16.mxu0 %v2065
        %2410 = vmatpush1.bf16.msra.mxu0 %v2064
        %2411 = vmatprep.subr.bf16.mxu0 %v2077
        %2412 = vmatpush1.bf16.msra.mxu0 %v2076
        %2413 = vmatprep.subr.bf16.mxu0 %v2089
        %2414 = vmatpush1.bf16.msra.mxu0 %v2088
        %2415 = vmatprep.subr.bf16.mxu0 %v2101
        %2416 = vmatpush1.bf16.msra.mxu0 %v2100
        %2417 = vmatprep.subr.bf16.mxu0 %v2113
        %2418 = vmatpush1.bf16.msra.mxu0 %v2112
        %2419 = vmatprep.subr.bf16.mxu0 %v2125
        %2420 = vmatpush1.bf16.msra.mxu0 %v2124
        %2421 = vmatprep.subr.bf16.mxu0 %v2137
        %2422 = vmatpush1.bf16.msra.mxu0 %v2136
        %2423 = vmatprep.mubr.bf16.mxu0 %v1119
        %2424 = vmatmul.mubr.bf16.gmra.mrb[0].mxu0 %v1118
        %v2425 = vpop.f32.mrb[0].mxu0
        %v2426 = vadd.f32 %v1329, %v2425
        %v2427 = vpop.f32.mrb[0].mxu0
        %v2428 = vadd.f32 %v1333, %v2427
        %v2429 = vpop.f32.mrb[0].mxu0
        %v2430 = vadd.f32 %v1329, %v2429
        %v2431 = vpop.f32.mrb[0].mxu0
        %v2432 = vadd.f32 %v1333, %v2431
        %2433 = vmatprep.mubr.bf16.mxu0 %v1121
        %2434 = vmatmul.mubr.bf16.gmra.mrb[0].mxu0 %v1120
        %v2435 = vpop.f32.mrb[0].mxu0
        %v2436 = vadd.f32 %v1329, %v2435
        %v2437 = vpop.f32.mrb[0].mxu0
        %v2438 = vadd.f32 %v1333, %v2437
        %v2439 = vpop.f32.mrb[0].mxu0
        %v2440 = vadd.f32 %v1329, %v2439
        %v2441 = vpop.f32.mrb[0].mxu0
        %v2442 = vadd.f32 %v1333, %v2441
        %2443 = vdwg.mxu0
        %2444 = vmatprep.subr.bf16.mxu0 %v1959
        %2445 = vmatpush1.bf16.msra.mxu0 %v1958
        %2446 = vmatprep.subr.bf16.mxu0 %v1971
        %2447 = vmatpush1.bf16.msra.mxu0 %v1970
        %2448 = vmatprep.subr.bf16.mxu0 %v1983
        %2449 = vmatpush1.bf16.msra.mxu0 %v1982
        %2450 = vmatprep.subr.bf16.mxu0 %v1995
        %2451 = vmatpush1.bf16.msra.mxu0 %v1994
        %2452 = vmatprep.subr.bf16.mxu0 %v2007
        %2453 = vmatpush1.bf16.msra.mxu0 %v2006
        %2454 = vmatprep.subr.bf16.mxu0 %v2019
        %2455 = vmatpush1.bf16.msra.mxu0 %v2018
        %2456 = vmatprep.subr.bf16.mxu0 %v2031
        %2457 = vmatpush1.bf16.msra.mxu0 %v2030
        %2458 = vmatprep.subr.bf16.mxu0 %v2043
        %2459 = vmatpush1.bf16.msra.mxu0 %v2042
        %2460 = vmatprep.subr.bf16.mxu0 %v2055
        %2461 = vmatpush1.bf16.msra.mxu0 %v2054
        %2462 = vmatprep.subr.bf16.mxu0 %v2067
        %2463 = vmatpush1.bf16.msra.mxu0 %v2066
        %2464 = vmatprep.subr.bf16.mxu0 %v2079
        %2465 = vmatpush1.bf16.msra.mxu0 %v2078
        %2466 = vmatprep.subr.bf16.mxu0 %v2091
        %2467 = vmatpush1.bf16.msra.mxu0 %v2090
        %2468 = vmatprep.subr.bf16.mxu0 %v2103
        %2469 = vmatpush1.bf16.msra.mxu0 %v2102
        %2470 = vmatprep.subr.bf16.mxu0 %v2115
        %2471 = vmatpush1.bf16.msra.mxu0 %v2114
        %2472 = vmatprep.subr.bf16.mxu0 %v2127
        %2473 = vmatpush1.bf16.msra.mxu0 %v2126
        %2474 = vmatprep.subr.bf16.mxu0 %v2139
        %2475 = vmatpush1.bf16.msra.mxu0 %v2138
        %2476 = vmatprep.mubr.bf16.mxu0 %v1119
        %2477 = vmatmul.mubr.bf16.gmra.mrb[0].mxu0 %v1118
        %v2478 = vpop.f32.mrb[0].mxu0
        %v2479 = vadd.f32 %v1337, %v2478
        %v2480 = vpop.f32.mrb[0].mxu0
        %v2481 = vadd.f32 %v1341, %v2480
        %v2482 = vpop.f32.mrb[0].mxu0
        %v2483 = vadd.f32 %v1337, %v2482
        %v2484 = vpop.f32.mrb[0].mxu0
        %v2485 = vadd.f32 %v1341, %v2484
        %2486 = vmatprep.mubr.bf16.mxu0 %v1121
        %2487 = vmatmul.mubr.bf16.gmra.mrb[0].mxu0 %v1120
        %v2488 = vpop.f32.mrb[0].mxu0
        %v2489 = vadd.f32 %v1337, %v2488
        %v2490 = vpop.f32.mrb[0].mxu0
        %v2491 = vadd.f32 %v1341, %v2490
        %v2492 = vpop.f32.mrb[0].mxu0
        %v2493 = vadd.f32 %v1337, %v2492
        %v2494 = vpop.f32.mrb[0].mxu0
        %v2495 = vadd.f32 %v1341, %v2494
        %2496 = vdwg.mxu0
        %2497 = vmatprep.subr.bf16.mxu0 %v1961
        %2498 = vmatpush1.bf16.msra.mxu0 %v1960
        %2499 = vmatprep.subr.bf16.mxu0 %v1973
        %2500 = vmatpush1.bf16.msra.mxu0 %v1972
        %2501 = vmatprep.subr.bf16.mxu0 %v1985
        %2502 = vmatpush1.bf16.msra.mxu0 %v1984
        %2503 = vmatprep.subr.bf16.mxu0 %v1997
        %2504 = vmatpush1.bf16.msra.mxu0 %v1996
        %2505 = vmatprep.subr.bf16.mxu0 %v2009
        %2506 = vmatpush1.bf16.msra.mxu0 %v2008
        %2507 = vmatprep.subr.bf16.mxu0 %v2021
        %2508 = vmatpush1.bf16.msra.mxu0 %v2020
        %2509 = vmatprep.subr.bf16.mxu0 %v2033
        %2510 = vmatpush1.bf16.msra.mxu0 %v2032
        %2511 = vmatprep.subr.bf16.mxu0 %v2045
        %2512 = vmatpush1.bf16.msra.mxu0 %v2044
        %2513 = vmatprep.subr.bf16.mxu0 %v2057
        %2514 = vmatpush1.bf16.msra.mxu0 %v2056
        %2515 = vmatprep.subr.bf16.mxu0 %v2069
        %2516 = vmatpush1.bf16.msra.mxu0 %v2068
        %2517 = vmatprep.subr.bf16.mxu0 %v2081
        %2518 = vmatpush1.bf16.msra.mxu0 %v2080
        %2519 = vmatprep.subr.bf16.mxu0 %v2093
        %2520 = vmatpush1.bf16.msra.mxu0 %v2092
        %2521 = vmatprep.subr.bf16.mxu0 %v2105
        %2522 = vmatpush1.bf16.msra.mxu0 %v2104
        %2523 = vmatprep.subr.bf16.mxu0 %v2117
        %2524 = vmatpush1.bf16.msra.mxu0 %v2116
        %2525 = vmatprep.subr.bf16.mxu0 %v2129
        %2526 = vmatpush1.bf16.msra.mxu0 %v2128
        %2527 = vmatprep.subr.bf16.mxu0 %v2141
        %2528 = vmatpush1.bf16.msra.mxu0 %v2140
        %2529 = vmatprep.mubr.bf16.mxu0 %v1119
        %2530 = vmatmul.mubr.bf16.gmra.mrb[0].mxu0 %v1118
        %v2531 = vpop.f32.mrb[0].mxu0
        %v2532 = vadd.f32 %v1345, %v2531
        %v2533 = vpop.f32.mrb[0].mxu0
        %v2534 = vadd.f32 %v1349, %v2533
        %v2535 = vpop.f32.mrb[0].mxu0
        %v2536 = vadd.f32 %v1345, %v2535
        %v2537 = vpop.f32.mrb[0].mxu0
        %v2538 = vadd.f32 %v1349, %v2537
        %2539 = vmatprep.mubr.bf16.mxu0 %v1121
        %2540 = vmatmul.mubr.bf16.gmra.mrb[0].mxu0 %v1120
        %v2541 = vpop.f32.mrb[0].mxu0
        %v2542 = vadd.f32 %v1345, %v2541
        %v2543 = vpop.f32.mrb[0].mxu0
        %v2544 = vadd.f32 %v1349, %v2543
        %v2545 = vpop.f32.mrb[0].mxu0
        %v2546 = vadd.f32 %v1345, %v2545
        %v2547 = vpop.f32.mrb[0].mxu0
        %v2548 = vadd.f32 %v1349, %v2547
        %2549 = vdwg.mxu0
        %2550 = vmatprep.subr.bf16.mxu0 %v1963
        %2551 = vmatpush1.bf16.msra.mxu0 %v1962
        %2552 = vmatprep.subr.bf16.mxu0 %v1975
        %2553 = vmatpush1.bf16.msra.mxu0 %v1974
        %2554 = vmatprep.subr.bf16.mxu0 %v1987
        %2555 = vmatpush1.bf16.msra.mxu0 %v1986
        %2556 = vmatprep.subr.bf16.mxu0 %v1999
        %2557 = vmatpush1.bf16.msra.mxu0 %v1998
        %2558 = vmatprep.subr.bf16.mxu0 %v2011
        %2559 = vmatpush1.bf16.msra.mxu0 %v2010
        %2560 = vmatprep.subr.bf16.mxu0 %v2023
        %2561 = vmatpush1.bf16.msra.mxu0 %v2022
        %2562 = vmatprep.subr.bf16.mxu0 %v2035
        %2563 = vmatpush1.bf16.msra.mxu0 %v2034
        %2564 = vmatprep.subr.bf16.mxu0 %v2047
        %2565 = vmatpush1.bf16.msra.mxu0 %v2046
        %2566 = vmatprep.subr.bf16.mxu0 %v2059
        %2567 = vmatpush1.bf16.msra.mxu0 %v2058
        %2568 = vmatprep.subr.bf16.mxu0 %v2071
        %2569 = vmatpush1.bf16.msra.mxu0 %v2070
        %2570 = vmatprep.subr.bf16.mxu0 %v2083
        %2571 = vmatpush1.bf16.msra.mxu0 %v2082
        %2572 = vmatprep.subr.bf16.mxu0 %v2095
        %2573 = vmatpush1.bf16.msra.mxu0 %v2094
        %2574 = vmatprep.subr.bf16.mxu0 %v2107
        %2575 = vmatpush1.bf16.msra.mxu0 %v2106
        %2576 = vmatprep.subr.bf16.mxu0 %v2119
        %2577 = vmatpush1.bf16.msra.mxu0 %v2118
        %2578 = vmatprep.subr.bf16.mxu0 %v2131
        %2579 = vmatpush1.bf16.msra.mxu0 %v2130
        %2580 = vmatprep.subr.bf16.mxu0 %v2143
        %2581 = vmatpush1.bf16.msra.mxu0 %v2142
        %2582 = vmatprep.mubr.bf16.mxu0 %v1119
        %2583 = vmatmul.mubr.bf16.gmra.mrb[0].mxu0 %v1118
        %v2584 = vpop.f32.mrb[0].mxu0
        %v2585 = vadd.f32 %v1353, %v2584
        %v2586 = vpop.f32.mrb[0].mxu0
        %v2587 = vadd.f32 %v1357, %v2586
        %v2588 = vpop.f32.mrb[0].mxu0
        %v2589 = vadd.f32 %v1353, %v2588
        %v2590 = vpop.f32.mrb[0].mxu0
        %v2591 = vadd.f32 %v1357, %v2590
        %2592 = vmatprep.mubr.bf16.mxu0 %v1121
        %2593 = vmatmul.mubr.bf16.gmra.mrb[0].mxu0 %v1120
        %v2594 = vpop.f32.mrb[0].mxu0
        %v2595 = vadd.f32 %v1353, %v2594
        %v2596 = vpop.f32.mrb[0].mxu0
        %v2597 = vadd.f32 %v1357, %v2596
        %v2598 = vpop.f32.mrb[0].mxu0
        %v2599 = vadd.f32 %v1353, %v2598
        %v2600 = vpop.f32.mrb[0].mxu0
        %v2601 = vadd.f32 %v1357, %v2600
        %2602 = vdwg.mxu0
        %2603 = vmatprep.subr.bf16.mxu0 %v1965
        %2604 = vmatpush1.bf16.msra.mxu0 %v1964
        %2605 = vmatprep.subr.bf16.mxu0 %v1977
        %2606 = vmatpush1.bf16.msra.mxu0 %v1976
        %2607 = vmatprep.subr.bf16.mxu0 %v1989
        %2608 = vmatpush1.bf16.msra.mxu0 %v1988
        %2609 = vmatprep.subr.bf16.mxu0 %v2001
        %2610 = vmatpush1.bf16.msra.mxu0 %v2000
        %2611 = vmatprep.subr.bf16.mxu0 %v2013
        %2612 = vmatpush1.bf16.msra.mxu0 %v2012
        %2613 = vmatprep.subr.bf16.mxu0 %v2025
        %2614 = vmatpush1.bf16.msra.mxu0 %v2024
        %2615 = vmatprep.subr.bf16.mxu0 %v2037
        %2616 = vmatpush1.bf16.msra.mxu0 %v2036
        %2617 = vmatprep.subr.bf16.mxu0 %v2049
        %2618 = vmatpush1.bf16.msra.mxu0 %v2048
        %2619 = vmatprep.subr.bf16.mxu0 %v2061
        %2620 = vmatpush1.bf16.msra.mxu0 %v2060
        %2621 = vmatprep.subr.bf16.mxu0 %v2073
        %2622 = vmatpush1.bf16.msra.mxu0 %v2072
        %2623 = vmatprep.subr.bf16.mxu0 %v2085
        %2624 = vmatpush1.bf16.msra.mxu0 %v2084
        %2625 = vmatprep.subr.bf16.mxu0 %v2097
        %2626 = vmatpush1.bf16.msra.mxu0 %v2096
        %2627 = vmatprep.subr.bf16.mxu0 %v2109
        %2628 = vmatpush1.bf16.msra.mxu0 %v2108
        %2629 = vmatprep.subr.bf16.mxu0 %v2121
        %2630 = vmatpush1.bf16.msra.mxu0 %v2120
        %2631 = vmatprep.subr.bf16.mxu0 %v2133
        %2632 = vmatpush1.bf16.msra.mxu0 %v2132
        %2633 = vmatprep.subr.bf16.mxu0 %v2145
        %2634 = vmatpush1.bf16.msra.mxu0 %v2144
        %2635 = vmatprep.mubr.bf16.mxu0 %v1119
        %2636 = vmatmul.mubr.bf16.gmra.mrb[0].mxu0 %v1118
        %v2637 = vpop.f32.mrb[0].mxu0
        %v2638 = vadd.f32 %v1361, %v2637
        %v2639 = vpop.f32.mrb[0].mxu0
        %v2640 = vadd.f32 %v1365, %v2639
        %v2641 = vpop.f32.mrb[0].mxu0
        %v2642 = vadd.f32 %v1361, %v2641
        %v2643 = vpop.f32.mrb[0].mxu0
        %v2644 = vadd.f32 %v1365, %v2643
        %2645 = vmatprep.mubr.bf16.mxu0 %v1121
        %2646 = vmatmul.mubr.bf16.gmra.mrb[0].mxu0 %v1120
        %v2647 = vpop.f32.mrb[0].mxu0
        %v2648 = vadd.f32 %v1361, %v2647
        %v2649 = vpop.f32.mrb[0].mxu0
        %v2650 = vadd.f32 %v1365, %v2649
        %v2651 = vpop.f32.mrb[0].mxu0
        %v2652 = vadd.f32 %v1361, %v2651
        %v2653 = vpop.f32.mrb[0].mxu0
        %v2654 = vadd.f32 %v1365, %v2653
        %2655 = vdwg.mxu0
        %v2656 = vpack.c.bf16 %v2377, %v2373
        %v2657 = vpack.c.bf16 %v2379, %v2375
        %v2658 = vpack.c.bf16 %v2430, %v2426
        %v2659 = vpack.c.bf16 %v2432, %v2428
        %v2660 = vpack.c.bf16 %v2483, %v2479
        %v2661 = vpack.c.bf16 %v2485, %v2481
        %v2662 = vpack.c.bf16 %v2536, %v2532
        %v2663 = vpack.c.bf16 %v2538, %v2534
        %v2664 = vpack.c.bf16 %v2589, %v2585
        %v2665 = vpack.c.bf16 %v2591, %v2587
        %v2666 = vpack.c.bf16 %v2642, %v2638
        %v2667 = vpack.c.bf16 %v2644, %v2640
        %v2668 = vpack.c.bf16 %v2387, %v2383
        %v2669 = vpack.c.bf16 %v2389, %v2385
        %v2670 = vpack.c.bf16 %v2440, %v2436
        %v2671 = vpack.c.bf16 %v2442, %v2438
        %v2672 = vpack.c.bf16 %v2493, %v2489
        %v2673 = vpack.c.bf16 %v2495, %v2491
        %v2674 = vpack.c.bf16 %v2546, %v2542
        %v2675 = vpack.c.bf16 %v2548, %v2544
        %v2676 = vpack.c.bf16 %v2599, %v2595
        %v2677 = vpack.c.bf16 %v2601, %v2597
        %v2678 = vpack.c.bf16 %v2652, %v2648
        %v2679 = vpack.c.bf16 %v2654, %v2650
        %2680 = vst [vmem:[#allocation3] sm:$0xff] %v2656
        %2681 = vst [vmem:[#allocation3 + $0x8] sm:$0xff] %v2657
        %2682 = vst [vmem:[#allocation3 + $0x10] sm:$0xff] %v2658
        %2683 = vst [vmem:[#allocation3 + $0x18] sm:$0xff] %v2659
        %2684 = vst [vmem:[#allocation3 + $0x20] sm:$0xff] %v2660
        %2685 = vst [vmem:[#allocation3 + $0x28] sm:$0xff] %v2661
        %2686 = vst [vmem:[#allocation3 + $0x30] sm:$0xff] %v2662
        %2687 = vst [vmem:[#allocation3 + $0x38] sm:$0xff] %v2663
        %2688 = vst [vmem:[#allocation3 + $0x40] sm:$0xff] %v2664
        %2689 = vst [vmem:[#allocation3 + $0x48] sm:$0xff] %v2665
        %2690 = vst [vmem:[#allocation3 + $0x50] sm:$0xff] %v2666
        %2691 = vst [vmem:[#allocation3 + $0x58] sm:$0xff] %v2667
        %2692 = vst [vmem:[#allocation3 + $0x60] sm:$0xff] %v2668
        %2693 = vst [vmem:[#allocation3 + $0x68] sm:$0xff] %v2669
        %2694 = vst [vmem:[#allocation3 + $0x70] sm:$0xff] %v2670
        %2695 = vst [vmem:[#allocation3 + $0x78] sm:$0xff] %v2671
        %2696 = vst [vmem:[#allocation3 + $0x80] sm:$0xff] %v2672
        %2697 = vst [vmem:[#allocation3 + $0x88] sm:$0xff] %v2673
        %2698 = vst [vmem:[#allocation3 + $0x90] sm:$0xff] %v2674
        %2699 = vst [vmem:[#allocation3 + $0x98] sm:$0xff] %v2675
        %2700 = vst [vmem:[#allocation3 + $0xa0] sm:$0xff] %v2676
        %2701 = vst [vmem:[#allocation3 + $0xa8] sm:$0xff] %v2677
        %2702 = vst [vmem:[#allocation3 + $0xb0] sm:$0xff] %v2678
        %2703 = vst [vmem:[#allocation3 + $0xb8] sm:$0xff] %v2679
        %v2704 = vld [vmem:[%s2] sm:$0x1]
        %v2705 = vld [vmem:[#allocation3] sm:$0xff]
        %v2706 = vld [vmem:[#allocation3 + $0x20] sm:$0xff]
        %v2707 = vld [vmem:[#allocation3 + $0x40] sm:$0xff]
        %2708 = vmatprep.subr.bf16.mxu0 0
        %2709 = vmatpush1.bf16.xpose.msra.mxu0 %v2706
        %2710 = vmatprep.subr.bf16.mxu0 0
        %2711 = vmatpush1.bf16.xpose.msra.mxu0 0
        %2712 = vmatprep.subr.bf16.mxu0 0
        %2713 = vmatpush1.bf16.xpose.msra.mxu0 0
        %2714 = vmatprep.subr.bf16.mxu0 0
        %2715 = vmatpush1.bf16.xpose.msra.mxu0 0
        %2716 = vmatprep.subr.bf16.mxu0 0
        %2717 = vmatpush1.bf16.xpose.msra.mxu0 0
        %2718 = vmatprep.subr.bf16.mxu0 0
        %2719 = vmatpush1.bf16.xpose.msra.mxu0 0
        %2720 = vmatprep.subr.bf16.mxu0 0
        %2721 = vmatpush1.bf16.xpose.msra.mxu0 0
        %2722 = vmatprep.subr.bf16.mxu0 0
        %2723 = vmatpush1.bf16.xpose.msra.mxu0 0
        %2724 = vmatprep.subr.bf16.mxu0 0
        %2725 = vmatpush1.bf16.xpose.msra.mxu0 0
        %2726 = vmatprep.subr.bf16.mxu0 0
        %2727 = vmatpush1.bf16.xpose.msra.mxu0 0
        %2728 = vmatprep.subr.bf16.mxu0 0
        %2729 = vmatpush1.bf16.xpose.msra.mxu0 0
        %2730 = vmatprep.subr.bf16.mxu0 0
        %2731 = vmatpush1.bf16.xpose.msra.mxu0 0
        %2732 = vmatprep.subr.bf16.mxu0 0
        %2733 = vmatpush1.bf16.xpose.msra.mxu0 0
        %2734 = vmatprep.subr.bf16.mxu0 0
        %2735 = vmatpush1.bf16.xpose.msra.mxu0 0
        %2736 = vmatprep.subr.bf16.mxu0 0
        %2737 = vmatpush1.bf16.xpose.msra.mxu0 0
        %2738 = vmatprep.subr.bf16.mxu0 0
        %2739 = vmatpush1.bf16.xpose.msra.mxu0 0
        %2740 = vmatprep.mubr.bf16.mxu0 0
        %2741 = vmatmul.mubr.bf16.gmra.mrb[0].mxu0 %v2705
        %v2742 = vpop.f32.mrb[0].mxu0
        %v2743 = vadd.f32 0.0, %v2742
        %v2744 = vpop.f32.mrb[0].mxu0
        %v2745 = vpop.f32.mrb[0].mxu0
        %v2746 = vadd.f32 0.0, %v2745
        %v2747 = vpop.f32.mrb[0].mxu0
        %2748 = vdwg.mxu0
        %v2749 = vmul.f32 %v2743, 0.125
        %v2750 = vmul.f32 %v2746, 0.125
        %v2751 = vlaneseq
        %v2752 = vshrl.u32 %v2751, 7
        %v2753 = vsub.s32 0, %v2752
        %v2754 = vrot.slane %v2704, %v2753
        %v2755 = vadd.f32 %v2749, %v2754
        %v2756 = vadd.f32 %v2750, %v2754
        %vm2757 = vcmask 130048
        %v2758 = vsel %vm2757, %v2755, -inf
        %2759 = vmax.xlane.f32.xlu0 %v2758
        %v2760 = vpop.xlane.xlu0 %2759
        %v2761 = vsel %vm2757, %v2756, -inf
        %2762 = vmax.xlane.f32.xlu0 %v2761
        %v2763 = vpop.xlane.xlu0 %2762
        %v2764 = vsub.f32 %v2755, %v2760
        %v2765 = vsub.f32 %v2756, %v2763
        %v2766 = vmul.f32 %v2764, 1.442695
        %v2767 = vpow.pop %v2766
        %v2768 = vmul.f32 %v2765, 1.442695
        %v2769 = vpow.pop %v2768
        %v2770 = vsel %vm2757, %v2767, 0.0
        %2771 = vadd.xlane.f32.xlu0 %v2770
        %v2772 = vpop.xlane.xlu0 %2771
        %v2773 = vsel %vm2757, %v2769, 0.0
        %2774 = vadd.xlane.f32.xlu0 %v2773
        %v2775 = vpop.xlane.xlu0 %2774
        %v2776 = vmax.f32 %v2772, 1e-20
        %v2777 = vmax.f32 %v2775, 1e-20
        %v2778 = vrcp.pop %v2776
        %v2779 = vmul.f32 %v2767, %v2778
        %v2780 = vrcp.pop %v2777
        %v2781 = vmul.f32 %v2769, %v2780
        %v2782 = vpack.c.bf16 %v2781, %v2779
        %v2784 = vsel %vm2757, %v2782, 0
        %2786 = vmatprep.subr.bf16.mxu0 0
        %2787 = vmatpush1.bf16.msra.mxu0 %v2707
        %2788 = vmatprep.subr.bf16.mxu0 0
        %2789 = vmatpush1.bf16.msra.mxu0 0
        %2790 = vmatprep.subr.bf16.mxu0 0
        %2791 = vmatpush1.bf16.msra.mxu0 0
        %2792 = vmatprep.subr.bf16.mxu0 0
        %2793 = vmatpush1.bf16.msra.mxu0 0
        %2794 = vmatprep.subr.bf16.mxu0 0
        %2795 = vmatpush1.bf16.msra.mxu0 0
        %2796 = vmatprep.subr.bf16.mxu0 0
        %2797 = vmatpush1.bf16.msra.mxu0 0
        %2798 = vmatprep.subr.bf16.mxu0 0
        %2799 = vmatpush1.bf16.msra.mxu0 0
        %2800 = vmatprep.subr.bf16.mxu0 0
        %2801 = vmatpush1.bf16.msra.mxu0 0
        %2802 = vmatprep.subr.bf16.mxu0 0
        %2803 = vmatpush1.bf16.msra.mxu0 0
        %2804 = vmatprep.subr.bf16.mxu0 0
        %2805 = vmatpush1.bf16.msra.mxu0 0
        %2806 = vmatprep.subr.bf16.mxu0 0
        %2807 = vmatpush1.bf16.msra.mxu0 0
        %2808 = vmatprep.subr.bf16.mxu0 0
        %2809 = vmatpush1.bf16.msra.mxu0 0
        %2810 = vmatprep.subr.bf16.mxu0 0
        %2811 = vmatpush1.bf16.msra.mxu0 0
        %2812 = vmatprep.subr.bf16.mxu0 0
        %2813 = vmatpush1.bf16.msra.mxu0 0
        %2814 = vmatprep.subr.bf16.mxu0 0
        %2815 = vmatpush1.bf16.msra.mxu0 0
        %2816 = vmatprep.subr.bf16.mxu0 0
        %2817 = vmatpush1.bf16.msra.mxu0 0
        %2818 = vmatprep.mubr.bf16.mxu0 0
        %2819 = vmatmul.mubr.bf16.gmra.mrb[0].mxu0 %v2784
        %v2820 = vpop.f32.mrb[0].mxu0
        %v2821 = vadd.f32 0.0, %v2820
        %v2822 = vpop.f32.mrb[0].mxu0
        %v2823 = vpop.f32.mrb[0].mxu0
        %v2824 = vadd.f32 0.0, %v2823
        %v2825 = vpop.f32.mrb[0].mxu0
        %2826 = vdwg.mxu0
        %v2827 = vpack.c.bf16 %v2824, %v2821
        %2828 = vst [vmem:[#allocation4] sm:$0xff] %v2827
        %v2829 = vld [vmem:[#allocation3 + $0x8] sm:$0xff]
        %v2830 = vld [vmem:[#allocation3 + $0x28] sm:$0xff]
        %v2831 = vld [vmem:[#allocation3 + $0x48] sm:$0xff]
        %2832 = vmatprep.subr.bf16.mxu0 0
        %2833 = vmatpush1.bf16.xpose.msra.mxu0 %v2830
        %2834 = vmatprep.subr.bf16.mxu0 0
        %2835 = vmatpush1.bf16.xpose.msra.mxu0 0
        %2836 = vmatprep.subr.bf16.mxu0 0
        %2837 = vmatpush1.bf16.xpose.msra.mxu0 0
        %2838 = vmatprep.subr.bf16.mxu0 0
        %2839 = vmatpush1.bf16.xpose.msra.mxu0 0
        %2840 = vmatprep.subr.bf16.mxu0 0
        %2841 = vmatpush1.bf16.xpose.msra.mxu0 0
        %2842 = vmatprep.subr.bf16.mxu0 0
        %2843 = vmatpush1.bf16.xpose.msra.mxu0 0
        %2844 = vmatprep.subr.bf16.mxu0 0
        %2845 = vmatpush1.bf16.xpose.msra.mxu0 0
        %2846 = vmatprep.subr.bf16.mxu0 0
        %2847 = vmatpush1.bf16.xpose.msra.mxu0 0
        %2848 = vmatprep.subr.bf16.mxu0 0
        %2849 = vmatpush1.bf16.xpose.msra.mxu0 0
        %2850 = vmatprep.subr.bf16.mxu0 0
        %2851 = vmatpush1.bf16.xpose.msra.mxu0 0
        %2852 = vmatprep.subr.bf16.mxu0 0
        %2853 = vmatpush1.bf16.xpose.msra.mxu0 0
        %2854 = vmatprep.subr.bf16.mxu0 0
        %2855 = vmatpush1.bf16.xpose.msra.mxu0 0
        %2856 = vmatprep.subr.bf16.mxu0 0
        %2857 = vmatpush1.bf16.xpose.msra.mxu0 0
        %2858 = vmatprep.subr.bf16.mxu0 0
        %2859 = vmatpush1.bf16.xpose.msra.mxu0 0
        %2860 = vmatprep.subr.bf16.mxu0 0
        %2861 = vmatpush1.bf16.xpose.msra.mxu0 0
        %2862 = vmatprep.subr.bf16.mxu0 0
        %2863 = vmatpush1.bf16.xpose.msra.mxu0 0
        %2864 = vmatprep.mubr.bf16.mxu0 0
        %2865 = vmatmul.mubr.bf16.gmra.mrb[0].mxu0 %v2829
        %v2866 = vpop.f32.mrb[0].mxu0
        %v2867 = vadd.f32 0.0, %v2866
        %v2868 = vpop.f32.mrb[0].mxu0
        %v2869 = vpop.f32.mrb[0].mxu0
        %v2870 = vadd.f32 0.0, %v2869
        %v2871 = vpop.f32.mrb[0].mxu0
        %2872 = vdwg.mxu0
        %v2873 = vmul.f32 %v2867, 0.125
        %v2874 = vmul.f32 %v2870, 0.125
        %v2875 = vadd.f32 %v2873, %v2754
        %v2876 = vadd.f32 %v2874, %v2754
        %v2877 = vsel %vm2757, %v2875, -inf
        %2878 = vmax.xlane.f32.xlu0 %v2877
        %v2879 = vpop.xlane.xlu0 %2878
        %v2880 = vsel %vm2757, %v2876, -inf
        %2881 = vmax.xlane.f32.xlu0 %v2880
        %v2882 = vpop.xlane.xlu0 %2881
        %v2883 = vsub.f32 %v2875, %v2879
        %v2884 = vsub.f32 %v2876, %v2882
        %v2885 = vmul.f32 %v2883, 1.442695
        %v2886 = vpow.pop %v2885
        %v2887 = vmul.f32 %v2884, 1.442695
        %v2888 = vpow.pop %v2887
        %v2889 = vsel %vm2757, %v2886, 0.0
        %2890 = vadd.xlane.f32.xlu0 %v2889
        %v2891 = vpop.xlane.xlu0 %2890
        %v2892 = vsel %vm2757, %v2888, 0.0
        %2893 = vadd.xlane.f32.xlu0 %v2892
        %v2894 = vpop.xlane.xlu0 %2893
        %v2895 = vmax.f32 %v2891, 1e-20
        %v2896 = vmax.f32 %v2894, 1e-20
        %v2897 = vrcp.pop %v2895
        %v2898 = vmul.f32 %v2886, %v2897
        %v2899 = vrcp.pop %v2896
        %v2900 = vmul.f32 %v2888, %v2899
        %v2901 = vpack.c.bf16 %v2900, %v2898
        %v2903 = vsel %vm2757, %v2901, 0
        %2905 = vmatprep.subr.bf16.mxu0 0
        %2906 = vmatpush1.bf16.msra.mxu0 %v2831
        %2907 = vmatprep.subr.bf16.mxu0 0
        %2908 = vmatpush1.bf16.msra.mxu0 0
        %2909 = vmatprep.subr.bf16.mxu0 0
        %2910 = vmatpush1.bf16.msra.mxu0 0
        %2911 = vmatprep.subr.bf16.mxu0 0
        %2912 = vmatpush1.bf16.msra.mxu0 0
        %2913 = vmatprep.subr.bf16.mxu0 0
        %2914 = vmatpush1.bf16.msra.mxu0 0
        %2915 = vmatprep.subr.bf16.mxu0 0
        %2916 = vmatpush1.bf16.msra.mxu0 0
        %2917 = vmatprep.subr.bf16.mxu0 0
        %2918 = vmatpush1.bf16.msra.mxu0 0
        %2919 = vmatprep.subr.bf16.mxu0 0
        %2920 = vmatpush1.bf16.msra.mxu0 0
        %2921 = vmatprep.subr.bf16.mxu0 0
        %2922 = vmatpush1.bf16.msra.mxu0 0
        %2923 = vmatprep.subr.bf16.mxu0 0
        %2924 = vmatpush1.bf16.msra.mxu0 0
        %2925 = vmatprep.subr.bf16.mxu0 0
        %2926 = vmatpush1.bf16.msra.mxu0 0
        %2927 = vmatprep.subr.bf16.mxu0 0
        %2928 = vmatpush1.bf16.msra.mxu0 0
        %2929 = vmatprep.subr.bf16.mxu0 0
        %2930 = vmatpush1.bf16.msra.mxu0 0
        %2931 = vmatprep.subr.bf16.mxu0 0
        %2932 = vmatpush1.bf16.msra.mxu0 0
        %2933 = vmatprep.subr.bf16.mxu0 0
        %2934 = vmatpush1.bf16.msra.mxu0 0
        %2935 = vmatprep.subr.bf16.mxu0 0
        %2936 = vmatpush1.bf16.msra.mxu0 0
        %2937 = vmatprep.mubr.bf16.mxu0 0
        %2938 = vmatmul.mubr.bf16.gmra.mrb[0].mxu0 %v2903
        %v2939 = vpop.f32.mrb[0].mxu0
        %v2940 = vadd.f32 0.0, %v2939
        %v2941 = vpop.f32.mrb[0].mxu0
        %v2942 = vpop.f32.mrb[0].mxu0
        %v2943 = vadd.f32 0.0, %v2942
        %v2944 = vpop.f32.mrb[0].mxu0
        %2945 = vdwg.mxu0
        %v2946 = vpack.c.bf16 %v2943, %v2940
        %2947 = vst [vmem:[#allocation4 + $0x8] sm:$0xff] %v2946
        %v2948 = vld [vmem:[#allocation3 + $0x10] sm:$0xff]
        %v2949 = vld [vmem:[#allocation3 + $0x30] sm:$0xff]
        %v2950 = vld [vmem:[#allocation3 + $0x50] sm:$0xff]
        %2951 = vmatprep.subr.bf16.mxu0 0
        %2952 = vmatpush1.bf16.xpose.msra.mxu0 %v2949
        %2953 = vmatprep.subr.bf16.mxu0 0
        %2954 = vmatpush1.bf16.xpose.msra.mxu0 0
        %2955 = vmatprep.subr.bf16.mxu0 0
        %2956 = vmatpush1.bf16.xpose.msra.mxu0 0
        %2957 = vmatprep.subr.bf16.mxu0 0
        %2958 = vmatpush1.bf16.xpose.msra.mxu0 0
        %2959 = vmatprep.subr.bf16.mxu0 0
        %2960 = vmatpush1.bf16.xpose.msra.mxu0 0
        %2961 = vmatprep.subr.bf16.mxu0 0
        %2962 = vmatpush1.bf16.xpose.msra.mxu0 0
        %2963 = vmatprep.subr.bf16.mxu0 0
        %2964 = vmatpush1.bf16.xpose.msra.mxu0 0
        %2965 = vmatprep.subr.bf16.mxu0 0
        %2966 = vmatpush1.bf16.xpose.msra.mxu0 0
        %2967 = vmatprep.subr.bf16.mxu0 0
        %2968 = vmatpush1.bf16.xpose.msra.mxu0 0
        %2969 = vmatprep.subr.bf16.mxu0 0
        %2970 = vmatpush1.bf16.xpose.msra.mxu0 0
        %2971 = vmatprep.subr.bf16.mxu0 0
        %2972 = vmatpush1.bf16.xpose.msra.mxu0 0
        %2973 = vmatprep.subr.bf16.mxu0 0
        %2974 = vmatpush1.bf16.xpose.msra.mxu0 0
        %2975 = vmatprep.subr.bf16.mxu0 0
        %2976 = vmatpush1.bf16.xpose.msra.mxu0 0
        %2977 = vmatprep.subr.bf16.mxu0 0
        %2978 = vmatpush1.bf16.xpose.msra.mxu0 0
        %2979 = vmatprep.subr.bf16.mxu0 0
        %2980 = vmatpush1.bf16.xpose.msra.mxu0 0
        %2981 = vmatprep.subr.bf16.mxu0 0
        %2982 = vmatpush1.bf16.xpose.msra.mxu0 0
        %2983 = vmatprep.mubr.bf16.mxu0 0
        %2984 = vmatmul.mubr.bf16.gmra.mrb[0].mxu0 %v2948
        %v2985 = vpop.f32.mrb[0].mxu0
        %v2986 = vadd.f32 0.0, %v2985
        %v2987 = vpop.f32.mrb[0].mxu0
        %v2988 = vpop.f32.mrb[0].mxu0
        %v2989 = vadd.f32 0.0, %v2988
        %v2990 = vpop.f32.mrb[0].mxu0
        %2991 = vdwg.mxu0
        %v2992 = vmul.f32 %v2986, 0.125
        %v2993 = vmul.f32 %v2989, 0.125
        %v2994 = vadd.f32 %v2992, %v2754
        %v2995 = vadd.f32 %v2993, %v2754
        %v2996 = vsel %vm2757, %v2994, -inf
        %2997 = vmax.xlane.f32.xlu0 %v2996
        %v2998 = vpop.xlane.xlu0 %2997
        %v2999 = vsel %vm2757, %v2995, -inf
        %3000 = vmax.xlane.f32.xlu0 %v2999
        %v3001 = vpop.xlane.xlu0 %3000
        %v3002 = vsub.f32 %v2994, %v2998
        %v3003 = vsub.f32 %v2995, %v3001
        %v3004 = vmul.f32 %v3002, 1.442695
        %v3005 = vpow.pop %v3004
        %v3006 = vmul.f32 %v3003, 1.442695
        %v3007 = vpow.pop %v3006
        %v3008 = vsel %vm2757, %v3005, 0.0
        %3009 = vadd.xlane.f32.xlu0 %v3008
        %v3010 = vpop.xlane.xlu0 %3009
        %v3011 = vsel %vm2757, %v3007, 0.0
        %3012 = vadd.xlane.f32.xlu0 %v3011
        %v3013 = vpop.xlane.xlu0 %3012
        %v3014 = vmax.f32 %v3010, 1e-20
        %v3015 = vmax.f32 %v3013, 1e-20
        %v3016 = vrcp.pop %v3014
        %v3017 = vmul.f32 %v3005, %v3016
        %v3018 = vrcp.pop %v3015
        %v3019 = vmul.f32 %v3007, %v3018
        %v3020 = vpack.c.bf16 %v3019, %v3017
        %v3022 = vsel %vm2757, %v3020, 0
        %3024 = vmatprep.subr.bf16.mxu0 0
        %3025 = vmatpush1.bf16.msra.mxu0 %v2950
        %3026 = vmatprep.subr.bf16.mxu0 0
        %3027 = vmatpush1.bf16.msra.mxu0 0
        %3028 = vmatprep.subr.bf16.mxu0 0
        %3029 = vmatpush1.bf16.msra.mxu0 0
        %3030 = vmatprep.subr.bf16.mxu0 0
        %3031 = vmatpush1.bf16.msra.mxu0 0
        %3032 = vmatprep.subr.bf16.mxu0 0
        %3033 = vmatpush1.bf16.msra.mxu0 0
        %3034 = vmatprep.subr.bf16.mxu0 0
        %3035 = vmatpush1.bf16.msra.mxu0 0
        %3036 = vmatprep.subr.bf16.mxu0 0
        %3037 = vmatpush1.bf16.msra.mxu0 0
        %3038 = vmatprep.subr.bf16.mxu0 0
        %3039 = vmatpush1.bf16.msra.mxu0 0
        %3040 = vmatprep.subr.bf16.mxu0 0
        %3041 = vmatpush1.bf16.msra.mxu0 0
        %3042 = vmatprep.subr.bf16.mxu0 0
        %3043 = vmatpush1.bf16.msra.mxu0 0
        %3044 = vmatprep.subr.bf16.mxu0 0
        %3045 = vmatpush1.bf16.msra.mxu0 0
        %3046 = vmatprep.subr.bf16.mxu0 0
        %3047 = vmatpush1.bf16.msra.mxu0 0
        %3048 = vmatprep.subr.bf16.mxu0 0
        %3049 = vmatpush1.bf16.msra.mxu0 0
        %3050 = vmatprep.subr.bf16.mxu0 0
        %3051 = vmatpush1.bf16.msra.mxu0 0
        %3052 = vmatprep.subr.bf16.mxu0 0
        %3053 = vmatpush1.bf16.msra.mxu0 0
        %3054 = vmatprep.subr.bf16.mxu0 0
        %3055 = vmatpush1.bf16.msra.mxu0 0
        %3056 = vmatprep.mubr.bf16.mxu0 0
        %3057 = vmatmul.mubr.bf16.gmra.mrb[0].mxu0 %v3022
        %v3058 = vpop.f32.mrb[0].mxu0
        %v3059 = vadd.f32 0.0, %v3058
        %v3060 = vpop.f32.mrb[0].mxu0
        %v3061 = vpop.f32.mrb[0].mxu0
        %v3062 = vadd.f32 0.0, %v3061
        %v3063 = vpop.f32.mrb[0].mxu0
        %3064 = vdwg.mxu0
        %v3065 = vpack.c.bf16 %v3062, %v3059
        %3066 = vst [vmem:[#allocation4 + $0x10] sm:$0xff] %v3065
        %v3067 = vld [vmem:[#allocation3 + $0x18] sm:$0xff]
        %v3068 = vld [vmem:[#allocation3 + $0x38] sm:$0xff]
        %v3069 = vld [vmem:[#allocation3 + $0x58] sm:$0xff]
        %3070 = vmatprep.subr.bf16.mxu0 0
        %3071 = vmatpush1.bf16.xpose.msra.mxu0 %v3068
        %3072 = vmatprep.subr.bf16.mxu0 0
        %3073 = vmatpush1.bf16.xpose.msra.mxu0 0
        %3074 = vmatprep.subr.bf16.mxu0 0
        %3075 = vmatpush1.bf16.xpose.msra.mxu0 0
        %3076 = vmatprep.subr.bf16.mxu0 0
        %3077 = vmatpush1.bf16.xpose.msra.mxu0 0
        %3078 = vmatprep.subr.bf16.mxu0 0
        %3079 = vmatpush1.bf16.xpose.msra.mxu0 0
        %3080 = vmatprep.subr.bf16.mxu0 0
        %3081 = vmatpush1.bf16.xpose.msra.mxu0 0
        %3082 = vmatprep.subr.bf16.mxu0 0
        %3083 = vmatpush1.bf16.xpose.msra.mxu0 0
        %3084 = vmatprep.subr.bf16.mxu0 0
        %3085 = vmatpush1.bf16.xpose.msra.mxu0 0
        %3086 = vmatprep.subr.bf16.mxu0 0
        %3087 = vmatpush1.bf16.xpose.msra.mxu0 0
        %3088 = vmatprep.subr.bf16.mxu0 0
        %3089 = vmatpush1.bf16.xpose.msra.mxu0 0
        %3090 = vmatprep.subr.bf16.mxu0 0
        %3091 = vmatpush1.bf16.xpose.msra.mxu0 0
        %3092 = vmatprep.subr.bf16.mxu0 0
        %3093 = vmatpush1.bf16.xpose.msra.mxu0 0
        %3094 = vmatprep.subr.bf16.mxu0 0
        %3095 = vmatpush1.bf16.xpose.msra.mxu0 0
        %3096 = vmatprep.subr.bf16.mxu0 0
        %3097 = vmatpush1.bf16.xpose.msra.mxu0 0
        %3098 = vmatprep.subr.bf16.mxu0 0
        %3099 = vmatpush1.bf16.xpose.msra.mxu0 0
        %3100 = vmatprep.subr.bf16.mxu0 0
        %3101 = vmatpush1.bf16.xpose.msra.mxu0 0
        %3102 = vmatprep.mubr.bf16.mxu0 0
        %3103 = vmatmul.mubr.bf16.gmra.mrb[0].mxu0 %v3067
        %v3104 = vpop.f32.mrb[0].mxu0
        %v3105 = vadd.f32 0.0, %v3104
        %v3106 = vpop.f32.mrb[0].mxu0
        %v3107 = vpop.f32.mrb[0].mxu0
        %v3108 = vadd.f32 0.0, %v3107
        %v3109 = vpop.f32.mrb[0].mxu0
        %3110 = vdwg.mxu0
        %v3111 = vmul.f32 %v3105, 0.125
        %v3112 = vmul.f32 %v3108, 0.125
        %v3113 = vadd.f32 %v3111, %v2754
        %v3114 = vadd.f32 %v3112, %v2754
        %v3115 = vsel %vm2757, %v3113, -inf
        %3116 = vmax.xlane.f32.xlu0 %v3115
        %v3117 = vpop.xlane.xlu0 %3116
        %v3118 = vsel %vm2757, %v3114, -inf
        %3119 = vmax.xlane.f32.xlu0 %v3118
        %v3120 = vpop.xlane.xlu0 %3119
        %v3121 = vsub.f32 %v3113, %v3117
        %v3122 = vsub.f32 %v3114, %v3120
        %v3123 = vmul.f32 %v3121, 1.442695
        %v3124 = vpow.pop %v3123
        %v3125 = vmul.f32 %v3122, 1.442695
        %v3126 = vpow.pop %v3125
        %v3127 = vsel %vm2757, %v3124, 0.0
        %3128 = vadd.xlane.f32.xlu0 %v3127
        %v3129 = vpop.xlane.xlu0 %3128
        %v3130 = vsel %vm2757, %v3126, 0.0
        %3131 = vadd.xlane.f32.xlu0 %v3130
        %v3132 = vpop.xlane.xlu0 %3131
        %v3133 = vmax.f32 %v3129, 1e-20
        %v3134 = vmax.f32 %v3132, 1e-20
        %v3135 = vrcp.pop %v3133
        %v3136 = vmul.f32 %v3124, %v3135
        %v3137 = vrcp.pop %v3134
        %v3138 = vmul.f32 %v3126, %v3137
        %v3139 = vpack.c.bf16 %v3138, %v3136
        %v3141 = vsel %vm2757, %v3139, 0
        %3143 = vmatprep.subr.bf16.mxu0 0
        %3144 = vmatpush1.bf16.msra.mxu0 %v3069
        %3145 = vmatprep.subr.bf16.mxu0 0
        %3146 = vmatpush1.bf16.msra.mxu0 0
        %3147 = vmatprep.subr.bf16.mxu0 0
        %3148 = vmatpush1.bf16.msra.mxu0 0
        %3149 = vmatprep.subr.bf16.mxu0 0
        %3150 = vmatpush1.bf16.msra.mxu0 0
        %3151 = vmatprep.subr.bf16.mxu0 0
        %3152 = vmatpush1.bf16.msra.mxu0 0
        %3153 = vmatprep.subr.bf16.mxu0 0
        %3154 = vmatpush1.bf16.msra.mxu0 0
        %3155 = vmatprep.subr.bf16.mxu0 0
        %3156 = vmatpush1.bf16.msra.mxu0 0
        %3157 = vmatprep.subr.bf16.mxu0 0
        %3158 = vmatpush1.bf16.msra.mxu0 0
        %3159 = vmatprep.subr.bf16.mxu0 0
        %3160 = vmatpush1.bf16.msra.mxu0 0
        %3161 = vmatprep.subr.bf16.mxu0 0
        %3162 = vmatpush1.bf16.msra.mxu0 0
        %3163 = vmatprep.subr.bf16.mxu0 0
        %3164 = vmatpush1.bf16.msra.mxu0 0
        %3165 = vmatprep.subr.bf16.mxu0 0
        %3166 = vmatpush1.bf16.msra.mxu0 0
        %3167 = vmatprep.subr.bf16.mxu0 0
        %3168 = vmatpush1.bf16.msra.mxu0 0
        %3169 = vmatprep.subr.bf16.mxu0 0
        %3170 = vmatpush1.bf16.msra.mxu0 0
        %3171 = vmatprep.subr.bf16.mxu0 0
        %3172 = vmatpush1.bf16.msra.mxu0 0
        %3173 = vmatprep.subr.bf16.mxu0 0
        %3174 = vmatpush1.bf16.msra.mxu0 0
        %3175 = vmatprep.mubr.bf16.mxu0 0
        %3176 = vmatmul.mubr.bf16.gmra.mrb[0].mxu0 %v3141
        %v3177 = vpop.f32.mrb[0].mxu0
        %v3178 = vadd.f32 0.0, %v3177
        %v3179 = vpop.f32.mrb[0].mxu0
        %v3180 = vpop.f32.mrb[0].mxu0
        %v3181 = vadd.f32 0.0, %v3180
        %v3182 = vpop.f32.mrb[0].mxu0
        %3183 = vdwg.mxu0
        %v3184 = vpack.c.bf16 %v3181, %v3178
        %3185 = vst [vmem:[#allocation4 + $0x18] sm:$0xff] %v3184
        %v3186 = vld [vmem:[%s2 + $0x1] sm:$0x1]
        %v3187 = vld [vmem:[#allocation3 + $0x60] sm:$0xff]
        %v3188 = vld [vmem:[#allocation3 + $0x80] sm:$0xff]
        %v3189 = vld [vmem:[#allocation3 + $0xa0] sm:$0xff]
        %3190 = vmatprep.subr.bf16.mxu0 0
        %3191 = vmatpush1.bf16.xpose.msra.mxu0 %v3188
        %3192 = vmatprep.subr.bf16.mxu0 0
        %3193 = vmatpush1.bf16.xpose.msra.mxu0 0
        %3194 = vmatprep.subr.bf16.mxu0 0
        %3195 = vmatpush1.bf16.xpose.msra.mxu0 0
        %3196 = vmatprep.subr.bf16.mxu0 0
        %3197 = vmatpush1.bf16.xpose.msra.mxu0 0
        %3198 = vmatprep.subr.bf16.mxu0 0
        %3199 = vmatpush1.bf16.xpose.msra.mxu0 0
        %3200 = vmatprep.subr.bf16.mxu0 0
        %3201 = vmatpush1.bf16.xpose.msra.mxu0 0
        %3202 = vmatprep.subr.bf16.mxu0 0
        %3203 = vmatpush1.bf16.xpose.msra.mxu0 0
        %3204 = vmatprep.subr.bf16.mxu0 0
        %3205 = vmatpush1.bf16.xpose.msra.mxu0 0
        %3206 = vmatprep.subr.bf16.mxu0 0
        %3207 = vmatpush1.bf16.xpose.msra.mxu0 0
        %3208 = vmatprep.subr.bf16.mxu0 0
        %3209 = vmatpush1.bf16.xpose.msra.mxu0 0
        %3210 = vmatprep.subr.bf16.mxu0 0
        %3211 = vmatpush1.bf16.xpose.msra.mxu0 0
        %3212 = vmatprep.subr.bf16.mxu0 0
        %3213 = vmatpush1.bf16.xpose.msra.mxu0 0
        %3214 = vmatprep.subr.bf16.mxu0 0
        %3215 = vmatpush1.bf16.xpose.msra.mxu0 0
        %3216 = vmatprep.subr.bf16.mxu0 0
        %3217 = vmatpush1.bf16.xpose.msra.mxu0 0
        %3218 = vmatprep.subr.bf16.mxu0 0
        %3219 = vmatpush1.bf16.xpose.msra.mxu0 0
        %3220 = vmatprep.subr.bf16.mxu0 0
        %3221 = vmatpush1.bf16.xpose.msra.mxu0 0
        %3222 = vmatprep.mubr.bf16.mxu0 0
        %3223 = vmatmul.mubr.bf16.gmra.mrb[0].mxu0 %v3187
        %v3224 = vpop.f32.mrb[0].mxu0
        %v3225 = vadd.f32 0.0, %v3224
        %v3226 = vpop.f32.mrb[0].mxu0
        %v3227 = vpop.f32.mrb[0].mxu0
        %v3228 = vadd.f32 0.0, %v3227
        %v3229 = vpop.f32.mrb[0].mxu0
        %3230 = vdwg.mxu0
        %v3231 = vmul.f32 %v3225, 0.125
        %v3232 = vmul.f32 %v3228, 0.125
        %v3233 = vlaneseq
        %v3234 = vshrl.u32 %v3233, 7
        %v3235 = vsub.s32 0, %v3234
        %v3236 = vrot.slane %v3186, %v3235
        %v3237 = vadd.f32 %v3231, %v3236
        %v3238 = vadd.f32 %v3232, %v3236
        %v3239 = vsel %vm2757, %v3237, -inf
        %3240 = vmax.xlane.f32.xlu0 %v3239
        %v3241 = vpop.xlane.xlu0 %3240
        %v3242 = vsel %vm2757, %v3238, -inf
        %3243 = vmax.xlane.f32.xlu0 %v3242
        %v3244 = vpop.xlane.xlu0 %3243
        %v3245 = vsub.f32 %v3237, %v3241
        %v3246 = vsub.f32 %v3238, %v3244
        %v3247 = vmul.f32 %v3245, 1.442695
        %v3248 = vpow.pop %v3247
        %v3249 = vmul.f32 %v3246, 1.442695
        %v3250 = vpow.pop %v3249
        %v3251 = vsel %vm2757, %v3248, 0.0
        %3252 = vadd.xlane.f32.xlu0 %v3251
        %v3253 = vpop.xlane.xlu0 %3252
        %v3254 = vsel %vm2757, %v3250, 0.0
        %3255 = vadd.xlane.f32.xlu0 %v3254
        %v3256 = vpop.xlane.xlu0 %3255
        %v3257 = vmax.f32 %v3253, 1e-20
        %v3258 = vmax.f32 %v3256, 1e-20
        %v3259 = vrcp.pop %v3257
        %v3260 = vmul.f32 %v3248, %v3259
        %v3261 = vrcp.pop %v3258
        %v3262 = vmul.f32 %v3250, %v3261
        %v3263 = vpack.c.bf16 %v3262, %v3260
        %v3265 = vsel %vm2757, %v3263, 0
        %3267 = vmatprep.subr.bf16.mxu0 0
        %3268 = vmatpush1.bf16.msra.mxu0 %v3189
        %3269 = vmatprep.subr.bf16.mxu0 0
        %3270 = vmatpush1.bf16.msra.mxu0 0
        %3271 = vmatprep.subr.bf16.mxu0 0
        %3272 = vmatpush1.bf16.msra.mxu0 0
        %3273 = vmatprep.subr.bf16.mxu0 0
        %3274 = vmatpush1.bf16.msra.mxu0 0
        %3275 = vmatprep.subr.bf16.mxu0 0
        %3276 = vmatpush1.bf16.msra.mxu0 0
        %3277 = vmatprep.subr.bf16.mxu0 0
        %3278 = vmatpush1.bf16.msra.mxu0 0
        %3279 = vmatprep.subr.bf16.mxu0 0
        %3280 = vmatpush1.bf16.msra.mxu0 0
        %3281 = vmatprep.subr.bf16.mxu0 0
        %3282 = vmatpush1.bf16.msra.mxu0 0
        %3283 = vmatprep.subr.bf16.mxu0 0
        %3284 = vmatpush1.bf16.msra.mxu0 0
        %3285 = vmatprep.subr.bf16.mxu0 0
        %3286 = vmatpush1.bf16.msra.mxu0 0
        %3287 = vmatprep.subr.bf16.mxu0 0
        %3288 = vmatpush1.bf16.msra.mxu0 0
        %3289 = vmatprep.subr.bf16.mxu0 0
        %3290 = vmatpush1.bf16.msra.mxu0 0
        %3291 = vmatprep.subr.bf16.mxu0 0
        %3292 = vmatpush1.bf16.msra.mxu0 0
        %3293 = vmatprep.subr.bf16.mxu0 0
        %3294 = vmatpush1.bf16.msra.mxu0 0
        %3295 = vmatprep.subr.bf16.mxu0 0
        %3296 = vmatpush1.bf16.msra.mxu0 0
        %3297 = vmatprep.subr.bf16.mxu0 0
        %3298 = vmatpush1.bf16.msra.mxu0 0
        %3299 = vmatprep.mubr.bf16.mxu0 0
        %3300 = vmatmul.mubr.bf16.gmra.mrb[0].mxu0 %v3265
        %v3301 = vpop.f32.mrb[0].mxu0
        %v3302 = vadd.f32 0.0, %v3301
        %v3303 = vpop.f32.mrb[0].mxu0
        %v3304 = vpop.f32.mrb[0].mxu0
        %v3305 = vadd.f32 0.0, %v3304
        %v3306 = vpop.f32.mrb[0].mxu0
        %3307 = vdwg.mxu0
        %v3308 = vpack.c.bf16 %v3305, %v3302
        %3309 = vst [vmem:[#allocation4 + $0x20] sm:$0xff] %v3308
        %v3310 = vld [vmem:[#allocation3 + $0x68] sm:$0xff]
        %v3311 = vld [vmem:[#allocation3 + $0x88] sm:$0xff]
        %v3312 = vld [vmem:[#allocation3 + $0xa8] sm:$0xff]
        %3313 = vmatprep.subr.bf16.mxu0 0
        %3314 = vmatpush1.bf16.xpose.msra.mxu0 %v3311
        %3315 = vmatprep.subr.bf16.mxu0 0
        %3316 = vmatpush1.bf16.xpose.msra.mxu0 0
        %3317 = vmatprep.subr.bf16.mxu0 0
        %3318 = vmatpush1.bf16.xpose.msra.mxu0 0
        %3319 = vmatprep.subr.bf16.mxu0 0
        %3320 = vmatpush1.bf16.xpose.msra.mxu0 0
        %3321 = vmatprep.subr.bf16.mxu0 0
        %3322 = vmatpush1.bf16.xpose.msra.mxu0 0
        %3323 = vmatprep.subr.bf16.mxu0 0
        %3324 = vmatpush1.bf16.xpose.msra.mxu0 0
        %3325 = vmatprep.subr.bf16.mxu0 0
        %3326 = vmatpush1.bf16.xpose.msra.mxu0 0
        %3327 = vmatprep.subr.bf16.mxu0 0
        %3328 = vmatpush1.bf16.xpose.msra.mxu0 0
        %3329 = vmatprep.subr.bf16.mxu0 0
        %3330 = vmatpush1.bf16.xpose.msra.mxu0 0
        %3331 = vmatprep.subr.bf16.mxu0 0
        %3332 = vmatpush1.bf16.xpose.msra.mxu0 0
        %3333 = vmatprep.subr.bf16.mxu0 0
        %3334 = vmatpush1.bf16.xpose.msra.mxu0 0
        %3335 = vmatprep.subr.bf16.mxu0 0
        %3336 = vmatpush1.bf16.xpose.msra.mxu0 0
        %3337 = vmatprep.subr.bf16.mxu0 0
        %3338 = vmatpush1.bf16.xpose.msra.mxu0 0
        %3339 = vmatprep.subr.bf16.mxu0 0
        %3340 = vmatpush1.bf16.xpose.msra.mxu0 0
        %3341 = vmatprep.subr.bf16.mxu0 0
        %3342 = vmatpush1.bf16.xpose.msra.mxu0 0
        %3343 = vmatprep.subr.bf16.mxu0 0
        %3344 = vmatpush1.bf16.xpose.msra.mxu0 0
        %3345 = vmatprep.mubr.bf16.mxu0 0
        %3346 = vmatmul.mubr.bf16.gmra.mrb[0].mxu0 %v3310
        %v3347 = vpop.f32.mrb[0].mxu0
        %v3348 = vadd.f32 0.0, %v3347
        %v3349 = vpop.f32.mrb[0].mxu0
        %v3350 = vpop.f32.mrb[0].mxu0
        %v3351 = vadd.f32 0.0, %v3350
        %v3352 = vpop.f32.mrb[0].mxu0
        %3353 = vdwg.mxu0
        %v3354 = vmul.f32 %v3348, 0.125
        %v3355 = vmul.f32 %v3351, 0.125
        %v3356 = vadd.f32 %v3354, %v3236
        %v3357 = vadd.f32 %v3355, %v3236
        %v3358 = vsel %vm2757, %v3356, -inf
        %3359 = vmax.xlane.f32.xlu0 %v3358
        %v3360 = vpop.xlane.xlu0 %3359
        %v3361 = vsel %vm2757, %v3357, -inf
        %3362 = vmax.xlane.f32.xlu0 %v3361
        %v3363 = vpop.xlane.xlu0 %3362
        %v3364 = vsub.f32 %v3356, %v3360
        %v3365 = vsub.f32 %v3357, %v3363
        %v3366 = vmul.f32 %v3364, 1.442695
        %v3367 = vpow.pop %v3366
        %v3368 = vmul.f32 %v3365, 1.442695
        %v3369 = vpow.pop %v3368
        %v3370 = vsel %vm2757, %v3367, 0.0
        %3371 = vadd.xlane.f32.xlu0 %v3370
        %v3372 = vpop.xlane.xlu0 %3371
        %v3373 = vsel %vm2757, %v3369, 0.0
        %3374 = vadd.xlane.f32.xlu0 %v3373
        %v3375 = vpop.xlane.xlu0 %3374
        %v3376 = vmax.f32 %v3372, 1e-20
        %v3377 = vmax.f32 %v3375, 1e-20
        %v3378 = vrcp.pop %v3376
        %v3379 = vmul.f32 %v3367, %v3378
        %v3380 = vrcp.pop %v3377
        %v3381 = vmul.f32 %v3369, %v3380
        %v3382 = vpack.c.bf16 %v3381, %v3379
        %v3384 = vsel %vm2757, %v3382, 0
        %3386 = vmatprep.subr.bf16.mxu0 0
        %3387 = vmatpush1.bf16.msra.mxu0 %v3312
        %3388 = vmatprep.subr.bf16.mxu0 0
        %3389 = vmatpush1.bf16.msra.mxu0 0
        %3390 = vmatprep.subr.bf16.mxu0 0
        %3391 = vmatpush1.bf16.msra.mxu0 0
        %3392 = vmatprep.subr.bf16.mxu0 0
        %3393 = vmatpush1.bf16.msra.mxu0 0
        %3394 = vmatprep.subr.bf16.mxu0 0
        %3395 = vmatpush1.bf16.msra.mxu0 0
        %3396 = vmatprep.subr.bf16.mxu0 0
        %3397 = vmatpush1.bf16.msra.mxu0 0
        %3398 = vmatprep.subr.bf16.mxu0 0
        %3399 = vmatpush1.bf16.msra.mxu0 0
        %3400 = vmatprep.subr.bf16.mxu0 0
        %3401 = vmatpush1.bf16.msra.mxu0 0
        %3402 = vmatprep.subr.bf16.mxu0 0
        %3403 = vmatpush1.bf16.msra.mxu0 0
        %3404 = vmatprep.subr.bf16.mxu0 0
        %3405 = vmatpush1.bf16.msra.mxu0 0
        %3406 = vmatprep.subr.bf16.mxu0 0
        %3407 = vmatpush1.bf16.msra.mxu0 0
        %3408 = vmatprep.subr.bf16.mxu0 0
        %3409 = vmatpush1.bf16.msra.mxu0 0
        %3410 = vmatprep.subr.bf16.mxu0 0
        %3411 = vmatpush1.bf16.msra.mxu0 0
        %3412 = vmatprep.subr.bf16.mxu0 0
        %3413 = vmatpush1.bf16.msra.mxu0 0
        %3414 = vmatprep.subr.bf16.mxu0 0
        %3415 = vmatpush1.bf16.msra.mxu0 0
        %3416 = vmatprep.subr.bf16.mxu0 0
        %3417 = vmatpush1.bf16.msra.mxu0 0
        %3418 = vmatprep.mubr.bf16.mxu0 0
        %3419 = vmatmul.mubr.bf16.gmra.mrb[0].mxu0 %v3384
        %v3420 = vpop.f32.mrb[0].mxu0
        %v3421 = vadd.f32 0.0, %v3420
        %v3422 = vpop.f32.mrb[0].mxu0
        %v3423 = vpop.f32.mrb[0].mxu0
        %v3424 = vadd.f32 0.0, %v3423
        %v3425 = vpop.f32.mrb[0].mxu0
        %3426 = vdwg.mxu0
        %v3427 = vpack.c.bf16 %v3424, %v3421
        %3428 = vst [vmem:[#allocation4 + $0x28] sm:$0xff] %v3427
        %v3429 = vld [vmem:[#allocation3 + $0x70] sm:$0xff]
        %v3430 = vld [vmem:[#allocation3 + $0x90] sm:$0xff]
        %v3431 = vld [vmem:[#allocation3 + $0xb0] sm:$0xff]
        %3432 = vmatprep.subr.bf16.mxu0 0
        %3433 = vmatpush1.bf16.xpose.msra.mxu0 %v3430
        %3434 = vmatprep.subr.bf16.mxu0 0
        %3435 = vmatpush1.bf16.xpose.msra.mxu0 0
        %3436 = vmatprep.subr.bf16.mxu0 0
        %3437 = vmatpush1.bf16.xpose.msra.mxu0 0
        %3438 = vmatprep.subr.bf16.mxu0 0
        %3439 = vmatpush1.bf16.xpose.msra.mxu0 0
        %3440 = vmatprep.subr.bf16.mxu0 0
        %3441 = vmatpush1.bf16.xpose.msra.mxu0 0
        %3442 = vmatprep.subr.bf16.mxu0 0
        %3443 = vmatpush1.bf16.xpose.msra.mxu0 0
        %3444 = vmatprep.subr.bf16.mxu0 0
        %3445 = vmatpush1.bf16.xpose.msra.mxu0 0
        %3446 = vmatprep.subr.bf16.mxu0 0
        %3447 = vmatpush1.bf16.xpose.msra.mxu0 0
        %3448 = vmatprep.subr.bf16.mxu0 0
        %3449 = vmatpush1.bf16.xpose.msra.mxu0 0
        %3450 = vmatprep.subr.bf16.mxu0 0
        %3451 = vmatpush1.bf16.xpose.msra.mxu0 0
        %3452 = vmatprep.subr.bf16.mxu0 0
        %3453 = vmatpush1.bf16.xpose.msra.mxu0 0
        %3454 = vmatprep.subr.bf16.mxu0 0
        %3455 = vmatpush1.bf16.xpose.msra.mxu0 0
        %3456 = vmatprep.subr.bf16.mxu0 0
        %3457 = vmatpush1.bf16.xpose.msra.mxu0 0
        %3458 = vmatprep.subr.bf16.mxu0 0
        %3459 = vmatpush1.bf16.xpose.msra.mxu0 0
        %3460 = vmatprep.subr.bf16.mxu0 0
        %3461 = vmatpush1.bf16.xpose.msra.mxu0 0
        %3462 = vmatprep.subr.bf16.mxu0 0
        %3463 = vmatpush1.bf16.xpose.msra.mxu0 0
        %3464 = vmatprep.mubr.bf16.mxu0 0
        %3465 = vmatmul.mubr.bf16.gmra.mrb[0].mxu0 %v3429
        %v3466 = vpop.f32.mrb[0].mxu0
        %v3467 = vadd.f32 0.0, %v3466
        %v3468 = vpop.f32.mrb[0].mxu0
        %v3469 = vpop.f32.mrb[0].mxu0
        %v3470 = vadd.f32 0.0, %v3469
        %v3471 = vpop.f32.mrb[0].mxu0
        %3472 = vdwg.mxu0
        %v3473 = vmul.f32 %v3467, 0.125
        %v3474 = vmul.f32 %v3470, 0.125
        %v3475 = vadd.f32 %v3473, %v3236
        %v3476 = vadd.f32 %v3474, %v3236
        %v3477 = vsel %vm2757, %v3475, -inf
        %3478 = vmax.xlane.f32.xlu0 %v3477
        %v3479 = vpop.xlane.xlu0 %3478
        %v3480 = vsel %vm2757, %v3476, -inf
        %3481 = vmax.xlane.f32.xlu0 %v3480
        %v3482 = vpop.xlane.xlu0 %3481
        %v3483 = vsub.f32 %v3475, %v3479
        %v3484 = vsub.f32 %v3476, %v3482
        %v3485 = vmul.f32 %v3483, 1.442695
        %v3486 = vpow.pop %v3485
        %v3487 = vmul.f32 %v3484, 1.442695
        %v3488 = vpow.pop %v3487
        %v3489 = vsel %vm2757, %v3486, 0.0
        %3490 = vadd.xlane.f32.xlu0 %v3489
        %v3491 = vpop.xlane.xlu0 %3490
        %v3492 = vsel %vm2757, %v3488, 0.0
        %3493 = vadd.xlane.f32.xlu0 %v3492
        %v3494 = vpop.xlane.xlu0 %3493
        %v3495 = vmax.f32 %v3491, 1e-20
        %v3496 = vmax.f32 %v3494, 1e-20
        %v3497 = vrcp.pop %v3495
        %v3498 = vmul.f32 %v3486, %v3497
        %v3499 = vrcp.pop %v3496
        %v3500 = vmul.f32 %v3488, %v3499
        %v3501 = vpack.c.bf16 %v3500, %v3498
        %v3503 = vsel %vm2757, %v3501, 0
        %3505 = vmatprep.subr.bf16.mxu0 0
        %3506 = vmatpush1.bf16.msra.mxu0 %v3431
        %3507 = vmatprep.subr.bf16.mxu0 0
        %3508 = vmatpush1.bf16.msra.mxu0 0
        %3509 = vmatprep.subr.bf16.mxu0 0
        %3510 = vmatpush1.bf16.msra.mxu0 0
        %3511 = vmatprep.subr.bf16.mxu0 0
        %3512 = vmatpush1.bf16.msra.mxu0 0
        %3513 = vmatprep.subr.bf16.mxu0 0
        %3514 = vmatpush1.bf16.msra.mxu0 0
        %3515 = vmatprep.subr.bf16.mxu0 0
        %3516 = vmatpush1.bf16.msra.mxu0 0
        %3517 = vmatprep.subr.bf16.mxu0 0
        %3518 = vmatpush1.bf16.msra.mxu0 0
        %3519 = vmatprep.subr.bf16.mxu0 0
        %3520 = vmatpush1.bf16.msra.mxu0 0
        %3521 = vmatprep.subr.bf16.mxu0 0
        %3522 = vmatpush1.bf16.msra.mxu0 0
        %3523 = vmatprep.subr.bf16.mxu0 0
        %3524 = vmatpush1.bf16.msra.mxu0 0
        %3525 = vmatprep.subr.bf16.mxu0 0
        %3526 = vmatpush1.bf16.msra.mxu0 0
        %3527 = vmatprep.subr.bf16.mxu0 0
        %3528 = vmatpush1.bf16.msra.mxu0 0
        %3529 = vmatprep.subr.bf16.mxu0 0
        %3530 = vmatpush1.bf16.msra.mxu0 0
        %3531 = vmatprep.subr.bf16.mxu0 0
        %3532 = vmatpush1.bf16.msra.mxu0 0
        %3533 = vmatprep.subr.bf16.mxu0 0
        %3534 = vmatpush1.bf16.msra.mxu0 0
        %3535 = vmatprep.subr.bf16.mxu0 0
        %3536 = vmatpush1.bf16.msra.mxu0 0
        %3537 = vmatprep.mubr.bf16.mxu0 0
        %3538 = vmatmul.mubr.bf16.gmra.mrb[0].mxu0 %v3503
        %v3539 = vpop.f32.mrb[0].mxu0
        %v3540 = vadd.f32 0.0, %v3539
        %v3541 = vpop.f32.mrb[0].mxu0
        %v3542 = vpop.f32.mrb[0].mxu0
        %v3543 = vadd.f32 0.0, %v3542
        %v3544 = vpop.f32.mrb[0].mxu0
        %3545 = vdwg.mxu0
        %v3546 = vpack.c.bf16 %v3543, %v3540
        %3547 = vst [vmem:[#allocation4 + $0x30] sm:$0xff] %v3546
        %v3548 = vld [vmem:[#allocation3 + $0x78] sm:$0xff]
        %v3549 = vld [vmem:[#allocation3 + $0x98] sm:$0xff]
        %v3550 = vld [vmem:[#allocation3 + $0xb8] sm:$0xff]
        %3551 = vmatprep.subr.bf16.mxu0 0
        %3552 = vmatpush1.bf16.xpose.msra.mxu0 %v3549
        %3553 = vmatprep.subr.bf16.mxu0 0
        %3554 = vmatpush1.bf16.xpose.msra.mxu0 0
        %3555 = vmatprep.subr.bf16.mxu0 0
        %3556 = vmatpush1.bf16.xpose.msra.mxu0 0
        %3557 = vmatprep.subr.bf16.mxu0 0
        %3558 = vmatpush1.bf16.xpose.msra.mxu0 0
        %3559 = vmatprep.subr.bf16.mxu0 0
        %3560 = vmatpush1.bf16.xpose.msra.mxu0 0
        %3561 = vmatprep.subr.bf16.mxu0 0
        %3562 = vmatpush1.bf16.xpose.msra.mxu0 0
        %3563 = vmatprep.subr.bf16.mxu0 0
        %3564 = vmatpush1.bf16.xpose.msra.mxu0 0
        %3565 = vmatprep.subr.bf16.mxu0 0
        %3566 = vmatpush1.bf16.xpose.msra.mxu0 0
        %3567 = vmatprep.subr.bf16.mxu0 0
        %3568 = vmatpush1.bf16.xpose.msra.mxu0 0
        %3569 = vmatprep.subr.bf16.mxu0 0
        %3570 = vmatpush1.bf16.xpose.msra.mxu0 0
        %3571 = vmatprep.subr.bf16.mxu0 0
        %3572 = vmatpush1.bf16.xpose.msra.mxu0 0
        %3573 = vmatprep.subr.bf16.mxu0 0
        %3574 = vmatpush1.bf16.xpose.msra.mxu0 0
        %3575 = vmatprep.subr.bf16.mxu0 0
        %3576 = vmatpush1.bf16.xpose.msra.mxu0 0
        %3577 = vmatprep.subr.bf16.mxu0 0
        %3578 = vmatpush1.bf16.xpose.msra.mxu0 0
        %3579 = vmatprep.subr.bf16.mxu0 0
        %3580 = vmatpush1.bf16.xpose.msra.mxu0 0
        %3581 = vmatprep.subr.bf16.mxu0 0
        %3582 = vmatpush1.bf16.xpose.msra.mxu0 0
        %3583 = vmatprep.mubr.bf16.mxu0 0
        %3584 = vmatmul.mubr.bf16.gmra.mrb[0].mxu0 %v3548
        %v3585 = vpop.f32.mrb[0].mxu0
        %v3586 = vadd.f32 0.0, %v3585
        %v3587 = vpop.f32.mrb[0].mxu0
        %v3588 = vpop.f32.mrb[0].mxu0
        %v3589 = vadd.f32 0.0, %v3588
        %v3590 = vpop.f32.mrb[0].mxu0
        %3591 = vdwg.mxu0
        %v3592 = vmul.f32 %v3586, 0.125
        %v3593 = vmul.f32 %v3589, 0.125
        %v3594 = vadd.f32 %v3592, %v3236
        %v3595 = vadd.f32 %v3593, %v3236
        %v3596 = vsel %vm2757, %v3594, -inf
        %3597 = vmax.xlane.f32.xlu0 %v3596
        %v3598 = vpop.xlane.xlu0 %3597
        %v3599 = vsel %vm2757, %v3595, -inf
        %3600 = vmax.xlane.f32.xlu0 %v3599
        %v3601 = vpop.xlane.xlu0 %3600
        %v3602 = vsub.f32 %v3594, %v3598
        %v3603 = vsub.f32 %v3595, %v3601
        %v3604 = vmul.f32 %v3602, 1.442695
        %v3605 = vpow.pop %v3604
        %v3606 = vmul.f32 %v3603, 1.442695
        %v3607 = vpow.pop %v3606
        %v3608 = vsel %vm2757, %v3605, 0.0
        %3609 = vadd.xlane.f32.xlu0 %v3608
        %v3610 = vpop.xlane.xlu0 %3609
        %v3611 = vsel %vm2757, %v3607, 0.0
        %3612 = vadd.xlane.f32.xlu0 %v3611
        %v3613 = vpop.xlane.xlu0 %3612
        %v3614 = vmax.f32 %v3610, 1e-20
        %v3615 = vmax.f32 %v3613, 1e-20
        %v3616 = vrcp.pop %v3614
        %v3617 = vmul.f32 %v3605, %v3616
        %v3618 = vrcp.pop %v3615
        %v3619 = vmul.f32 %v3607, %v3618
        %v3620 = vpack.c.bf16 %v3619, %v3617
        %v3622 = vsel %vm2757, %v3620, 0
        %3624 = vmatprep.subr.bf16.mxu0 0
        %3625 = vmatpush1.bf16.msra.mxu0 %v3550
        %3626 = vmatprep.subr.bf16.mxu0 0
        %3627 = vmatpush1.bf16.msra.mxu0 0
        %3628 = vmatprep.subr.bf16.mxu0 0
        %3629 = vmatpush1.bf16.msra.mxu0 0
        %3630 = vmatprep.subr.bf16.mxu0 0
        %3631 = vmatpush1.bf16.msra.mxu0 0
        %3632 = vmatprep.subr.bf16.mxu0 0
        %3633 = vmatpush1.bf16.msra.mxu0 0
        %3634 = vmatprep.subr.bf16.mxu0 0
        %3635 = vmatpush1.bf16.msra.mxu0 0
        %3636 = vmatprep.subr.bf16.mxu0 0
        %3637 = vmatpush1.bf16.msra.mxu0 0
        %3638 = vmatprep.subr.bf16.mxu0 0
        %3639 = vmatpush1.bf16.msra.mxu0 0
        %3640 = vmatprep.subr.bf16.mxu0 0
        %3641 = vmatpush1.bf16.msra.mxu0 0
        %3642 = vmatprep.subr.bf16.mxu0 0
        %3643 = vmatpush1.bf16.msra.mxu0 0
        %3644 = vmatprep.subr.bf16.mxu0 0
        %3645 = vmatpush1.bf16.msra.mxu0 0
        %3646 = vmatprep.subr.bf16.mxu0 0
        %3647 = vmatpush1.bf16.msra.mxu0 0
        %3648 = vmatprep.subr.bf16.mxu0 0
        %3649 = vmatpush1.bf16.msra.mxu0 0
        %3650 = vmatprep.subr.bf16.mxu0 0
        %3651 = vmatpush1.bf16.msra.mxu0 0
        %3652 = vmatprep.subr.bf16.mxu0 0
        %3653 = vmatpush1.bf16.msra.mxu0 0
        %3654 = vmatprep.subr.bf16.mxu0 0
        %3655 = vmatpush1.bf16.msra.mxu0 0
        %3656 = vmatprep.mubr.bf16.mxu0 0
        %3657 = vmatmul.mubr.bf16.gmra.mrb[0].mxu0 %v3622
        %v3658 = vpop.f32.mrb[0].mxu0
        %v3659 = vadd.f32 0.0, %v3658
        %v3660 = vpop.f32.mrb[0].mxu0
        %v3661 = vpop.f32.mrb[0].mxu0
        %v3662 = vadd.f32 0.0, %v3661
        %v3663 = vpop.f32.mrb[0].mxu0
        %3664 = vdwg.mxu0
        %v3665 = vpack.c.bf16 %v3662, %v3659
        %3666 = vst [vmem:[#allocation4 + $0x38] sm:$0xff] %v3665
        %v3667 = vld [vmem:[#allocation4] sm:$0xff]
        %v3668 = vld [vmem:[#allocation4 + $0x8] sm:$0xff]
        %v3669 = vld [vmem:[#allocation4 + $0x10] sm:$0xff]
        %v3670 = vld [vmem:[#allocation4 + $0x18] sm:$0xff]
        %v3671 = vld [vmem:[#allocation4 + $0x20] sm:$0xff]
        %v3672 = vld [vmem:[#allocation4 + $0x28] sm:$0xff]
        %v3673 = vld [vmem:[#allocation4 + $0x30] sm:$0xff]
        %v3674 = vld [vmem:[#allocation4 + $0x38] sm:$0xff]
        %v3675 = vld [vmem:[%s786] sm:$0xff]
        %v3676 = vld [vmem:[%s786 + $0x8] sm:$0xff]
        %v3677 = vld [vmem:[%s786 + $0x10] sm:$0xff]
        %v3678 = vld [vmem:[%s786 + $0x18] sm:$0xff]
        %v3679 = vld [vmem:[%s786 + $0x20] sm:$0xff]
        %v3680 = vld [vmem:[%s786 + $0x28] sm:$0xff]
        %v3681 = vld [vmem:[%s786 + $0x30] sm:$0xff]
        %v3682 = vld [vmem:[%s786 + $0x38] sm:$0xff]
        %v3683 = vld [vmem:[%s786 + $0x40] sm:$0xff]
        %v3684 = vld [vmem:[%s786 + $0x48] sm:$0xff]
        %v3685 = vld [vmem:[%s786 + $0x50] sm:$0xff]
        %v3686 = vld [vmem:[%s786 + $0x58] sm:$0xff]
        %v3687 = vld [vmem:[%s786 + $0x60] sm:$0xff]
        %v3688 = vld [vmem:[%s786 + $0x68] sm:$0xff]
        %v3689 = vld [vmem:[%s786 + $0x70] sm:$0xff]
        %v3690 = vld [vmem:[%s786 + $0x78] sm:$0xff]
        %v3691 = vld [vmem:[%s786 + $0x80] sm:$0xff]
        %v3692 = vld [vmem:[%s786 + $0x88] sm:$0xff]
        %v3693 = vld [vmem:[%s786 + $0x90] sm:$0xff]
        %v3694 = vld [vmem:[%s786 + $0x98] sm:$0xff]
        %v3695 = vld [vmem:[%s786 + $0xa0] sm:$0xff]
        %v3696 = vld [vmem:[%s786 + $0xa8] sm:$0xff]
        %v3697 = vld [vmem:[%s786 + $0xb0] sm:$0xff]
        %v3698 = vld [vmem:[%s786 + $0xb8] sm:$0xff]
        %v3699 = vld [vmem:[%s786 + $0xc0] sm:$0xff]
        %v3700 = vld [vmem:[%s786 + $0xc8] sm:$0xff]
        %v3701 = vld [vmem:[%s786 + $0xd0] sm:$0xff]
        %v3702 = vld [vmem:[%s786 + $0xd8] sm:$0xff]
        %v3703 = vld [vmem:[%s786 + $0xe0] sm:$0xff]
        %v3704 = vld [vmem:[%s786 + $0xe8] sm:$0xff]
        %v3705 = vld [vmem:[%s786 + $0xf0] sm:$0xff]
        %v3706 = vld [vmem:[%s786 + $0xf8] sm:$0xff]
        %v3707 = vld [vmem:[%s786 + $0x100] sm:$0xff]
        %v3708 = vld [vmem:[%s786 + $0x108] sm:$0xff]
        %v3709 = vld [vmem:[%s786 + $0x110] sm:$0xff]
        %v3710 = vld [vmem:[%s786 + $0x118] sm:$0xff]
        %v3711 = vld [vmem:[%s786 + $0x120] sm:$0xff]
        %v3712 = vld [vmem:[%s786 + $0x128] sm:$0xff]
        %v3713 = vld [vmem:[%s786 + $0x130] sm:$0xff]
        %v3714 = vld [vmem:[%s786 + $0x138] sm:$0xff]
        %v3715 = vld [vmem:[%s786 + $0x140] sm:$0xff]
        %v3716 = vld [vmem:[%s786 + $0x148] sm:$0xff]
        %v3717 = vld [vmem:[%s786 + $0x150] sm:$0xff]
        %v3718 = vld [vmem:[%s786 + $0x158] sm:$0xff]
        %v3719 = vld [vmem:[%s786 + $0x160] sm:$0xff]
        %v3720 = vld [vmem:[%s786 + $0x168] sm:$0xff]
        %v3721 = vld [vmem:[%s786 + $0x170] sm:$0xff]
        %v3722 = vld [vmem:[%s786 + $0x178] sm:$0xff]
        %v3723 = vld [vmem:[%s786 + $0x180] sm:$0xff]
        %v3724 = vld [vmem:[%s786 + $0x188] sm:$0xff]
        %v3725 = vld [vmem:[%s786 + $0x190] sm:$0xff]
        %v3726 = vld [vmem:[%s786 + $0x198] sm:$0xff]
        %v3727 = vld [vmem:[%s786 + $0x1a0] sm:$0xff]
        %v3728 = vld [vmem:[%s786 + $0x1a8] sm:$0xff]
        %v3729 = vld [vmem:[%s786 + $0x1b0] sm:$0xff]
        %v3730 = vld [vmem:[%s786 + $0x1b8] sm:$0xff]
        %v3731 = vld [vmem:[%s786 + $0x1c0] sm:$0xff]
        %v3732 = vld [vmem:[%s786 + $0x1c8] sm:$0xff]
        %v3733 = vld [vmem:[%s786 + $0x1d0] sm:$0xff]
        %v3734 = vld [vmem:[%s786 + $0x1d8] sm:$0xff]
        %v3735 = vld [vmem:[%s786 + $0x1e0] sm:$0xff]
        %v3736 = vld [vmem:[%s786 + $0x1e8] sm:$0xff]
        %v3737 = vld [vmem:[%s786 + $0x1f0] sm:$0xff]
        %v3738 = vld [vmem:[%s786 + $0x1f8] sm:$0xff]
        %v3739 = vld [vmem:[%s795] sm:$0x3]
        %v3741 = vlaneseq
        %v3742 = vshrl.u32 %v3741, 7
        %v3743 = vsub.s32 0, %v3742
        %v3744 = vrot.slane %v3739, %v3743
        %v3745 = vlaneseq
        %v3746 = vshrl.u32 %v3745, 7
        %v3747 = vsub.s32 1, %v3746
        %v3748 = vrot.slane %v3739, %v3747
        %v3815 = vunpack.c.l.b16 %v3675
        %v3816 = vunpack.c.h.b16 %v3675
        %v3817 = vunpack.c.l.b16 %v3676
        %v3818 = vunpack.c.h.b16 %v3676
        %v3819 = vunpack.c.l.b16 %v3677
        %v3820 = vunpack.c.h.b16 %v3677
        %v3821 = vunpack.c.l.b16 %v3678
        %v3822 = vunpack.c.h.b16 %v3678
        %v3823 = vunpack.c.l.b16 %v3679
        %v3824 = vunpack.c.h.b16 %v3679
        %v3825 = vunpack.c.l.b16 %v3680
        %v3826 = vunpack.c.h.b16 %v3680
        %v3827 = vunpack.c.l.b16 %v3681
        %v3828 = vunpack.c.h.b16 %v3681
        %v3829 = vunpack.c.l.b16 %v3682
        %v3830 = vunpack.c.h.b16 %v3682
        %v3831 = vunpack.c.l.b16 %v3683
        %v3832 = vunpack.c.h.b16 %v3683
        %v3833 = vunpack.c.l.b16 %v3684
        %v3834 = vunpack.c.h.b16 %v3684
        %v3835 = vunpack.c.l.b16 %v3685
        %v3836 = vunpack.c.h.b16 %v3685
        %v3837 = vunpack.c.l.b16 %v3686
        %v3838 = vunpack.c.h.b16 %v3686
        %v3839 = vunpack.c.l.b16 %v3687
        %v3840 = vunpack.c.h.b16 %v3687
        %v3841 = vunpack.c.l.b16 %v3688
        %v3842 = vunpack.c.h.b16 %v3688
        %v3843 = vunpack.c.l.b16 %v3689
        %v3844 = vunpack.c.h.b16 %v3689
        %v3845 = vunpack.c.l.b16 %v3690
        %v3846 = vunpack.c.h.b16 %v3690
        %v3847 = vunpack.c.l.b16 %v3691
        %v3848 = vunpack.c.h.b16 %v3691
        %v3849 = vunpack.c.l.b16 %v3692
        %v3850 = vunpack.c.h.b16 %v3692
        %v3851 = vunpack.c.l.b16 %v3693
        %v3852 = vunpack.c.h.b16 %v3693
        %v3853 = vunpack.c.l.b16 %v3694
        %v3854 = vunpack.c.h.b16 %v3694
        %v3855 = vunpack.c.l.b16 %v3695
        %v3856 = vunpack.c.h.b16 %v3695
        %v3857 = vunpack.c.l.b16 %v3696
        %v3858 = vunpack.c.h.b16 %v3696
        %v3859 = vunpack.c.l.b16 %v3697
        %v3860 = vunpack.c.h.b16 %v3697
        %v3861 = vunpack.c.l.b16 %v3698
        %v3862 = vunpack.c.h.b16 %v3698
        %v3863 = vunpack.c.l.b16 %v3699
        %v3864 = vunpack.c.h.b16 %v3699
        %v3865 = vunpack.c.l.b16 %v3700
        %v3866 = vunpack.c.h.b16 %v3700
        %v3867 = vunpack.c.l.b16 %v3701
        %v3868 = vunpack.c.h.b16 %v3701
        %v3869 = vunpack.c.l.b16 %v3702
        %v3870 = vunpack.c.h.b16 %v3702
        %v3871 = vunpack.c.l.b16 %v3703
        %v3872 = vunpack.c.h.b16 %v3703
        %v3873 = vunpack.c.l.b16 %v3704
        %v3874 = vunpack.c.h.b16 %v3704
        %v3875 = vunpack.c.l.b16 %v3705
        %v3876 = vunpack.c.h.b16 %v3705
        %v3877 = vunpack.c.l.b16 %v3706
        %v3878 = vunpack.c.h.b16 %v3706
        %v3879 = vunpack.c.l.b16 %v3707
        %v3880 = vunpack.c.h.b16 %v3707
        %v3881 = vunpack.c.l.b16 %v3708
        %v3882 = vunpack.c.h.b16 %v3708
        %v3883 = vunpack.c.l.b16 %v3709
        %v3884 = vunpack.c.h.b16 %v3709
        %v3885 = vunpack.c.l.b16 %v3710
        %v3886 = vunpack.c.h.b16 %v3710
        %v3887 = vunpack.c.l.b16 %v3711
        %v3888 = vunpack.c.h.b16 %v3711
        %v3889 = vunpack.c.l.b16 %v3712
        %v3890 = vunpack.c.h.b16 %v3712
        %v3891 = vunpack.c.l.b16 %v3713
        %v3892 = vunpack.c.h.b16 %v3713
        %v3893 = vunpack.c.l.b16 %v3714
        %v3894 = vunpack.c.h.b16 %v3714
        %v3895 = vunpack.c.l.b16 %v3715
        %v3896 = vunpack.c.h.b16 %v3715
        %v3897 = vunpack.c.l.b16 %v3716
        %v3898 = vunpack.c.h.b16 %v3716
        %v3899 = vunpack.c.l.b16 %v3717
        %v3900 = vunpack.c.h.b16 %v3717
        %v3901 = vunpack.c.l.b16 %v3718
        %v3902 = vunpack.c.h.b16 %v3718
        %v3903 = vunpack.c.l.b16 %v3719
        %v3904 = vunpack.c.h.b16 %v3719
        %v3905 = vunpack.c.l.b16 %v3720
        %v3906 = vunpack.c.h.b16 %v3720
        %v3907 = vunpack.c.l.b16 %v3721
        %v3908 = vunpack.c.h.b16 %v3721
        %v3909 = vunpack.c.l.b16 %v3722
        %v3910 = vunpack.c.h.b16 %v3722
        %v3911 = vunpack.c.l.b16 %v3723
        %v3912 = vunpack.c.h.b16 %v3723
        %v3913 = vunpack.c.l.b16 %v3724
        %v3914 = vunpack.c.h.b16 %v3724
        %v3915 = vunpack.c.l.b16 %v3725
        %v3916 = vunpack.c.h.b16 %v3725
        %v3917 = vunpack.c.l.b16 %v3726
        %v3918 = vunpack.c.h.b16 %v3726
        %v3919 = vunpack.c.l.b16 %v3727
        %v3920 = vunpack.c.h.b16 %v3727
        %v3921 = vunpack.c.l.b16 %v3728
        %v3922 = vunpack.c.h.b16 %v3728
        %v3923 = vunpack.c.l.b16 %v3729
        %v3924 = vunpack.c.h.b16 %v3729
        %v3925 = vunpack.c.l.b16 %v3730
        %v3926 = vunpack.c.h.b16 %v3730
        %v3927 = vunpack.c.l.b16 %v3731
        %v3928 = vunpack.c.h.b16 %v3731
        %v3929 = vunpack.c.l.b16 %v3732
        %v3930 = vunpack.c.h.b16 %v3732
        %v3931 = vunpack.c.l.b16 %v3733
        %v3932 = vunpack.c.h.b16 %v3733
        %v3933 = vunpack.c.l.b16 %v3734
        %v3934 = vunpack.c.h.b16 %v3734
        %v3935 = vunpack.c.l.b16 %v3735
        %v3936 = vunpack.c.h.b16 %v3735
        %v3937 = vunpack.c.l.b16 %v3736
        %v3938 = vunpack.c.h.b16 %v3736
        %v3939 = vunpack.c.l.b16 %v3737
        %v3940 = vunpack.c.h.b16 %v3737
        %v3941 = vunpack.c.l.b16 %v3738
        %v3942 = vunpack.c.h.b16 %v3738
        %v3943 = vpack.c.b16 %v3817, %v3815
        %v3944 = vpack.c.b16 %v3818, %v3816
        %v3945 = vpack.c.b16 %v3821, %v3819
        %v3946 = vpack.c.b16 %v3822, %v3820
        %v3947 = vpack.c.b16 %v3825, %v3823
        %v3948 = vpack.c.b16 %v3826, %v3824
        %v3949 = vpack.c.b16 %v3829, %v3827
        %v3950 = vpack.c.b16 %v3830, %v3828
        %v3951 = vpack.c.b16 %v3833, %v3831
        %v3952 = vpack.c.b16 %v3834, %v3832
        %v3953 = vpack.c.b16 %v3837, %v3835
        %v3954 = vpack.c.b16 %v3838, %v3836
        %v3955 = vpack.c.b16 %v3841, %v3839
        %v3956 = vpack.c.b16 %v3842, %v3840
        %v3957 = vpack.c.b16 %v3845, %v3843
        %v3958 = vpack.c.b16 %v3846, %v3844
        %v3959 = vpack.c.b16 %v3849, %v3847
        %v3960 = vpack.c.b16 %v3850, %v3848
        %v3961 = vpack.c.b16 %v3853, %v3851
        %v3962 = vpack.c.b16 %v3854, %v3852
        %v3963 = vpack.c.b16 %v3857, %v3855
        %v3964 = vpack.c.b16 %v3858, %v3856
        %v3965 = vpack.c.b16 %v3861, %v3859
        %v3966 = vpack.c.b16 %v3862, %v3860
        %v3967 = vpack.c.b16 %v3865, %v3863
        %v3968 = vpack.c.b16 %v3866, %v3864
        %v3969 = vpack.c.b16 %v3869, %v3867
        %v3970 = vpack.c.b16 %v3870, %v3868
        %v3971 = vpack.c.b16 %v3873, %v3871
        %v3972 = vpack.c.b16 %v3874, %v3872
        %v3973 = vpack.c.b16 %v3877, %v3875
        %v3974 = vpack.c.b16 %v3878, %v3876
        %v3975 = vpack.c.b16 %v3881, %v3879
        %v3976 = vpack.c.b16 %v3882, %v3880
        %v3977 = vpack.c.b16 %v3885, %v3883
        %v3978 = vpack.c.b16 %v3886, %v3884
        %v3979 = vpack.c.b16 %v3889, %v3887
        %v3980 = vpack.c.b16 %v3890, %v3888
        %v3981 = vpack.c.b16 %v3893, %v3891
        %v3982 = vpack.c.b16 %v3894, %v3892
        %v3983 = vpack.c.b16 %v3897, %v3895
        %v3984 = vpack.c.b16 %v3898, %v3896
        %v3985 = vpack.c.b16 %v3901, %v3899
        %v3986 = vpack.c.b16 %v3902, %v3900
        %v3987 = vpack.c.b16 %v3905, %v3903
        %v3988 = vpack.c.b16 %v3906, %v3904
        %v3989 = vpack.c.b16 %v3909, %v3907
        %v3990 = vpack.c.b16 %v3910, %v3908
        %v3991 = vpack.c.b16 %v3913, %v3911
        %v3992 = vpack.c.b16 %v3914, %v3912
        %v3993 = vpack.c.b16 %v3917, %v3915
        %v3994 = vpack.c.b16 %v3918, %v3916
        %v3995 = vpack.c.b16 %v3921, %v3919
        %v3996 = vpack.c.b16 %v3922, %v3920
        %v3997 = vpack.c.b16 %v3925, %v3923
        %v3998 = vpack.c.b16 %v3926, %v3924
        %v3999 = vpack.c.b16 %v3929, %v3927
        %v4000 = vpack.c.b16 %v3930, %v3928
        %v4001 = vpack.c.b16 %v3933, %v3931
        %v4002 = vpack.c.b16 %v3934, %v3932
        %v4003 = vpack.c.b16 %v3937, %v3935
        %v4004 = vpack.c.b16 %v3938, %v3936
        %v4005 = vpack.c.b16 %v3941, %v3939
        %v4006 = vpack.c.b16 %v3942, %v3940
        %4071 = vmatprep.subr.bf16.mxu0 %v3944
        %4072 = vmatpush1.bf16.msra.mxu0 %v3943
        %4073 = vmatprep.subr.bf16.mxu0 %v3946
        %4074 = vmatpush1.bf16.msra.mxu0 %v3945
        %4075 = vmatprep.subr.bf16.mxu0 %v3948
        %4076 = vmatpush1.bf16.msra.mxu0 %v3947
        %4077 = vmatprep.subr.bf16.mxu0 %v3950
        %4078 = vmatpush1.bf16.msra.mxu0 %v3949
        %4079 = vmatprep.subr.bf16.mxu0 %v3952
        %4080 = vmatpush1.bf16.msra.mxu0 %v3951
        %4081 = vmatprep.subr.bf16.mxu0 %v3954
        %4082 = vmatpush1.bf16.msra.mxu0 %v3953
        %4083 = vmatprep.subr.bf16.mxu0 %v3956
        %4084 = vmatpush1.bf16.msra.mxu0 %v3955
        %4085 = vmatprep.subr.bf16.mxu0 %v3958
        %4086 = vmatpush1.bf16.msra.mxu0 %v3957
        %4087 = vmatprep.subr.bf16.mxu0 %v3960
        %4088 = vmatpush1.bf16.msra.mxu0 %v3959
        %4089 = vmatprep.subr.bf16.mxu0 %v3962
        %4090 = vmatpush1.bf16.msra.mxu0 %v3961
        %4091 = vmatprep.subr.bf16.mxu0 %v3964
        %4092 = vmatpush1.bf16.msra.mxu0 %v3963
        %4093 = vmatprep.subr.bf16.mxu0 %v3966
        %4094 = vmatpush1.bf16.msra.mxu0 %v3965
        %4095 = vmatprep.subr.bf16.mxu0 %v3968
        %4096 = vmatpush1.bf16.msra.mxu0 %v3967
        %4097 = vmatprep.subr.bf16.mxu0 %v3970
        %4098 = vmatpush1.bf16.msra.mxu0 %v3969
        %4099 = vmatprep.subr.bf16.mxu0 %v3972
        %4100 = vmatpush1.bf16.msra.mxu0 %v3971
        %4101 = vmatprep.subr.bf16.mxu0 %v3974
        %4102 = vmatpush1.bf16.msra.mxu0 %v3973
        %4103 = vmatprep.mubr.bf16.mxu0 %v3668
        %4104 = vmatmul.mubr.bf16.gmra.mrb[0].mxu0 %v3667
        %v4105 = vpop.f32.mrb[0].mxu0
        %v4106 = vadd.f32 %v3744, %v4105
        %v4107 = vpop.f32.mrb[0].mxu0
        %v4108 = vadd.f32 %v3748, %v4107
        %v4109 = vpop.f32.mrb[0].mxu0
        %v4110 = vadd.f32 %v3744, %v4109
        %v4111 = vpop.f32.mrb[0].mxu0
        %v4112 = vadd.f32 %v3748, %v4111
        %4113 = vmatprep.mubr.bf16.mxu0 %v3672
        %4114 = vmatmul.mubr.bf16.gmra.mrb[0].mxu0 %v3671
        %v4115 = vpop.f32.mrb[0].mxu0
        %v4116 = vadd.f32 %v3744, %v4115
        %v4117 = vpop.f32.mrb[0].mxu0
        %v4118 = vadd.f32 %v3748, %v4117
        %v4119 = vpop.f32.mrb[0].mxu0
        %v4120 = vadd.f32 %v3744, %v4119
        %v4121 = vpop.f32.mrb[0].mxu0
        %v4122 = vadd.f32 %v3748, %v4121
        %4123 = vdwg.mxu0
        %4124 = vmatprep.subr.bf16.mxu0 %v3976
        %4125 = vmatpush1.bf16.msra.mxu0 %v3975
        %4126 = vmatprep.subr.bf16.mxu0 %v3978
        %4127 = vmatpush1.bf16.msra.mxu0 %v3977
        %4128 = vmatprep.subr.bf16.mxu0 %v3980
        %4129 = vmatpush1.bf16.msra.mxu0 %v3979
        %4130 = vmatprep.subr.bf16.mxu0 %v3982
        %4131 = vmatpush1.bf16.msra.mxu0 %v3981
        %4132 = vmatprep.subr.bf16.mxu0 %v3984
        %4133 = vmatpush1.bf16.msra.mxu0 %v3983
        %4134 = vmatprep.subr.bf16.mxu0 %v3986
        %4135 = vmatpush1.bf16.msra.mxu0 %v3985
        %4136 = vmatprep.subr.bf16.mxu0 %v3988
        %4137 = vmatpush1.bf16.msra.mxu0 %v3987
        %4138 = vmatprep.subr.bf16.mxu0 %v3990
        %4139 = vmatpush1.bf16.msra.mxu0 %v3989
        %4140 = vmatprep.subr.bf16.mxu0 %v3992
        %4141 = vmatpush1.bf16.msra.mxu0 %v3991
        %4142 = vmatprep.subr.bf16.mxu0 %v3994
        %4143 = vmatpush1.bf16.msra.mxu0 %v3993
        %4144 = vmatprep.subr.bf16.mxu0 %v3996
        %4145 = vmatpush1.bf16.msra.mxu0 %v3995
        %4146 = vmatprep.subr.bf16.mxu0 %v3998
        %4147 = vmatpush1.bf16.msra.mxu0 %v3997
        %4148 = vmatprep.subr.bf16.mxu0 %v4000
        %4149 = vmatpush1.bf16.msra.mxu0 %v3999
        %4150 = vmatprep.subr.bf16.mxu0 %v4002
        %4151 = vmatpush1.bf16.msra.mxu0 %v4001
        %4152 = vmatprep.subr.bf16.mxu0 %v4004
        %4153 = vmatpush1.bf16.msra.mxu0 %v4003
        %4154 = vmatprep.subr.bf16.mxu0 %v4006
        %4155 = vmatpush1.bf16.msra.mxu0 %v4005
        %4156 = vmatprep.mubr.bf16.mxu0 %v3670
        %4157 = vmatmul.mubr.bf16.gmra.mrb[0].mxu0 %v3669
        %v4158 = vpop.f32.mrb[0].mxu0
        %v4159 = vadd.f32 %v4106, %v4158
        %v4160 = vpop.f32.mrb[0].mxu0
        %v4161 = vadd.f32 %v4108, %v4160
        %v4162 = vpop.f32.mrb[0].mxu0
        %v4163 = vadd.f32 %v4110, %v4162
        %v4164 = vpop.f32.mrb[0].mxu0
        %v4165 = vadd.f32 %v4112, %v4164
        %4166 = vmatprep.mubr.bf16.mxu0 %v3674
        %4167 = vmatmul.mubr.bf16.gmra.mrb[0].mxu0 %v3673
        %v4168 = vpop.f32.mrb[0].mxu0
        %v4169 = vadd.f32 %v4116, %v4168
        %v4170 = vpop.f32.mrb[0].mxu0
        %v4171 = vadd.f32 %v4118, %v4170
        %v4172 = vpop.f32.mrb[0].mxu0
        %v4173 = vadd.f32 %v4120, %v4172
        %v4174 = vpop.f32.mrb[0].mxu0
        %v4175 = vadd.f32 %v4122, %v4174
        %4176 = vdwg.mxu0
        %v4177 = vadd.f32 %v4159, %v1110
        %v4178 = vadd.f32 %v4161, %v1111
        %v4179 = vadd.f32 %v4163, %v1112
        %v4180 = vadd.f32 %v4165, %v1113
        %v4181 = vadd.f32 %v4169, %v1114
        %v4182 = vadd.f32 %v4171, %v1115
        %v4183 = vadd.f32 %v4173, %v1116
        %v4184 = vadd.f32 %v4175, %v1117
        %v4185 = vld [vmem:[%s804] sm:$0x3]
        %v4186 = vld [vmem:[%s813] sm:$0x3]
        %v4187 = vadd.f32 %v4177, %v4178
        %4188 = vadd.xlane.f32.xlu0 %v4187
        %v4189 = vpop.xlane.xlu0 %4188
        %v4190 = vadd.f32 %v4179, %v4180
        %4191 = vadd.xlane.f32.xlu0 %v4190
        %v4192 = vpop.xlane.xlu0 %4191
        %v4193 = vadd.f32 %v4181, %v4182
        %4194 = vadd.xlane.f32.xlu0 %v4193
        %v4195 = vpop.xlane.xlu0 %4194
        %v4196 = vadd.f32 %v4183, %v4184
        %4197 = vadd.xlane.f32.xlu0 %v4196
        %v4198 = vpop.xlane.xlu0 %4197
        %v4199 = vrcp.pop 256.0
        %v4200 = vmul.f32 %v4189, %v4199
        %v4201 = vmul.f32 %v4192, %v4199
        %v4202 = vmul.f32 %v4195, %v4199
        %v4203 = vmul.f32 %v4198, %v4199
        %v4204 = vsub.f32 %v4177, %v4200
        %v4205 = vsub.f32 %v4178, %v4200
        %v4206 = vsub.f32 %v4179, %v4201
        %v4207 = vsub.f32 %v4180, %v4201
        %v4208 = vsub.f32 %v4181, %v4202
        %v4209 = vsub.f32 %v4182, %v4202
        %v4210 = vsub.f32 %v4183, %v4203
        %v4211 = vsub.f32 %v4184, %v4203
        %v4212 = vmul.f32 %v4204, %v4204
        %v4213 = vmul.f32 %v4205, %v4205
        %v4214 = vmul.f32 %v4206, %v4206
        %v4215 = vmul.f32 %v4207, %v4207
        %v4216 = vmul.f32 %v4208, %v4208
        %v4217 = vmul.f32 %v4209, %v4209
        %v4218 = vmul.f32 %v4210, %v4210
        %v4219 = vmul.f32 %v4211, %v4211
        %v4220 = vadd.f32 %v4212, %v4213
        %4221 = vadd.xlane.f32.xlu0 %v4220
        %v4222 = vpop.xlane.xlu0 %4221
        %v4223 = vadd.f32 %v4214, %v4215
        %4224 = vadd.xlane.f32.xlu0 %v4223
        %v4225 = vpop.xlane.xlu0 %4224
        %v4226 = vadd.f32 %v4216, %v4217
        %4227 = vadd.xlane.f32.xlu0 %v4226
        %v4228 = vpop.xlane.xlu0 %4227
        %v4229 = vadd.f32 %v4218, %v4219
        %4230 = vadd.xlane.f32.xlu0 %v4229
        %v4231 = vpop.xlane.xlu0 %4230
        %v4232 = vmul.f32 %v4222, %v4199
        %v4233 = vmul.f32 %v4225, %v4199
        %v4234 = vmul.f32 %v4228, %v4199
        %v4235 = vmul.f32 %v4231, %v4199
        %v4236 = vadd.f32 %v4232, 1e-12
        %v4237 = vadd.f32 %v4233, 1e-12
        %v4238 = vadd.f32 %v4234, 1e-12
        %v4239 = vadd.f32 %v4235, 1e-12
        %v4240 = vrsqrt.pop %v4236
        %v4241 = vrsqrt.pop %v4237
        %v4242 = vrsqrt.pop %v4238
        %v4243 = vrsqrt.pop %v4239
        %v4244 = vmul.f32 %v4204, %v4240
        %v4245 = vmul.f32 %v4205, %v4240
        %v4246 = vmul.f32 %v4206, %v4241
        %v4247 = vmul.f32 %v4207, %v4241
        %v4248 = vmul.f32 %v4208, %v4242
        %v4249 = vmul.f32 %v4209, %v4242
        %v4250 = vmul.f32 %v4210, %v4243
        %v4251 = vmul.f32 %v4211, %v4243
        %v4253 = vlaneseq
        %v4254 = vshrl.u32 %v4253, 7
        %v4255 = vsub.s32 0, %v4254
        %v4256 = vrot.slane %v4185, %v4255
        %v4257 = vlaneseq
        %v4258 = vshrl.u32 %v4257, 7
        %v4259 = vsub.s32 1, %v4258
        %v4260 = vrot.slane %v4185, %v4259
        %v4263 = vmul.f32 %v4244, %v4256
        %v4264 = vmul.f32 %v4245, %v4260
        %v4265 = vmul.f32 %v4246, %v4256
        %v4266 = vmul.f32 %v4247, %v4260
        %v4267 = vmul.f32 %v4248, %v4256
        %v4268 = vmul.f32 %v4249, %v4260
        %v4269 = vmul.f32 %v4250, %v4256
        %v4270 = vmul.f32 %v4251, %v4260
        %v4272 = vlaneseq
        %v4273 = vshrl.u32 %v4272, 7
        %v4274 = vsub.s32 0, %v4273
        %v4275 = vrot.slane %v4186, %v4274
        %v4276 = vlaneseq
        %v4277 = vshrl.u32 %v4276, 7
        %v4278 = vsub.s32 1, %v4277
        %v4279 = vrot.slane %v4186, %v4278
        %v4282 = vadd.f32 %v4263, %v4275
        %v4283 = vadd.f32 %v4264, %v4279
        %v4284 = vadd.f32 %v4265, %v4275
        %v4285 = vadd.f32 %v4266, %v4279
        %v4286 = vadd.f32 %v4267, %v4275
        %v4287 = vadd.f32 %v4268, %v4279
        %v4288 = vadd.f32 %v4269, %v4275
        %v4289 = vadd.f32 %v4270, %v4279
        %v4290 = vpack.c.bf16 %v4284, %v4282
        %v4291 = vpack.c.bf16 %v4285, %v4283
        %v4292 = vpack.c.bf16 %v4288, %v4286
        %v4293 = vpack.c.bf16 %v4289, %v4287
        %v4294 = vld [vmem:[%s822] sm:$0xff]
        %v4295 = vld [vmem:[%s822 + $0x8] sm:$0xff]
        %v4296 = vld [vmem:[%s822 + $0x10] sm:$0xff]
        %v4297 = vld [vmem:[%s822 + $0x18] sm:$0xff]
        %v4298 = vld [vmem:[%s822 + $0x20] sm:$0xff]
        %v4299 = vld [vmem:[%s822 + $0x28] sm:$0xff]
        %v4300 = vld [vmem:[%s822 + $0x30] sm:$0xff]
        %v4301 = vld [vmem:[%s822 + $0x38] sm:$0xff]
        %v4302 = vld [vmem:[%s822 + $0x40] sm:$0xff]
        %v4303 = vld [vmem:[%s822 + $0x48] sm:$0xff]
        %v4304 = vld [vmem:[%s822 + $0x50] sm:$0xff]
        %v4305 = vld [vmem:[%s822 + $0x58] sm:$0xff]
        %v4306 = vld [vmem:[%s822 + $0x60] sm:$0xff]
        %v4307 = vld [vmem:[%s822 + $0x68] sm:$0xff]
        %v4308 = vld [vmem:[%s822 + $0x70] sm:$0xff]
        %v4309 = vld [vmem:[%s822 + $0x78] sm:$0xff]
        %v4310 = vld [vmem:[%s822 + $0x80] sm:$0xff]
        %v4311 = vld [vmem:[%s822 + $0x88] sm:$0xff]
        %v4312 = vld [vmem:[%s822 + $0x90] sm:$0xff]
        %v4313 = vld [vmem:[%s822 + $0x98] sm:$0xff]
        %v4314 = vld [vmem:[%s822 + $0xa0] sm:$0xff]
        %v4315 = vld [vmem:[%s822 + $0xa8] sm:$0xff]
        %v4316 = vld [vmem:[%s822 + $0xb0] sm:$0xff]
        %v4317 = vld [vmem:[%s822 + $0xb8] sm:$0xff]
        %v4318 = vld [vmem:[%s822 + $0xc0] sm:$0xff]
        %v4319 = vld [vmem:[%s822 + $0xc8] sm:$0xff]
        %v4320 = vld [vmem:[%s822 + $0xd0] sm:$0xff]
        %v4321 = vld [vmem:[%s822 + $0xd8] sm:$0xff]
        %v4322 = vld [vmem:[%s822 + $0xe0] sm:$0xff]
        %v4323 = vld [vmem:[%s822 + $0xe8] sm:$0xff]
        %v4324 = vld [vmem:[%s822 + $0xf0] sm:$0xff]
        %v4325 = vld [vmem:[%s822 + $0xf8] sm:$0xff]
        %v4326 = vld [vmem:[%s822 + $0x100] sm:$0xff]
        %v4327 = vld [vmem:[%s822 + $0x108] sm:$0xff]
        %v4328 = vld [vmem:[%s822 + $0x110] sm:$0xff]
        %v4329 = vld [vmem:[%s822 + $0x118] sm:$0xff]
        %v4330 = vld [vmem:[%s822 + $0x120] sm:$0xff]
        %v4331 = vld [vmem:[%s822 + $0x128] sm:$0xff]
        %v4332 = vld [vmem:[%s822 + $0x130] sm:$0xff]
        %v4333 = vld [vmem:[%s822 + $0x138] sm:$0xff]
        %v4334 = vld [vmem:[%s822 + $0x140] sm:$0xff]
        %v4335 = vld [vmem:[%s822 + $0x148] sm:$0xff]
        %v4336 = vld [vmem:[%s822 + $0x150] sm:$0xff]
        %v4337 = vld [vmem:[%s822 + $0x158] sm:$0xff]
        %v4338 = vld [vmem:[%s822 + $0x160] sm:$0xff]
        %v4339 = vld [vmem:[%s822 + $0x168] sm:$0xff]
        %v4340 = vld [vmem:[%s822 + $0x170] sm:$0xff]
        %v4341 = vld [vmem:[%s822 + $0x178] sm:$0xff]
        %v4342 = vld [vmem:[%s822 + $0x180] sm:$0xff]
        %v4343 = vld [vmem:[%s822 + $0x188] sm:$0xff]
        %v4344 = vld [vmem:[%s822 + $0x190] sm:$0xff]
        %v4345 = vld [vmem:[%s822 + $0x198] sm:$0xff]
        %v4346 = vld [vmem:[%s822 + $0x1a0] sm:$0xff]
        %v4347 = vld [vmem:[%s822 + $0x1a8] sm:$0xff]
        %v4348 = vld [vmem:[%s822 + $0x1b0] sm:$0xff]
        %v4349 = vld [vmem:[%s822 + $0x1b8] sm:$0xff]
        %v4350 = vld [vmem:[%s822 + $0x1c0] sm:$0xff]
        %v4351 = vld [vmem:[%s822 + $0x1c8] sm:$0xff]
        %v4352 = vld [vmem:[%s822 + $0x1d0] sm:$0xff]
        %v4353 = vld [vmem:[%s822 + $0x1d8] sm:$0xff]
        %v4354 = vld [vmem:[%s822 + $0x1e0] sm:$0xff]
        %v4355 = vld [vmem:[%s822 + $0x1e8] sm:$0xff]
        %v4356 = vld [vmem:[%s822 + $0x1f0] sm:$0xff]
        %v4357 = vld [vmem:[%s822 + $0x1f8] sm:$0xff]
        %v4358 = vld [vmem:[%s822 + $0x200] sm:$0xff]
        %v4359 = vld [vmem:[%s822 + $0x208] sm:$0xff]
        %v4360 = vld [vmem:[%s822 + $0x210] sm:$0xff]
        %v4361 = vld [vmem:[%s822 + $0x218] sm:$0xff]
        %v4362 = vld [vmem:[%s822 + $0x220] sm:$0xff]
        %v4363 = vld [vmem:[%s822 + $0x228] sm:$0xff]
        %v4364 = vld [vmem:[%s822 + $0x230] sm:$0xff]
        %v4365 = vld [vmem:[%s822 + $0x238] sm:$0xff]
        %v4366 = vld [vmem:[%s822 + $0x240] sm:$0xff]
        %v4367 = vld [vmem:[%s822 + $0x248] sm:$0xff]
        %v4368 = vld [vmem:[%s822 + $0x250] sm:$0xff]
        %v4369 = vld [vmem:[%s822 + $0x258] sm:$0xff]
        %v4370 = vld [vmem:[%s822 + $0x260] sm:$0xff]
        %v4371 = vld [vmem:[%s822 + $0x268] sm:$0xff]
        %v4372 = vld [vmem:[%s822 + $0x270] sm:$0xff]
        %v4373 = vld [vmem:[%s822 + $0x278] sm:$0xff]
        %v4374 = vld [vmem:[%s822 + $0x280] sm:$0xff]
        %v4375 = vld [vmem:[%s822 + $0x288] sm:$0xff]
        %v4376 = vld [vmem:[%s822 + $0x290] sm:$0xff]
        %v4377 = vld [vmem:[%s822 + $0x298] sm:$0xff]
        %v4378 = vld [vmem:[%s822 + $0x2a0] sm:$0xff]
        %v4379 = vld [vmem:[%s822 + $0x2a8] sm:$0xff]
        %v4380 = vld [vmem:[%s822 + $0x2b0] sm:$0xff]
        %v4381 = vld [vmem:[%s822 + $0x2b8] sm:$0xff]
        %v4382 = vld [vmem:[%s822 + $0x2c0] sm:$0xff]
        %v4383 = vld [vmem:[%s822 + $0x2c8] sm:$0xff]
        %v4384 = vld [vmem:[%s822 + $0x2d0] sm:$0xff]
        %v4385 = vld [vmem:[%s822 + $0x2d8] sm:$0xff]
        %v4386 = vld [vmem:[%s822 + $0x2e0] sm:$0xff]
        %v4387 = vld [vmem:[%s822 + $0x2e8] sm:$0xff]
        %v4388 = vld [vmem:[%s822 + $0x2f0] sm:$0xff]
        %v4389 = vld [vmem:[%s822 + $0x2f8] sm:$0xff]
        %v4390 = vld [vmem:[%s822 + $0x300] sm:$0xff]
        %v4391 = vld [vmem:[%s822 + $0x308] sm:$0xff]
        %v4392 = vld [vmem:[%s822 + $0x310] sm:$0xff]
        %v4393 = vld [vmem:[%s822 + $0x318] sm:$0xff]
        %v4394 = vld [vmem:[%s822 + $0x320] sm:$0xff]
        %v4395 = vld [vmem:[%s822 + $0x328] sm:$0xff]
        %v4396 = vld [vmem:[%s822 + $0x330] sm:$0xff]
        %v4397 = vld [vmem:[%s822 + $0x338] sm:$0xff]
        %v4398 = vld [vmem:[%s822 + $0x340] sm:$0xff]
        %v4399 = vld [vmem:[%s822 + $0x348] sm:$0xff]
        %v4400 = vld [vmem:[%s822 + $0x350] sm:$0xff]
        %v4401 = vld [vmem:[%s822 + $0x358] sm:$0xff]
        %v4402 = vld [vmem:[%s822 + $0x360] sm:$0xff]
        %v4403 = vld [vmem:[%s822 + $0x368] sm:$0xff]
        %v4404 = vld [vmem:[%s822 + $0x370] sm:$0xff]
        %v4405 = vld [vmem:[%s822 + $0x378] sm:$0xff]
        %v4406 = vld [vmem:[%s822 + $0x380] sm:$0xff]
        %v4407 = vld [vmem:[%s822 + $0x388] sm:$0xff]
        %v4408 = vld [vmem:[%s822 + $0x390] sm:$0xff]
        %v4409 = vld [vmem:[%s822 + $0x398] sm:$0xff]
        %v4410 = vld [vmem:[%s822 + $0x3a0] sm:$0xff]
        %v4411 = vld [vmem:[%s822 + $0x3a8] sm:$0xff]
        %v4412 = vld [vmem:[%s822 + $0x3b0] sm:$0xff]
        %v4413 = vld [vmem:[%s822 + $0x3b8] sm:$0xff]
        %v4414 = vld [vmem:[%s822 + $0x3c0] sm:$0xff]
        %v4415 = vld [vmem:[%s822 + $0x3c8] sm:$0xff]
        %v4416 = vld [vmem:[%s822 + $0x3d0] sm:$0xff]
        %v4417 = vld [vmem:[%s822 + $0x3d8] sm:$0xff]
        %v4418 = vld [vmem:[%s822 + $0x3e0] sm:$0xff]
        %v4419 = vld [vmem:[%s822 + $0x3e8] sm:$0xff]
        %v4420 = vld [vmem:[%s822 + $0x3f0] sm:$0xff]
        %v4421 = vld [vmem:[%s822 + $0x3f8] sm:$0xff]
        %v4422 = vld [vmem:[%s831] sm:$0xff]
        %v4424 = vlaneseq
        %v4425 = vshrl.u32 %v4424, 7
        %v4426 = vsub.s32 0, %v4425
        %v4427 = vrot.slane %v4422, %v4426
        %v4428 = vlaneseq
        %v4429 = vshrl.u32 %v4428, 7
        %v4430 = vsub.s32 1, %v4429
        %v4431 = vrot.slane %v4422, %v4430
        %v4432 = vlaneseq
        %v4433 = vshrl.u32 %v4432, 7
        %v4434 = vsub.s32 2, %v4433
        %v4435 = vrot.slane %v4422, %v4434
        %v4436 = vlaneseq
        %v4437 = vshrl.u32 %v4436, 7
        %v4438 = vsub.s32 3, %v4437
        %v4439 = vrot.slane %v4422, %v4438
        %v4440 = vlaneseq
        %v4441 = vshrl.u32 %v4440, 7
        %v4442 = vsub.s32 4, %v4441
        %v4443 = vrot.slane %v4422, %v4442
        %v4444 = vlaneseq
        %v4445 = vshrl.u32 %v4444, 7
        %v4446 = vsub.s32 5, %v4445
        %v4447 = vrot.slane %v4422, %v4446
        %v4448 = vlaneseq
        %v4449 = vshrl.u32 %v4448, 7
        %v4450 = vsub.s32 6, %v4449
        %v4451 = vrot.slane %v4422, %v4450
        %v4452 = vlaneseq
        %v4453 = vshrl.u32 %v4452, 7
        %v4454 = vsub.s32 7, %v4453
        %v4455 = vrot.slane %v4422, %v4454
        %v4592 = vunpack.c.l.b16 %v4294
        %v4593 = vunpack.c.h.b16 %v4294
        %v4594 = vunpack.c.l.b16 %v4295
        %v4595 = vunpack.c.h.b16 %v4295
        %v4596 = vunpack.c.l.b16 %v4296
        %v4597 = vunpack.c.h.b16 %v4296
        %v4598 = vunpack.c.l.b16 %v4297
        %v4599 = vunpack.c.h.b16 %v4297
        %v4600 = vunpack.c.l.b16 %v4298
        %v4601 = vunpack.c.h.b16 %v4298
        %v4602 = vunpack.c.l.b16 %v4299
        %v4603 = vunpack.c.h.b16 %v4299
        %v4604 = vunpack.c.l.b16 %v4300
        %v4605 = vunpack.c.h.b16 %v4300
        %v4606 = vunpack.c.l.b16 %v4301
        %v4607 = vunpack.c.h.b16 %v4301
        %v4608 = vunpack.c.l.b16 %v4302
        %v4609 = vunpack.c.h.b16 %v4302
        %v4610 = vunpack.c.l.b16 %v4303
        %v4611 = vunpack.c.h.b16 %v4303
        %v4612 = vunpack.c.l.b16 %v4304
        %v4613 = vunpack.c.h.b16 %v4304
        %v4614 = vunpack.c.l.b16 %v4305
        %v4615 = vunpack.c.h.b16 %v4305
        %v4616 = vunpack.c.l.b16 %v4306
        %v4617 = vunpack.c.h.b16 %v4306
        %v4618 = vunpack.c.l.b16 %v4307
        %v4619 = vunpack.c.h.b16 %v4307
        %v4620 = vunpack.c.l.b16 %v4308
        %v4621 = vunpack.c.h.b16 %v4308
        %v4622 = vunpack.c.l.b16 %v4309
        %v4623 = vunpack.c.h.b16 %v4309
        %v4624 = vunpack.c.l.b16 %v4310
        %v4625 = vunpack.c.h.b16 %v4310
        %v4626 = vunpack.c.l.b16 %v4311
        %v4627 = vunpack.c.h.b16 %v4311
        %v4628 = vunpack.c.l.b16 %v4312
        %v4629 = vunpack.c.h.b16 %v4312
        %v4630 = vunpack.c.l.b16 %v4313
        %v4631 = vunpack.c.h.b16 %v4313
        %v4632 = vunpack.c.l.b16 %v4314
        %v4633 = vunpack.c.h.b16 %v4314
        %v4634 = vunpack.c.l.b16 %v4315
        %v4635 = vunpack.c.h.b16 %v4315
        %v4636 = vunpack.c.l.b16 %v4316
        %v4637 = vunpack.c.h.b16 %v4316
        %v4638 = vunpack.c.l.b16 %v4317
        %v4639 = vunpack.c.h.b16 %v4317
        %v4640 = vunpack.c.l.b16 %v4318
        %v4641 = vunpack.c.h.b16 %v4318
        %v4642 = vunpack.c.l.b16 %v4319
        %v4643 = vunpack.c.h.b16 %v4319
        %v4644 = vunpack.c.l.b16 %v4320
        %v4645 = vunpack.c.h.b16 %v4320
        %v4646 = vunpack.c.l.b16 %v4321
        %v4647 = vunpack.c.h.b16 %v4321
        %v4648 = vunpack.c.l.b16 %v4322
        %v4649 = vunpack.c.h.b16 %v4322
        %v4650 = vunpack.c.l.b16 %v4323
        %v4651 = vunpack.c.h.b16 %v4323
        %v4652 = vunpack.c.l.b16 %v4324
        %v4653 = vunpack.c.h.b16 %v4324
        %v4654 = vunpack.c.l.b16 %v4325
        %v4655 = vunpack.c.h.b16 %v4325
        %v4656 = vunpack.c.l.b16 %v4326
        %v4657 = vunpack.c.h.b16 %v4326
        %v4658 = vunpack.c.l.b16 %v4327
        %v4659 = vunpack.c.h.b16 %v4327
        %v4660 = vunpack.c.l.b16 %v4328
        %v4661 = vunpack.c.h.b16 %v4328
        %v4662 = vunpack.c.l.b16 %v4329
        %v4663 = vunpack.c.h.b16 %v4329
        %v4664 = vunpack.c.l.b16 %v4330
        %v4665 = vunpack.c.h.b16 %v4330
        %v4666 = vunpack.c.l.b16 %v4331
        %v4667 = vunpack.c.h.b16 %v4331
        %v4668 = vunpack.c.l.b16 %v4332
        %v4669 = vunpack.c.h.b16 %v4332
        %v4670 = vunpack.c.l.b16 %v4333
        %v4671 = vunpack.c.h.b16 %v4333
        %v4672 = vunpack.c.l.b16 %v4334
        %v4673 = vunpack.c.h.b16 %v4334
        %v4674 = vunpack.c.l.b16 %v4335
        %v4675 = vunpack.c.h.b16 %v4335
        %v4676 = vunpack.c.l.b16 %v4336
        %v4677 = vunpack.c.h.b16 %v4336
        %v4678 = vunpack.c.l.b16 %v4337
        %v4679 = vunpack.c.h.b16 %v4337
        %v4680 = vunpack.c.l.b16 %v4338
        %v4681 = vunpack.c.h.b16 %v4338
        %v4682 = vunpack.c.l.b16 %v4339
        %v4683 = vunpack.c.h.b16 %v4339
        %v4684 = vunpack.c.l.b16 %v4340
        %v4685 = vunpack.c.h.b16 %v4340
        %v4686 = vunpack.c.l.b16 %v4341
        %v4687 = vunpack.c.h.b16 %v4341
        %v4688 = vunpack.c.l.b16 %v4342
        %v4689 = vunpack.c.h.b16 %v4342
        %v4690 = vunpack.c.l.b16 %v4343
        %v4691 = vunpack.c.h.b16 %v4343
        %v4692 = vunpack.c.l.b16 %v4344
        %v4693 = vunpack.c.h.b16 %v4344
        %v4694 = vunpack.c.l.b16 %v4345
        %v4695 = vunpack.c.h.b16 %v4345
        %v4696 = vunpack.c.l.b16 %v4346
        %v4697 = vunpack.c.h.b16 %v4346
        %v4698 = vunpack.c.l.b16 %v4347
        %v4699 = vunpack.c.h.b16 %v4347
        %v4700 = vunpack.c.l.b16 %v4348
        %v4701 = vunpack.c.h.b16 %v4348
        %v4702 = vunpack.c.l.b16 %v4349
        %v4703 = vunpack.c.h.b16 %v4349
        %v4704 = vunpack.c.l.b16 %v4350
        %v4705 = vunpack.c.h.b16 %v4350
        %v4706 = vunpack.c.l.b16 %v4351
        %v4707 = vunpack.c.h.b16 %v4351
        %v4708 = vunpack.c.l.b16 %v4352
        %v4709 = vunpack.c.h.b16 %v4352
        %v4710 = vunpack.c.l.b16 %v4353
        %v4711 = vunpack.c.h.b16 %v4353
        %v4712 = vunpack.c.l.b16 %v4354
        %v4713 = vunpack.c.h.b16 %v4354
        %v4714 = vunpack.c.l.b16 %v4355
        %v4715 = vunpack.c.h.b16 %v4355
        %v4716 = vunpack.c.l.b16 %v4356
        %v4717 = vunpack.c.h.b16 %v4356
        %v4718 = vunpack.c.l.b16 %v4357
        %v4719 = vunpack.c.h.b16 %v4357
        %v4720 = vunpack.c.l.b16 %v4358
        %v4721 = vunpack.c.h.b16 %v4358
        %v4722 = vunpack.c.l.b16 %v4359
        %v4723 = vunpack.c.h.b16 %v4359
        %v4724 = vunpack.c.l.b16 %v4360
        %v4725 = vunpack.c.h.b16 %v4360
        %v4726 = vunpack.c.l.b16 %v4361
        %v4727 = vunpack.c.h.b16 %v4361
        %v4728 = vunpack.c.l.b16 %v4362
        %v4729 = vunpack.c.h.b16 %v4362
        %v4730 = vunpack.c.l.b16 %v4363
        %v4731 = vunpack.c.h.b16 %v4363
        %v4732 = vunpack.c.l.b16 %v4364
        %v4733 = vunpack.c.h.b16 %v4364
        %v4734 = vunpack.c.l.b16 %v4365
        %v4735 = vunpack.c.h.b16 %v4365
        %v4736 = vunpack.c.l.b16 %v4366
        %v4737 = vunpack.c.h.b16 %v4366
        %v4738 = vunpack.c.l.b16 %v4367
        %v4739 = vunpack.c.h.b16 %v4367
        %v4740 = vunpack.c.l.b16 %v4368
        %v4741 = vunpack.c.h.b16 %v4368
        %v4742 = vunpack.c.l.b16 %v4369
        %v4743 = vunpack.c.h.b16 %v4369
        %v4744 = vunpack.c.l.b16 %v4370
        %v4745 = vunpack.c.h.b16 %v4370
        %v4746 = vunpack.c.l.b16 %v4371
        %v4747 = vunpack.c.h.b16 %v4371
        %v4748 = vunpack.c.l.b16 %v4372
        %v4749 = vunpack.c.h.b16 %v4372
        %v4750 = vunpack.c.l.b16 %v4373
        %v4751 = vunpack.c.h.b16 %v4373
        %v4752 = vunpack.c.l.b16 %v4374
        %v4753 = vunpack.c.h.b16 %v4374
        %v4754 = vunpack.c.l.b16 %v4375
        %v4755 = vunpack.c.h.b16 %v4375
        %v4756 = vunpack.c.l.b16 %v4376
        %v4757 = vunpack.c.h.b16 %v4376
        %v4758 = vunpack.c.l.b16 %v4377
        %v4759 = vunpack.c.h.b16 %v4377
        %v4760 = vunpack.c.l.b16 %v4378
        %v4761 = vunpack.c.h.b16 %v4378
        %v4762 = vunpack.c.l.b16 %v4379
        %v4763 = vunpack.c.h.b16 %v4379
        %v4764 = vunpack.c.l.b16 %v4380
        %v4765 = vunpack.c.h.b16 %v4380
        %v4766 = vunpack.c.l.b16 %v4381
        %v4767 = vunpack.c.h.b16 %v4381
        %v4768 = vunpack.c.l.b16 %v4382
        %v4769 = vunpack.c.h.b16 %v4382
        %v4770 = vunpack.c.l.b16 %v4383
        %v4771 = vunpack.c.h.b16 %v4383
        %v4772 = vunpack.c.l.b16 %v4384
        %v4773 = vunpack.c.h.b16 %v4384
        %v4774 = vunpack.c.l.b16 %v4385
        %v4775 = vunpack.c.h.b16 %v4385
        %v4776 = vunpack.c.l.b16 %v4386
        %v4777 = vunpack.c.h.b16 %v4386
        %v4778 = vunpack.c.l.b16 %v4387
        %v4779 = vunpack.c.h.b16 %v4387
        %v4780 = vunpack.c.l.b16 %v4388
        %v4781 = vunpack.c.h.b16 %v4388
        %v4782 = vunpack.c.l.b16 %v4389
        %v4783 = vunpack.c.h.b16 %v4389
        %v4784 = vunpack.c.l.b16 %v4390
        %v4785 = vunpack.c.h.b16 %v4390
        %v4786 = vunpack.c.l.b16 %v4391
        %v4787 = vunpack.c.h.b16 %v4391
        %v4788 = vunpack.c.l.b16 %v4392
        %v4789 = vunpack.c.h.b16 %v4392
        %v4790 = vunpack.c.l.b16 %v4393
        %v4791 = vunpack.c.h.b16 %v4393
        %v4792 = vunpack.c.l.b16 %v4394
        %v4793 = vunpack.c.h.b16 %v4394
        %v4794 = vunpack.c.l.b16 %v4395
        %v4795 = vunpack.c.h.b16 %v4395
        %v4796 = vunpack.c.l.b16 %v4396
        %v4797 = vunpack.c.h.b16 %v4396
        %v4798 = vunpack.c.l.b16 %v4397
        %v4799 = vunpack.c.h.b16 %v4397
        %v4800 = vunpack.c.l.b16 %v4398
        %v4801 = vunpack.c.h.b16 %v4398
        %v4802 = vunpack.c.l.b16 %v4399
        %v4803 = vunpack.c.h.b16 %v4399
        %v4804 = vunpack.c.l.b16 %v4400
        %v4805 = vunpack.c.h.b16 %v4400
        %v4806 = vunpack.c.l.b16 %v4401
        %v4807 = vunpack.c.h.b16 %v4401
        %v4808 = vunpack.c.l.b16 %v4402
        %v4809 = vunpack.c.h.b16 %v4402
        %v4810 = vunpack.c.l.b16 %v4403
        %v4811 = vunpack.c.h.b16 %v4403
        %v4812 = vunpack.c.l.b16 %v4404
        %v4813 = vunpack.c.h.b16 %v4404
        %v4814 = vunpack.c.l.b16 %v4405
        %v4815 = vunpack.c.h.b16 %v4405
        %v4816 = vunpack.c.l.b16 %v4406
        %v4817 = vunpack.c.h.b16 %v4406
        %v4818 = vunpack.c.l.b16 %v4407
        %v4819 = vunpack.c.h.b16 %v4407
        %v4820 = vunpack.c.l.b16 %v4408
        %v4821 = vunpack.c.h.b16 %v4408
        %v4822 = vunpack.c.l.b16 %v4409
        %v4823 = vunpack.c.h.b16 %v4409
        %v4824 = vunpack.c.l.b16 %v4410
        %v4825 = vunpack.c.h.b16 %v4410
        %v4826 = vunpack.c.l.b16 %v4411
        %v4827 = vunpack.c.h.b16 %v4411
        %v4828 = vunpack.c.l.b16 %v4412
        %v4829 = vunpack.c.h.b16 %v4412
        %v4830 = vunpack.c.l.b16 %v4413
        %v4831 = vunpack.c.h.b16 %v4413
        %v4832 = vunpack.c.l.b16 %v4414
        %v4833 = vunpack.c.h.b16 %v4414
        %v4834 = vunpack.c.l.b16 %v4415
        %v4835 = vunpack.c.h.b16 %v4415
        %v4836 = vunpack.c.l.b16 %v4416
        %v4837 = vunpack.c.h.b16 %v4416
        %v4838 = vunpack.c.l.b16 %v4417
        %v4839 = vunpack.c.h.b16 %v4417
        %v4840 = vunpack.c.l.b16 %v4418
        %v4841 = vunpack.c.h.b16 %v4418
        %v4842 = vunpack.c.l.b16 %v4419
        %v4843 = vunpack.c.h.b16 %v4419
        %v4844 = vunpack.c.l.b16 %v4420
        %v4845 = vunpack.c.h.b16 %v4420
        %v4846 = vunpack.c.l.b16 %v4421
        %v4847 = vunpack.c.h.b16 %v4421
        %v4848 = vpack.c.b16 %v4600, %v4592
        %v4849 = vpack.c.b16 %v4601, %v4593
        %v4850 = vpack.c.b16 %v4602, %v4594
        %v4851 = vpack.c.b16 %v4603, %v4595
        %v4852 = vpack.c.b16 %v4604, %v4596
        %v4853 = vpack.c.b16 %v4605, %v4597
        %v4854 = vpack.c.b16 %v4606, %v4598
        %v4855 = vpack.c.b16 %v4607, %v4599
        %v4856 = vpack.c.b16 %v4616, %v4608
        %v4857 = vpack.c.b16 %v4617, %v4609
        %v4858 = vpack.c.b16 %v4618, %v4610
        %v4859 = vpack.c.b16 %v4619, %v4611
        %v4860 = vpack.c.b16 %v4620, %v4612
        %v4861 = vpack.c.b16 %v4621, %v4613
        %v4862 = vpack.c.b16 %v4622, %v4614
        %v4863 = vpack.c.b16 %v4623, %v4615
        %v4864 = vpack.c.b16 %v4632, %v4624
        %v4865 = vpack.c.b16 %v4633, %v4625
        %v4866 = vpack.c.b16 %v4634, %v4626
        %v4867 = vpack.c.b16 %v4635, %v4627
        %v4868 = vpack.c.b16 %v4636, %v4628
        %v4869 = vpack.c.b16 %v4637, %v4629
        %v4870 = vpack.c.b16 %v4638, %v4630
        %v4871 = vpack.c.b16 %v4639, %v4631
        %v4872 = vpack.c.b16 %v4648, %v4640
        %v4873 = vpack.c.b16 %v4649, %v4641
        %v4874 = vpack.c.b16 %v4650, %v4642
        %v4875 = vpack.c.b16 %v4651, %v4643
        %v4876 = vpack.c.b16 %v4652, %v4644
        %v4877 = vpack.c.b16 %v4653, %v4645
        %v4878 = vpack.c.b16 %v4654, %v4646
        %v4879 = vpack.c.b16 %v4655, %v4647
        %v4880 = vpack.c.b16 %v4664, %v4656
        %v4881 = vpack.c.b16 %v4665, %v4657
        %v4882 = vpack.c.b16 %v4666, %v4658
        %v4883 = vpack.c.b16 %v4667, %v4659
        %v4884 = vpack.c.b16 %v4668, %v4660
        %v4885 = vpack.c.b16 %v4669, %v4661
        %v4886 = vpack.c.b16 %v4670, %v4662
        %v4887 = vpack.c.b16 %v4671, %v4663
        %v4888 = vpack.c.b16 %v4680, %v4672
        %v4889 = vpack.c.b16 %v4681, %v4673
        %v4890 = vpack.c.b16 %v4682, %v4674
        %v4891 = vpack.c.b16 %v4683, %v4675
        %v4892 = vpack.c.b16 %v4684, %v4676
        %v4893 = vpack.c.b16 %v4685, %v4677
        %v4894 = vpack.c.b16 %v4686, %v4678
        %v4895 = vpack.c.b16 %v4687, %v4679
        %v4896 = vpack.c.b16 %v4696, %v4688
        %v4897 = vpack.c.b16 %v4697, %v4689
        %v4898 = vpack.c.b16 %v4698, %v4690
        %v4899 = vpack.c.b16 %v4699, %v4691
        %v4900 = vpack.c.b16 %v4700, %v4692
        %v4901 = vpack.c.b16 %v4701, %v4693
        %v4902 = vpack.c.b16 %v4702, %v4694
        %v4903 = vpack.c.b16 %v4703, %v4695
        %v4904 = vpack.c.b16 %v4712, %v4704
        %v4905 = vpack.c.b16 %v4713, %v4705
        %v4906 = vpack.c.b16 %v4714, %v4706
        %v4907 = vpack.c.b16 %v4715, %v4707
        %v4908 = vpack.c.b16 %v4716, %v4708
        %v4909 = vpack.c.b16 %v4717, %v4709
        %v4910 = vpack.c.b16 %v4718, %v4710
        %v4911 = vpack.c.b16 %v4719, %v4711
        %v4912 = vpack.c.b16 %v4728, %v4720
        %v4913 = vpack.c.b16 %v4729, %v4721
        %v4914 = vpack.c.b16 %v4730, %v4722
        %v4915 = vpack.c.b16 %v4731, %v4723
        %v4916 = vpack.c.b16 %v4732, %v4724
        %v4917 = vpack.c.b16 %v4733, %v4725
        %v4918 = vpack.c.b16 %v4734, %v4726
        %v4919 = vpack.c.b16 %v4735, %v4727
        %v4920 = vpack.c.b16 %v4744, %v4736
        %v4921 = vpack.c.b16 %v4745, %v4737
        %v4922 = vpack.c.b16 %v4746, %v4738
        %v4923 = vpack.c.b16 %v4747, %v4739
        %v4924 = vpack.c.b16 %v4748, %v4740
        %v4925 = vpack.c.b16 %v4749, %v4741
        %v4926 = vpack.c.b16 %v4750, %v4742
        %v4927 = vpack.c.b16 %v4751, %v4743
        %v4928 = vpack.c.b16 %v4760, %v4752
        %v4929 = vpack.c.b16 %v4761, %v4753
        %v4930 = vpack.c.b16 %v4762, %v4754
        %v4931 = vpack.c.b16 %v4763, %v4755
        %v4932 = vpack.c.b16 %v4764, %v4756
        %v4933 = vpack.c.b16 %v4765, %v4757
        %v4934 = vpack.c.b16 %v4766, %v4758
        %v4935 = vpack.c.b16 %v4767, %v4759
        %v4936 = vpack.c.b16 %v4776, %v4768
        %v4937 = vpack.c.b16 %v4777, %v4769
        %v4938 = vpack.c.b16 %v4778, %v4770
        %v4939 = vpack.c.b16 %v4779, %v4771
        %v4940 = vpack.c.b16 %v4780, %v4772
        %v4941 = vpack.c.b16 %v4781, %v4773
        %v4942 = vpack.c.b16 %v4782, %v4774
        %v4943 = vpack.c.b16 %v4783, %v4775
        %v4944 = vpack.c.b16 %v4792, %v4784
        %v4945 = vpack.c.b16 %v4793, %v4785
        %v4946 = vpack.c.b16 %v4794, %v4786
        %v4947 = vpack.c.b16 %v4795, %v4787
        %v4948 = vpack.c.b16 %v4796, %v4788
        %v4949 = vpack.c.b16 %v4797, %v4789
        %v4950 = vpack.c.b16 %v4798, %v4790
        %v4951 = vpack.c.b16 %v4799, %v4791
        %v4952 = vpack.c.b16 %v4808, %v4800
        %v4953 = vpack.c.b16 %v4809, %v4801
        %v4954 = vpack.c.b16 %v4810, %v4802
        %v4955 = vpack.c.b16 %v4811, %v4803
        %v4956 = vpack.c.b16 %v4812, %v4804
        %v4957 = vpack.c.b16 %v4813, %v4805
        %v4958 = vpack.c.b16 %v4814, %v4806
        %v4959 = vpack.c.b16 %v4815, %v4807
        %v4960 = vpack.c.b16 %v4824, %v4816
        %v4961 = vpack.c.b16 %v4825, %v4817
        %v4962 = vpack.c.b16 %v4826, %v4818
        %v4963 = vpack.c.b16 %v4827, %v4819
        %v4964 = vpack.c.b16 %v4828, %v4820
        %v4965 = vpack.c.b16 %v4829, %v4821
        %v4966 = vpack.c.b16 %v4830, %v4822
        %v4967 = vpack.c.b16 %v4831, %v4823
        %v4968 = vpack.c.b16 %v4840, %v4832
        %v4969 = vpack.c.b16 %v4841, %v4833
        %v4970 = vpack.c.b16 %v4842, %v4834
        %v4971 = vpack.c.b16 %v4843, %v4835
        %v4972 = vpack.c.b16 %v4844, %v4836
        %v4973 = vpack.c.b16 %v4845, %v4837
        %v4974 = vpack.c.b16 %v4846, %v4838
        %v4975 = vpack.c.b16 %v4847, %v4839
        %5104 = vmatprep.subr.bf16.mxu0 %v4849
        %5105 = vmatpush1.bf16.msra.mxu0 %v4848
        %5106 = vmatprep.subr.bf16.mxu0 %v4857
        %5107 = vmatpush1.bf16.msra.mxu0 %v4856
        %5108 = vmatprep.subr.bf16.mxu0 %v4865
        %5109 = vmatpush1.bf16.msra.mxu0 %v4864
        %5110 = vmatprep.subr.bf16.mxu0 %v4873
        %5111 = vmatpush1.bf16.msra.mxu0 %v4872
        %5112 = vmatprep.subr.bf16.mxu0 %v4881
        %5113 = vmatpush1.bf16.msra.mxu0 %v4880
        %5114 = vmatprep.subr.bf16.mxu0 %v4889
        %5115 = vmatpush1.bf16.msra.mxu0 %v4888
        %5116 = vmatprep.subr.bf16.mxu0 %v4897
        %5117 = vmatpush1.bf16.msra.mxu0 %v4896
        %5118 = vmatprep.subr.bf16.mxu0 %v4905
        %5119 = vmatpush1.bf16.msra.mxu0 %v4904
        %5120 = vmatprep.subr.bf16.mxu0 %v4913
        %5121 = vmatpush1.bf16.msra.mxu0 %v4912
        %5122 = vmatprep.subr.bf16.mxu0 %v4921
        %5123 = vmatpush1.bf16.msra.mxu0 %v4920
        %5124 = vmatprep.subr.bf16.mxu0 %v4929
        %5125 = vmatpush1.bf16.msra.mxu0 %v4928
        %5126 = vmatprep.subr.bf16.mxu0 %v4937
        %5127 = vmatpush1.bf16.msra.mxu0 %v4936
        %5128 = vmatprep.subr.bf16.mxu0 %v4945
        %5129 = vmatpush1.bf16.msra.mxu0 %v4944
        %5130 = vmatprep.subr.bf16.mxu0 %v4953
        %5131 = vmatpush1.bf16.msra.mxu0 %v4952
        %5132 = vmatprep.subr.bf16.mxu0 %v4961
        %5133 = vmatpush1.bf16.msra.mxu0 %v4960
        %5134 = vmatprep.subr.bf16.mxu0 %v4969
        %5135 = vmatpush1.bf16.msra.mxu0 %v4968
        %5136 = vmatprep.mubr.bf16.mxu0 %v4291
        %5137 = vmatmul.mubr.bf16.gmra.mrb[0].mxu0 %v4290
        %v5138 = vpop.f32.mrb[0].mxu0
        %v5139 = vadd.f32 %v4427, %v5138
        %v5140 = vpop.f32.mrb[0].mxu0
        %v5141 = vadd.f32 %v4431, %v5140
        %v5142 = vpop.f32.mrb[0].mxu0
        %v5143 = vadd.f32 %v4427, %v5142
        %v5144 = vpop.f32.mrb[0].mxu0
        %v5145 = vadd.f32 %v4431, %v5144
        %5146 = vmatprep.mubr.bf16.mxu0 %v4293
        %5147 = vmatmul.mubr.bf16.gmra.mrb[0].mxu0 %v4292
        %v5148 = vpop.f32.mrb[0].mxu0
        %v5149 = vadd.f32 %v4427, %v5148
        %v5150 = vpop.f32.mrb[0].mxu0
        %v5151 = vadd.f32 %v4431, %v5150
        %v5152 = vpop.f32.mrb[0].mxu0
        %v5153 = vadd.f32 %v4427, %v5152
        %v5154 = vpop.f32.mrb[0].mxu0
        %v5155 = vadd.f32 %v4431, %v5154
        %5156 = vdwg.mxu0
        %5157 = vmatprep.subr.bf16.mxu0 %v4851
        %5158 = vmatpush1.bf16.msra.mxu0 %v4850
        %5159 = vmatprep.subr.bf16.mxu0 %v4859
        %5160 = vmatpush1.bf16.msra.mxu0 %v4858
        %5161 = vmatprep.subr.bf16.mxu0 %v4867
        %5162 = vmatpush1.bf16.msra.mxu0 %v4866
        %5163 = vmatprep.subr.bf16.mxu0 %v4875
        %5164 = vmatpush1.bf16.msra.mxu0 %v4874
        %5165 = vmatprep.subr.bf16.mxu0 %v4883
        %5166 = vmatpush1.bf16.msra.mxu0 %v4882
        %5167 = vmatprep.subr.bf16.mxu0 %v4891
        %5168 = vmatpush1.bf16.msra.mxu0 %v4890
        %5169 = vmatprep.subr.bf16.mxu0 %v4899
        %5170 = vmatpush1.bf16.msra.mxu0 %v4898
        %5171 = vmatprep.subr.bf16.mxu0 %v4907
        %5172 = vmatpush1.bf16.msra.mxu0 %v4906
        %5173 = vmatprep.subr.bf16.mxu0 %v4915
        %5174 = vmatpush1.bf16.msra.mxu0 %v4914
        %5175 = vmatprep.subr.bf16.mxu0 %v4923
        %5176 = vmatpush1.bf16.msra.mxu0 %v4922
        %5177 = vmatprep.subr.bf16.mxu0 %v4931
        %5178 = vmatpush1.bf16.msra.mxu0 %v4930
        %5179 = vmatprep.subr.bf16.mxu0 %v4939
        %5180 = vmatpush1.bf16.msra.mxu0 %v4938
        %5181 = vmatprep.subr.bf16.mxu0 %v4947
        %5182 = vmatpush1.bf16.msra.mxu0 %v4946
        %5183 = vmatprep.subr.bf16.mxu0 %v4955
        %5184 = vmatpush1.bf16.msra.mxu0 %v4954
        %5185 = vmatprep.subr.bf16.mxu0 %v4963
        %5186 = vmatpush1.bf16.msra.mxu0 %v4962
        %5187 = vmatprep.subr.bf16.mxu0 %v4971
        %5188 = vmatpush1.bf16.msra.mxu0 %v4970
        %5189 = vmatprep.mubr.bf16.mxu0 %v4291
        %5190 = vmatmul.mubr.bf16.gmra.mrb[0].mxu0 %v4290
        %v5191 = vpop.f32.mrb[0].mxu0
        %v5192 = vadd.f32 %v4435, %v5191
        %v5193 = vpop.f32.mrb[0].mxu0
        %v5194 = vadd.f32 %v4439, %v5193
        %v5195 = vpop.f32.mrb[0].mxu0
        %v5196 = vadd.f32 %v4435, %v5195
        %v5197 = vpop.f32.mrb[0].mxu0
        %v5198 = vadd.f32 %v4439, %v5197
        %5199 = vmatprep.mubr.bf16.mxu0 %v4293
        %5200 = vmatmul.mubr.bf16.gmra.mrb[0].mxu0 %v4292
        %v5201 = vpop.f32.mrb[0].mxu0
        %v5202 = vadd.f32 %v4435, %v5201
        %v5203 = vpop.f32.mrb[0].mxu0
        %v5204 = vadd.f32 %v4439, %v5203
        %v5205 = vpop.f32.mrb[0].mxu0
        %v5206 = vadd.f32 %v4435, %v5205
        %v5207 = vpop.f32.mrb[0].mxu0
        %v5208 = vadd.f32 %v4439, %v5207
        %5209 = vdwg.mxu0
        %5210 = vmatprep.subr.bf16.mxu0 %v4853
        %5211 = vmatpush1.bf16.msra.mxu0 %v4852
        %5212 = vmatprep.subr.bf16.mxu0 %v4861
        %5213 = vmatpush1.bf16.msra.mxu0 %v4860
        %5214 = vmatprep.subr.bf16.mxu0 %v4869
        %5215 = vmatpush1.bf16.msra.mxu0 %v4868
        %5216 = vmatprep.subr.bf16.mxu0 %v4877
        %5217 = vmatpush1.bf16.msra.mxu0 %v4876
        %5218 = vmatprep.subr.bf16.mxu0 %v4885
        %5219 = vmatpush1.bf16.msra.mxu0 %v4884
        %5220 = vmatprep.subr.bf16.mxu0 %v4893
        %5221 = vmatpush1.bf16.msra.mxu0 %v4892
        %5222 = vmatprep.subr.bf16.mxu0 %v4901
        %5223 = vmatpush1.bf16.msra.mxu0 %v4900
        %5224 = vmatprep.subr.bf16.mxu0 %v4909
        %5225 = vmatpush1.bf16.msra.mxu0 %v4908
        %5226 = vmatprep.subr.bf16.mxu0 %v4917
        %5227 = vmatpush1.bf16.msra.mxu0 %v4916
        %5228 = vmatprep.subr.bf16.mxu0 %v4925
        %5229 = vmatpush1.bf16.msra.mxu0 %v4924
        %5230 = vmatprep.subr.bf16.mxu0 %v4933
        %5231 = vmatpush1.bf16.msra.mxu0 %v4932
        %5232 = vmatprep.subr.bf16.mxu0 %v4941
        %5233 = vmatpush1.bf16.msra.mxu0 %v4940
        %5234 = vmatprep.subr.bf16.mxu0 %v4949
        %5235 = vmatpush1.bf16.msra.mxu0 %v4948
        %5236 = vmatprep.subr.bf16.mxu0 %v4957
        %5237 = vmatpush1.bf16.msra.mxu0 %v4956
        %5238 = vmatprep.subr.bf16.mxu0 %v4965
        %5239 = vmatpush1.bf16.msra.mxu0 %v4964
        %5240 = vmatprep.subr.bf16.mxu0 %v4973
        %5241 = vmatpush1.bf16.msra.mxu0 %v4972
        %5242 = vmatprep.mubr.bf16.mxu0 %v4291
        %5243 = vmatmul.mubr.bf16.gmra.mrb[0].mxu0 %v4290
        %v5244 = vpop.f32.mrb[0].mxu0
        %v5245 = vadd.f32 %v4443, %v5244
        %v5246 = vpop.f32.mrb[0].mxu0
        %v5247 = vadd.f32 %v4447, %v5246
        %v5248 = vpop.f32.mrb[0].mxu0
        %v5249 = vadd.f32 %v4443, %v5248
        %v5250 = vpop.f32.mrb[0].mxu0
        %v5251 = vadd.f32 %v4447, %v5250
        %5252 = vmatprep.mubr.bf16.mxu0 %v4293
        %5253 = vmatmul.mubr.bf16.gmra.mrb[0].mxu0 %v4292
        %v5254 = vpop.f32.mrb[0].mxu0
        %v5255 = vadd.f32 %v4443, %v5254
        %v5256 = vpop.f32.mrb[0].mxu0
        %v5257 = vadd.f32 %v4447, %v5256
        %v5258 = vpop.f32.mrb[0].mxu0
        %v5259 = vadd.f32 %v4443, %v5258
        %v5260 = vpop.f32.mrb[0].mxu0
        %v5261 = vadd.f32 %v4447, %v5260
        %5262 = vdwg.mxu0
        %5263 = vmatprep.subr.bf16.mxu0 %v4855
        %5264 = vmatpush1.bf16.msra.mxu0 %v4854
        %5265 = vmatprep.subr.bf16.mxu0 %v4863
        %5266 = vmatpush1.bf16.msra.mxu0 %v4862
        %5267 = vmatprep.subr.bf16.mxu0 %v4871
        %5268 = vmatpush1.bf16.msra.mxu0 %v4870
        %5269 = vmatprep.subr.bf16.mxu0 %v4879
        %5270 = vmatpush1.bf16.msra.mxu0 %v4878
        %5271 = vmatprep.subr.bf16.mxu0 %v4887
        %5272 = vmatpush1.bf16.msra.mxu0 %v4886
        %5273 = vmatprep.subr.bf16.mxu0 %v4895
        %5274 = vmatpush1.bf16.msra.mxu0 %v4894
        %5275 = vmatprep.subr.bf16.mxu0 %v4903
        %5276 = vmatpush1.bf16.msra.mxu0 %v4902
        %5277 = vmatprep.subr.bf16.mxu0 %v4911
        %5278 = vmatpush1.bf16.msra.mxu0 %v4910
        %5279 = vmatprep.subr.bf16.mxu0 %v4919
        %5280 = vmatpush1.bf16.msra.mxu0 %v4918
        %5281 = vmatprep.subr.bf16.mxu0 %v4927
        %5282 = vmatpush1.bf16.msra.mxu0 %v4926
        %5283 = vmatprep.subr.bf16.mxu0 %v4935
        %5284 = vmatpush1.bf16.msra.mxu0 %v4934
        %5285 = vmatprep.subr.bf16.mxu0 %v4943
        %5286 = vmatpush1.bf16.msra.mxu0 %v4942
        %5287 = vmatprep.subr.bf16.mxu0 %v4951
        %5288 = vmatpush1.bf16.msra.mxu0 %v4950
        %5289 = vmatprep.subr.bf16.mxu0 %v4959
        %5290 = vmatpush1.bf16.msra.mxu0 %v4958
        %5291 = vmatprep.subr.bf16.mxu0 %v4967
        %5292 = vmatpush1.bf16.msra.mxu0 %v4966
        %5293 = vmatprep.subr.bf16.mxu0 %v4975
        %5294 = vmatpush1.bf16.msra.mxu0 %v4974
        %5295 = vmatprep.mubr.bf16.mxu0 %v4291
        %5296 = vmatmul.mubr.bf16.gmra.mrb[0].mxu0 %v4290
        %v5297 = vpop.f32.mrb[0].mxu0
        %v5298 = vadd.f32 %v4451, %v5297
        %v5299 = vpop.f32.mrb[0].mxu0
        %v5300 = vadd.f32 %v4455, %v5299
        %v5301 = vpop.f32.mrb[0].mxu0
        %v5302 = vadd.f32 %v4451, %v5301
        %v5303 = vpop.f32.mrb[0].mxu0
        %v5304 = vadd.f32 %v4455, %v5303
        %5305 = vmatprep.mubr.bf16.mxu0 %v4293
        %5306 = vmatmul.mubr.bf16.gmra.mrb[0].mxu0 %v4292
        %v5307 = vpop.f32.mrb[0].mxu0
        %v5308 = vadd.f32 %v4451, %v5307
        %v5309 = vpop.f32.mrb[0].mxu0
        %v5310 = vadd.f32 %v4455, %v5309
        %v5311 = vpop.f32.mrb[0].mxu0
        %v5312 = vadd.f32 %v4451, %v5311
        %v5313 = vpop.f32.mrb[0].mxu0
        %v5314 = vadd.f32 %v4455, %v5313
        %5315 = vdwg.mxu0
        %v5316 = vmul.f32 %v5139, 0.5
        %v5317 = vmul.f32 %v5141, 0.5
        %v5318 = vmul.f32 %v5192, 0.5
        %v5319 = vmul.f32 %v5194, 0.5
        %v5320 = vmul.f32 %v5245, 0.5
        %v5321 = vmul.f32 %v5247, 0.5
        %v5322 = vmul.f32 %v5298, 0.5
        %v5323 = vmul.f32 %v5300, 0.5
        %v5324 = vmul.f32 %v5143, 0.5
        %v5325 = vmul.f32 %v5145, 0.5
        %v5326 = vmul.f32 %v5196, 0.5
        %v5327 = vmul.f32 %v5198, 0.5
        %v5328 = vmul.f32 %v5249, 0.5
        %v5329 = vmul.f32 %v5251, 0.5
        %v5330 = vmul.f32 %v5302, 0.5
        %v5331 = vmul.f32 %v5304, 0.5
        %v5332 = vmul.f32 %v5149, 0.5
        %v5333 = vmul.f32 %v5151, 0.5
        %v5334 = vmul.f32 %v5202, 0.5
        %v5335 = vmul.f32 %v5204, 0.5
        %v5336 = vmul.f32 %v5255, 0.5
        %v5337 = vmul.f32 %v5257, 0.5
        %v5338 = vmul.f32 %v5308, 0.5
        %v5339 = vmul.f32 %v5310, 0.5
        %v5340 = vmul.f32 %v5153, 0.5
        %v5341 = vmul.f32 %v5155, 0.5
        %v5342 = vmul.f32 %v5206, 0.5
        %v5343 = vmul.f32 %v5208, 0.5
        %v5344 = vmul.f32 %v5259, 0.5
        %v5345 = vmul.f32 %v5261, 0.5
        %v5346 = vmul.f32 %v5312, 0.5
        %v5347 = vmul.f32 %v5314, 0.5
        %v5348 = vmul.f32 %v5139, 0.044715
        %v5349 = vmul.f32 %v5141, 0.044715
        %v5350 = vmul.f32 %v5192, 0.044715
        %v5351 = vmul.f32 %v5194, 0.044715
        %v5352 = vmul.f32 %v5245, 0.044715
        %v5353 = vmul.f32 %v5247, 0.044715
        %v5354 = vmul.f32 %v5298, 0.044715
        %v5355 = vmul.f32 %v5300, 0.044715
        %v5356 = vmul.f32 %v5143, 0.044715
        %v5357 = vmul.f32 %v5145, 0.044715
        %v5358 = vmul.f32 %v5196, 0.044715
        %v5359 = vmul.f32 %v5198, 0.044715
        %v5360 = vmul.f32 %v5249, 0.044715
        %v5361 = vmul.f32 %v5251, 0.044715
        %v5362 = vmul.f32 %v5302, 0.044715
        %v5363 = vmul.f32 %v5304, 0.044715
        %v5364 = vmul.f32 %v5149, 0.044715
        %v5365 = vmul.f32 %v5151, 0.044715
        %v5366 = vmul.f32 %v5202, 0.044715
        %v5367 = vmul.f32 %v5204, 0.044715
        %v5368 = vmul.f32 %v5255, 0.044715
        %v5369 = vmul.f32 %v5257, 0.044715
        %v5370 = vmul.f32 %v5308, 0.044715
        %v5371 = vmul.f32 %v5310, 0.044715
        %v5372 = vmul.f32 %v5153, 0.044715
        %v5373 = vmul.f32 %v5155, 0.044715
        %v5374 = vmul.f32 %v5206, 0.044715
        %v5375 = vmul.f32 %v5208, 0.044715
        %v5376 = vmul.f32 %v5259, 0.044715
        %v5377 = vmul.f32 %v5261, 0.044715
        %v5378 = vmul.f32 %v5312, 0.044715
        %v5379 = vmul.f32 %v5314, 0.044715
        %v5380 = vmul.f32 %v5348, %v5139
        %v5381 = vmul.f32 %v5349, %v5141
        %v5382 = vmul.f32 %v5350, %v5192
        %v5383 = vmul.f32 %v5351, %v5194
        %v5384 = vmul.f32 %v5352, %v5245
        %v5385 = vmul.f32 %v5353, %v5247
        %v5386 = vmul.f32 %v5354, %v5298
        %v5387 = vmul.f32 %v5355, %v5300
        %v5388 = vmul.f32 %v5356, %v5143
        %v5389 = vmul.f32 %v5357, %v5145
        %v5390 = vmul.f32 %v5358, %v5196
        %v5391 = vmul.f32 %v5359, %v5198
        %v5392 = vmul.f32 %v5360, %v5249
        %v5393 = vmul.f32 %v5361, %v5251
        %v5394 = vmul.f32 %v5362, %v5302
        %v5395 = vmul.f32 %v5363, %v5304
        %v5396 = vmul.f32 %v5364, %v5149
        %v5397 = vmul.f32 %v5365, %v5151
        %v5398 = vmul.f32 %v5366, %v5202
        %v5399 = vmul.f32 %v5367, %v5204
        %v5400 = vmul.f32 %v5368, %v5255
        %v5401 = vmul.f32 %v5369, %v5257
        %v5402 = vmul.f32 %v5370, %v5308
        %v5403 = vmul.f32 %v5371, %v5310
        %v5404 = vmul.f32 %v5372, %v5153
        %v5405 = vmul.f32 %v5373, %v5155
        %v5406 = vmul.f32 %v5374, %v5206
        %v5407 = vmul.f32 %v5375, %v5208
        %v5408 = vmul.f32 %v5376, %v5259
        %v5409 = vmul.f32 %v5377, %v5261
        %v5410 = vmul.f32 %v5378, %v5312
        %v5411 = vmul.f32 %v5379, %v5314
        %v5412 = vmul.f32 %v5380, %v5139
        %v5413 = vmul.f32 %v5381, %v5141
        %v5414 = vmul.f32 %v5382, %v5192
        %v5415 = vmul.f32 %v5383, %v5194
        %v5416 = vmul.f32 %v5384, %v5245
        %v5417 = vmul.f32 %v5385, %v5247
        %v5418 = vmul.f32 %v5386, %v5298
        %v5419 = vmul.f32 %v5387, %v5300
        %v5420 = vmul.f32 %v5388, %v5143
        %v5421 = vmul.f32 %v5389, %v5145
        %v5422 = vmul.f32 %v5390, %v5196
        %v5423 = vmul.f32 %v5391, %v5198
        %v5424 = vmul.f32 %v5392, %v5249
        %v5425 = vmul.f32 %v5393, %v5251
        %v5426 = vmul.f32 %v5394, %v5302
        %v5427 = vmul.f32 %v5395, %v5304
        %v5428 = vmul.f32 %v5396, %v5149
        %v5429 = vmul.f32 %v5397, %v5151
        %v5430 = vmul.f32 %v5398, %v5202
        %v5431 = vmul.f32 %v5399, %v5204
        %v5432 = vmul.f32 %v5400, %v5255
        %v5433 = vmul.f32 %v5401, %v5257
        %v5434 = vmul.f32 %v5402, %v5308
        %v5435 = vmul.f32 %v5403, %v5310
        %v5436 = vmul.f32 %v5404, %v5153
        %v5437 = vmul.f32 %v5405, %v5155
        %v5438 = vmul.f32 %v5406, %v5206
        %v5439 = vmul.f32 %v5407, %v5208
        %v5440 = vmul.f32 %v5408, %v5259
        %v5441 = vmul.f32 %v5409, %v5261
        %v5442 = vmul.f32 %v5410, %v5312
        %v5443 = vmul.f32 %v5411, %v5314
        %v5444 = vadd.f32 %v5139, %v5412
        %v5445 = vadd.f32 %v5141, %v5413
        %v5446 = vadd.f32 %v5192, %v5414
        %v5447 = vadd.f32 %v5194, %v5415
        %v5448 = vadd.f32 %v5245, %v5416
        %v5449 = vadd.f32 %v5247, %v5417
        %v5450 = vadd.f32 %v5298, %v5418
        %v5451 = vadd.f32 %v5300, %v5419
        %v5452 = vadd.f32 %v5143, %v5420
        %v5453 = vadd.f32 %v5145, %v5421
        %v5454 = vadd.f32 %v5196, %v5422
        %v5455 = vadd.f32 %v5198, %v5423
        %v5456 = vadd.f32 %v5249, %v5424
        %v5457 = vadd.f32 %v5251, %v5425
        %v5458 = vadd.f32 %v5302, %v5426
        %v5459 = vadd.f32 %v5304, %v5427
        %v5460 = vadd.f32 %v5149, %v5428
        %v5461 = vadd.f32 %v5151, %v5429
        %v5462 = vadd.f32 %v5202, %v5430
        %v5463 = vadd.f32 %v5204, %v5431
        %v5464 = vadd.f32 %v5255, %v5432
        %v5465 = vadd.f32 %v5257, %v5433
        %v5466 = vadd.f32 %v5308, %v5434
        %v5467 = vadd.f32 %v5310, %v5435
        %v5468 = vadd.f32 %v5153, %v5436
        %v5469 = vadd.f32 %v5155, %v5437
        %v5470 = vadd.f32 %v5206, %v5438
        %v5471 = vadd.f32 %v5208, %v5439
        %v5472 = vadd.f32 %v5259, %v5440
        %v5473 = vadd.f32 %v5261, %v5441
        %v5474 = vadd.f32 %v5312, %v5442
        %v5475 = vadd.f32 %v5314, %v5443
        %v5476 = vmul.f32 %v5444, 0.7978846
        %v5477 = vmul.f32 %v5445, 0.7978846
        %v5478 = vmul.f32 %v5446, 0.7978846
        %v5479 = vmul.f32 %v5447, 0.7978846
        %v5480 = vmul.f32 %v5448, 0.7978846
        %v5481 = vmul.f32 %v5449, 0.7978846
        %v5482 = vmul.f32 %v5450, 0.7978846
        %v5483 = vmul.f32 %v5451, 0.7978846
        %v5484 = vmul.f32 %v5452, 0.7978846
        %v5485 = vmul.f32 %v5453, 0.7978846
        %v5486 = vmul.f32 %v5454, 0.7978846
        %v5487 = vmul.f32 %v5455, 0.7978846
        %v5488 = vmul.f32 %v5456, 0.7978846
        %v5489 = vmul.f32 %v5457, 0.7978846
        %v5490 = vmul.f32 %v5458, 0.7978846
        %v5491 = vmul.f32 %v5459, 0.7978846
        %v5492 = vmul.f32 %v5460, 0.7978846
        %v5493 = vmul.f32 %v5461, 0.7978846
        %v5494 = vmul.f32 %v5462, 0.7978846
        %v5495 = vmul.f32 %v5463, 0.7978846
        %v5496 = vmul.f32 %v5464, 0.7978846
        %v5497 = vmul.f32 %v5465, 0.7978846
        %v5498 = vmul.f32 %v5466, 0.7978846
        %v5499 = vmul.f32 %v5467, 0.7978846
        %v5500 = vmul.f32 %v5468, 0.7978846
        %v5501 = vmul.f32 %v5469, 0.7978846
        %v5502 = vmul.f32 %v5470, 0.7978846
        %v5503 = vmul.f32 %v5471, 0.7978846
        %v5504 = vmul.f32 %v5472, 0.7978846
        %v5505 = vmul.f32 %v5473, 0.7978846
        %v5506 = vmul.f32 %v5474, 0.7978846
        %v5507 = vmul.f32 %v5475, 0.7978846
        %v5508 = vtanh.pop %v5476
        %v5509 = vtanh.pop %v5477
        %v5510 = vtanh.pop %v5478
        %v5511 = vtanh.pop %v5479
        %v5512 = vtanh.pop %v5480
        %v5513 = vtanh.pop %v5481
        %v5514 = vtanh.pop %v5482
        %v5515 = vtanh.pop %v5483
        %v5516 = vtanh.pop %v5484
        %v5517 = vtanh.pop %v5485
        %v5518 = vtanh.pop %v5486
        %v5519 = vtanh.pop %v5487
        %v5520 = vtanh.pop %v5488
        %v5521 = vtanh.pop %v5489
        %v5522 = vtanh.pop %v5490
        %v5523 = vtanh.pop %v5491
        %v5524 = vtanh.pop %v5492
        %v5525 = vtanh.pop %v5493
        %v5526 = vtanh.pop %v5494
        %v5527 = vtanh.pop %v5495
        %v5528 = vtanh.pop %v5496
        %v5529 = vtanh.pop %v5497
        %v5530 = vtanh.pop %v5498
        %v5531 = vtanh.pop %v5499
        %v5532 = vtanh.pop %v5500
        %v5533 = vtanh.pop %v5501
        %v5534 = vtanh.pop %v5502
        %v5535 = vtanh.pop %v5503
        %v5536 = vtanh.pop %v5504
        %v5537 = vtanh.pop %v5505
        %v5538 = vtanh.pop %v5506
        %v5539 = vtanh.pop %v5507
        %v5540 = vadd.f32 %v5508, 1.0
        %v5541 = vadd.f32 %v5509, 1.0
        %v5542 = vadd.f32 %v5510, 1.0
        %v5543 = vadd.f32 %v5511, 1.0
        %v5544 = vadd.f32 %v5512, 1.0
        %v5545 = vadd.f32 %v5513, 1.0
        %v5546 = vadd.f32 %v5514, 1.0
        %v5547 = vadd.f32 %v5515, 1.0
        %v5548 = vadd.f32 %v5516, 1.0
        %v5549 = vadd.f32 %v5517, 1.0
        %v5550 = vadd.f32 %v5518, 1.0
        %v5551 = vadd.f32 %v5519, 1.0
        %v5552 = vadd.f32 %v5520, 1.0
        %v5553 = vadd.f32 %v5521, 1.0
        %v5554 = vadd.f32 %v5522, 1.0
        %v5555 = vadd.f32 %v5523, 1.0
        %v5556 = vadd.f32 %v5524, 1.0
        %v5557 = vadd.f32 %v5525, 1.0
        %v5558 = vadd.f32 %v5526, 1.0
        %v5559 = vadd.f32 %v5527, 1.0
        %v5560 = vadd.f32 %v5528, 1.0
        %v5561 = vadd.f32 %v5529, 1.0
        %v5562 = vadd.f32 %v5530, 1.0
        %v5563 = vadd.f32 %v5531, 1.0
        %v5564 = vadd.f32 %v5532, 1.0
        %v5565 = vadd.f32 %v5533, 1.0
        %v5566 = vadd.f32 %v5534, 1.0
        %v5567 = vadd.f32 %v5535, 1.0
        %v5568 = vadd.f32 %v5536, 1.0
        %v5569 = vadd.f32 %v5537, 1.0
        %v5570 = vadd.f32 %v5538, 1.0
        %v5571 = vadd.f32 %v5539, 1.0
        %v5572 = vmul.f32 %v5316, %v5540
        %v5573 = vmul.f32 %v5317, %v5541
        %v5574 = vmul.f32 %v5318, %v5542
        %v5575 = vmul.f32 %v5319, %v5543
        %v5576 = vmul.f32 %v5320, %v5544
        %v5577 = vmul.f32 %v5321, %v5545
        %v5578 = vmul.f32 %v5322, %v5546
        %v5579 = vmul.f32 %v5323, %v5547
        %v5580 = vmul.f32 %v5324, %v5548
        %v5581 = vmul.f32 %v5325, %v5549
        %v5582 = vmul.f32 %v5326, %v5550
        %v5583 = vmul.f32 %v5327, %v5551
        %v5584 = vmul.f32 %v5328, %v5552
        %v5585 = vmul.f32 %v5329, %v5553
        %v5586 = vmul.f32 %v5330, %v5554
        %v5587 = vmul.f32 %v5331, %v5555
        %v5588 = vmul.f32 %v5332, %v5556
        %v5589 = vmul.f32 %v5333, %v5557
        %v5590 = vmul.f32 %v5334, %v5558
        %v5591 = vmul.f32 %v5335, %v5559
        %v5592 = vmul.f32 %v5336, %v5560
        %v5593 = vmul.f32 %v5337, %v5561
        %v5594 = vmul.f32 %v5338, %v5562
        %v5595 = vmul.f32 %v5339, %v5563
        %v5596 = vmul.f32 %v5340, %v5564
        %v5597 = vmul.f32 %v5341, %v5565
        %v5598 = vmul.f32 %v5342, %v5566
        %v5599 = vmul.f32 %v5343, %v5567
        %v5600 = vmul.f32 %v5344, %v5568
        %v5601 = vmul.f32 %v5345, %v5569
        %v5602 = vmul.f32 %v5346, %v5570
        %v5603 = vmul.f32 %v5347, %v5571
        %v5604 = vpack.c.bf16 %v5580, %v5572
        %v5605 = vpack.c.bf16 %v5581, %v5573
        %v5606 = vpack.c.bf16 %v5582, %v5574
        %v5607 = vpack.c.bf16 %v5583, %v5575
        %v5608 = vpack.c.bf16 %v5584, %v5576
        %v5609 = vpack.c.bf16 %v5585, %v5577
        %v5610 = vpack.c.bf16 %v5586, %v5578
        %v5611 = vpack.c.bf16 %v5587, %v5579
        %v5612 = vpack.c.bf16 %v5596, %v5588
        %v5613 = vpack.c.bf16 %v5597, %v5589
        %v5614 = vpack.c.bf16 %v5598, %v5590
        %v5615 = vpack.c.bf16 %v5599, %v5591
        %v5616 = vpack.c.bf16 %v5600, %v5592
        %v5617 = vpack.c.bf16 %v5601, %v5593
        %v5618 = vpack.c.bf16 %v5602, %v5594
        %v5619 = vpack.c.bf16 %v5603, %v5595
        %v5620 = vld [vmem:[%s840] sm:$0xff]
        %v5621 = vld [vmem:[%s840 + $0x8] sm:$0xff]
        %v5622 = vld [vmem:[%s840 + $0x10] sm:$0xff]
        %v5623 = vld [vmem:[%s840 + $0x18] sm:$0xff]
        %v5624 = vld [vmem:[%s840 + $0x20] sm:$0xff]
        %v5625 = vld [vmem:[%s840 + $0x28] sm:$0xff]
        %v5626 = vld [vmem:[%s840 + $0x30] sm:$0xff]
        %v5627 = vld [vmem:[%s840 + $0x38] sm:$0xff]
        %v5628 = vld [vmem:[%s840 + $0x40] sm:$0xff]
        %v5629 = vld [vmem:[%s840 + $0x48] sm:$0xff]
        %v5630 = vld [vmem:[%s840 + $0x50] sm:$0xff]
        %v5631 = vld [vmem:[%s840 + $0x58] sm:$0xff]
        %v5632 = vld [vmem:[%s840 + $0x60] sm:$0xff]
        %v5633 = vld [vmem:[%s840 + $0x68] sm:$0xff]
        %v5634 = vld [vmem:[%s840 + $0x70] sm:$0xff]
        %v5635 = vld [vmem:[%s840 + $0x78] sm:$0xff]
        %v5636 = vld [vmem:[%s840 + $0x80] sm:$0xff]
        %v5637 = vld [vmem:[%s840 + $0x88] sm:$0xff]
        %v5638 = vld [vmem:[%s840 + $0x90] sm:$0xff]
        %v5639 = vld [vmem:[%s840 + $0x98] sm:$0xff]
        %v5640 = vld [vmem:[%s840 + $0xa0] sm:$0xff]
        %v5641 = vld [vmem:[%s840 + $0xa8] sm:$0xff]
        %v5642 = vld [vmem:[%s840 + $0xb0] sm:$0xff]
        %v5643 = vld [vmem:[%s840 + $0xb8] sm:$0xff]
        %v5644 = vld [vmem:[%s840 + $0xc0] sm:$0xff]
        %v5645 = vld [vmem:[%s840 + $0xc8] sm:$0xff]
        %v5646 = vld [vmem:[%s840 + $0xd0] sm:$0xff]
        %v5647 = vld [vmem:[%s840 + $0xd8] sm:$0xff]
        %v5648 = vld [vmem:[%s840 + $0xe0] sm:$0xff]
        %v5649 = vld [vmem:[%s840 + $0xe8] sm:$0xff]
        %v5650 = vld [vmem:[%s840 + $0xf0] sm:$0xff]
        %v5651 = vld [vmem:[%s840 + $0xf8] sm:$0xff]
        %v5652 = vld [vmem:[%s840 + $0x100] sm:$0xff]
        %v5653 = vld [vmem:[%s840 + $0x108] sm:$0xff]
        %v5654 = vld [vmem:[%s840 + $0x110] sm:$0xff]
        %v5655 = vld [vmem:[%s840 + $0x118] sm:$0xff]
        %v5656 = vld [vmem:[%s840 + $0x120] sm:$0xff]
        %v5657 = vld [vmem:[%s840 + $0x128] sm:$0xff]
        %v5658 = vld [vmem:[%s840 + $0x130] sm:$0xff]
        %v5659 = vld [vmem:[%s840 + $0x138] sm:$0xff]
        %v5660 = vld [vmem:[%s840 + $0x140] sm:$0xff]
        %v5661 = vld [vmem:[%s840 + $0x148] sm:$0xff]
        %v5662 = vld [vmem:[%s840 + $0x150] sm:$0xff]
        %v5663 = vld [vmem:[%s840 + $0x158] sm:$0xff]
        %v5664 = vld [vmem:[%s840 + $0x160] sm:$0xff]
        %v5665 = vld [vmem:[%s840 + $0x168] sm:$0xff]
        %v5666 = vld [vmem:[%s840 + $0x170] sm:$0xff]
        %v5667 = vld [vmem:[%s840 + $0x178] sm:$0xff]
        %v5668 = vld [vmem:[%s840 + $0x180] sm:$0xff]
        %v5669 = vld [vmem:[%s840 + $0x188] sm:$0xff]
        %v5670 = vld [vmem:[%s840 + $0x190] sm:$0xff]
        %v5671 = vld [vmem:[%s840 + $0x198] sm:$0xff]
        %v5672 = vld [vmem:[%s840 + $0x1a0] sm:$0xff]
        %v5673 = vld [vmem:[%s840 + $0x1a8] sm:$0xff]
        %v5674 = vld [vmem:[%s840 + $0x1b0] sm:$0xff]
        %v5675 = vld [vmem:[%s840 + $0x1b8] sm:$0xff]
        %v5676 = vld [vmem:[%s840 + $0x1c0] sm:$0xff]
        %v5677 = vld [vmem:[%s840 + $0x1c8] sm:$0xff]
        %v5678 = vld [vmem:[%s840 + $0x1d0] sm:$0xff]
        %v5679 = vld [vmem:[%s840 + $0x1d8] sm:$0xff]
        %v5680 = vld [vmem:[%s840 + $0x1e0] sm:$0xff]
        %v5681 = vld [vmem:[%s840 + $0x1e8] sm:$0xff]
        %v5682 = vld [vmem:[%s840 + $0x1f0] sm:$0xff]
        %v5683 = vld [vmem:[%s840 + $0x1f8] sm:$0xff]
        %v5684 = vld [vmem:[%s840 + $0x200] sm:$0xff]
        %v5685 = vld [vmem:[%s840 + $0x208] sm:$0xff]
        %v5686 = vld [vmem:[%s840 + $0x210] sm:$0xff]
        %v5687 = vld [vmem:[%s840 + $0x218] sm:$0xff]
        %v5688 = vld [vmem:[%s840 + $0x220] sm:$0xff]
        %v5689 = vld [vmem:[%s840 + $0x228] sm:$0xff]
        %v5690 = vld [vmem:[%s840 + $0x230] sm:$0xff]
        %v5691 = vld [vmem:[%s840 + $0x238] sm:$0xff]
        %v5692 = vld [vmem:[%s840 + $0x240] sm:$0xff]
        %v5693 = vld [vmem:[%s840 + $0x248] sm:$0xff]
        %v5694 = vld [vmem:[%s840 + $0x250] sm:$0xff]
        %v5695 = vld [vmem:[%s840 + $0x258] sm:$0xff]
        %v5696 = vld [vmem:[%s840 + $0x260] sm:$0xff]
        %v5697 = vld [vmem:[%s840 + $0x268] sm:$0xff]
        %v5698 = vld [vmem:[%s840 + $0x270] sm:$0xff]
        %v5699 = vld [vmem:[%s840 + $0x278] sm:$0xff]
        %v5700 = vld [vmem:[%s840 + $0x280] sm:$0xff]
        %v5701 = vld [vmem:[%s840 + $0x288] sm:$0xff]
        %v5702 = vld [vmem:[%s840 + $0x290] sm:$0xff]
        %v5703 = vld [vmem:[%s840 + $0x298] sm:$0xff]
        %v5704 = vld [vmem:[%s840 + $0x2a0] sm:$0xff]
        %v5705 = vld [vmem:[%s840 + $0x2a8] sm:$0xff]
        %v5706 = vld [vmem:[%s840 + $0x2b0] sm:$0xff]
        %v5707 = vld [vmem:[%s840 + $0x2b8] sm:$0xff]
        %v5708 = vld [vmem:[%s840 + $0x2c0] sm:$0xff]
        %v5709 = vld [vmem:[%s840 + $0x2c8] sm:$0xff]
        %v5710 = vld [vmem:[%s840 + $0x2d0] sm:$0xff]
        %v5711 = vld [vmem:[%s840 + $0x2d8] sm:$0xff]
        %v5712 = vld [vmem:[%s840 + $0x2e0] sm:$0xff]
        %v5713 = vld [vmem:[%s840 + $0x2e8] sm:$0xff]
        %v5714 = vld [vmem:[%s840 + $0x2f0] sm:$0xff]
        %v5715 = vld [vmem:[%s840 + $0x2f8] sm:$0xff]
        %v5716 = vld [vmem:[%s840 + $0x300] sm:$0xff]
        %v5717 = vld [vmem:[%s840 + $0x308] sm:$0xff]
        %v5718 = vld [vmem:[%s840 + $0x310] sm:$0xff]
        %v5719 = vld [vmem:[%s840 + $0x318] sm:$0xff]
        %v5720 = vld [vmem:[%s840 + $0x320] sm:$0xff]
        %v5721 = vld [vmem:[%s840 + $0x328] sm:$0xff]
        %v5722 = vld [vmem:[%s840 + $0x330] sm:$0xff]
        %v5723 = vld [vmem:[%s840 + $0x338] sm:$0xff]
        %v5724 = vld [vmem:[%s840 + $0x340] sm:$0xff]
        %v5725 = vld [vmem:[%s840 + $0x348] sm:$0xff]
        %v5726 = vld [vmem:[%s840 + $0x350] sm:$0xff]
        %v5727 = vld [vmem:[%s840 + $0x358] sm:$0xff]
        %v5728 = vld [vmem:[%s840 + $0x360] sm:$0xff]
        %v5729 = vld [vmem:[%s840 + $0x368] sm:$0xff]
        %v5730 = vld [vmem:[%s840 + $0x370] sm:$0xff]
        %v5731 = vld [vmem:[%s840 + $0x378] sm:$0xff]
        %v5732 = vld [vmem:[%s840 + $0x380] sm:$0xff]
        %v5733 = vld [vmem:[%s840 + $0x388] sm:$0xff]
        %v5734 = vld [vmem:[%s840 + $0x390] sm:$0xff]
        %v5735 = vld [vmem:[%s840 + $0x398] sm:$0xff]
        %v5736 = vld [vmem:[%s840 + $0x3a0] sm:$0xff]
        %v5737 = vld [vmem:[%s840 + $0x3a8] sm:$0xff]
        %v5738 = vld [vmem:[%s840 + $0x3b0] sm:$0xff]
        %v5739 = vld [vmem:[%s840 + $0x3b8] sm:$0xff]
        %v5740 = vld [vmem:[%s840 + $0x3c0] sm:$0xff]
        %v5741 = vld [vmem:[%s840 + $0x3c8] sm:$0xff]
        %v5742 = vld [vmem:[%s840 + $0x3d0] sm:$0xff]
        %v5743 = vld [vmem:[%s840 + $0x3d8] sm:$0xff]
        %v5744 = vld [vmem:[%s840 + $0x3e0] sm:$0xff]
        %v5745 = vld [vmem:[%s840 + $0x3e8] sm:$0xff]
        %v5746 = vld [vmem:[%s840 + $0x3f0] sm:$0xff]
        %v5747 = vld [vmem:[%s840 + $0x3f8] sm:$0xff]
        %v5748 = vld [vmem:[%s849] sm:$0x3]
        %v5750 = vlaneseq
        %v5751 = vshrl.u32 %v5750, 7
        %v5752 = vsub.s32 0, %v5751
        %v5753 = vrot.slane %v5748, %v5752
        %v5754 = vlaneseq
        %v5755 = vshrl.u32 %v5754, 7
        %v5756 = vsub.s32 1, %v5755
        %v5757 = vrot.slane %v5748, %v5756
        %v5888 = vunpack.c.l.b16 %v5620
        %v5889 = vunpack.c.h.b16 %v5620
        %v5890 = vunpack.c.l.b16 %v5621
        %v5891 = vunpack.c.h.b16 %v5621
        %v5892 = vunpack.c.l.b16 %v5622
        %v5893 = vunpack.c.h.b16 %v5622
        %v5894 = vunpack.c.l.b16 %v5623
        %v5895 = vunpack.c.h.b16 %v5623
        %v5896 = vunpack.c.l.b16 %v5624
        %v5897 = vunpack.c.h.b16 %v5624
        %v5898 = vunpack.c.l.b16 %v5625
        %v5899 = vunpack.c.h.b16 %v5625
        %v5900 = vunpack.c.l.b16 %v5626
        %v5901 = vunpack.c.h.b16 %v5626
        %v5902 = vunpack.c.l.b16 %v5627
        %v5903 = vunpack.c.h.b16 %v5627
        %v5904 = vunpack.c.l.b16 %v5628
        %v5905 = vunpack.c.h.b16 %v5628
        %v5906 = vunpack.c.l.b16 %v5629
        %v5907 = vunpack.c.h.b16 %v5629
        %v5908 = vunpack.c.l.b16 %v5630
        %v5909 = vunpack.c.h.b16 %v5630
        %v5910 = vunpack.c.l.b16 %v5631
        %v5911 = vunpack.c.h.b16 %v5631
        %v5912 = vunpack.c.l.b16 %v5632
        %v5913 = vunpack.c.h.b16 %v5632
        %v5914 = vunpack.c.l.b16 %v5633
        %v5915 = vunpack.c.h.b16 %v5633
        %v5916 = vunpack.c.l.b16 %v5634
        %v5917 = vunpack.c.h.b16 %v5634
        %v5918 = vunpack.c.l.b16 %v5635
        %v5919 = vunpack.c.h.b16 %v5635
        %v5920 = vunpack.c.l.b16 %v5636
        %v5921 = vunpack.c.h.b16 %v5636
        %v5922 = vunpack.c.l.b16 %v5637
        %v5923 = vunpack.c.h.b16 %v5637
        %v5924 = vunpack.c.l.b16 %v5638
        %v5925 = vunpack.c.h.b16 %v5638
        %v5926 = vunpack.c.l.b16 %v5639
        %v5927 = vunpack.c.h.b16 %v5639
        %v5928 = vunpack.c.l.b16 %v5640
        %v5929 = vunpack.c.h.b16 %v5640
        %v5930 = vunpack.c.l.b16 %v5641
        %v5931 = vunpack.c.h.b16 %v5641
        %v5932 = vunpack.c.l.b16 %v5642
        %v5933 = vunpack.c.h.b16 %v5642
        %v5934 = vunpack.c.l.b16 %v5643
        %v5935 = vunpack.c.h.b16 %v5643
        %v5936 = vunpack.c.l.b16 %v5644
        %v5937 = vunpack.c.h.b16 %v5644
        %v5938 = vunpack.c.l.b16 %v5645
        %v5939 = vunpack.c.h.b16 %v5645
        %v5940 = vunpack.c.l.b16 %v5646
        %v5941 = vunpack.c.h.b16 %v5646
        %v5942 = vunpack.c.l.b16 %v5647
        %v5943 = vunpack.c.h.b16 %v5647
        %v5944 = vunpack.c.l.b16 %v5648
        %v5945 = vunpack.c.h.b16 %v5648
        %v5946 = vunpack.c.l.b16 %v5649
        %v5947 = vunpack.c.h.b16 %v5649
        %v5948 = vunpack.c.l.b16 %v5650
        %v5949 = vunpack.c.h.b16 %v5650
        %v5950 = vunpack.c.l.b16 %v5651
        %v5951 = vunpack.c.h.b16 %v5651
        %v5952 = vunpack.c.l.b16 %v5652
        %v5953 = vunpack.c.h.b16 %v5652
        %v5954 = vunpack.c.l.b16 %v5653
        %v5955 = vunpack.c.h.b16 %v5653
        %v5956 = vunpack.c.l.b16 %v5654
        %v5957 = vunpack.c.h.b16 %v5654
        %v5958 = vunpack.c.l.b16 %v5655
        %v5959 = vunpack.c.h.b16 %v5655
        %v5960 = vunpack.c.l.b16 %v5656
        %v5961 = vunpack.c.h.b16 %v5656
        %v5962 = vunpack.c.l.b16 %v5657
        %v5963 = vunpack.c.h.b16 %v5657
        %v5964 = vunpack.c.l.b16 %v5658
        %v5965 = vunpack.c.h.b16 %v5658
        %v5966 = vunpack.c.l.b16 %v5659
        %v5967 = vunpack.c.h.b16 %v5659
        %v5968 = vunpack.c.l.b16 %v5660
        %v5969 = vunpack.c.h.b16 %v5660
        %v5970 = vunpack.c.l.b16 %v5661
        %v5971 = vunpack.c.h.b16 %v5661
        %v5972 = vunpack.c.l.b16 %v5662
        %v5973 = vunpack.c.h.b16 %v5662
        %v5974 = vunpack.c.l.b16 %v5663
        %v5975 = vunpack.c.h.b16 %v5663
        %v5976 = vunpack.c.l.b16 %v5664
        %v5977 = vunpack.c.h.b16 %v5664
        %v5978 = vunpack.c.l.b16 %v5665
        %v5979 = vunpack.c.h.b16 %v5665
        %v5980 = vunpack.c.l.b16 %v5666
        %v5981 = vunpack.c.h.b16 %v5666
        %v5982 = vunpack.c.l.b16 %v5667
        %v5983 = vunpack.c.h.b16 %v5667
        %v5984 = vunpack.c.l.b16 %v5668
        %v5985 = vunpack.c.h.b16 %v5668
        %v5986 = vunpack.c.l.b16 %v5669
        %v5987 = vunpack.c.h.b16 %v5669
        %v5988 = vunpack.c.l.b16 %v5670
        %v5989 = vunpack.c.h.b16 %v5670
        %v5990 = vunpack.c.l.b16 %v5671
        %v5991 = vunpack.c.h.b16 %v5671
        %v5992 = vunpack.c.l.b16 %v5672
        %v5993 = vunpack.c.h.b16 %v5672
        %v5994 = vunpack.c.l.b16 %v5673
        %v5995 = vunpack.c.h.b16 %v5673
        %v5996 = vunpack.c.l.b16 %v5674
        %v5997 = vunpack.c.h.b16 %v5674
        %v5998 = vunpack.c.l.b16 %v5675
        %v5999 = vunpack.c.h.b16 %v5675
        %v6000 = vunpack.c.l.b16 %v5676
        %v6001 = vunpack.c.h.b16 %v5676
        %v6002 = vunpack.c.l.b16 %v5677
        %v6003 = vunpack.c.h.b16 %v5677
        %v6004 = vunpack.c.l.b16 %v5678
        %v6005 = vunpack.c.h.b16 %v5678
        %v6006 = vunpack.c.l.b16 %v5679
        %v6007 = vunpack.c.h.b16 %v5679
        %v6008 = vunpack.c.l.b16 %v5680
        %v6009 = vunpack.c.h.b16 %v5680
        %v6010 = vunpack.c.l.b16 %v5681
        %v6011 = vunpack.c.h.b16 %v5681
        %v6012 = vunpack.c.l.b16 %v5682
        %v6013 = vunpack.c.h.b16 %v5682
        %v6014 = vunpack.c.l.b16 %v5683
        %v6015 = vunpack.c.h.b16 %v5683
        %v6016 = vunpack.c.l.b16 %v5684
        %v6017 = vunpack.c.h.b16 %v5684
        %v6018 = vunpack.c.l.b16 %v5685
        %v6019 = vunpack.c.h.b16 %v5685
        %v6020 = vunpack.c.l.b16 %v5686
        %v6021 = vunpack.c.h.b16 %v5686
        %v6022 = vunpack.c.l.b16 %v5687
        %v6023 = vunpack.c.h.b16 %v5687
        %v6024 = vunpack.c.l.b16 %v5688
        %v6025 = vunpack.c.h.b16 %v5688
        %v6026 = vunpack.c.l.b16 %v5689
        %v6027 = vunpack.c.h.b16 %v5689
        %v6028 = vunpack.c.l.b16 %v5690
        %v6029 = vunpack.c.h.b16 %v5690
        %v6030 = vunpack.c.l.b16 %v5691
        %v6031 = vunpack.c.h.b16 %v5691
        %v6032 = vunpack.c.l.b16 %v5692
        %v6033 = vunpack.c.h.b16 %v5692
        %v6034 = vunpack.c.l.b16 %v5693
        %v6035 = vunpack.c.h.b16 %v5693
        %v6036 = vunpack.c.l.b16 %v5694
        %v6037 = vunpack.c.h.b16 %v5694
        %v6038 = vunpack.c.l.b16 %v5695
        %v6039 = vunpack.c.h.b16 %v5695
        %v6040 = vunpack.c.l.b16 %v5696
        %v6041 = vunpack.c.h.b16 %v5696
        %v6042 = vunpack.c.l.b16 %v5697
        %v6043 = vunpack.c.h.b16 %v5697
        %v6044 = vunpack.c.l.b16 %v5698
        %v6045 = vunpack.c.h.b16 %v5698
        %v6046 = vunpack.c.l.b16 %v5699
        %v6047 = vunpack.c.h.b16 %v5699
        %v6048 = vunpack.c.l.b16 %v5700
        %v6049 = vunpack.c.h.b16 %v5700
        %v6050 = vunpack.c.l.b16 %v5701
        %v6051 = vunpack.c.h.b16 %v5701
        %v6052 = vunpack.c.l.b16 %v5702
        %v6053 = vunpack.c.h.b16 %v5702
        %v6054 = vunpack.c.l.b16 %v5703
        %v6055 = vunpack.c.h.b16 %v5703
        %v6056 = vunpack.c.l.b16 %v5704
        %v6057 = vunpack.c.h.b16 %v5704
        %v6058 = vunpack.c.l.b16 %v5705
        %v6059 = vunpack.c.h.b16 %v5705
        %v6060 = vunpack.c.l.b16 %v5706
        %v6061 = vunpack.c.h.b16 %v5706
        %v6062 = vunpack.c.l.b16 %v5707
        %v6063 = vunpack.c.h.b16 %v5707
        %v6064 = vunpack.c.l.b16 %v5708
        %v6065 = vunpack.c.h.b16 %v5708
        %v6066 = vunpack.c.l.b16 %v5709
        %v6067 = vunpack.c.h.b16 %v5709
        %v6068 = vunpack.c.l.b16 %v5710
        %v6069 = vunpack.c.h.b16 %v5710
        %v6070 = vunpack.c.l.b16 %v5711
        %v6071 = vunpack.c.h.b16 %v5711
        %v6072 = vunpack.c.l.b16 %v5712
        %v6073 = vunpack.c.h.b16 %v5712
        %v6074 = vunpack.c.l.b16 %v5713
        %v6075 = vunpack.c.h.b16 %v5713
        %v6076 = vunpack.c.l.b16 %v5714
        %v6077 = vunpack.c.h.b16 %v5714
        %v6078 = vunpack.c.l.b16 %v5715
        %v6079 = vunpack.c.h.b16 %v5715
        %v6080 = vunpack.c.l.b16 %v5716
        %v6081 = vunpack.c.h.b16 %v5716
        %v6082 = vunpack.c.l.b16 %v5717
        %v6083 = vunpack.c.h.b16 %v5717
        %v6084 = vunpack.c.l.b16 %v5718
        %v6085 = vunpack.c.h.b16 %v5718
        %v6086 = vunpack.c.l.b16 %v5719
        %v6087 = vunpack.c.h.b16 %v5719
        %v6088 = vunpack.c.l.b16 %v5720
        %v6089 = vunpack.c.h.b16 %v5720
        %v6090 = vunpack.c.l.b16 %v5721
        %v6091 = vunpack.c.h.b16 %v5721
        %v6092 = vunpack.c.l.b16 %v5722
        %v6093 = vunpack.c.h.b16 %v5722
        %v6094 = vunpack.c.l.b16 %v5723
        %v6095 = vunpack.c.h.b16 %v5723
        %v6096 = vunpack.c.l.b16 %v5724
        %v6097 = vunpack.c.h.b16 %v5724
        %v6098 = vunpack.c.l.b16 %v5725
        %v6099 = vunpack.c.h.b16 %v5725
        %v6100 = vunpack.c.l.b16 %v5726
        %v6101 = vunpack.c.h.b16 %v5726
        %v6102 = vunpack.c.l.b16 %v5727
        %v6103 = vunpack.c.h.b16 %v5727
        %v6104 = vunpack.c.l.b16 %v5728
        %v6105 = vunpack.c.h.b16 %v5728
        %v6106 = vunpack.c.l.b16 %v5729
        %v6107 = vunpack.c.h.b16 %v5729
        %v6108 = vunpack.c.l.b16 %v5730
        %v6109 = vunpack.c.h.b16 %v5730
        %v6110 = vunpack.c.l.b16 %v5731
        %v6111 = vunpack.c.h.b16 %v5731
        %v6112 = vunpack.c.l.b16 %v5732
        %v6113 = vunpack.c.h.b16 %v5732
        %v6114 = vunpack.c.l.b16 %v5733
        %v6115 = vunpack.c.h.b16 %v5733
        %v6116 = vunpack.c.l.b16 %v5734
        %v6117 = vunpack.c.h.b16 %v5734
        %v6118 = vunpack.c.l.b16 %v5735
        %v6119 = vunpack.c.h.b16 %v5735
        %v6120 = vunpack.c.l.b16 %v5736
        %v6121 = vunpack.c.h.b16 %v5736
        %v6122 = vunpack.c.l.b16 %v5737
        %v6123 = vunpack.c.h.b16 %v5737
        %v6124 = vunpack.c.l.b16 %v5738
        %v6125 = vunpack.c.h.b16 %v5738
        %v6126 = vunpack.c.l.b16 %v5739
        %v6127 = vunpack.c.h.b16 %v5739
        %v6128 = vunpack.c.l.b16 %v5740
        %v6129 = vunpack.c.h.b16 %v5740
        %v6130 = vunpack.c.l.b16 %v5741
        %v6131 = vunpack.c.h.b16 %v5741
        %v6132 = vunpack.c.l.b16 %v5742
        %v6133 = vunpack.c.h.b16 %v5742
        %v6134 = vunpack.c.l.b16 %v5743
        %v6135 = vunpack.c.h.b16 %v5743
        %v6136 = vunpack.c.l.b16 %v5744
        %v6137 = vunpack.c.h.b16 %v5744
        %v6138 = vunpack.c.l.b16 %v5745
        %v6139 = vunpack.c.h.b16 %v5745
        %v6140 = vunpack.c.l.b16 %v5746
        %v6141 = vunpack.c.h.b16 %v5746
        %v6142 = vunpack.c.l.b16 %v5747
        %v6143 = vunpack.c.h.b16 %v5747
        %v6144 = vpack.c.b16 %v5890, %v5888
        %v6145 = vpack.c.b16 %v5891, %v5889
        %v6146 = vpack.c.b16 %v5894, %v5892
        %v6147 = vpack.c.b16 %v5895, %v5893
        %v6148 = vpack.c.b16 %v5898, %v5896
        %v6149 = vpack.c.b16 %v5899, %v5897
        %v6150 = vpack.c.b16 %v5902, %v5900
        %v6151 = vpack.c.b16 %v5903, %v5901
        %v6152 = vpack.c.b16 %v5906, %v5904
        %v6153 = vpack.c.b16 %v5907, %v5905
        %v6154 = vpack.c.b16 %v5910, %v5908
        %v6155 = vpack.c.b16 %v5911, %v5909
        %v6156 = vpack.c.b16 %v5914, %v5912
        %v6157 = vpack.c.b16 %v5915, %v5913
        %v6158 = vpack.c.b16 %v5918, %v5916
        %v6159 = vpack.c.b16 %v5919, %v5917
        %v6160 = vpack.c.b16 %v5922, %v5920
        %v6161 = vpack.c.b16 %v5923, %v5921
        %v6162 = vpack.c.b16 %v5926, %v5924
        %v6163 = vpack.c.b16 %v5927, %v5925
        %v6164 = vpack.c.b16 %v5930, %v5928
        %v6165 = vpack.c.b16 %v5931, %v5929
        %v6166 = vpack.c.b16 %v5934, %v5932
        %v6167 = vpack.c.b16 %v5935, %v5933
        %v6168 = vpack.c.b16 %v5938, %v5936
        %v6169 = vpack.c.b16 %v5939, %v5937
        %v6170 = vpack.c.b16 %v5942, %v5940
        %v6171 = vpack.c.b16 %v5943, %v5941
        %v6172 = vpack.c.b16 %v5946, %v5944
        %v6173 = vpack.c.b16 %v5947, %v5945
        %v6174 = vpack.c.b16 %v5950, %v5948
        %v6175 = vpack.c.b16 %v5951, %v5949
        %v6176 = vpack.c.b16 %v5954, %v5952
        %v6177 = vpack.c.b16 %v5955, %v5953
        %v6178 = vpack.c.b16 %v5958, %v5956
        %v6179 = vpack.c.b16 %v5959, %v5957
        %v6180 = vpack.c.b16 %v5962, %v5960
        %v6181 = vpack.c.b16 %v5963, %v5961
        %v6182 = vpack.c.b16 %v5966, %v5964
        %v6183 = vpack.c.b16 %v5967, %v5965
        %v6184 = vpack.c.b16 %v5970, %v5968
        %v6185 = vpack.c.b16 %v5971, %v5969
        %v6186 = vpack.c.b16 %v5974, %v5972
        %v6187 = vpack.c.b16 %v5975, %v5973
        %v6188 = vpack.c.b16 %v5978, %v5976
        %v6189 = vpack.c.b16 %v5979, %v5977
        %v6190 = vpack.c.b16 %v5982, %v5980
        %v6191 = vpack.c.b16 %v5983, %v5981
        %v6192 = vpack.c.b16 %v5986, %v5984
        %v6193 = vpack.c.b16 %v5987, %v5985
        %v6194 = vpack.c.b16 %v5990, %v5988
        %v6195 = vpack.c.b16 %v5991, %v5989
        %v6196 = vpack.c.b16 %v5994, %v5992
        %v6197 = vpack.c.b16 %v5995, %v5993
        %v6198 = vpack.c.b16 %v5998, %v5996
        %v6199 = vpack.c.b16 %v5999, %v5997
        %v6200 = vpack.c.b16 %v6002, %v6000
        %v6201 = vpack.c.b16 %v6003, %v6001
        %v6202 = vpack.c.b16 %v6006, %v6004
        %v6203 = vpack.c.b16 %v6007, %v6005
        %v6204 = vpack.c.b16 %v6010, %v6008
        %v6205 = vpack.c.b16 %v6011, %v6009
        %v6206 = vpack.c.b16 %v6014, %v6012
        %v6207 = vpack.c.b16 %v6015, %v6013
        %v6208 = vpack.c.b16 %v6018, %v6016
        %v6209 = vpack.c.b16 %v6019, %v6017
        %v6210 = vpack.c.b16 %v6022, %v6020
        %v6211 = vpack.c.b16 %v6023, %v6021
        %v6212 = vpack.c.b16 %v6026, %v6024
        %v6213 = vpack.c.b16 %v6027, %v6025
        %v6214 = vpack.c.b16 %v6030, %v6028
        %v6215 = vpack.c.b16 %v6031, %v6029
        %v6216 = vpack.c.b16 %v6034, %v6032
        %v6217 = vpack.c.b16 %v6035, %v6033
        %v6218 = vpack.c.b16 %v6038, %v6036
        %v6219 = vpack.c.b16 %v6039, %v6037
        %v6220 = vpack.c.b16 %v6042, %v6040
        %v6221 = vpack.c.b16 %v6043, %v6041
        %v6222 = vpack.c.b16 %v6046, %v6044
        %v6223 = vpack.c.b16 %v6047, %v6045
        %v6224 = vpack.c.b16 %v6050, %v6048
        %v6225 = vpack.c.b16 %v6051, %v6049
        %v6226 = vpack.c.b16 %v6054, %v6052
        %v6227 = vpack.c.b16 %v6055, %v6053
        %v6228 = vpack.c.b16 %v6058, %v6056
        %v6229 = vpack.c.b16 %v6059, %v6057
        %v6230 = vpack.c.b16 %v6062, %v6060
        %v6231 = vpack.c.b16 %v6063, %v6061
        %v6232 = vpack.c.b16 %v6066, %v6064
        %v6233 = vpack.c.b16 %v6067, %v6065
        %v6234 = vpack.c.b16 %v6070, %v6068
        %v6235 = vpack.c.b16 %v6071, %v6069
        %v6236 = vpack.c.b16 %v6074, %v6072
        %v6237 = vpack.c.b16 %v6075, %v6073
        %v6238 = vpack.c.b16 %v6078, %v6076
        %v6239 = vpack.c.b16 %v6079, %v6077
        %v6240 = vpack.c.b16 %v6082, %v6080
        %v6241 = vpack.c.b16 %v6083, %v6081
        %v6242 = vpack.c.b16 %v6086, %v6084
        %v6243 = vpack.c.b16 %v6087, %v6085
        %v6244 = vpack.c.b16 %v6090, %v6088
        %v6245 = vpack.c.b16 %v6091, %v6089
        %v6246 = vpack.c.b16 %v6094, %v6092
        %v6247 = vpack.c.b16 %v6095, %v6093
        %v6248 = vpack.c.b16 %v6098, %v6096
        %v6249 = vpack.c.b16 %v6099, %v6097
        %v6250 = vpack.c.b16 %v6102, %v6100
        %v6251 = vpack.c.b16 %v6103, %v6101
        %v6252 = vpack.c.b16 %v6106, %v6104
        %v6253 = vpack.c.b16 %v6107, %v6105
        %v6254 = vpack.c.b16 %v6110, %v6108
        %v6255 = vpack.c.b16 %v6111, %v6109
        %v6256 = vpack.c.b16 %v6114, %v6112
        %v6257 = vpack.c.b16 %v6115, %v6113
        %v6258 = vpack.c.b16 %v6118, %v6116
        %v6259 = vpack.c.b16 %v6119, %v6117
        %v6260 = vpack.c.b16 %v6122, %v6120
        %v6261 = vpack.c.b16 %v6123, %v6121
        %v6262 = vpack.c.b16 %v6126, %v6124
        %v6263 = vpack.c.b16 %v6127, %v6125
        %v6264 = vpack.c.b16 %v6130, %v6128
        %v6265 = vpack.c.b16 %v6131, %v6129
        %v6266 = vpack.c.b16 %v6134, %v6132
        %v6267 = vpack.c.b16 %v6135, %v6133
        %v6268 = vpack.c.b16 %v6138, %v6136
        %v6269 = vpack.c.b16 %v6139, %v6137
        %v6270 = vpack.c.b16 %v6142, %v6140
        %v6271 = vpack.c.b16 %v6143, %v6141
        %6400 = vmatprep.subr.bf16.mxu0 %v6145
        %6401 = vmatpush1.bf16.msra.mxu0 %v6144
        %6402 = vmatprep.subr.bf16.mxu0 %v6147
        %6403 = vmatpush1.bf16.msra.mxu0 %v6146
        %6404 = vmatprep.subr.bf16.mxu0 %v6149
        %6405 = vmatpush1.bf16.msra.mxu0 %v6148
        %6406 = vmatprep.subr.bf16.mxu0 %v6151
        %6407 = vmatpush1.bf16.msra.mxu0 %v6150
        %6408 = vmatprep.subr.bf16.mxu0 %v6153
        %6409 = vmatpush1.bf16.msra.mxu0 %v6152
        %6410 = vmatprep.subr.bf16.mxu0 %v6155
        %6411 = vmatpush1.bf16.msra.mxu0 %v6154
        %6412 = vmatprep.subr.bf16.mxu0 %v6157
        %6413 = vmatpush1.bf16.msra.mxu0 %v6156
        %6414 = vmatprep.subr.bf16.mxu0 %v6159
        %6415 = vmatpush1.bf16.msra.mxu0 %v6158
        %6416 = vmatprep.subr.bf16.mxu0 %v6161
        %6417 = vmatpush1.bf16.msra.mxu0 %v6160
        %6418 = vmatprep.subr.bf16.mxu0 %v6163
        %6419 = vmatpush1.bf16.msra.mxu0 %v6162
        %6420 = vmatprep.subr.bf16.mxu0 %v6165
        %6421 = vmatpush1.bf16.msra.mxu0 %v6164
        %6422 = vmatprep.subr.bf16.mxu0 %v6167
        %6423 = vmatpush1.bf16.msra.mxu0 %v6166
        %6424 = vmatprep.subr.bf16.mxu0 %v6169
        %6425 = vmatpush1.bf16.msra.mxu0 %v6168
        %6426 = vmatprep.subr.bf16.mxu0 %v6171
        %6427 = vmatpush1.bf16.msra.mxu0 %v6170
        %6428 = vmatprep.subr.bf16.mxu0 %v6173
        %6429 = vmatpush1.bf16.msra.mxu0 %v6172
        %6430 = vmatprep.subr.bf16.mxu0 %v6175
        %6431 = vmatpush1.bf16.msra.mxu0 %v6174
        %6432 = vmatprep.mubr.bf16.mxu0 %v5605
        %6433 = vmatmul.mubr.bf16.gmra.mrb[0].mxu0 %v5604
        %v6434 = vpop.f32.mrb[0].mxu0
        %v6435 = vadd.f32 %v5753, %v6434
        %v6436 = vpop.f32.mrb[0].mxu0
        %v6437 = vadd.f32 %v5757, %v6436
        %v6438 = vpop.f32.mrb[0].mxu0
        %v6439 = vadd.f32 %v5753, %v6438
        %v6440 = vpop.f32.mrb[0].mxu0
        %v6441 = vadd.f32 %v5757, %v6440
        %6442 = vmatprep.mubr.bf16.mxu0 %v5613
        %6443 = vmatmul.mubr.bf16.gmra.mrb[0].mxu0 %v5612
        %v6444 = vpop.f32.mrb[0].mxu0
        %v6445 = vadd.f32 %v5753, %v6444
        %v6446 = vpop.f32.mrb[0].mxu0
        %v6447 = vadd.f32 %v5757, %v6446
        %v6448 = vpop.f32.mrb[0].mxu0
        %v6449 = vadd.f32 %v5753, %v6448
        %v6450 = vpop.f32.mrb[0].mxu0
        %v6451 = vadd.f32 %v5757, %v6450
        %6452 = vdwg.mxu0
        %6453 = vmatprep.subr.bf16.mxu0 %v6177
        %6454 = vmatpush1.bf16.msra.mxu0 %v6176
        %6455 = vmatprep.subr.bf16.mxu0 %v6179
        %6456 = vmatpush1.bf16.msra.mxu0 %v6178
        %6457 = vmatprep.subr.bf16.mxu0 %v6181
        %6458 = vmatpush1.bf16.msra.mxu0 %v6180
        %6459 = vmatprep.subr.bf16.mxu0 %v6183
        %6460 = vmatpush1.bf16.msra.mxu0 %v6182
        %6461 = vmatprep.subr.bf16.mxu0 %v6185
        %6462 = vmatpush1.bf16.msra.mxu0 %v6184
        %6463 = vmatprep.subr.bf16.mxu0 %v6187
        %6464 = vmatpush1.bf16.msra.mxu0 %v6186
        %6465 = vmatprep.subr.bf16.mxu0 %v6189
        %6466 = vmatpush1.bf16.msra.mxu0 %v6188
        %6467 = vmatprep.subr.bf16.mxu0 %v6191
        %6468 = vmatpush1.bf16.msra.mxu0 %v6190
        %6469 = vmatprep.subr.bf16.mxu0 %v6193
        %6470 = vmatpush1.bf16.msra.mxu0 %v6192
        %6471 = vmatprep.subr.bf16.mxu0 %v6195
        %6472 = vmatpush1.bf16.msra.mxu0 %v6194
        %6473 = vmatprep.subr.bf16.mxu0 %v6197
        %6474 = vmatpush1.bf16.msra.mxu0 %v6196
        %6475 = vmatprep.subr.bf16.mxu0 %v6199
        %6476 = vmatpush1.bf16.msra.mxu0 %v6198
        %6477 = vmatprep.subr.bf16.mxu0 %v6201
        %6478 = vmatpush1.bf16.msra.mxu0 %v6200
        %6479 = vmatprep.subr.bf16.mxu0 %v6203
        %6480 = vmatpush1.bf16.msra.mxu0 %v6202
        %6481 = vmatprep.subr.bf16.mxu0 %v6205
        %6482 = vmatpush1.bf16.msra.mxu0 %v6204
        %6483 = vmatprep.subr.bf16.mxu0 %v6207
        %6484 = vmatpush1.bf16.msra.mxu0 %v6206
        %6485 = vmatprep.mubr.bf16.mxu0 %v5607
        %6486 = vmatmul.mubr.bf16.gmra.mrb[0].mxu0 %v5606
        %v6487 = vpop.f32.mrb[0].mxu0
        %v6488 = vadd.f32 %v6435, %v6487
        %v6489 = vpop.f32.mrb[0].mxu0
        %v6490 = vadd.f32 %v6437, %v6489
        %v6491 = vpop.f32.mrb[0].mxu0
        %v6492 = vadd.f32 %v6439, %v6491
        %v6493 = vpop.f32.mrb[0].mxu0
        %v6494 = vadd.f32 %v6441, %v6493
        %6495 = vmatprep.mubr.bf16.mxu0 %v5615
        %6496 = vmatmul.mubr.bf16.gmra.mrb[0].mxu0 %v5614
        %v6497 = vpop.f32.mrb[0].mxu0
        %v6498 = vadd.f32 %v6445, %v6497
        %v6499 = vpop.f32.mrb[0].mxu0
        %v6500 = vadd.f32 %v6447, %v6499
        %v6501 = vpop.f32.mrb[0].mxu0
        %v6502 = vadd.f32 %v6449, %v6501
        %v6503 = vpop.f32.mrb[0].mxu0
        %v6504 = vadd.f32 %v6451, %v6503
        %6505 = vdwg.mxu0
        %6506 = vmatprep.subr.bf16.mxu0 %v6209
        %6507 = vmatpush1.bf16.msra.mxu0 %v6208
        %6508 = vmatprep.subr.bf16.mxu0 %v6211
        %6509 = vmatpush1.bf16.msra.mxu0 %v6210
        %6510 = vmatprep.subr.bf16.mxu0 %v6213
        %6511 = vmatpush1.bf16.msra.mxu0 %v6212
        %6512 = vmatprep.subr.bf16.mxu0 %v6215
        %6513 = vmatpush1.bf16.msra.mxu0 %v6214
        %6514 = vmatprep.subr.bf16.mxu0 %v6217
        %6515 = vmatpush1.bf16.msra.mxu0 %v6216
        %6516 = vmatprep.subr.bf16.mxu0 %v6219
        %6517 = vmatpush1.bf16.msra.mxu0 %v6218
        %6518 = vmatprep.subr.bf16.mxu0 %v6221
        %6519 = vmatpush1.bf16.msra.mxu0 %v6220
        %6520 = vmatprep.subr.bf16.mxu0 %v6223
        %6521 = vmatpush1.bf16.msra.mxu0 %v6222
        %6522 = vmatprep.subr.bf16.mxu0 %v6225
        %6523 = vmatpush1.bf16.msra.mxu0 %v6224
        %6524 = vmatprep.subr.bf16.mxu0 %v6227
        %6525 = vmatpush1.bf16.msra.mxu0 %v6226
        %6526 = vmatprep.subr.bf16.mxu0 %v6229
        %6527 = vmatpush1.bf16.msra.mxu0 %v6228
        %6528 = vmatprep.subr.bf16.mxu0 %v6231
        %6529 = vmatpush1.bf16.msra.mxu0 %v6230
        %6530 = vmatprep.subr.bf16.mxu0 %v6233
        %6531 = vmatpush1.bf16.msra.mxu0 %v6232
        %6532 = vmatprep.subr.bf16.mxu0 %v6235
        %6533 = vmatpush1.bf16.msra.mxu0 %v6234
        %6534 = vmatprep.subr.bf16.mxu0 %v6237
        %6535 = vmatpush1.bf16.msra.mxu0 %v6236
        %6536 = vmatprep.subr.bf16.mxu0 %v6239
        %6537 = vmatpush1.bf16.msra.mxu0 %v6238
        %6538 = vmatprep.mubr.bf16.mxu0 %v5609
        %6539 = vmatmul.mubr.bf16.gmra.mrb[0].mxu0 %v5608
        %v6540 = vpop.f32.mrb[0].mxu0
        %v6541 = vadd.f32 %v6488, %v6540
        %v6542 = vpop.f32.mrb[0].mxu0
        %v6543 = vadd.f32 %v6490, %v6542
        %v6544 = vpop.f32.mrb[0].mxu0
        %v6545 = vadd.f32 %v6492, %v6544
        %v6546 = vpop.f32.mrb[0].mxu0
        %v6547 = vadd.f32 %v6494, %v6546
        %6548 = vmatprep.mubr.bf16.mxu0 %v5617
        %6549 = vmatmul.mubr.bf16.gmra.mrb[0].mxu0 %v5616
        %v6550 = vpop.f32.mrb[0].mxu0
        %v6551 = vadd.f32 %v6498, %v6550
        %v6552 = vpop.f32.mrb[0].mxu0
        %v6553 = vadd.f32 %v6500, %v6552
        %v6554 = vpop.f32.mrb[0].mxu0
        %v6555 = vadd.f32 %v6502, %v6554
        %v6556 = vpop.f32.mrb[0].mxu0
        %v6557 = vadd.f32 %v6504, %v6556
        %6558 = vdwg.mxu0
        %6559 = vmatprep.subr.bf16.mxu0 %v6241
        %6560 = vmatpush1.bf16.msra.mxu0 %v6240
        %6561 = vmatprep.subr.bf16.mxu0 %v6243
        %6562 = vmatpush1.bf16.msra.mxu0 %v6242
        %6563 = vmatprep.subr.bf16.mxu0 %v6245
        %6564 = vmatpush1.bf16.msra.mxu0 %v6244
        %6565 = vmatprep.subr.bf16.mxu0 %v6247
        %6566 = vmatpush1.bf16.msra.mxu0 %v6246
        %6567 = vmatprep.subr.bf16.mxu0 %v6249
        %6568 = vmatpush1.bf16.msra.mxu0 %v6248
        %6569 = vmatprep.subr.bf16.mxu0 %v6251
        %6570 = vmatpush1.bf16.msra.mxu0 %v6250
        %6571 = vmatprep.subr.bf16.mxu0 %v6253
        %6572 = vmatpush1.bf16.msra.mxu0 %v6252
        %6573 = vmatprep.subr.bf16.mxu0 %v6255
        %6574 = vmatpush1.bf16.msra.mxu0 %v6254
        %6575 = vmatprep.subr.bf16.mxu0 %v6257
        %6576 = vmatpush1.bf16.msra.mxu0 %v6256
        %6577 = vmatprep.subr.bf16.mxu0 %v6259
        %6578 = vmatpush1.bf16.msra.mxu0 %v6258
        %6579 = vmatprep.subr.bf16.mxu0 %v6261
        %6580 = vmatpush1.bf16.msra.mxu0 %v6260
        %6581 = vmatprep.subr.bf16.mxu0 %v6263
        %6582 = vmatpush1.bf16.msra.mxu0 %v6262
        %6583 = vmatprep.subr.bf16.mxu0 %v6265
        %6584 = vmatpush1.bf16.msra.mxu0 %v6264
        %6585 = vmatprep.subr.bf16.mxu0 %v6267
        %6586 = vmatpush1.bf16.msra.mxu0 %v6266
        %6587 = vmatprep.subr.bf16.mxu0 %v6269
        %6588 = vmatpush1.bf16.msra.mxu0 %v6268
        %6589 = vmatprep.subr.bf16.mxu0 %v6271
        %6590 = vmatpush1.bf16.msra.mxu0 %v6270
        %6591 = vmatprep.mubr.bf16.mxu0 %v5611
        %6592 = vmatmul.mubr.bf16.gmra.mrb[0].mxu0 %v5610
        %v6593 = vpop.f32.mrb[0].mxu0
        %v6594 = vadd.f32 %v6541, %v6593
        %v6595 = vpop.f32.mrb[0].mxu0
        %v6596 = vadd.f32 %v6543, %v6595
        %v6597 = vpop.f32.mrb[0].mxu0
        %v6598 = vadd.f32 %v6545, %v6597
        %v6599 = vpop.f32.mrb[0].mxu0
        %v6600 = vadd.f32 %v6547, %v6599
        %6601 = vmatprep.mubr.bf16.mxu0 %v5619
        %6602 = vmatmul.mubr.bf16.gmra.mrb[0].mxu0 %v5618
        %v6603 = vpop.f32.mrb[0].mxu0
        %v6604 = vadd.f32 %v6551, %v6603
        %v6605 = vpop.f32.mrb[0].mxu0
        %v6606 = vadd.f32 %v6553, %v6605
        %v6607 = vpop.f32.mrb[0].mxu0
        %v6608 = vadd.f32 %v6555, %v6607
        %v6609 = vpop.f32.mrb[0].mxu0
        %v6610 = vadd.f32 %v6557, %v6609
        %6611 = vdwg.mxu0
        %v6612 = vadd.f32 %v6594, %v4282
        %v6613 = vadd.f32 %v6596, %v4283
        %v6614 = vadd.f32 %v6598, %v4284
        %v6615 = vadd.f32 %v6600, %v4285
        %v6616 = vadd.f32 %v6604, %v4286
        %v6617 = vadd.f32 %v6606, %v4287
        %v6618 = vadd.f32 %v6608, %v4288
        %v6619 = vadd.f32 %v6610, %v4289
        %v6620 = vld [vmem:[%s858] sm:$0x3]
        %v6621 = vld [vmem:[%s867] sm:$0x3]
        %v6622 = vadd.f32 %v6612, %v6613
        %6623 = vadd.xlane.f32.xlu0 %v6622
        %v6624 = vpop.xlane.xlu0 %6623
        %v6625 = vadd.f32 %v6614, %v6615
        %6626 = vadd.xlane.f32.xlu0 %v6625
        %v6627 = vpop.xlane.xlu0 %6626
        %v6628 = vadd.f32 %v6616, %v6617
        %6629 = vadd.xlane.f32.xlu0 %v6628
        %v6630 = vpop.xlane.xlu0 %6629
        %v6631 = vadd.f32 %v6618, %v6619
        %6632 = vadd.xlane.f32.xlu0 %v6631
        %v6633 = vpop.xlane.xlu0 %6632
        %v6634 = vmul.f32 %v6624, %v4199
        %v6635 = vmul.f32 %v6627, %v4199
        %v6636 = vmul.f32 %v6630, %v4199
        %v6637 = vmul.f32 %v6633, %v4199
        %v6638 = vsub.f32 %v6612, %v6634
        %v6639 = vsub.f32 %v6613, %v6634
        %v6640 = vsub.f32 %v6614, %v6635
        %v6641 = vsub.f32 %v6615, %v6635
        %v6642 = vsub.f32 %v6616, %v6636
        %v6643 = vsub.f32 %v6617, %v6636
        %v6644 = vsub.f32 %v6618, %v6637
        %v6645 = vsub.f32 %v6619, %v6637
        %v6646 = vmul.f32 %v6638, %v6638
        %v6647 = vmul.f32 %v6639, %v6639
        %v6648 = vmul.f32 %v6640, %v6640
        %v6649 = vmul.f32 %v6641, %v6641
        %v6650 = vmul.f32 %v6642, %v6642
        %v6651 = vmul.f32 %v6643, %v6643
        %v6652 = vmul.f32 %v6644, %v6644
        %v6653 = vmul.f32 %v6645, %v6645
        %v6654 = vadd.f32 %v6646, %v6647
        %6655 = vadd.xlane.f32.xlu0 %v6654
        %v6656 = vpop.xlane.xlu0 %6655
        %v6657 = vadd.f32 %v6648, %v6649
        %6658 = vadd.xlane.f32.xlu0 %v6657
        %v6659 = vpop.xlane.xlu0 %6658
        %v6660 = vadd.f32 %v6650, %v6651
        %6661 = vadd.xlane.f32.xlu0 %v6660
        %v6662 = vpop.xlane.xlu0 %6661
        %v6663 = vadd.f32 %v6652, %v6653
        %6664 = vadd.xlane.f32.xlu0 %v6663
        %v6665 = vpop.xlane.xlu0 %6664
        %v6666 = vmul.f32 %v6656, %v4199
        %v6667 = vmul.f32 %v6659, %v4199
        %v6668 = vmul.f32 %v6662, %v4199
        %v6669 = vmul.f32 %v6665, %v4199
        %v6670 = vadd.f32 %v6666, 1e-12
        %v6671 = vadd.f32 %v6667, 1e-12
        %v6672 = vadd.f32 %v6668, 1e-12
        %v6673 = vadd.f32 %v6669, 1e-12
        %v6674 = vrsqrt.pop %v6670
        %v6675 = vrsqrt.pop %v6671
        %v6676 = vrsqrt.pop %v6672
        %v6677 = vrsqrt.pop %v6673
        %v6678 = vmul.f32 %v6638, %v6674
        %v6679 = vmul.f32 %v6639, %v6674
        %v6680 = vmul.f32 %v6640, %v6675
        %v6681 = vmul.f32 %v6641, %v6675
        %v6682 = vmul.f32 %v6642, %v6676
        %v6683 = vmul.f32 %v6643, %v6676
        %v6684 = vmul.f32 %v6644, %v6677
        %v6685 = vmul.f32 %v6645, %v6677
        %v6687 = vlaneseq
        %v6688 = vshrl.u32 %v6687, 7
        %v6689 = vsub.s32 0, %v6688
        %v6690 = vrot.slane %v6620, %v6689
        %v6691 = vlaneseq
        %v6692 = vshrl.u32 %v6691, 7
        %v6693 = vsub.s32 1, %v6692
        %v6694 = vrot.slane %v6620, %v6693
        %v6697 = vmul.f32 %v6678, %v6690
        %v6698 = vmul.f32 %v6679, %v6694
        %v6699 = vmul.f32 %v6680, %v6690
        %v6700 = vmul.f32 %v6681, %v6694
        %v6701 = vmul.f32 %v6682, %v6690
        %v6702 = vmul.f32 %v6683, %v6694
        %v6703 = vmul.f32 %v6684, %v6690
        %v6704 = vmul.f32 %v6685, %v6694
        %v6706 = vlaneseq
        %v6707 = vshrl.u32 %v6706, 7
        %v6708 = vsub.s32 0, %v6707
        %v6709 = vrot.slane %v6621, %v6708
        %v6710 = vlaneseq
        %v6711 = vshrl.u32 %v6710, 7
        %v6712 = vsub.s32 1, %v6711
        %v6713 = vrot.slane %v6621, %v6712
        %v6716 = vadd.f32 %v6697, %v6709
        %v6717 = vadd.f32 %v6698, %v6713
        %v6718 = vadd.f32 %v6699, %v6709
        %v6719 = vadd.f32 %v6700, %v6713
        %v6720 = vadd.f32 %v6701, %v6709
        %v6721 = vadd.f32 %v6702, %v6713
        %v6722 = vadd.f32 %v6703, %v6709
        %v6723 = vadd.f32 %v6704, %v6713
        %6724 = vst [vmem:[#allocation2] sm:$0xff] %v6716
        %6725 = vst [vmem:[#allocation2 + $0x8] sm:$0xff] %v6717
        %6726 = vst [vmem:[#allocation2 + $0x10] sm:$0xff] %v6718
        %6727 = vst [vmem:[#allocation2 + $0x18] sm:$0xff] %v6719
        %6728 = vst [vmem:[#allocation2 + $0x20] sm:$0xff] %v6720
        %6729 = vst [vmem:[#allocation2 + $0x28] sm:$0xff] %v6721
        %6730 = vst [vmem:[#allocation2 + $0x30] sm:$0xff] %v6722
        %6731 = vst [vmem:[#allocation2 + $0x38] sm:$0xff] %v6723
        %6732 = vst [vmem:[%s17] sm:$0xff] %v6716
        %6733 = vst [vmem:[%s17 + $0x8] sm:$0xff] %v6717
        %6734 = vst [vmem:[%s17 + $0x10] sm:$0xff] %v6718
        %6735 = vst [vmem:[%s17 + $0x18] sm:$0xff] %v6719
        %6736 = vst [vmem:[%s17 + $0x20] sm:$0xff] %v6720
        %6737 = vst [vmem:[%s17 + $0x28] sm:$0xff] %v6721
        %6738 = vst [vmem:[%s17 + $0x30] sm:$0xff] %v6722
        %6739 = vst [vmem:[%s17 + $0x38] sm:$0xff] %v6723
        // Predicated region
        $region149: #{text_encoder_forward.1} parent=87 // pred_check
          %p6740 = pneg %p460
        $region150: #{text_encoder_forward.1} parent=87 // pred_check_branch
          %6742 = sbr.rel (%p6740) target = $region152
        $region151: #{text_encoder_forward.1} parent=87 // pred_region
          _
        $region152: #{text_encoder_forward.1} parent=87 // pred_fallthru
          _
        // Predicated region
        $region153: #{text_encoder_forward.1} parent=87 // pred_check
          %p6743 = pneg %p460
        $region154: #{text_encoder_forward.1} parent=87 // pred_check_branch
          %6745 = sbr.rel (%p6743) target = $region156
        $region155: #{text_encoder_forward.1} parent=87 // pred_region
          _
        $region156: #{text_encoder_forward.1} parent=87 // pred_fallthru
          _
      $region88: #{text_encoder_forward.1} parent=5 // pred_fallthru
        _
      %p6746 = scmp.le.s32.totalorder 2, %s25
      // Predicated region
      $region157: #{text_encoder_forward.1} parent=5 // pred_check
        %p6747 = pneg %p6746
      $region158: #{text_encoder_forward.1} parent=5 // pred_check_branch
        %6749 = sbr.rel (%p6747) target = $region160
      $region159: #{text_encoder_forward.1} parent=5 // pred_region
        %s6750 = ssub.s32 %s25, 2
      $region160: #{text_encoder_forward.1} parent=5 // pred_fallthru
        _
    $region6: #{text_encoder_forward.1} parent=1 // loop_footer
      %s29 = sadd.s32 1, %s25
    $region7: #{text_encoder_forward.1} parent=1 // loop_footer_branch
      %24 = sbr.rel target = $region3
    $region8: #{text_encoder_forward.1} parent=1 // loop_exit
      _
    %6751 = vsyncpa [#allocation6], 1
    %s6752 = scalar_lea.sflag [#allocation6], 1
    %6753 = vsyncpa %s6752, 1
    %6754 = vsyncpa [#allocation8], 1

</llo_original>
